<compile_context>
chip_gen: v6e
topology: v6e:2x2x1
jax: 0.10.0
libtpu: 0.0.40
codegen_flags: <defaults>
</compile_context>

<pallas_src>
import functools

import jax
import jax.numpy as jnp
from jax.experimental import pallas as pl
from jax.experimental.pallas import tpu as pltpu

_C1_P, _CMID_P, _C2_P = 8, 16, 24      # padded channel counts (multiples of 8)
_NUM_BLOCKS = 4
_KQ = 9 * _C1_P                        # stacked-tap width / bf16 slab width (72)


def _round_up(x, m):
    return ((x + m - 1) // m) * m


# ----------------------------------------------------------------------------
# Fused kernel: one grid step processes a lane-batched slab of B images.
# ----------------------------------------------------------------------------

def _bitgatenet_kernel(x_ref, masks_ref, pool_ref, exp_ref, wq_ref, wf_ref,
                       out_ref, taps_ref, *, width, bhw, q_off, f_off):
    masks = masks_ref[...]                      # [9, B*HW]  f32 border masks
    pool = pool_ref[...]                        # [B*HW, B]  f32 block-diag * 1/HW
    expand = exp_ref[...]                       # [B, B*HW]  f32 block-diag ones

    def wq(name):                               # static slice of bf16 weight slab
        r, nr, nc = q_off[name]
        return wq_ref[r:r + nr, 0:nc]

    def wf(name):                               # static slice of f32 slab
        r, nr, nc = f_off[name]
        return wf_ref[r:r + nr, 0:nc]

    def conv3x3_relu(xin, wname, bname):
        """3x3 / stride 1 / pad 1 conv on a [Cin, B*HW] slab.

        The 9 taps (lane rotations + border masks) are stacked into the VMEM
        scratch as one [9*Cin, B*HW] operand -> a single K=9*Cin MXU dot with
        one f32->bf16 cast per conv."""
        cin = xin.shape[0]
        k = 0
        for dh in (-1, 0, 1):
            for dw in (-1, 0, 1):
                off = dh * width + dw
                if off == 0:
                    piece = xin                 # centre tap: always in-bounds
                else:
                    # roll(x, s)[:, p] == x[:, (p - s) % bhw] == x[:, (p + off) % bhw]
                    piece = pltpu.roll(xin, shift=(-off) % bhw, axis=1) * masks[k:k + 1]
                taps_ref[k * cin:(k + 1) * cin, :] = piece
                k += 1
        taps = taps_ref[0:9 * cin, :].astype(jnp.bfloat16)   # cast once per conv
        y = jnp.dot(wq(wname), taps, preferred_element_type=jnp.float32)
        return jnp.maximum(y + wf(bname), 0.0)

    def sigmoid(y):
        # exp and the (approx) reciprocal both go to the EUP slot.
        return pl.reciprocal(1.0 + jnp.exp(-y), approx=True)

    def gate(pooled, w1, b1, w2, b2):
        z = jnp.maximum(
            jnp.dot(wf(w1), pooled, preferred_element_type=jnp.float32) + wf(b1),
            0.0)
        return sigmoid(jnp.dot(wf(w2), z, preferred_element_type=jnp.float32) + wf(b2))

    # conv1 + ReLU (single real input channel, K = 9)
    h = conv3x3_relu(x_ref[...], "conv1_w", "conv1_b")                   # [8, B*HW]

    # Dual-gate blocks: 3x3 expand conv (+folded BN, ReLU) -> two SE-style
    # channel gates off the per-image global-average pool -> 1x1 projection
    # (+folded BN) -> residual add + ReLU.  Gate math stays in f32.
    for i in range(1, _NUM_BLOCKS + 1):
        hid = conv3x3_relu(h, f"b{i}_wexp", f"b{i}_bexp")                # [16, B*HW]
        pooled = jnp.dot(hid, pool, preferred_element_type=jnp.float32)  # [16, B]
        g = (gate(pooled, f"b{i}_wa1", f"b{i}_ba1", f"b{i}_wa2", f"b{i}_ba2") *
             gate(pooled, f"b{i}_wb1", f"b{i}_bb1", f"b{i}_wb2", f"b{i}_bb2"))
        g_full = jnp.dot(g, expand, preferred_element_type=jnp.float32)  # [16, B*HW]
        gated = (hid * g_full).astype(jnp.bfloat16)
        proj = jnp.dot(wq(f"b{i}_wproj"), gated,
                       preferred_element_type=jnp.float32) + wf(f"b{i}_bproj")
        h = jnp.maximum(proj + h, 0.0)                                   # [8, B*HW]

    # conv2 + ReLU -> per-image global average pool -> fc
    h2 = conv3x3_relu(h, "conv2_w", "conv2_b")                           # [24, B*HW]
    pooled2 = jnp.dot(h2, pool, preferred_element_type=jnp.float32)      # [24, B]
    logits = (jnp.dot(wf("fc_w"), pooled2, preferred_element_type=jnp.float32)
              + wf("fc_b"))                                              # [NCP, B]
    out_ref[0] = logits


# ----------------------------------------------------------------------------
# Wrapper: layout plumbing + pallas_call
# ----------------------------------------------------------------------------

def _conv_shift_masks(H, W, B):
    """[9, B*H*W] f32: 1 where tap (dh,dw) of that pixel lies inside its image.

    The masks also zero every position where the circular lane-roll would
    cross an image boundary, so B images can be concatenated along lanes."""
    hh = jnp.arange(H * W, dtype=jnp.int32) // W
    ww = jnp.arange(H * W, dtype=jnp.int32) % W
    rows = []
    for dh in (-1, 0, 1):
        for dw in (-1, 0, 1):
            ok = ((hh + dh >= 0) & (hh + dh < H) &
                  (ww + dw >= 0) & (ww + dw < W))
            rows.append(ok.astype(jnp.float32))
    return jnp.tile(jnp.stack(rows, axis=0), (1, B))


def bitgatenet_forward(wq_slab, wf_slab, x_nchw, *, q_off, f_off, num_classes,
                       images_per_step=None):
    N, cin, H, W = x_nchw.shape
    assert cin == 1, "BitGateNet.conv1 expects a single input channel"
    HW = H * W
    assert HW % 128 == 0, "per-image spatial size must be a multiple of 128"

    if images_per_step is None:
        # Lane-batch as many images as possible per grid step; keep >= 2 grid
        # steps for larger batches (v7x has 2 TensorCores) and cap at 16
        # images/step to stay well inside v5e's 16 MiB scoped-VMEM default.
        images_per_step = N if N <= 8 else max(1, min(16, -(-N // 2)))
    B = max(1, min(images_per_step, N))
    G = -(-N // B)
    Np = G * B
    BHW = B * HW
    NCP = _round_up(num_classes, 8)

    # NCHW -> one lane-dense slab [1, Np*HW] (images concatenated along lanes
    # in batch order); pad the batch with zero images if needed.
    x = x_nchw.astype(jnp.float32).reshape(N, HW)
    if Np > N:
        x = jnp.pad(x, ((0, Np - N), (0, 0)))
    x2d = x.reshape(1, Np * HW)

    masks = _conv_shift_masks(H, W, B)                        # [9, B*HW]
    eye = jnp.eye(B, dtype=jnp.float32)
    pool = jnp.repeat(eye, HW, axis=0) * (1.0 / HW)           # [B*HW, B]
    expand = jnp.repeat(eye, HW, axis=1)                      # [B, B*HW]

    kernel = functools.partial(_bitgatenet_kernel, width=W, bhw=BHW,
                               q_off=q_off, f_off=f_off)

    out = pl.pallas_call(
        kernel,
        out_shape=jax.ShapeDtypeStruct((G, NCP, B), jnp.float32),
        grid=(G,),
        in_specs=[
            pl.BlockSpec((1, BHW), lambda n: (0, n)),         # per-step image slab
            pl.BlockSpec(masks.shape, lambda n: (0, 0)),      # constants: fetched once
            pl.BlockSpec(pool.shape, lambda n: (0, 0)),
            pl.BlockSpec(expand.shape, lambda n: (0, 0)),
            pl.BlockSpec(wq_slab.shape, lambda n: (0, 0)),
            pl.BlockSpec(wf_slab.shape, lambda n: (0, 0)),
        ],
        out_specs=pl.BlockSpec((1, NCP, B), lambda n: (n, 0, 0)),
        scratch_shapes=[pltpu.VMEM((_KQ, BHW), jnp.float32)],  # stacked conv taps
        compiler_params=pltpu.CompilerParams(
            dimension_semantics=("parallel",)),
    )(x2d, masks, pool, expand, wq_slab, wf_slab)

    # [G, NCP, B] -> [N, num_classes]
    return out.transpose(0, 2, 1).reshape(Np, NCP)[:N, :num_classes]


# ----------------------------------------------------------------------------
# Parameter setup: fake 8-bit quant, BN folding, padding, tap layout, packing.
# ----------------------------------------------------------------------------

def symquant8(w, quantscale=1.0, enabled=True):
    """Symmetric 8-bit fake quantization (per-tensor scale)."""
    if not enabled:
        return w
    s = jnp.maximum(jnp.max(jnp.abs(w)) * quantscale / 127.0, 1e-8)
    return jnp.clip(jnp.round(w / s), -127.0, 127.0) * s


def fold_bn_conv(w_oihw, b, bn, eps=1e-5):
    scale = bn["gamma"] / jnp.sqrt(bn["var"] + eps)
    return w_oihw * scale[:, None, None, None], (b - bn["mean"]) * scale + bn["beta"]


def fold_bn_lin(w_oc, b, bn, eps=1e-5):
    scale = bn["gamma"] / jnp.sqrt(bn["var"] + eps)
    return w_oc * scale[:, None], (b - bn["mean"]) * scale + bn["beta"]


def init_params(key, num_classes):
    keys = iter(jax.random.split(key, 96))
    nrm = lambda shape, s=0.1: s * jax.random.normal(next(keys), shape, dtype=jnp.float32)

    def bn(c):
        return dict(
            gamma=1.0 + 0.1 * jax.random.normal(next(keys), (c,)),
            beta=0.1 * jax.random.normal(next(keys), (c,)),
            mean=0.1 * jax.random.normal(next(keys), (c,)),
            var=1.0 + 0.1 * jnp.abs(jax.random.normal(next(keys), (c,))),
        )

    def block(cin, cmid, g1, g2, cout):
        return dict(
            w_exp=nrm((cmid, cin, 3, 3)), b_exp=nrm((cmid,)), bn1=bn(cmid),
            wa1=nrm((g1, cmid)), ba1=nrm((g1,)),
            wa2=nrm((cmid, g1)), ba2=nrm((cmid,)),
            wb1=nrm((g2, cmid)), bb1=nrm((g2,)),
            wb2=nrm((cmid, g2)), bb2=nrm((cmid,)),
            w_proj=nrm((cout, cmid)), b_proj=nrm((cout,)), bn2=bn(cout),
        )

    return dict(
        conv1_w=nrm((7, 1, 3, 3)), conv1_b=nrm((7,)),
        block1=block(7, 14, 3, 6, 7),
        block2=block(7, 14, 3, 6, 7),
        block3=block(7, 14, 2, 4, 7),
        block4=block(7, 14, 11, 22, 7),
        conv2_w=nrm((17, 7, 3, 3)), conv2_b=nrm((17,)),
        fc_w=nrm((num_classes, 17)), fc_b=nrm((num_classes,)),
    )


def _pack_rows(entries, width, dtype):
    """Pack named 2-D arrays (row counts multiples of 8) into one slab.

    Returns (slab [sum_rows, width], {name: (row_off, nrows, ncols)}) with the
    offsets as plain Python ints so the kernel can take free static slices."""
    offs, rows, r = {}, [], 0
    for name, a in entries:
        a = jnp.asarray(a, jnp.float32)
        nr, nc = a.shape
        assert nr % 8 == 0 and nc <= width, (name, a.shape)
        rows.append(jnp.pad(a, ((0, 0), (0, width - nc))))
        offs[name] = (r, nr, nc)
        r += nr
    return jnp.concatenate(rows, axis=0).astype(dtype), offs


def prepare_params(raw, num_classes, quantscale=1.0, q_en=True):
    """Quantize, fold BN, lay out conv taps, pad and pack into two slabs."""
    q = lambda w: symquant8(w, quantscale, q_en)
    ncp = _round_up(num_classes, 8)

    def conv_taps(w_oihw, cout_p, cin_p):
        co, ci = w_oihw.shape[:2]
        w = jnp.pad(w_oihw, ((0, cout_p - co), (0, cin_p - ci), (0, 0), (0, 0)))
        # [co_p, ci_p, 3, 3] -> [co_p, 3, 3, ci_p] -> [co_p, 9*ci_p]
        # column index = (3*kh + kw)*ci_p + ci, matching the kernel's tap rows.
        return jnp.transpose(w, (0, 2, 3, 1)).reshape(cout_p, 9 * cin_p)

    def mat(w, rp, cp):
        return jnp.pad(w, ((0, rp - w.shape[0]), (0, cp - w.shape[1])))

    def col(b, rp):
        return jnp.pad(b, (0, rp - b.shape[0])).reshape(rp, 1)

    q_entries = [("conv1_w", conv_taps(q(raw["conv1_w"]), _C1_P, 1))]
    f_entries = [("conv1_b", col(raw["conv1_b"], _C1_P))]

    for i, name in enumerate(("block1", "block2", "block3", "block4"), start=1):
        b = raw[name]
        g1p = _round_up(b["wa1"].shape[0], 8)
        g2p = _round_up(b["wb1"].shape[0], 8)
        w_exp, b_exp = fold_bn_conv(q(b["w_exp"]), b["b_exp"], b["bn1"])
        w_proj, b_proj = fold_bn_lin(q(b["w_proj"]), b["b_proj"], b["bn2"])
        q_entries += [
            (f"b{i}_wexp", conv_taps(w_exp, _CMID_P, _C1_P)),
            (f"b{i}_wproj", mat(w_proj, _C1_P, _CMID_P)),
        ]
        f_entries += [
            (f"b{i}_bexp", col(b_exp, _CMID_P)),
            (f"b{i}_bproj", col(b_proj, _C1_P)),
            (f"b{i}_wa1", mat(q(b["wa1"]), g1p, _CMID_P)),
            (f"b{i}_ba1", col(b["ba1"], g1p)),
            (f"b{i}_wa2", mat(q(b["wa2"]), _CMID_P, g1p)),
            (f"b{i}_ba2", col(b["ba2"], _CMID_P)),
            (f"b{i}_wb1", mat(q(b["wb1"]), g2p, _CMID_P)),
            (f"b{i}_bb1", col(b["bb1"], g2p)),
            (f"b{i}_wb2", mat(q(b["wb2"]), _CMID_P, g2p)),
            (f"b{i}_bb2", col(b["bb2"], _CMID_P)),
        ]

    q_entries.append(("conv2_w", conv_taps(q(raw["conv2_w"]), _C2_P, _C1_P)))
    f_entries += [
        ("conv2_b", col(raw["conv2_b"], _C2_P)),
        ("fc_w", mat(q(raw["fc_w"]), ncp, _C2_P)),
        ("fc_b", col(raw["fc_b"], ncp)),
    ]

    wq_slab, q_off = _pack_rows(q_entries, width=_KQ, dtype=jnp.bfloat16)
    wf_slab, f_off = _pack_rows(f_entries, width=_C2_P, dtype=jnp.float32)
    return wq_slab, wf_slab, q_off, f_off


# ----------------------------------------------------------------------------

if __name__ == "__main__":
    num_classes = 10
    key = jax.random.PRNGKey(0)
    k_param, k_in = jax.random.split(key)

    raw_params = init_params(k_param, num_classes)
    wq_slab, wf_slab, q_off, f_off = prepare_params(
        raw_params, num_classes, quantscale=1.0, q_en=True)

    # PyTorch-style NCHW input: BitGateNet's conv1 expects 1 input channel.
    x = jax.random.normal(k_in, (2, 1, 16, 16), dtype=jnp.float32)

    fwd = jax.jit(functools.partial(
        bitgatenet_forward, q_off=q_off, f_off=f_off, num_classes=num_classes))
    logits = jax.block_until_ready(fwd(wq_slab, wf_slab, x))

    assert logits.shape == (2, num_classes), logits.shape
    assert bool(jnp.all(jnp.isfinite(logits)))
    print("KERNEL_OK")
</pallas_src>

<mosaic_0001>
module attributes {stable_mosaic.version = 11 : i64} {
  func.func @_bitgatenet_kernel(%arg0: i32, %arg1: memref<1x512xf32, #tpu.memory_space<vmem>>, %arg2: memref<9x512xf32, #tpu.memory_space<vmem>>, %arg3: memref<512x2xf32, #tpu.memory_space<vmem>>, %arg4: memref<2x512xf32, #tpu.memory_space<vmem>>, %arg5: memref<128x72xbf16, #tpu.memory_space<vmem>>, %arg6: memref<592x24xf32, #tpu.memory_space<vmem>>, %arg7: memref<1x16x2xf32, #tpu.memory_space<vmem>>, %arg8: memref<72x512xf32, #tpu.memory_space<vmem>>) attributes {dimension_semantics = [#tpu.dimension_semantics<parallel>], iteration_bounds = array<i64: 1>, scalar_prefetch = 0 : i64, scratch_operands = 1 : i64, tpu.core_type = #tpu.core_type<tc>, window_params = [{transform_indices = @transform_0, window_bounds = array<i64: 1, 512>}, {pipeline_mode = #tpu.pipeline_mode<synchronous>, transform_indices = @transform_1, window_bounds = array<i64: 9, 512>}, {pipeline_mode = #tpu.pipeline_mode<synchronous>, transform_indices = @transform_2, window_bounds = array<i64: 512, 2>}, {pipeline_mode = #tpu.pipeline_mode<synchronous>, transform_indices = @transform_3, window_bounds = array<i64: 2, 512>}, {pipeline_mode = #tpu.pipeline_mode<synchronous>, transform_indices = @transform_4, window_bounds = array<i64: 128, 72>}, {pipeline_mode = #tpu.pipeline_mode<synchronous>, transform_indices = @transform_5, window_bounds = array<i64: 592, 24>}, {transform_indices = @transform_6, window_bounds = array<i64: 1, 16, 2>}]} {
    %c0 = arith.constant 0 : index
    %c0_0 = arith.constant 0 : index
    %0 = vector.load %arg2[%c0, %c0_0] : memref<9x512xf32, #tpu.memory_space<vmem>>, vector<9x512xf32>
    %c0_1 = arith.constant 0 : index
    %c0_2 = arith.constant 0 : index
    %1 = vector.load %arg3[%c0_1, %c0_2] : memref<512x2xf32, #tpu.memory_space<vmem>>, vector<512x2xf32>
    %c0_3 = arith.constant 0 : index
    %c0_4 = arith.constant 0 : index
    %2 = vector.load %arg4[%c0_3, %c0_4] : memref<2x512xf32, #tpu.memory_space<vmem>>, vector<2x512xf32>
    %c0_5 = arith.constant 0 : index
    %c0_6 = arith.constant 0 : index
    %3 = vector.load %arg1[%c0_5, %c0_6] : memref<1x512xf32, #tpu.memory_space<vmem>>, vector<1x512xf32>
    %c17_i32 = arith.constant 17 : i32
    %4 = tpu.dynamic_rotate %3 by %c17_i32 dim 1 : vector<1x512xf32>, i32 -> vector<1x512xf32>
    %5 = vector.extract_strided_slice %0 {offsets = [0, 0], sizes = [1, 512], strides = [1, 1]} : vector<9x512xf32> to vector<1x512xf32>
    %6 = arith.mulf %4, %5 : vector<1x512xf32>
    %c0_7 = arith.constant 0 : index
    %c0_8 = arith.constant 0 : index
    %7 = vector.load %arg8[%c0_7, %c0_8] : memref<72x512xf32, #tpu.memory_space<vmem>>, vector<1x512xf32>
    tpu.vector_store %arg8[%c0_7, %c0_8], %6 {strides = array<i32>} : memref<72x512xf32, #tpu.memory_space<vmem>>, vector<1x512xf32>,
    %c16_i32 = arith.constant 16 : i32
    %8 = tpu.dynamic_rotate %3 by %c16_i32 dim 1 : vector<1x512xf32>, i32 -> vector<1x512xf32>
    %9 = vector.extract_strided_slice %0 {offsets = [1, 0], sizes = [1, 512], strides = [1, 1]} : vector<9x512xf32> to vector<1x512xf32>
    %10 = arith.mulf %8, %9 : vector<1x512xf32>
    %c1 = arith.constant 1 : index
    %c0_9 = arith.constant 0 : index
    %11 = vector.load %arg8[%c1, %c0_9] : memref<72x512xf32, #tpu.memory_space<vmem>>, vector<1x512xf32>
    tpu.vector_store %arg8[%c1, %c0_9], %10 {strides = array<i32>} : memref<72x512xf32, #tpu.memory_space<vmem>>, vector<1x512xf32>,
    %c15_i32 = arith.constant 15 : i32
    %12 = tpu.dynamic_rotate %3 by %c15_i32 dim 1 : vector<1x512xf32>, i32 -> vector<1x512xf32>
    %13 = vector.extract_strided_slice %0 {offsets = [2, 0], sizes = [1, 512], strides = [1, 1]} : vector<9x512xf32> to vector<1x512xf32>
    %14 = arith.mulf %12, %13 : vector<1x512xf32>
    %c2 = arith.constant 2 : index
    %c0_10 = arith.constant 0 : index
    %15 = vector.load %arg8[%c2, %c0_10] : memref<72x512xf32, #tpu.memory_space<vmem>>, vector<1x512xf32>
    tpu.vector_store %arg8[%c2, %c0_10], %14 {strides = array<i32>} : memref<72x512xf32, #tpu.memory_space<vmem>>, vector<1x512xf32>,
    %c1_i32 = arith.constant 1 : i32
    %16 = tpu.dynamic_rotate %3 by %c1_i32 dim 1 : vector<1x512xf32>, i32 -> vector<1x512xf32>
    %17 = vector.extract_strided_slice %0 {offsets = [3, 0], sizes = [1, 512], strides = [1, 1]} : vector<9x512xf32> to vector<1x512xf32>
    %18 = arith.mulf %16, %17 : vector<1x512xf32>
    %c3 = arith.constant 3 : index
    %c0_11 = arith.constant 0 : index
    %19 = vector.load %arg8[%c3, %c0_11] : memref<72x512xf32, #tpu.memory_space<vmem>>, vector<1x512xf32>
    tpu.vector_store %arg8[%c3, %c0_11], %18 {strides = array<i32>} : memref<72x512xf32, #tpu.memory_space<vmem>>, vector<1x512xf32>,
    %c4 = arith.constant 4 : index
    %c0_12 = arith.constant 0 : index
    %20 = vector.load %arg8[%c4, %c0_12] : memref<72x512xf32, #tpu.memory_space<vmem>>, vector<1x512xf32>
    tpu.vector_store %arg8[%c4, %c0_12], %3 {strides = array<i32>} : memref<72x512xf32, #tpu.memory_space<vmem>>, vector<1x512xf32>,
    %c511_i32 = arith.constant 511 : i32
    %21 = tpu.dynamic_rotate %3 by %c511_i32 dim 1 : vector<1x512xf32>, i32 -> vector<1x512xf32>
    %22 = vector.extract_strided_slice %0 {offsets = [5, 0], sizes = [1, 512], strides = [1, 1]} : vector<9x512xf32> to vector<1x512xf32>
    %23 = arith.mulf %21, %22 : vector<1x512xf32>
    %c5 = arith.constant 5 : index
    %c0_13 = arith.constant 0 : index
    %24 = vector.load %arg8[%c5, %c0_13] : memref<72x512xf32, #tpu.memory_space<vmem>>, vector<1x512xf32>
    tpu.vector_store %arg8[%c5, %c0_13], %23 {strides = array<i32>} : memref<72x512xf32, #tpu.memory_space<vmem>>, vector<1x512xf32>,
    %c497_i32 = arith.constant 497 : i32
    %25 = tpu.dynamic_rotate %3 by %c497_i32 dim 1 : vector<1x512xf32>, i32 -> vector<1x512xf32>
    %26 = vector.extract_strided_slice %0 {offsets = [6, 0], sizes = [1, 512], strides = [1, 1]} : vector<9x512xf32> to vector<1x512xf32>
    %27 = arith.mulf %25, %26 : vector<1x512xf32>
    %c6 = arith.constant 6 : index
    %c0_14 = arith.constant 0 : index
    %28 = vector.load %arg8[%c6, %c0_14] : memref<72x512xf32, #tpu.memory_space<vmem>>, vector<1x512xf32>
    tpu.vector_store %arg8[%c6, %c0_14], %27 {strides = array<i32>} : memref<72x512xf32, #tpu.memory_space<vmem>>, vector<1x512xf32>,
    %c496_i32 = arith.constant 496 : i32
    %29 = tpu.dynamic_rotate %3 by %c496_i32 dim 1 : vector<1x512xf32>, i32 -> vector<1x512xf32>
    %30 = vector.extract_strided_slice %0 {offsets = [7, 0], sizes = [1, 512], strides = [1, 1]} : vector<9x512xf32> to vector<1x512xf32>
    %31 = arith.mulf %29, %30 : vector<1x512xf32>
    %c7 = arith.constant 7 : index
    %c0_15 = arith.constant 0 : index
    %32 = vector.load %arg8[%c7, %c0_15] : memref<72x512xf32, #tpu.memory_space<vmem>>, vector<1x512xf32>
    tpu.vector_store %arg8[%c7, %c0_15], %31 {strides = array<i32>} : memref<72x512xf32, #tpu.memory_space<vmem>>, vector<1x512xf32>,
    %c495_i32 = arith.constant 495 : i32
    %33 = tpu.dynamic_rotate %3 by %c495_i32 dim 1 : vector<1x512xf32>, i32 -> vector<1x512xf32>
    %34 = vector.extract_strided_slice %0 {offsets = [8, 0], sizes = [1, 512], strides = [1, 1]} : vector<9x512xf32> to vector<1x512xf32>
    %35 = arith.mulf %33, %34 : vector<1x512xf32>
    %c8 = arith.constant 8 : index
    %c0_16 = arith.constant 0 : index
    %36 = vector.load %arg8[%c8, %c0_16] : memref<72x512xf32, #tpu.memory_space<vmem>>, vector<1x512xf32>
    tpu.vector_store %arg8[%c8, %c0_16], %35 {strides = array<i32>} : memref<72x512xf32, #tpu.memory_space<vmem>>, vector<1x512xf32>,
    %c0_17 = arith.constant 0 : index
    %c0_18 = arith.constant 0 : index
    %37 = vector.load %arg8[%c0_17, %c0_18] : memref<72x512xf32, #tpu.memory_space<vmem>>, vector<9x512xf32>
    %38 = arith.truncf %37 : vector<9x512xf32> to vector<9x512xbf16>
    %c0_19 = arith.constant 0 : index
    %c0_20 = arith.constant 0 : index
    %39 = vector.load %arg5[%c0_19, %c0_20] : memref<128x72xbf16, #tpu.memory_space<vmem>>, vector<8x9xbf16>
    %cst = arith.constant dense<0.000000e+00> : vector<8x512xf32>
    %40 = tpu.matmul %39, %38, %cst {dimension_numbers = #tpu.dot_dimension_numbers<[1], [0], [0], [1], [0, 0, 1, 1], [], []>} : vector<8x9xbf16>, vector<9x512xbf16>, vector<8x512xf32> -> vector<8x512xf32>
    %c0_21 = arith.constant 0 : index
    %c0_22 = arith.constant 0 : index
    %41 = vector.load %arg6[%c0_21, %c0_22] : memref<592x24xf32, #tpu.memory_space<vmem>>, vector<8x1xf32>
    %42 = vector.broadcast %41 : vector<8x1xf32> to vector<8x512xf32>
    %43 = arith.addf %40, %42 : vector<8x512xf32>
    %cst_23 = arith.constant 0.000000e+00 : f32
    %44 = vector.broadcast %cst_23 : f32 to vector<8x512xf32>
    %45 = arith.maximumf %43, %44 : vector<8x512xf32>
    %c17_i32_24 = arith.constant 17 : i32
    %46 = tpu.dynamic_rotate %45 by %c17_i32_24 dim 1 : vector<8x512xf32>, i32 -> vector<8x512xf32>
    %47 = vector.extract_strided_slice %0 {offsets = [0, 0], sizes = [1, 512], strides = [1, 1]} : vector<9x512xf32> to vector<1x512xf32>
    %48 = vector.broadcast %47 : vector<1x512xf32> to vector<8x512xf32>
    %49 = arith.mulf %46, %48 : vector<8x512xf32>
    %c0_25 = arith.constant 0 : index
    %c0_26 = arith.constant 0 : index
    %50 = vector.load %arg8[%c0_25, %c0_26] : memref<72x512xf32, #tpu.memory_space<vmem>>, vector<8x512xf32>
    tpu.vector_store %arg8[%c0_25, %c0_26], %49 {strides = array<i32>} : memref<72x512xf32, #tpu.memory_space<vmem>>, vector<8x512xf32>,
    %c16_i32_27 = arith.constant 16 : i32
    %51 = tpu.dynamic_rotate %45 by %c16_i32_27 dim 1 : vector<8x512xf32>, i32 -> vector<8x512xf32>
    %52 = vector.extract_strided_slice %0 {offsets = [1, 0], sizes = [1, 512], strides = [1, 1]} : vector<9x512xf32> to vector<1x512xf32>
    %53 = vector.broadcast %52 : vector<1x512xf32> to vector<8x512xf32>
    %54 = arith.mulf %51, %53 : vector<8x512xf32>
    %c8_28 = arith.constant 8 : index
    %c0_29 = arith.constant 0 : index
    %55 = vector.load %arg8[%c8_28, %c0_29] : memref<72x512xf32, #tpu.memory_space<vmem>>, vector<8x512xf32>
    tpu.vector_store %arg8[%c8_28, %c0_29], %54 {strides = array<i32>} : memref<72x512xf32, #tpu.memory_space<vmem>>, vector<8x512xf32>,
    %c15_i32_30 = arith.constant 15 : i32
    %56 = tpu.dynamic_rotate %45 by %c15_i32_30 dim 1 : vector<8x512xf32>, i32 -> vector<8x512xf32>
    %57 = vector.extract_strided_slice %0 {offsets = [2, 0], sizes = [1, 512], strides = [1, 1]} : vector<9x512xf32> to vector<1x512xf32>
    %58 = vector.broadcast %57 : vector<1x512xf32> to vector<8x512xf32>
    %59 = arith.mulf %56, %58 : vector<8x512xf32>
    %c16 = arith.constant 16 : index
    %c0_31 = arith.constant 0 : index
    %60 = vector.load %arg8[%c16, %c0_31] : memref<72x512xf32, #tpu.memory_space<vmem>>, vector<8x512xf32>
    tpu.vector_store %arg8[%c16, %c0_31], %59 {strides = array<i32>} : memref<72x512xf32, #tpu.memory_space<vmem>>, vector<8x512xf32>,
    %c1_i32_32 = arith.constant 1 : i32
    %61 = tpu.dynamic_rotate %45 by %c1_i32_32 dim 1 : vector<8x512xf32>, i32 -> vector<8x512xf32>
    %62 = vector.extract_strided_slice %0 {offsets = [3, 0], sizes = [1, 512], strides = [1, 1]} : vector<9x512xf32> to vector<1x512xf32>
    %63 = vector.broadcast %62 : vector<1x512xf32> to vector<8x512xf32>
    %64 = arith.mulf %61, %63 : vector<8x512xf32>
    %c24 = arith.constant 24 : index
    %c0_33 = arith.constant 0 : index
    %65 = vector.load %arg8[%c24, %c0_33] : memref<72x512xf32, #tpu.memory_space<vmem>>, vector<8x512xf32>
    tpu.vector_store %arg8[%c24, %c0_33], %64 {strides = array<i32>} : memref<72x512xf32, #tpu.memory_space<vmem>>, vector<8x512xf32>,
    %c32 = arith.constant 32 : index
    %c0_34 = arith.constant 0 : index
    %66 = vector.load %arg8[%c32, %c0_34] : memref<72x512xf32, #tpu.memory_space<vmem>>, vector<8x512xf32>
    tpu.vector_store %arg8[%c32, %c0_34], %45 {strides = array<i32>} : memref<72x512xf32, #tpu.memory_space<vmem>>, vector<8x512xf32>,
    %c511_i32_35 = arith.constant 511 : i32
    %67 = tpu.dynamic_rotate %45 by %c511_i32_35 dim 1 : vector<8x512xf32>, i32 -> vector<8x512xf32>
    %68 = vector.extract_strided_slice %0 {offsets = [5, 0], sizes = [1, 512], strides = [1, 1]} : vector<9x512xf32> to vector<1x512xf32>
    %69 = vector.broadcast %68 : vector<1x512xf32> to vector<8x512xf32>
    %70 = arith.mulf %67, %69 : vector<8x512xf32>
    %c40 = arith.constant 40 : index
    %c0_36 = arith.constant 0 : index
    %71 = vector.load %arg8[%c40, %c0_36] : memref<72x512xf32, #tpu.memory_space<vmem>>, vector<8x512xf32>
    tpu.vector_store %arg8[%c40, %c0_36], %70 {strides = array<i32>} : memref<72x512xf32, #tpu.memory_space<vmem>>, vector<8x512xf32>,
    %c497_i32_37 = arith.constant 497 : i32
    %72 = tpu.dynamic_rotate %45 by %c497_i32_37 dim 1 : vector<8x512xf32>, i32 -> vector<8x512xf32>
    %73 = vector.extract_strided_slice %0 {offsets = [6, 0], sizes = [1, 512], strides = [1, 1]} : vector<9x512xf32> to vector<1x512xf32>
    %74 = vector.broadcast %73 : vector<1x512xf32> to vector<8x512xf32>
    %75 = arith.mulf %72, %74 : vector<8x512xf32>
    %c48 = arith.constant 48 : index
    %c0_38 = arith.constant 0 : index
    %76 = vector.load %arg8[%c48, %c0_38] : memref<72x512xf32, #tpu.memory_space<vmem>>, vector<8x512xf32>
    tpu.vector_store %arg8[%c48, %c0_38], %75 {strides = array<i32>} : memref<72x512xf32, #tpu.memory_space<vmem>>, vector<8x512xf32>,
    %c496_i32_39 = arith.constant 496 : i32
    %77 = tpu.dynamic_rotate %45 by %c496_i32_39 dim 1 : vector<8x512xf32>, i32 -> vector<8x512xf32>
    %78 = vector.extract_strided_slice %0 {offsets = [7, 0], sizes = [1, 512], strides = [1, 1]} : vector<9x512xf32> to vector<1x512xf32>
    %79 = vector.broadcast %78 : vector<1x512xf32> to vector<8x512xf32>
    %80 = arith.mulf %77, %79 : vector<8x512xf32>
    %c56 = arith.constant 56 : index
    %c0_40 = arith.constant 0 : index
    %81 = vector.load %arg8[%c56, %c0_40] : memref<72x512xf32, #tpu.memory_space<vmem>>, vector<8x512xf32>
    tpu.vector_store %arg8[%c56, %c0_40], %80 {strides = array<i32>} : memref<72x512xf32, #tpu.memory_space<vmem>>, vector<8x512xf32>,
    %c495_i32_41 = arith.constant 495 : i32
    %82 = tpu.dynamic_rotate %45 by %c495_i32_41 dim 1 : vector<8x512xf32>, i32 -> vector<8x512xf32>
    %83 = vector.extract_strided_slice %0 {offsets = [8, 0], sizes = [1, 512], strides = [1, 1]} : vector<9x512xf32> to vector<1x512xf32>
    %84 = vector.broadcast %83 : vector<1x512xf32> to vector<8x512xf32>
    %85 = arith.mulf %82, %84 : vector<8x512xf32>
    %c64 = arith.constant 64 : index
    %c0_42 = arith.constant 0 : index
    %86 = vector.load %arg8[%c64, %c0_42] : memref<72x512xf32, #tpu.memory_space<vmem>>, vector<8x512xf32>
    tpu.vector_store %arg8[%c64, %c0_42], %85 {strides = array<i32>} : memref<72x512xf32, #tpu.memory_space<vmem>>, vector<8x512xf32>,
    %c0_43 = arith.constant 0 : index
    %c0_44 = arith.constant 0 : index
    %87 = vector.load %arg8[%c0_43, %c0_44] : memref<72x512xf32, #tpu.memory_space<vmem>>, vector<72x512xf32>
    %88 = arith.truncf %87 : vector<72x512xf32> to vector<72x512xbf16>
    %c8_45 = arith.constant 8 : index
    %c0_46 = arith.constant 0 : index
    %89 = vector.load %arg5[%c8_45, %c0_46] : memref<128x72xbf16, #tpu.memory_space<vmem>>, vector<16x72xbf16>
    %cst_47 = arith.constant dense<0.000000e+00> : vector<16x512xf32>
    %90 = tpu.matmul %89, %88, %cst_47 {dimension_numbers = #tpu.dot_dimension_numbers<[1], [0], [0], [1], [0, 0, 1, 1], [], []>} : vector<16x72xbf16>, vector<72x512xbf16>, vector<16x512xf32> -> vector<16x512xf32>
    %c8_48 = arith.constant 8 : index
    %c0_49 = arith.constant 0 : index
    %91 = vector.load %arg6[%c8_48, %c0_49] : memref<592x24xf32, #tpu.memory_space<vmem>>, vector<16x1xf32>
    %92 = vector.broadcast %91 : vector<16x1xf32> to vector<16x512xf32>
    %93 = arith.addf %90, %92 : vector<16x512xf32>
    %cst_50 = arith.constant 0.000000e+00 : f32
    %94 = vector.broadcast %cst_50 : f32 to vector<16x512xf32>
    %95 = arith.maximumf %93, %94 : vector<16x512xf32>
    %cst_51 = arith.constant dense<0.000000e+00> : vector<16x2xf32>
    %96 = tpu.matmul %95, %1, %cst_51 {dimension_numbers = #tpu.dot_dimension_numbers<[1], [0], [0], [1], [0, 0, 1, 1], [], []>} : vector<16x512xf32>, vector<512x2xf32>, vector<16x2xf32> -> vector<16x2xf32>
    %c32_52 = arith.constant 32 : index
    %c0_53 = arith.constant 0 : index
    %97 = vector.load %arg6[%c32_52, %c0_53] : memref<592x24xf32, #tpu.memory_space<vmem>>, vector<8x16xf32>
    %cst_54 = arith.constant dense<0.000000e+00> : vector<8x2xf32>
    %98 = tpu.matmul %97, %96, %cst_54 {dimension_numbers = #tpu.dot_dimension_numbers<[1], [0], [0], [1], [0, 0, 1, 1], [], []>} : vector<8x16xf32>, vector<16x2xf32>, vector<8x2xf32> -> vector<8x2xf32>
    %c40_55 = arith.constant 40 : index
    %c0_56 = arith.constant 0 : index
    %99 = vector.load %arg6[%c40_55, %c0_56] : memref<592x24xf32, #tpu.memory_space<vmem>>, vector<8x1xf32>
    %100 = vector.broadcast %99 : vector<8x1xf32> to vector<8x2xf32>
    %101 = arith.addf %98, %100 : vector<8x2xf32>
    %cst_57 = arith.constant 0.000000e+00 : f32
    %102 = vector.broadcast %cst_57 : f32 to vector<8x2xf32>
    %103 = arith.maximumf %101, %102 : vector<8x2xf32>
    %c48_58 = arith.constant 48 : index
    %c0_59 = arith.constant 0 : index
    %104 = vector.load %arg6[%c48_58, %c0_59] : memref<592x24xf32, #tpu.memory_space<vmem>>, vector<16x8xf32>
    %cst_60 = arith.constant dense<0.000000e+00> : vector<16x2xf32>
    %105 = tpu.matmul %104, %103, %cst_60 {dimension_numbers = #tpu.dot_dimension_numbers<[1], [0], [0], [1], [0, 0, 1, 1], [], []>} : vector<16x8xf32>, vector<8x2xf32>, vector<16x2xf32> -> vector<16x2xf32>
    %c64_61 = arith.constant 64 : index
    %c0_62 = arith.constant 0 : index
    %106 = vector.load %arg6[%c64_61, %c0_62] : memref<592x24xf32, #tpu.memory_space<vmem>>, vector<16x1xf32>
    %107 = vector.broadcast %106 : vector<16x1xf32> to vector<16x2xf32>
    %108 = arith.addf %105, %107 : vector<16x2xf32>
    %cst_63 = arith.constant 0.000000e+00 : f32
    %109 = vector.broadcast %cst_63 : f32 to vector<16x2xf32>
    %110 = arith.subf %109, %108 : vector<16x2xf32>
    %111 = math.exp %110 : vector<16x2xf32>
    %cst_64 = arith.constant 1.000000e+00 : f32
    %112 = vector.broadcast %cst_64 : f32 to vector<16x2xf32>
    %113 = arith.addf %112, %111 : vector<16x2xf32>
    %114 = tpu.reciprocal %113 {approx = true} : vector<16x2xf32> -> vector<16x2xf32>
    %c80 = arith.constant 80 : index
    %c0_65 = arith.constant 0 : index
    %115 = vector.load %arg6[%c80, %c0_65] : memref<592x24xf32, #tpu.memory_space<vmem>>, vector<8x16xf32>
    %cst_66 = arith.constant dense<0.000000e+00> : vector<8x2xf32>
    %116 = tpu.matmul %115, %96, %cst_66 {dimension_numbers = #tpu.dot_dimension_numbers<[1], [0], [0], [1], [0, 0, 1, 1], [], []>} : vector<8x16xf32>, vector<16x2xf32>, vector<8x2xf32> -> vector<8x2xf32>
    %c88 = arith.constant 88 : index
    %c0_67 = arith.constant 0 : index
    %117 = vector.load %arg6[%c88, %c0_67] : memref<592x24xf32, #tpu.memory_space<vmem>>, vector<8x1xf32>
    %118 = vector.broadcast %117 : vector<8x1xf32> to vector<8x2xf32>
    %119 = arith.addf %116, %118 : vector<8x2xf32>
    %cst_68 = arith.constant 0.000000e+00 : f32
    %120 = vector.broadcast %cst_68 : f32 to vector<8x2xf32>
    %121 = arith.maximumf %119, %120 : vector<8x2xf32>
    %c96 = arith.constant 96 : index
    %c0_69 = arith.constant 0 : index
    %122 = vector.load %arg6[%c96, %c0_69] : memref<592x24xf32, #tpu.memory_space<vmem>>, vector<16x8xf32>
    %cst_70 = arith.constant dense<0.000000e+00> : vector<16x2xf32>
    %123 = tpu.matmul %122, %121, %cst_70 {dimension_numbers = #tpu.dot_dimension_numbers<[1], [0], [0], [1], [0, 0, 1, 1], [], []>} : vector<16x8xf32>, vector<8x2xf32>, vector<16x2xf32> -> vector<16x2xf32>
    %c112 = arith.constant 112 : index
    %c0_71 = arith.constant 0 : index
    %124 = vector.load %arg6[%c112, %c0_71] : memref<592x24xf32, #tpu.memory_space<vmem>>, vector<16x1xf32>
    %125 = vector.broadcast %124 : vector<16x1xf32> to vector<16x2xf32>
    %126 = arith.addf %123, %125 : vector<16x2xf32>
    %cst_72 = arith.constant 0.000000e+00 : f32
    %127 = vector.broadcast %cst_72 : f32 to vector<16x2xf32>
    %128 = arith.subf %127, %126 : vector<16x2xf32>
    %129 = math.exp %128 : vector<16x2xf32>
    %cst_73 = arith.constant 1.000000e+00 : f32
    %130 = vector.broadcast %cst_73 : f32 to vector<16x2xf32>
    %131 = arith.addf %130, %129 : vector<16x2xf32>
    %132 = tpu.reciprocal %131 {approx = true} : vector<16x2xf32> -> vector<16x2xf32>
    %133 = arith.mulf %114, %132 : vector<16x2xf32>
    %cst_74 = arith.constant dense<0.000000e+00> : vector<16x512xf32>
    %134 = tpu.matmul %133, %2, %cst_74 {dimension_numbers = #tpu.dot_dimension_numbers<[1], [0], [0], [1], [0, 0, 1, 1], [], []>} : vector<16x2xf32>, vector<2x512xf32>, vector<16x512xf32> -> vector<16x512xf32>
    %135 = arith.mulf %95, %134 : vector<16x512xf32>
    %136 = arith.truncf %135 : vector<16x512xf32> to vector<16x512xbf16>
    %c24_75 = arith.constant 24 : index
    %c0_76 = arith.constant 0 : index
    %137 = vector.load %arg5[%c24_75, %c0_76] : memref<128x72xbf16, #tpu.memory_space<vmem>>, vector<8x16xbf16>
    %cst_77 = arith.constant dense<0.000000e+00> : vector<8x512xf32>
    %138 = tpu.matmul %137, %136, %cst_77 {dimension_numbers = #tpu.dot_dimension_numbers<[1], [0], [0], [1], [0, 0, 1, 1], [], []>} : vector<8x16xbf16>, vector<16x512xbf16>, vector<8x512xf32> -> vector<8x512xf32>
    %c24_78 = arith.constant 24 : index
    %c0_79 = arith.constant 0 : index
    %139 = vector.load %arg6[%c24_78, %c0_79] : memref<592x24xf32, #tpu.memory_space<vmem>>, vector<8x1xf32>
    %140 = vector.broadcast %139 : vector<8x1xf32> to vector<8x512xf32>
    %141 = arith.addf %138, %140 : vector<8x512xf32>
    %142 = arith.addf %141, %45 : vector<8x512xf32>
    %cst_80 = arith.constant 0.000000e+00 : f32
    %143 = vector.broadcast %cst_80 : f32 to vector<8x512xf32>
    %144 = arith.maximumf %142, %143 : vector<8x512xf32>
    %c17_i32_81 = arith.constant 17 : i32
    %145 = tpu.dynamic_rotate %144 by %c17_i32_81 dim 1 : vector<8x512xf32>, i32 -> vector<8x512xf32>
    %146 = vector.extract_strided_slice %0 {offsets = [0, 0], sizes = [1, 512], strides = [1, 1]} : vector<9x512xf32> to vector<1x512xf32>
    %147 = vector.broadcast %146 : vector<1x512xf32> to vector<8x512xf32>
    %148 = arith.mulf %145, %147 : vector<8x512xf32>
    %c0_82 = arith.constant 0 : index
    %c0_83 = arith.constant 0 : index
    %149 = vector.load %arg8[%c0_82, %c0_83] : memref<72x512xf32, #tpu.memory_space<vmem>>, vector<8x512xf32>
    tpu.vector_store %arg8[%c0_82, %c0_83], %148 {strides = array<i32>} : memref<72x512xf32, #tpu.memory_space<vmem>>, vector<8x512xf32>,
    %c16_i32_84 = arith.constant 16 : i32
    %150 = tpu.dynamic_rotate %144 by %c16_i32_84 dim 1 : vector<8x512xf32>, i32 -> vector<8x512xf32>
    %151 = vector.extract_strided_slice %0 {offsets = [1, 0], sizes = [1, 512], strides = [1, 1]} : vector<9x512xf32> to vector<1x512xf32>
    %152 = vector.broadcast %151 : vector<1x512xf32> to vector<8x512xf32>
    %153 = arith.mulf %150, %152 : vector<8x512xf32>
    %c8_85 = arith.constant 8 : index
    %c0_86 = arith.constant 0 : index
    %154 = vector.load %arg8[%c8_85, %c0_86] : memref<72x512xf32, #tpu.memory_space<vmem>>, vector<8x512xf32>
    tpu.vector_store %arg8[%c8_85, %c0_86], %153 {strides = array<i32>} : memref<72x512xf32, #tpu.memory_space<vmem>>, vector<8x512xf32>,
    %c15_i32_87 = arith.constant 15 : i32
    %155 = tpu.dynamic_rotate %144 by %c15_i32_87 dim 1 : vector<8x512xf32>, i32 -> vector<8x512xf32>
    %156 = vector.extract_strided_slice %0 {offsets = [2, 0], sizes = [1, 512], strides = [1, 1]} : vector<9x512xf32> to vector<1x512xf32>
    %157 = vector.broadcast %156 : vector<1x512xf32> to vector<8x512xf32>
    %158 = arith.mulf %155, %157 : vector<8x512xf32>
    %c16_88 = arith.constant 16 : index
    %c0_89 = arith.constant 0 : index
    %159 = vector.load %arg8[%c16_88, %c0_89] : memref<72x512xf32, #tpu.memory_space<vmem>>, vector<8x512xf32>
    tpu.vector_store %arg8[%c16_88, %c0_89], %158 {strides = array<i32>} : memref<72x512xf32, #tpu.memory_space<vmem>>, vector<8x512xf32>,
    %c1_i32_90 = arith.constant 1 : i32
    %160 = tpu.dynamic_rotate %144 by %c1_i32_90 dim 1 : vector<8x512xf32>, i32 -> vector<8x512xf32>
    %161 = vector.extract_strided_slice %0 {offsets = [3, 0], sizes = [1, 512], strides = [1, 1]} : vector<9x512xf32> to vector<1x512xf32>
    %162 = vector.broadcast %161 : vector<1x512xf32> to vector<8x512xf32>
    %163 = arith.mulf %160, %162 : vector<8x512xf32>
    %c24_91 = arith.constant 24 : index
    %c0_92 = arith.constant 0 : index
    %164 = vector.load %arg8[%c24_91, %c0_92] : memref<72x512xf32, #tpu.memory_space<vmem>>, vector<8x512xf32>
    tpu.vector_store %arg8[%c24_91, %c0_92], %163 {strides = array<i32>} : memref<72x512xf32, #tpu.memory_space<vmem>>, vector<8x512xf32>,
    %c32_93 = arith.constant 32 : index
    %c0_94 = arith.constant 0 : index
    %165 = vector.load %arg8[%c32_93, %c0_94] : memref<72x512xf32, #tpu.memory_space<vmem>>, vector<8x512xf32>
    tpu.vector_store %arg8[%c32_93, %c0_94], %144 {strides = array<i32>} : memref<72x512xf32, #tpu.memory_space<vmem>>, vector<8x512xf32>,
    %c511_i32_95 = arith.constant 511 : i32
    %166 = tpu.dynamic_rotate %144 by %c511_i32_95 dim 1 : vector<8x512xf32>, i32 -> vector<8x512xf32>
    %167 = vector.extract_strided_slice %0 {offsets = [5, 0], sizes = [1, 512], strides = [1, 1]} : vector<9x512xf32> to vector<1x512xf32>
    %168 = vector.broadcast %167 : vector<1x512xf32> to vector<8x512xf32>
    %169 = arith.mulf %166, %168 : vector<8x512xf32>
    %c40_96 = arith.constant 40 : index
    %c0_97 = arith.constant 0 : index
    %170 = vector.load %arg8[%c40_96, %c0_97] : memref<72x512xf32, #tpu.memory_space<vmem>>, vector<8x512xf32>
    tpu.vector_store %arg8[%c40_96, %c0_97], %169 {strides = array<i32>} : memref<72x512xf32, #tpu.memory_space<vmem>>, vector<8x512xf32>,
    %c497_i32_98 = arith.constant 497 : i32
    %171 = tpu.dynamic_rotate %144 by %c497_i32_98 dim 1 : vector<8x512xf32>, i32 -> vector<8x512xf32>
    %172 = vector.extract_strided_slice %0 {offsets = [6, 0], sizes = [1, 512], strides = [1, 1]} : vector<9x512xf32> to vector<1x512xf32>
    %173 = vector.broadcast %172 : vector<1x512xf32> to vector<8x512xf32>
    %174 = arith.mulf %171, %173 : vector<8x512xf32>
    %c48_99 = arith.constant 48 : index
    %c0_100 = arith.constant 0 : index
    %175 = vector.load %arg8[%c48_99, %c0_100] : memref<72x512xf32, #tpu.memory_space<vmem>>, vector<8x512xf32>
    tpu.vector_store %arg8[%c48_99, %c0_100], %174 {strides = array<i32>} : memref<72x512xf32, #tpu.memory_space<vmem>>, vector<8x512xf32>,
    %c496_i32_101 = arith.constant 496 : i32
    %176 = tpu.dynamic_rotate %144 by %c496_i32_101 dim 1 : vector<8x512xf32>, i32 -> vector<8x512xf32>
    %177 = vector.extract_strided_slice %0 {offsets = [7, 0], sizes = [1, 512], strides = [1, 1]} : vector<9x512xf32> to vector<1x512xf32>
    %178 = vector.broadcast %177 : vector<1x512xf32> to vector<8x512xf32>
    %179 = arith.mulf %176, %178 : vector<8x512xf32>
    %c56_102 = arith.constant 56 : index
    %c0_103 = arith.constant 0 : index
    %180 = vector.load %arg8[%c56_102, %c0_103] : memref<72x512xf32, #tpu.memory_space<vmem>>, vector<8x512xf32>
    tpu.vector_store %arg8[%c56_102, %c0_103], %179 {strides = array<i32>} : memref<72x512xf32, #tpu.memory_space<vmem>>, vector<8x512xf32>,
    %c495_i32_104 = arith.constant 495 : i32
    %181 = tpu.dynamic_rotate %144 by %c495_i32_104 dim 1 : vector<8x512xf32>, i32 -> vector<8x512xf32>
    %182 = vector.extract_strided_slice %0 {offsets = [8, 0], sizes = [1, 512], strides = [1, 1]} : vector<9x512xf32> to vector<1x512xf32>
    %183 = vector.broadcast %182 : vector<1x512xf32> to vector<8x512xf32>
    %184 = arith.mulf %181, %183 : vector<8x512xf32>
    %c64_105 = arith.constant 64 : index
    %c0_106 = arith.constant 0 : index
    %185 = vector.load %arg8[%c64_105, %c0_106] : memref<72x512xf32, #tpu.memory_space<vmem>>, vector<8x512xf32>
    tpu.vector_store %arg8[%c64_105, %c0_106], %184 {strides = array<i32>} : memref<72x512xf32, #tpu.memory_space<vmem>>, vector<8x512xf32>,
    %c0_107 = arith.constant 0 : index
    %c0_108 = arith.constant 0 : index
    %186 = vector.load %arg8[%c0_107, %c0_108] : memref<72x512xf32, #tpu.memory_space<vmem>>, vector<72x512xf32>
    %187 = arith.truncf %186 : vector<72x512xf32> to vector<72x512xbf16>
    %c32_109 = arith.constant 32 : index
    %c0_110 = arith.constant 0 : index
    %188 = vector.load %arg5[%c32_109, %c0_110] : memref<128x72xbf16, #tpu.memory_space<vmem>>, vector<16x72xbf16>
    %cst_111 = arith.constant dense<0.000000e+00> : vector<16x512xf32>
    %189 = tpu.matmul %188, %187, %cst_111 {dimension_numbers = #tpu.dot_dimension_numbers<[1], [0], [0], [1], [0, 0, 1, 1], [], []>} : vector<16x72xbf16>, vector<72x512xbf16>, vector<16x512xf32> -> vector<16x512xf32>
    %c128 = arith.constant 128 : index
    %c0_112 = arith.constant 0 : index
    %190 = vector.load %arg6[%c128, %c0_112] : memref<592x24xf32, #tpu.memory_space<vmem>>, vector<16x1xf32>
    %191 = vector.broadcast %190 : vector<16x1xf32> to vector<16x512xf32>
    %192 = arith.addf %189, %191 : vector<16x512xf32>
    %cst_113 = arith.constant 0.000000e+00 : f32
    %193 = vector.broadcast %cst_113 : f32 to vector<16x512xf32>
    %194 = arith.maximumf %192, %193 : vector<16x512xf32>
    %cst_114 = arith.constant dense<0.000000e+00> : vector<16x2xf32>
    %195 = tpu.matmul %194, %1, %cst_114 {dimension_numbers = #tpu.dot_dimension_numbers<[1], [0], [0], [1], [0, 0, 1, 1], [], []>} : vector<16x512xf32>, vector<512x2xf32>, vector<16x2xf32> -> vector<16x2xf32>
    %c152 = arith.constant 152 : index
    %c0_115 = arith.constant 0 : index
    %196 = vector.load %arg6[%c152, %c0_115] : memref<592x24xf32, #tpu.memory_space<vmem>>, vector<8x16xf32>
    %cst_116 = arith.constant dense<0.000000e+00> : vector<8x2xf32>
    %197 = tpu.matmul %196, %195, %cst_116 {dimension_numbers = #tpu.dot_dimension_numbers<[1], [0], [0], [1], [0, 0, 1, 1], [], []>} : vector<8x16xf32>, vector<16x2xf32>, vector<8x2xf32> -> vector<8x2xf32>
    %c160 = arith.constant 160 : index
    %c0_117 = arith.constant 0 : index
    %198 = vector.load %arg6[%c160, %c0_117] : memref<592x24xf32, #tpu.memory_space<vmem>>, vector<8x1xf32>
    %199 = vector.broadcast %198 : vector<8x1xf32> to vector<8x2xf32>
    %200 = arith.addf %197, %199 : vector<8x2xf32>
    %cst_118 = arith.constant 0.000000e+00 : f32
    %201 = vector.broadcast %cst_118 : f32 to vector<8x2xf32>
    %202 = arith.maximumf %200, %201 : vector<8x2xf32>
    %c168 = arith.constant 168 : index
    %c0_119 = arith.constant 0 : index
    %203 = vector.load %arg6[%c168, %c0_119] : memref<592x24xf32, #tpu.memory_space<vmem>>, vector<16x8xf32>
    %cst_120 = arith.constant dense<0.000000e+00> : vector<16x2xf32>
    %204 = tpu.matmul %203, %202, %cst_120 {dimension_numbers = #tpu.dot_dimension_numbers<[1], [0], [0], [1], [0, 0, 1, 1], [], []>} : vector<16x8xf32>, vector<8x2xf32>, vector<16x2xf32> -> vector<16x2xf32>
    %c184 = arith.constant 184 : index
    %c0_121 = arith.constant 0 : index
    %205 = vector.load %arg6[%c184, %c0_121] : memref<592x24xf32, #tpu.memory_space<vmem>>, vector<16x1xf32>
    %206 = vector.broadcast %205 : vector<16x1xf32> to vector<16x2xf32>
    %207 = arith.addf %204, %206 : vector<16x2xf32>
    %cst_122 = arith.constant 0.000000e+00 : f32
    %208 = vector.broadcast %cst_122 : f32 to vector<16x2xf32>
    %209 = arith.subf %208, %207 : vector<16x2xf32>
    %210 = math.exp %209 : vector<16x2xf32>
    %cst_123 = arith.constant 1.000000e+00 : f32
    %211 = vector.broadcast %cst_123 : f32 to vector<16x2xf32>
    %212 = arith.addf %211, %210 : vector<16x2xf32>
    %213 = tpu.reciprocal %212 {approx = true} : vector<16x2xf32> -> vector<16x2xf32>
    %c200 = arith.constant 200 : index
    %c0_124 = arith.constant 0 : index
    %214 = vector.load %arg6[%c200, %c0_124] : memref<592x24xf32, #tpu.memory_space<vmem>>, vector<8x16xf32>
    %cst_125 = arith.constant dense<0.000000e+00> : vector<8x2xf32>
    %215 = tpu.matmul %214, %195, %cst_125 {dimension_numbers = #tpu.dot_dimension_numbers<[1], [0], [0], [1], [0, 0, 1, 1], [], []>} : vector<8x16xf32>, vector<16x2xf32>, vector<8x2xf32> -> vector<8x2xf32>
    %c208 = arith.constant 208 : index
    %c0_126 = arith.constant 0 : index
    %216 = vector.load %arg6[%c208, %c0_126] : memref<592x24xf32, #tpu.memory_space<vmem>>, vector<8x1xf32>
    %217 = vector.broadcast %216 : vector<8x1xf32> to vector<8x2xf32>
    %218 = arith.addf %215, %217 : vector<8x2xf32>
    %cst_127 = arith.constant 0.000000e+00 : f32
    %219 = vector.broadcast %cst_127 : f32 to vector<8x2xf32>
    %220 = arith.maximumf %218, %219 : vector<8x2xf32>
    %c216 = arith.constant 216 : index
    %c0_128 = arith.constant 0 : index
    %221 = vector.load %arg6[%c216, %c0_128] : memref<592x24xf32, #tpu.memory_space<vmem>>, vector<16x8xf32>
    %cst_129 = arith.constant dense<0.000000e+00> : vector<16x2xf32>
    %222 = tpu.matmul %221, %220, %cst_129 {dimension_numbers = #tpu.dot_dimension_numbers<[1], [0], [0], [1], [0, 0, 1, 1], [], []>} : vector<16x8xf32>, vector<8x2xf32>, vector<16x2xf32> -> vector<16x2xf32>
    %c232 = arith.constant 232 : index
    %c0_130 = arith.constant 0 : index
    %223 = vector.load %arg6[%c232, %c0_130] : memref<592x24xf32, #tpu.memory_space<vmem>>, vector<16x1xf32>
    %224 = vector.broadcast %223 : vector<16x1xf32> to vector<16x2xf32>
    %225 = arith.addf %222, %224 : vector<16x2xf32>
    %cst_131 = arith.constant 0.000000e+00 : f32
    %226 = vector.broadcast %cst_131 : f32 to vector<16x2xf32>
    %227 = arith.subf %226, %225 : vector<16x2xf32>
    %228 = math.exp %227 : vector<16x2xf32>
    %cst_132 = arith.constant 1.000000e+00 : f32
    %229 = vector.broadcast %cst_132 : f32 to vector<16x2xf32>
    %230 = arith.addf %229, %228 : vector<16x2xf32>
    %231 = tpu.reciprocal %230 {approx = true} : vector<16x2xf32> -> vector<16x2xf32>
    %232 = arith.mulf %213, %231 : vector<16x2xf32>
    %cst_133 = arith.constant dense<0.000000e+00> : vector<16x512xf32>
    %233 = tpu.matmul %232, %2, %cst_133 {dimension_numbers = #tpu.dot_dimension_numbers<[1], [0], [0], [1], [0, 0, 1, 1], [], []>} : vector<16x2xf32>, vector<2x512xf32>, vector<16x512xf32> -> vector<16x512xf32>
    %234 = arith.mulf %194, %233 : vector<16x512xf32>
    %235 = arith.truncf %234 : vector<16x512xf32> to vector<16x512xbf16>
    %c48_134 = arith.constant 48 : index
    %c0_135 = arith.constant 0 : index
    %236 = vector.load %arg5[%c48_134, %c0_135] : memref<128x72xbf16, #tpu.memory_space<vmem>>, vector<8x16xbf16>
    %cst_136 = arith.constant dense<0.000000e+00> : vector<8x512xf32>
    %237 = tpu.matmul %236, %235, %cst_136 {dimension_numbers = #tpu.dot_dimension_numbers<[1], [0], [0], [1], [0, 0, 1, 1], [], []>} : vector<8x16xbf16>, vector<16x512xbf16>, vector<8x512xf32> -> vector<8x512xf32>
    %c144 = arith.constant 144 : index
    %c0_137 = arith.constant 0 : index
    %238 = vector.load %arg6[%c144, %c0_137] : memref<592x24xf32, #tpu.memory_space<vmem>>, vector<8x1xf32>
    %239 = vector.broadcast %238 : vector<8x1xf32> to vector<8x512xf32>
    %240 = arith.addf %237, %239 : vector<8x512xf32>
    %241 = arith.addf %240, %144 : vector<8x512xf32>
    %cst_138 = arith.constant 0.000000e+00 : f32
    %242 = vector.broadcast %cst_138 : f32 to vector<8x512xf32>
    %243 = arith.maximumf %241, %242 : vector<8x512xf32>
    %c17_i32_139 = arith.constant 17 : i32
    %244 = tpu.dynamic_rotate %243 by %c17_i32_139 dim 1 : vector<8x512xf32>, i32 -> vector<8x512xf32>
    %245 = vector.extract_strided_slice %0 {offsets = [0, 0], sizes = [1, 512], strides = [1, 1]} : vector<9x512xf32> to vector<1x512xf32>
    %246 = vector.broadcast %245 : vector<1x512xf32> to vector<8x512xf32>
    %247 = arith.mulf %244, %246 : vector<8x512xf32>
    %c0_140 = arith.constant 0 : index
    %c0_141 = arith.constant 0 : index
    %248 = vector.load %arg8[%c0_140, %c0_141] : memref<72x512xf32, #tpu.memory_space<vmem>>, vector<8x512xf32>
    tpu.vector_store %arg8[%c0_140, %c0_141], %247 {strides = array<i32>} : memref<72x512xf32, #tpu.memory_space<vmem>>, vector<8x512xf32>,
    %c16_i32_142 = arith.constant 16 : i32
    %249 = tpu.dynamic_rotate %243 by %c16_i32_142 dim 1 : vector<8x512xf32>, i32 -> vector<8x512xf32>
    %250 = vector.extract_strided_slice %0 {offsets = [1, 0], sizes = [1, 512], strides = [1, 1]} : vector<9x512xf32> to vector<1x512xf32>
    %251 = vector.broadcast %250 : vector<1x512xf32> to vector<8x512xf32>
    %252 = arith.mulf %249, %251 : vector<8x512xf32>
    %c8_143 = arith.constant 8 : index
    %c0_144 = arith.constant 0 : index
    %253 = vector.load %arg8[%c8_143, %c0_144] : memref<72x512xf32, #tpu.memory_space<vmem>>, vector<8x512xf32>
    tpu.vector_store %arg8[%c8_143, %c0_144], %252 {strides = array<i32>} : memref<72x512xf32, #tpu.memory_space<vmem>>, vector<8x512xf32>,
    %c15_i32_145 = arith.constant 15 : i32
    %254 = tpu.dynamic_rotate %243 by %c15_i32_145 dim 1 : vector<8x512xf32>, i32 -> vector<8x512xf32>
    %255 = vector.extract_strided_slice %0 {offsets = [2, 0], sizes = [1, 512], strides = [1, 1]} : vector<9x512xf32> to vector<1x512xf32>
    %256 = vector.broadcast %255 : vector<1x512xf32> to vector<8x512xf32>
    %257 = arith.mulf %254, %256 : vector<8x512xf32>
    %c16_146 = arith.constant 16 : index
    %c0_147 = arith.constant 0 : index
    %258 = vector.load %arg8[%c16_146, %c0_147] : memref<72x512xf32, #tpu.memory_space<vmem>>, vector<8x512xf32>
    tpu.vector_store %arg8[%c16_146, %c0_147], %257 {strides = array<i32>} : memref<72x512xf32, #tpu.memory_space<vmem>>, vector<8x512xf32>,
    %c1_i32_148 = arith.constant 1 : i32
    %259 = tpu.dynamic_rotate %243 by %c1_i32_148 dim 1 : vector<8x512xf32>, i32 -> vector<8x512xf32>
    %260 = vector.extract_strided_slice %0 {offsets = [3, 0], sizes = [1, 512], strides = [1, 1]} : vector<9x512xf32> to vector<1x512xf32>
    %261 = vector.broadcast %260 : vector<1x512xf32> to vector<8x512xf32>
    %262 = arith.mulf %259, %261 : vector<8x512xf32>
    %c24_149 = arith.constant 24 : index
    %c0_150 = arith.constant 0 : index
    %263 = vector.load %arg8[%c24_149, %c0_150] : memref<72x512xf32, #tpu.memory_space<vmem>>, vector<8x512xf32>
    tpu.vector_store %arg8[%c24_149, %c0_150], %262 {strides = array<i32>} : memref<72x512xf32, #tpu.memory_space<vmem>>, vector<8x512xf32>,
    %c32_151 = arith.constant 32 : index
    %c0_152 = arith.constant 0 : index
    %264 = vector.load %arg8[%c32_151, %c0_152] : memref<72x512xf32, #tpu.memory_space<vmem>>, vector<8x512xf32>
    tpu.vector_store %arg8[%c32_151, %c0_152], %243 {strides = array<i32>} : memref<72x512xf32, #tpu.memory_space<vmem>>, vector<8x512xf32>,
    %c511_i32_153 = arith.constant 511 : i32
    %265 = tpu.dynamic_rotate %243 by %c511_i32_153 dim 1 : vector<8x512xf32>, i32 -> vector<8x512xf32>
    %266 = vector.extract_strided_slice %0 {offsets = [5, 0], sizes = [1, 512], strides = [1, 1]} : vector<9x512xf32> to vector<1x512xf32>
    %267 = vector.broadcast %266 : vector<1x512xf32> to vector<8x512xf32>
    %268 = arith.mulf %265, %267 : vector<8x512xf32>
    %c40_154 = arith.constant 40 : index
    %c0_155 = arith.constant 0 : index
    %269 = vector.load %arg8[%c40_154, %c0_155] : memref<72x512xf32, #tpu.memory_space<vmem>>, vector<8x512xf32>
    tpu.vector_store %arg8[%c40_154, %c0_155], %268 {strides = array<i32>} : memref<72x512xf32, #tpu.memory_space<vmem>>, vector<8x512xf32>,
    %c497_i32_156 = arith.constant 497 : i32
    %270 = tpu.dynamic_rotate %243 by %c497_i32_156 dim 1 : vector<8x512xf32>, i32 -> vector<8x512xf32>
    %271 = vector.extract_strided_slice %0 {offsets = [6, 0], sizes = [1, 512], strides = [1, 1]} : vector<9x512xf32> to vector<1x512xf32>
    %272 = vector.broadcast %271 : vector<1x512xf32> to vector<8x512xf32>
    %273 = arith.mulf %270, %272 : vector<8x512xf32>
    %c48_157 = arith.constant 48 : index
    %c0_158 = arith.constant 0 : index
    %274 = vector.load %arg8[%c48_157, %c0_158] : memref<72x512xf32, #tpu.memory_space<vmem>>, vector<8x512xf32>
    tpu.vector_store %arg8[%c48_157, %c0_158], %273 {strides = array<i32>} : memref<72x512xf32, #tpu.memory_space<vmem>>, vector<8x512xf32>,
    %c496_i32_159 = arith.constant 496 : i32
    %275 = tpu.dynamic_rotate %243 by %c496_i32_159 dim 1 : vector<8x512xf32>, i32 -> vector<8x512xf32>
    %276 = vector.extract_strided_slice %0 {offsets = [7, 0], sizes = [1, 512], strides = [1, 1]} : vector<9x512xf32> to vector<1x512xf32>
    %277 = vector.broadcast %276 : vector<1x512xf32> to vector<8x512xf32>
    %278 = arith.mulf %275, %277 : vector<8x512xf32>
    %c56_160 = arith.constant 56 : index
    %c0_161 = arith.constant 0 : index
    %279 = vector.load %arg8[%c56_160, %c0_161] : memref<72x512xf32, #tpu.memory_space<vmem>>, vector<8x512xf32>
    tpu.vector_store %arg8[%c56_160, %c0_161], %278 {strides = array<i32>} : memref<72x512xf32, #tpu.memory_space<vmem>>, vector<8x512xf32>,
    %c495_i32_162 = arith.constant 495 : i32
    %280 = tpu.dynamic_rotate %243 by %c495_i32_162 dim 1 : vector<8x512xf32>, i32 -> vector<8x512xf32>
    %281 = vector.extract_strided_slice %0 {offsets = [8, 0], sizes = [1, 512], strides = [1, 1]} : vector<9x512xf32> to vector<1x512xf32>
    %282 = vector.broadcast %281 : vector<1x512xf32> to vector<8x512xf32>
    %283 = arith.mulf %280, %282 : vector<8x512xf32>
    %c64_163 = arith.constant 64 : index
    %c0_164 = arith.constant 0 : index
    %284 = vector.load %arg8[%c64_163, %c0_164] : memref<72x512xf32, #tpu.memory_space<vmem>>, vector<8x512xf32>
    tpu.vector_store %arg8[%c64_163, %c0_164], %283 {strides = array<i32>} : memref<72x512xf32, #tpu.memory_space<vmem>>, vector<8x512xf32>,
    %c0_165 = arith.constant 0 : index
    %c0_166 = arith.constant 0 : index
    %285 = vector.load %arg8[%c0_165, %c0_166] : memref<72x512xf32, #tpu.memory_space<vmem>>, vector<72x512xf32>
    %286 = arith.truncf %285 : vector<72x512xf32> to vector<72x512xbf16>
    %c56_167 = arith.constant 56 : index
    %c0_168 = arith.constant 0 : index
    %287 = vector.load %arg5[%c56_167, %c0_168] : memref<128x72xbf16, #tpu.memory_space<vmem>>, vector<16x72xbf16>
    %cst_169 = arith.constant dense<0.000000e+00> : vector<16x512xf32>
    %288 = tpu.matmul %287, %286, %cst_169 {dimension_numbers = #tpu.dot_dimension_numbers<[1], [0], [0], [1], [0, 0, 1, 1], [], []>} : vector<16x72xbf16>, vector<72x512xbf16>, vector<16x512xf32> -> vector<16x512xf32>
    %c248 = arith.constant 248 : index
    %c0_170 = arith.constant 0 : index
    %289 = vector.load %arg6[%c248, %c0_170] : memref<592x24xf32, #tpu.memory_space<vmem>>, vector<16x1xf32>
    %290 = vector.broadcast %289 : vector<16x1xf32> to vector<16x512xf32>
    %291 = arith.addf %288, %290 : vector<16x512xf32>
    %cst_171 = arith.constant 0.000000e+00 : f32
    %292 = vector.broadcast %cst_171 : f32 to vector<16x512xf32>
    %293 = arith.maximumf %291, %292 : vector<16x512xf32>
    %cst_172 = arith.constant dense<0.000000e+00> : vector<16x2xf32>
    %294 = tpu.matmul %293, %1, %cst_172 {dimension_numbers = #tpu.dot_dimension_numbers<[1], [0], [0], [1], [0, 0, 1, 1], [], []>} : vector<16x512xf32>, vector<512x2xf32>, vector<16x2xf32> -> vector<16x2xf32>
    %c272 = arith.constant 272 : index
    %c0_173 = arith.constant 0 : index
    %295 = vector.load %arg6[%c272, %c0_173] : memref<592x24xf32, #tpu.memory_space<vmem>>, vector<8x16xf32>
    %cst_174 = arith.constant dense<0.000000e+00> : vector<8x2xf32>
    %296 = tpu.matmul %295, %294, %cst_174 {dimension_numbers = #tpu.dot_dimension_numbers<[1], [0], [0], [1], [0, 0, 1, 1], [], []>} : vector<8x16xf32>, vector<16x2xf32>, vector<8x2xf32> -> vector<8x2xf32>
    %c280 = arith.constant 280 : index
    %c0_175 = arith.constant 0 : index
    %297 = vector.load %arg6[%c280, %c0_175] : memref<592x24xf32, #tpu.memory_space<vmem>>, vector<8x1xf32>
    %298 = vector.broadcast %297 : vector<8x1xf32> to vector<8x2xf32>
    %299 = arith.addf %296, %298 : vector<8x2xf32>
    %cst_176 = arith.constant 0.000000e+00 : f32
    %300 = vector.broadcast %cst_176 : f32 to vector<8x2xf32>
    %301 = arith.maximumf %299, %300 : vector<8x2xf32>
    %c288 = arith.constant 288 : index
    %c0_177 = arith.constant 0 : index
    %302 = vector.load %arg6[%c288, %c0_177] : memref<592x24xf32, #tpu.memory_space<vmem>>, vector<16x8xf32>
    %cst_178 = arith.constant dense<0.000000e+00> : vector<16x2xf32>
    %303 = tpu.matmul %302, %301, %cst_178 {dimension_numbers = #tpu.dot_dimension_numbers<[1], [0], [0], [1], [0, 0, 1, 1], [], []>} : vector<16x8xf32>, vector<8x2xf32>, vector<16x2xf32> -> vector<16x2xf32>
    %c304 = arith.constant 304 : index
    %c0_179 = arith.constant 0 : index
    %304 = vector.load %arg6[%c304, %c0_179] : memref<592x24xf32, #tpu.memory_space<vmem>>, vector<16x1xf32>
    %305 = vector.broadcast %304 : vector<16x1xf32> to vector<16x2xf32>
    %306 = arith.addf %303, %305 : vector<16x2xf32>
    %cst_180 = arith.constant 0.000000e+00 : f32
    %307 = vector.broadcast %cst_180 : f32 to vector<16x2xf32>
    %308 = arith.subf %307, %306 : vector<16x2xf32>
    %309 = math.exp %308 : vector<16x2xf32>
    %cst_181 = arith.constant 1.000000e+00 : f32
    %310 = vector.broadcast %cst_181 : f32 to vector<16x2xf32>
    %311 = arith.addf %310, %309 : vector<16x2xf32>
    %312 = tpu.reciprocal %311 {approx = true} : vector<16x2xf32> -> vector<16x2xf32>
    %c320 = arith.constant 320 : index
    %c0_182 = arith.constant 0 : index
    %313 = vector.load %arg6[%c320, %c0_182] : memref<592x24xf32, #tpu.memory_space<vmem>>, vector<8x16xf32>
    %cst_183 = arith.constant dense<0.000000e+00> : vector<8x2xf32>
    %314 = tpu.matmul %313, %294, %cst_183 {dimension_numbers = #tpu.dot_dimension_numbers<[1], [0], [0], [1], [0, 0, 1, 1], [], []>} : vector<8x16xf32>, vector<16x2xf32>, vector<8x2xf32> -> vector<8x2xf32>
    %c328 = arith.constant 328 : index
    %c0_184 = arith.constant 0 : index
    %315 = vector.load %arg6[%c328, %c0_184] : memref<592x24xf32, #tpu.memory_space<vmem>>, vector<8x1xf32>
    %316 = vector.broadcast %315 : vector<8x1xf32> to vector<8x2xf32>
    %317 = arith.addf %314, %316 : vector<8x2xf32>
    %cst_185 = arith.constant 0.000000e+00 : f32
    %318 = vector.broadcast %cst_185 : f32 to vector<8x2xf32>
    %319 = arith.maximumf %317, %318 : vector<8x2xf32>
    %c336 = arith.constant 336 : index
    %c0_186 = arith.constant 0 : index
    %320 = vector.load %arg6[%c336, %c0_186] : memref<592x24xf32, #tpu.memory_space<vmem>>, vector<16x8xf32>
    %cst_187 = arith.constant dense<0.000000e+00> : vector<16x2xf32>
    %321 = tpu.matmul %320, %319, %cst_187 {dimension_numbers = #tpu.dot_dimension_numbers<[1], [0], [0], [1], [0, 0, 1, 1], [], []>} : vector<16x8xf32>, vector<8x2xf32>, vector<16x2xf32> -> vector<16x2xf32>
    %c352 = arith.constant 352 : index
    %c0_188 = arith.constant 0 : index
    %322 = vector.load %arg6[%c352, %c0_188] : memref<592x24xf32, #tpu.memory_space<vmem>>, vector<16x1xf32>
    %323 = vector.broadcast %322 : vector<16x1xf32> to vector<16x2xf32>
    %324 = arith.addf %321, %323 : vector<16x2xf32>
    %cst_189 = arith.constant 0.000000e+00 : f32
    %325 = vector.broadcast %cst_189 : f32 to vector<16x2xf32>
    %326 = arith.subf %325, %324 : vector<16x2xf32>
    %327 = math.exp %326 : vector<16x2xf32>
    %cst_190 = arith.constant 1.000000e+00 : f32
    %328 = vector.broadcast %cst_190 : f32 to vector<16x2xf32>
    %329 = arith.addf %328, %327 : vector<16x2xf32>
    %330 = tpu.reciprocal %329 {approx = true} : vector<16x2xf32> -> vector<16x2xf32>
    %331 = arith.mulf %312, %330 : vector<16x2xf32>
    %cst_191 = arith.constant dense<0.000000e+00> : vector<16x512xf32>
    %332 = tpu.matmul %331, %2, %cst_191 {dimension_numbers = #tpu.dot_dimension_numbers<[1], [0], [0], [1], [0, 0, 1, 1], [], []>} : vector<16x2xf32>, vector<2x512xf32>, vector<16x512xf32> -> vector<16x512xf32>
    %333 = arith.mulf %293, %332 : vector<16x512xf32>
    %334 = arith.truncf %333 : vector<16x512xf32> to vector<16x512xbf16>
    %c72 = arith.constant 72 : index
    %c0_192 = arith.constant 0 : index
    %335 = vector.load %arg5[%c72, %c0_192] : memref<128x72xbf16, #tpu.memory_space<vmem>>, vector<8x16xbf16>
    %cst_193 = arith.constant dense<0.000000e+00> : vector<8x512xf32>
    %336 = tpu.matmul %335, %334, %cst_193 {dimension_numbers = #tpu.dot_dimension_numbers<[1], [0], [0], [1], [0, 0, 1, 1], [], []>} : vector<8x16xbf16>, vector<16x512xbf16>, vector<8x512xf32> -> vector<8x512xf32>
    %c264 = arith.constant 264 : index
    %c0_194 = arith.constant 0 : index
    %337 = vector.load %arg6[%c264, %c0_194] : memref<592x24xf32, #tpu.memory_space<vmem>>, vector<8x1xf32>
    %338 = vector.broadcast %337 : vector<8x1xf32> to vector<8x512xf32>
    %339 = arith.addf %336, %338 : vector<8x512xf32>
    %340 = arith.addf %339, %243 : vector<8x512xf32>
    %cst_195 = arith.constant 0.000000e+00 : f32
    %341 = vector.broadcast %cst_195 : f32 to vector<8x512xf32>
    %342 = arith.maximumf %340, %341 : vector<8x512xf32>
    %c17_i32_196 = arith.constant 17 : i32
    %343 = tpu.dynamic_rotate %342 by %c17_i32_196 dim 1 : vector<8x512xf32>, i32 -> vector<8x512xf32>
    %344 = vector.extract_strided_slice %0 {offsets = [0, 0], sizes = [1, 512], strides = [1, 1]} : vector<9x512xf32> to vector<1x512xf32>
    %345 = vector.broadcast %344 : vector<1x512xf32> to vector<8x512xf32>
    %346 = arith.mulf %343, %345 : vector<8x512xf32>
    %c0_197 = arith.constant 0 : index
    %c0_198 = arith.constant 0 : index
    %347 = vector.load %arg8[%c0_197, %c0_198] : memref<72x512xf32, #tpu.memory_space<vmem>>, vector<8x512xf32>
    tpu.vector_store %arg8[%c0_197, %c0_198], %346 {strides = array<i32>} : memref<72x512xf32, #tpu.memory_space<vmem>>, vector<8x512xf32>,
    %c16_i32_199 = arith.constant 16 : i32
    %348 = tpu.dynamic_rotate %342 by %c16_i32_199 dim 1 : vector<8x512xf32>, i32 -> vector<8x512xf32>
    %349 = vector.extract_strided_slice %0 {offsets = [1, 0], sizes = [1, 512], strides = [1, 1]} : vector<9x512xf32> to vector<1x512xf32>
    %350 = vector.broadcast %349 : vector<1x512xf32> to vector<8x512xf32>
    %351 = arith.mulf %348, %350 : vector<8x512xf32>
    %c8_200 = arith.constant 8 : index
    %c0_201 = arith.constant 0 : index
    %352 = vector.load %arg8[%c8_200, %c0_201] : memref<72x512xf32, #tpu.memory_space<vmem>>, vector<8x512xf32>
    tpu.vector_store %arg8[%c8_200, %c0_201], %351 {strides = array<i32>} : memref<72x512xf32, #tpu.memory_space<vmem>>, vector<8x512xf32>,
    %c15_i32_202 = arith.constant 15 : i32
    %353 = tpu.dynamic_rotate %342 by %c15_i32_202 dim 1 : vector<8x512xf32>, i32 -> vector<8x512xf32>
    %354 = vector.extract_strided_slice %0 {offsets = [2, 0], sizes = [1, 512], strides = [1, 1]} : vector<9x512xf32> to vector<1x512xf32>
    %355 = vector.broadcast %354 : vector<1x512xf32> to vector<8x512xf32>
    %356 = arith.mulf %353, %355 : vector<8x512xf32>
    %c16_203 = arith.constant 16 : index
    %c0_204 = arith.constant 0 : index
    %357 = vector.load %arg8[%c16_203, %c0_204] : memref<72x512xf32, #tpu.memory_space<vmem>>, vector<8x512xf32>
    tpu.vector_store %arg8[%c16_203, %c0_204], %356 {strides = array<i32>} : memref<72x512xf32, #tpu.memory_space<vmem>>, vector<8x512xf32>,
    %c1_i32_205 = arith.constant 1 : i32
    %358 = tpu.dynamic_rotate %342 by %c1_i32_205 dim 1 : vector<8x512xf32>, i32 -> vector<8x512xf32>
    %359 = vector.extract_strided_slice %0 {offsets = [3, 0], sizes = [1, 512], strides = [1, 1]} : vector<9x512xf32> to vector<1x512xf32>
    %360 = vector.broadcast %359 : vector<1x512xf32> to vector<8x512xf32>
    %361 = arith.mulf %358, %360 : vector<8x512xf32>
    %c24_206 = arith.constant 24 : index
    %c0_207 = arith.constant 0 : index
    %362 = vector.load %arg8[%c24_206, %c0_207] : memref<72x512xf32, #tpu.memory_space<vmem>>, vector<8x512xf32>
    tpu.vector_store %arg8[%c24_206, %c0_207], %361 {strides = array<i32>} : memref<72x512xf32, #tpu.memory_space<vmem>>, vector<8x512xf32>,
    %c32_208 = arith.constant 32 : index
    %c0_209 = arith.constant 0 : index
    %363 = vector.load %arg8[%c32_208, %c0_209] : memref<72x512xf32, #tpu.memory_space<vmem>>, vector<8x512xf32>
    tpu.vector_store %arg8[%c32_208, %c0_209], %342 {strides = array<i32>} : memref<72x512xf32, #tpu.memory_space<vmem>>, vector<8x512xf32>,
    %c511_i32_210 = arith.constant 511 : i32
    %364 = tpu.dynamic_rotate %342 by %c511_i32_210 dim 1 : vector<8x512xf32>, i32 -> vector<8x512xf32>
    %365 = vector.extract_strided_slice %0 {offsets = [5, 0], sizes = [1, 512], strides = [1, 1]} : vector<9x512xf32> to vector<1x512xf32>
    %366 = vector.broadcast %365 : vector<1x512xf32> to vector<8x512xf32>
    %367 = arith.mulf %364, %366 : vector<8x512xf32>
    %c40_211 = arith.constant 40 : index
    %c0_212 = arith.constant 0 : index
    %368 = vector.load %arg8[%c40_211, %c0_212] : memref<72x512xf32, #tpu.memory_space<vmem>>, vector<8x512xf32>
    tpu.vector_store %arg8[%c40_211, %c0_212], %367 {strides = array<i32>} : memref<72x512xf32, #tpu.memory_space<vmem>>, vector<8x512xf32>,
    %c497_i32_213 = arith.constant 497 : i32
    %369 = tpu.dynamic_rotate %342 by %c497_i32_213 dim 1 : vector<8x512xf32>, i32 -> vector<8x512xf32>
    %370 = vector.extract_strided_slice %0 {offsets = [6, 0], sizes = [1, 512], strides = [1, 1]} : vector<9x512xf32> to vector<1x512xf32>
    %371 = vector.broadcast %370 : vector<1x512xf32> to vector<8x512xf32>
    %372 = arith.mulf %369, %371 : vector<8x512xf32>
    %c48_214 = arith.constant 48 : index
    %c0_215 = arith.constant 0 : index
    %373 = vector.load %arg8[%c48_214, %c0_215] : memref<72x512xf32, #tpu.memory_space<vmem>>, vector<8x512xf32>
    tpu.vector_store %arg8[%c48_214, %c0_215], %372 {strides = array<i32>} : memref<72x512xf32, #tpu.memory_space<vmem>>, vector<8x512xf32>,
    %c496_i32_216 = arith.constant 496 : i32
    %374 = tpu.dynamic_rotate %342 by %c496_i32_216 dim 1 : vector<8x512xf32>, i32 -> vector<8x512xf32>
    %375 = vector.extract_strided_slice %0 {offsets = [7, 0], sizes = [1, 512], strides = [1, 1]} : vector<9x512xf32> to vector<1x512xf32>
    %376 = vector.broadcast %375 : vector<1x512xf32> to vector<8x512xf32>
    %377 = arith.mulf %374, %376 : vector<8x512xf32>
    %c56_217 = arith.constant 56 : index
    %c0_218 = arith.constant 0 : index
    %378 = vector.load %arg8[%c56_217, %c0_218] : memref<72x512xf32, #tpu.memory_space<vmem>>, vector<8x512xf32>
    tpu.vector_store %arg8[%c56_217, %c0_218], %377 {strides = array<i32>} : memref<72x512xf32, #tpu.memory_space<vmem>>, vector<8x512xf32>,
    %c495_i32_219 = arith.constant 495 : i32
    %379 = tpu.dynamic_rotate %342 by %c495_i32_219 dim 1 : vector<8x512xf32>, i32 -> vector<8x512xf32>
    %380 = vector.extract_strided_slice %0 {offsets = [8, 0], sizes = [1, 512], strides = [1, 1]} : vector<9x512xf32> to vector<1x512xf32>
    %381 = vector.broadcast %380 : vector<1x512xf32> to vector<8x512xf32>
    %382 = arith.mulf %379, %381 : vector<8x512xf32>
    %c64_220 = arith.constant 64 : index
    %c0_221 = arith.constant 0 : index
    %383 = vector.load %arg8[%c64_220, %c0_221] : memref<72x512xf32, #tpu.memory_space<vmem>>, vector<8x512xf32>
    tpu.vector_store %arg8[%c64_220, %c0_221], %382 {strides = array<i32>} : memref<72x512xf32, #tpu.memory_space<vmem>>, vector<8x512xf32>,
    %c0_222 = arith.constant 0 : index
    %c0_223 = arith.constant 0 : index
    %384 = vector.load %arg8[%c0_222, %c0_223] : memref<72x512xf32, #tpu.memory_space<vmem>>, vector<72x512xf32>
    %385 = arith.truncf %384 : vector<72x512xf32> to vector<72x512xbf16>
    %c80_224 = arith.constant 80 : index
    %c0_225 = arith.constant 0 : index
    %386 = vector.load %arg5[%c80_224, %c0_225] : memref<128x72xbf16, #tpu.memory_space<vmem>>, vector<16x72xbf16>
    %cst_226 = arith.constant dense<0.000000e+00> : vector<16x512xf32>
    %387 = tpu.matmul %386, %385, %cst_226 {dimension_numbers = #tpu.dot_dimension_numbers<[1], [0], [0], [1], [0, 0, 1, 1], [], []>} : vector<16x72xbf16>, vector<72x512xbf16>, vector<16x512xf32> -> vector<16x512xf32>
    %c368 = arith.constant 368 : index
    %c0_227 = arith.constant 0 : index
    %388 = vector.load %arg6[%c368, %c0_227] : memref<592x24xf32, #tpu.memory_space<vmem>>, vector<16x1xf32>
    %389 = vector.broadcast %388 : vector<16x1xf32> to vector<16x512xf32>
    %390 = arith.addf %387, %389 : vector<16x512xf32>
    %cst_228 = arith.constant 0.000000e+00 : f32
    %391 = vector.broadcast %cst_228 : f32 to vector<16x512xf32>
    %392 = arith.maximumf %390, %391 : vector<16x512xf32>
    %cst_229 = arith.constant dense<0.000000e+00> : vector<16x2xf32>
    %393 = tpu.matmul %392, %1, %cst_229 {dimension_numbers = #tpu.dot_dimension_numbers<[1], [0], [0], [1], [0, 0, 1, 1], [], []>} : vector<16x512xf32>, vector<512x2xf32>, vector<16x2xf32> -> vector<16x2xf32>
    %c392 = arith.constant 392 : index
    %c0_230 = arith.constant 0 : index
    %394 = vector.load %arg6[%c392, %c0_230] : memref<592x24xf32, #tpu.memory_space<vmem>>, vector<16x16xf32>
    %cst_231 = arith.constant dense<0.000000e+00> : vector<16x2xf32>
    %395 = tpu.matmul %394, %393, %cst_231 {dimension_numbers = #tpu.dot_dimension_numbers<[1], [0], [0], [1], [0, 0, 1, 1], [], []>} : vector<16x16xf32>, vector<16x2xf32>, vector<16x2xf32> -> vector<16x2xf32>
    %c408 = arith.constant 408 : index
    %c0_232 = arith.constant 0 : index
    %396 = vector.load %arg6[%c408, %c0_232] : memref<592x24xf32, #tpu.memory_space<vmem>>, vector<16x1xf32>
    %397 = vector.broadcast %396 : vector<16x1xf32> to vector<16x2xf32>
    %398 = arith.addf %395, %397 : vector<16x2xf32>
    %cst_233 = arith.constant 0.000000e+00 : f32
    %399 = vector.broadcast %cst_233 : f32 to vector<16x2xf32>
    %400 = arith.maximumf %398, %399 : vector<16x2xf32>
    %c424 = arith.constant 424 : index
    %c0_234 = arith.constant 0 : index
    %401 = vector.load %arg6[%c424, %c0_234] : memref<592x24xf32, #tpu.memory_space<vmem>>, vector<16x16xf32>
    %cst_235 = arith.constant dense<0.000000e+00> : vector<16x2xf32>
    %402 = tpu.matmul %401, %400, %cst_235 {dimension_numbers = #tpu.dot_dimension_numbers<[1], [0], [0], [1], [0, 0, 1, 1], [], []>} : vector<16x16xf32>, vector<16x2xf32>, vector<16x2xf32> -> vector<16x2xf32>
    %c440 = arith.constant 440 : index
    %c0_236 = arith.constant 0 : index
    %403 = vector.load %arg6[%c440, %c0_236] : memref<592x24xf32, #tpu.memory_space<vmem>>, vector<16x1xf32>
    %404 = vector.broadcast %403 : vector<16x1xf32> to vector<16x2xf32>
    %405 = arith.addf %402, %404 : vector<16x2xf32>
    %cst_237 = arith.constant 0.000000e+00 : f32
    %406 = vector.broadcast %cst_237 : f32 to vector<16x2xf32>
    %407 = arith.subf %406, %405 : vector<16x2xf32>
    %408 = math.exp %407 : vector<16x2xf32>
    %cst_238 = arith.constant 1.000000e+00 : f32
    %409 = vector.broadcast %cst_238 : f32 to vector<16x2xf32>
    %410 = arith.addf %409, %408 : vector<16x2xf32>
    %411 = tpu.reciprocal %410 {approx = true} : vector<16x2xf32> -> vector<16x2xf32>
    %c456 = arith.constant 456 : index
    %c0_239 = arith.constant 0 : index
    %412 = vector.load %arg6[%c456, %c0_239] : memref<592x24xf32, #tpu.memory_space<vmem>>, vector<24x16xf32>
    %cst_240 = arith.constant dense<0.000000e+00> : vector<24x2xf32>
    %413 = tpu.matmul %412, %393, %cst_240 {dimension_numbers = #tpu.dot_dimension_numbers<[1], [0], [0], [1], [0, 0, 1, 1], [], []>} : vector<24x16xf32>, vector<16x2xf32>, vector<24x2xf32> -> vector<24x2xf32>
    %c480 = arith.constant 480 : index
    %c0_241 = arith.constant 0 : index
    %414 = vector.load %arg6[%c480, %c0_241] : memref<592x24xf32, #tpu.memory_space<vmem>>, vector<24x1xf32>
    %415 = vector.broadcast %414 : vector<24x1xf32> to vector<24x2xf32>
    %416 = arith.addf %413, %415 : vector<24x2xf32>
    %cst_242 = arith.constant 0.000000e+00 : f32
    %417 = vector.broadcast %cst_242 : f32 to vector<24x2xf32>
    %418 = arith.maximumf %416, %417 : vector<24x2xf32>
    %c504 = arith.constant 504 : index
    %c0_243 = arith.constant 0 : index
    %419 = vector.load %arg6[%c504, %c0_243] : memref<592x24xf32, #tpu.memory_space<vmem>>, vector<16x24xf32>
    %cst_244 = arith.constant dense<0.000000e+00> : vector<16x2xf32>
    %420 = tpu.matmul %419, %418, %cst_244 {dimension_numbers = #tpu.dot_dimension_numbers<[1], [0], [0], [1], [0, 0, 1, 1], [], []>} : vector<16x24xf32>, vector<24x2xf32>, vector<16x2xf32> -> vector<16x2xf32>
    %c520 = arith.constant 520 : index
    %c0_245 = arith.constant 0 : index
    %421 = vector.load %arg6[%c520, %c0_245] : memref<592x24xf32, #tpu.memory_space<vmem>>, vector<16x1xf32>
    %422 = vector.broadcast %421 : vector<16x1xf32> to vector<16x2xf32>
    %423 = arith.addf %420, %422 : vector<16x2xf32>
    %cst_246 = arith.constant 0.000000e+00 : f32
    %424 = vector.broadcast %cst_246 : f32 to vector<16x2xf32>
    %425 = arith.subf %424, %423 : vector<16x2xf32>
    %426 = math.exp %425 : vector<16x2xf32>
    %cst_247 = arith.constant 1.000000e+00 : f32
    %427 = vector.broadcast %cst_247 : f32 to vector<16x2xf32>
    %428 = arith.addf %427, %426 : vector<16x2xf32>
    %429 = tpu.reciprocal %428 {approx = true} : vector<16x2xf32> -> vector<16x2xf32>
    %430 = arith.mulf %411, %429 : vector<16x2xf32>
    %cst_248 = arith.constant dense<0.000000e+00> : vector<16x512xf32>
    %431 = tpu.matmul %430, %2, %cst_248 {dimension_numbers = #tpu.dot_dimension_numbers<[1], [0], [0], [1], [0, 0, 1, 1], [], []>} : vector<16x2xf32>, vector<2x512xf32>, vector<16x512xf32> -> vector<16x512xf32>
    %432 = arith.mulf %392, %431 : vector<16x512xf32>
    %433 = arith.truncf %432 : vector<16x512xf32> to vector<16x512xbf16>
    %c96_249 = arith.constant 96 : index
    %c0_250 = arith.constant 0 : index
    %434 = vector.load %arg5[%c96_249, %c0_250] : memref<128x72xbf16, #tpu.memory_space<vmem>>, vector<8x16xbf16>
    %cst_251 = arith.constant dense<0.000000e+00> : vector<8x512xf32>
    %435 = tpu.matmul %434, %433, %cst_251 {dimension_numbers = #tpu.dot_dimension_numbers<[1], [0], [0], [1], [0, 0, 1, 1], [], []>} : vector<8x16xbf16>, vector<16x512xbf16>, vector<8x512xf32> -> vector<8x512xf32>
    %c384 = arith.constant 384 : index
    %c0_252 = arith.constant 0 : index
    %436 = vector.load %arg6[%c384, %c0_252] : memref<592x24xf32, #tpu.memory_space<vmem>>, vector<8x1xf32>
    %437 = vector.broadcast %436 : vector<8x1xf32> to vector<8x512xf32>
    %438 = arith.addf %435, %437 : vector<8x512xf32>
    %439 = arith.addf %438, %342 : vector<8x512xf32>
    %cst_253 = arith.constant 0.000000e+00 : f32
    %440 = vector.broadcast %cst_253 : f32 to vector<8x512xf32>
    %441 = arith.maximumf %439, %440 : vector<8x512xf32>
    %c17_i32_254 = arith.constant 17 : i32
    %442 = tpu.dynamic_rotate %441 by %c17_i32_254 dim 1 : vector<8x512xf32>, i32 -> vector<8x512xf32>
    %443 = vector.extract_strided_slice %0 {offsets = [0, 0], sizes = [1, 512], strides = [1, 1]} : vector<9x512xf32> to vector<1x512xf32>
    %444 = vector.broadcast %443 : vector<1x512xf32> to vector<8x512xf32>
    %445 = arith.mulf %442, %444 : vector<8x512xf32>
    %c0_255 = arith.constant 0 : index
    %c0_256 = arith.constant 0 : index
    %446 = vector.load %arg8[%c0_255, %c0_256] : memref<72x512xf32, #tpu.memory_space<vmem>>, vector<8x512xf32>
    tpu.vector_store %arg8[%c0_255, %c0_256], %445 {strides = array<i32>} : memref<72x512xf32, #tpu.memory_space<vmem>>, vector<8x512xf32>,
    %c16_i32_257 = arith.constant 16 : i32
    %447 = tpu.dynamic_rotate %441 by %c16_i32_257 dim 1 : vector<8x512xf32>, i32 -> vector<8x512xf32>
    %448 = vector.extract_strided_slice %0 {offsets = [1, 0], sizes = [1, 512], strides = [1, 1]} : vector<9x512xf32> to vector<1x512xf32>
    %449 = vector.broadcast %448 : vector<1x512xf32> to vector<8x512xf32>
    %450 = arith.mulf %447, %449 : vector<8x512xf32>
    %c8_258 = arith.constant 8 : index
    %c0_259 = arith.constant 0 : index
    %451 = vector.load %arg8[%c8_258, %c0_259] : memref<72x512xf32, #tpu.memory_space<vmem>>, vector<8x512xf32>
    tpu.vector_store %arg8[%c8_258, %c0_259], %450 {strides = array<i32>} : memref<72x512xf32, #tpu.memory_space<vmem>>, vector<8x512xf32>,
    %c15_i32_260 = arith.constant 15 : i32
    %452 = tpu.dynamic_rotate %441 by %c15_i32_260 dim 1 : vector<8x512xf32>, i32 -> vector<8x512xf32>
    %453 = vector.extract_strided_slice %0 {offsets = [2, 0], sizes = [1, 512], strides = [1, 1]} : vector<9x512xf32> to vector<1x512xf32>
    %454 = vector.broadcast %453 : vector<1x512xf32> to vector<8x512xf32>
    %455 = arith.mulf %452, %454 : vector<8x512xf32>
    %c16_261 = arith.constant 16 : index
    %c0_262 = arith.constant 0 : index
    %456 = vector.load %arg8[%c16_261, %c0_262] : memref<72x512xf32, #tpu.memory_space<vmem>>, vector<8x512xf32>
    tpu.vector_store %arg8[%c16_261, %c0_262], %455 {strides = array<i32>} : memref<72x512xf32, #tpu.memory_space<vmem>>, vector<8x512xf32>,
    %c1_i32_263 = arith.constant 1 : i32
    %457 = tpu.dynamic_rotate %441 by %c1_i32_263 dim 1 : vector<8x512xf32>, i32 -> vector<8x512xf32>
    %458 = vector.extract_strided_slice %0 {offsets = [3, 0], sizes = [1, 512], strides = [1, 1]} : vector<9x512xf32> to vector<1x512xf32>
    %459 = vector.broadcast %458 : vector<1x512xf32> to vector<8x512xf32>
    %460 = arith.mulf %457, %459 : vector<8x512xf32>
    %c24_264 = arith.constant 24 : index
    %c0_265 = arith.constant 0 : index
    %461 = vector.load %arg8[%c24_264, %c0_265] : memref<72x512xf32, #tpu.memory_space<vmem>>, vector<8x512xf32>
    tpu.vector_store %arg8[%c24_264, %c0_265], %460 {strides = array<i32>} : memref<72x512xf32, #tpu.memory_space<vmem>>, vector<8x512xf32>,
    %c32_266 = arith.constant 32 : index
    %c0_267 = arith.constant 0 : index
    %462 = vector.load %arg8[%c32_266, %c0_267] : memref<72x512xf32, #tpu.memory_space<vmem>>, vector<8x512xf32>
    tpu.vector_store %arg8[%c32_266, %c0_267], %441 {strides = array<i32>} : memref<72x512xf32, #tpu.memory_space<vmem>>, vector<8x512xf32>,
    %c511_i32_268 = arith.constant 511 : i32
    %463 = tpu.dynamic_rotate %441 by %c511_i32_268 dim 1 : vector<8x512xf32>, i32 -> vector<8x512xf32>
    %464 = vector.extract_strided_slice %0 {offsets = [5, 0], sizes = [1, 512], strides = [1, 1]} : vector<9x512xf32> to vector<1x512xf32>
    %465 = vector.broadcast %464 : vector<1x512xf32> to vector<8x512xf32>
    %466 = arith.mulf %463, %465 : vector<8x512xf32>
    %c40_269 = arith.constant 40 : index
    %c0_270 = arith.constant 0 : index
    %467 = vector.load %arg8[%c40_269, %c0_270] : memref<72x512xf32, #tpu.memory_space<vmem>>, vector<8x512xf32>
    tpu.vector_store %arg8[%c40_269, %c0_270], %466 {strides = array<i32>} : memref<72x512xf32, #tpu.memory_space<vmem>>, vector<8x512xf32>,
    %c497_i32_271 = arith.constant 497 : i32
    %468 = tpu.dynamic_rotate %441 by %c497_i32_271 dim 1 : vector<8x512xf32>, i32 -> vector<8x512xf32>
    %469 = vector.extract_strided_slice %0 {offsets = [6, 0], sizes = [1, 512], strides = [1, 1]} : vector<9x512xf32> to vector<1x512xf32>
    %470 = vector.broadcast %469 : vector<1x512xf32> to vector<8x512xf32>
    %471 = arith.mulf %468, %470 : vector<8x512xf32>
    %c48_272 = arith.constant 48 : index
    %c0_273 = arith.constant 0 : index
    %472 = vector.load %arg8[%c48_272, %c0_273] : memref<72x512xf32, #tpu.memory_space<vmem>>, vector<8x512xf32>
    tpu.vector_store %arg8[%c48_272, %c0_273], %471 {strides = array<i32>} : memref<72x512xf32, #tpu.memory_space<vmem>>, vector<8x512xf32>,
    %c496_i32_274 = arith.constant 496 : i32
    %473 = tpu.dynamic_rotate %441 by %c496_i32_274 dim 1 : vector<8x512xf32>, i32 -> vector<8x512xf32>
    %474 = vector.extract_strided_slice %0 {offsets = [7, 0], sizes = [1, 512], strides = [1, 1]} : vector<9x512xf32> to vector<1x512xf32>
    %475 = vector.broadcast %474 : vector<1x512xf32> to vector<8x512xf32>
    %476 = arith.mulf %473, %475 : vector<8x512xf32>
    %c56_275 = arith.constant 56 : index
    %c0_276 = arith.constant 0 : index
    %477 = vector.load %arg8[%c56_275, %c0_276] : memref<72x512xf32, #tpu.memory_space<vmem>>, vector<8x512xf32>
    tpu.vector_store %arg8[%c56_275, %c0_276], %476 {strides = array<i32>} : memref<72x512xf32, #tpu.memory_space<vmem>>, vector<8x512xf32>,
    %c495_i32_277 = arith.constant 495 : i32
    %478 = tpu.dynamic_rotate %441 by %c495_i32_277 dim 1 : vector<8x512xf32>, i32 -> vector<8x512xf32>
    %479 = vector.extract_strided_slice %0 {offsets = [8, 0], sizes = [1, 512], strides = [1, 1]} : vector<9x512xf32> to vector<1x512xf32>
    %480 = vector.broadcast %479 : vector<1x512xf32> to vector<8x512xf32>
    %481 = arith.mulf %478, %480 : vector<8x512xf32>
    %c64_278 = arith.constant 64 : index
    %c0_279 = arith.constant 0 : index
    %482 = vector.load %arg8[%c64_278, %c0_279] : memref<72x512xf32, #tpu.memory_space<vmem>>, vector<8x512xf32>
    tpu.vector_store %arg8[%c64_278, %c0_279], %481 {strides = array<i32>} : memref<72x512xf32, #tpu.memory_space<vmem>>, vector<8x512xf32>,
    %c0_280 = arith.constant 0 : index
    %c0_281 = arith.constant 0 : index
    %483 = vector.load %arg8[%c0_280, %c0_281] : memref<72x512xf32, #tpu.memory_space<vmem>>, vector<72x512xf32>
    %484 = arith.truncf %483 : vector<72x512xf32> to vector<72x512xbf16>
    %c104 = arith.constant 104 : index
    %c0_282 = arith.constant 0 : index
    %485 = vector.load %arg5[%c104, %c0_282] : memref<128x72xbf16, #tpu.memory_space<vmem>>, vector<24x72xbf16>
    %cst_283 = arith.constant dense<0.000000e+00> : vector<24x512xf32>
    %486 = tpu.matmul %485, %484, %cst_283 {dimension_numbers = #tpu.dot_dimension_numbers<[1], [0], [0], [1], [0, 0, 1, 1], [], []>} : vector<24x72xbf16>, vector<72x512xbf16>, vector<24x512xf32> -> vector<24x512xf32>
    %c536 = arith.constant 536 : index
    %c0_284 = arith.constant 0 : index
    %487 = vector.load %arg6[%c536, %c0_284] : memref<592x24xf32, #tpu.memory_space<vmem>>, vector<24x1xf32>
    %488 = vector.broadcast %487 : vector<24x1xf32> to vector<24x512xf32>
    %489 = arith.addf %486, %488 : vector<24x512xf32>
    %cst_285 = arith.constant 0.000000e+00 : f32
    %490 = vector.broadcast %cst_285 : f32 to vector<24x512xf32>
    %491 = arith.maximumf %489, %490 : vector<24x512xf32>
    %cst_286 = arith.constant dense<0.000000e+00> : vector<24x2xf32>
    %492 = tpu.matmul %491, %1, %cst_286 {dimension_numbers = #tpu.dot_dimension_numbers<[1], [0], [0], [1], [0, 0, 1, 1], [], []>} : vector<24x512xf32>, vector<512x2xf32>, vector<24x2xf32> -> vector<24x2xf32>
    %c560 = arith.constant 560 : index
    %c0_287 = arith.constant 0 : index
    %493 = vector.load %arg6[%c560, %c0_287] : memref<592x24xf32, #tpu.memory_space<vmem>>, vector<16x24xf32>
    %cst_288 = arith.constant dense<0.000000e+00> : vector<16x2xf32>
    %494 = tpu.matmul %493, %492, %cst_288 {dimension_numbers = #tpu.dot_dimension_numbers<[1], [0], [0], [1], [0, 0, 1, 1], [], []>} : vector<16x24xf32>, vector<24x2xf32>, vector<16x2xf32> -> vector<16x2xf32>
    %c576 = arith.constant 576 : index
    %c0_289 = arith.constant 0 : index
    %495 = vector.load %arg6[%c576, %c0_289] : memref<592x24xf32, #tpu.memory_space<vmem>>, vector<16x1xf32>
    %496 = vector.broadcast %495 : vector<16x1xf32> to vector<16x2xf32>
    %497 = arith.addf %494, %496 : vector<16x2xf32>
    %c0_290 = arith.constant 0 : index
    %c0_291 = arith.constant 0 : index
    %c0_292 = arith.constant 0 : index
    %498 = vector.load %arg7[%c0_290, %c0_291, %c0_292] : memref<1x16x2xf32, #tpu.memory_space<vmem>>, vector<1x16x2xf32>
    %499 = vector.shape_cast %498 : vector<1x16x2xf32> to vector<16x2xf32>
    %500 = vector.shape_cast %497 : vector<16x2xf32> to vector<1x16x2xf32>
    tpu.vector_store %arg7[%c0_290, %c0_291, %c0_292], %500 {strides = array<i32>} : memref<1x16x2xf32, #tpu.memory_space<vmem>>, vector<1x16x2xf32>,
    return
  }
  func.func @transform_0(%arg0: i32) -> (i32, i32) {
    %c0_i32 = arith.constant 0 : i32
    %c0_i32_0 = arith.constant 0 : i32
    return %c0_i32, %arg0 : i32, i32
  }
  func.func @transform_1(%arg0: i32) -> (i32, i32) {
    %c0_i32 = arith.constant 0 : i32
    %c0_i32_0 = arith.constant 0 : i32
    %c0_i32_1 = arith.constant 0 : i32
    return %c0_i32, %c0_i32_0 : i32, i32
  }
  func.func @transform_2(%arg0: i32) -> (i32, i32) {
    %c0_i32 = arith.constant 0 : i32
    %c0_i32_0 = arith.constant 0 : i32
    %c0_i32_1 = arith.constant 0 : i32
    return %c0_i32, %c0_i32_0 : i32, i32
  }
  func.func @transform_3(%arg0: i32) -> (i32, i32) {
    %c0_i32 = arith.constant 0 : i32
    %c0_i32_0 = arith.constant 0 : i32
    %c0_i32_1 = arith.constant 0 : i32
    return %c0_i32, %c0_i32_0 : i32, i32
  }
  func.func @transform_4(%arg0: i32) -> (i32, i32) {
    %c0_i32 = arith.constant 0 : i32
    %c0_i32_0 = arith.constant 0 : i32
    %c0_i32_1 = arith.constant 0 : i32
    return %c0_i32, %c0_i32_0 : i32, i32
  }
  func.func @transform_5(%arg0: i32) -> (i32, i32) {
    %c0_i32 = arith.constant 0 : i32
    %c0_i32_0 = arith.constant 0 : i32
    %c0_i32_1 = arith.constant 0 : i32
    return %c0_i32, %c0_i32_0 : i32, i32
  }
  func.func @transform_6(%arg0: i32) -> (i32, i32, i32) {
    %c0_i32 = arith.constant 0 : i32
    %c0_i32_0 = arith.constant 0 : i32
    %c0_i32_1 = arith.constant 0 : i32
    return %arg0, %c0_i32, %c0_i32_0 : i32, i32, i32
  }
}

</mosaic_0001>

<llo_original>
// kernel: bitgatenet_forward.1
$region0: #{bitgatenet_forward.1}
  #allocation0 [shape = 'u32[]', space=smem, size = 0x4, offset = 0x4, fixed_abs, tag = 'smem constant byte address 0x4 - core index']
  #allocation1 [shape = 'u32[144,128]{1,0:T(1,128)}', space=vmem, size = 0x12000, scoped, tag = 'internal scratch']
  #allocation2 [shape = 'f32[72,512]{1,0:T(8,128)}', space=vmem, size = 0x24000, scoped, tag = 'scratch operand']
  %s0 = inlined_call_operand.vmem [shape: f32[1,512], index: 0, kind: input, shape index: {}]
  %s1 = inlined_call_operand.vmem [shape: f32[9,512], index: 1, kind: input, shape index: {}]
  %s2 = inlined_call_operand.vmem [shape: f32[512,2], index: 2, kind: input, shape index: {}]
  %s3 = inlined_call_operand.vmem [shape: f32[2,512], index: 3, kind: input, shape index: {}]
  %s4 = inlined_call_operand.vmem [shape: bf16[128,72], index: 4, kind: input, shape index: {}]
  %s5 = inlined_call_operand.vmem [shape: f32[592,24], index: 5, kind: input, shape index: {}]
  %s6 = inlined_call_operand.vmem [shape: f32[1,16,2], index: 6, kind: output, shape index: {}]
  %s7 = sld [smem:[#allocation0]]
  $region34: #{bitgatenet_forward.1} parent=0
    _
  %s9 = ssub.s32 1, %s7
  %s10 = scalar_select 0, %s9, %s7
  // Predicated region
  $region2: #{bitgatenet_forward.1} parent=0 // pred_check
    _
  $region3: #{bitgatenet_forward.1} parent=0 // pred_check_branch
    %12 = sbr.rel (0) target = $region5
  $region4: #{bitgatenet_forward.1} parent=0 // pred_region
    _
  $region5: #{bitgatenet_forward.1} parent=0 // pred_fallthru
    _
  // Predicated region
  $region6: #{bitgatenet_forward.1} parent=0 // pred_check
    _
  $region7: #{bitgatenet_forward.1} parent=0 // pred_check_branch
    %14 = sbr.rel (0) target = $region9
  $region8: #{bitgatenet_forward.1} parent=0 // pred_region
    _
  $region9: #{bitgatenet_forward.1} parent=0 // pred_fallthru
    _
  // Predicated region
  $region10: #{bitgatenet_forward.1} parent=0 // pred_check
    _
  $region11: #{bitgatenet_forward.1} parent=0 // pred_check_branch
    %16 = sbr.rel (0) target = $region13
  $region12: #{bitgatenet_forward.1} parent=0 // pred_region
    _
  $region13: #{bitgatenet_forward.1} parent=0 // pred_fallthru
    _
  // Predicated region
  $region14: #{bitgatenet_forward.1} parent=0 // pred_check
    _
  $region15: #{bitgatenet_forward.1} parent=0 // pred_check_branch
    %18 = sbr.rel (0) target = $region17
  $region16: #{bitgatenet_forward.1} parent=0 // pred_region
    _
  $region17: #{bitgatenet_forward.1} parent=0 // pred_fallthru
    _
  // Predicated region
  $region18: #{bitgatenet_forward.1} parent=0 // pred_check
    _
  $region19: #{bitgatenet_forward.1} parent=0 // pred_check_branch
    %20 = sbr.rel (0) target = $region21
  $region20: #{bitgatenet_forward.1} parent=0 // pred_region
    _
  $region21: #{bitgatenet_forward.1} parent=0 // pred_fallthru
    _
  // Predicated region
  $region22: #{bitgatenet_forward.1} parent=0 // pred_check
    _
  $region23: #{bitgatenet_forward.1} parent=0 // pred_check_branch
    %22 = sbr.rel (0) target = $region25
  $region24: #{bitgatenet_forward.1} parent=0 // pred_region
    _
  $region25: #{bitgatenet_forward.1} parent=0 // pred_fallthru
    _
  %v24 = vld [vmem:[%s1] sm:$0xff]
  %v25 = vld [vmem:[%s1 + $0x8] sm:$0xff]
  %v26 = vld [vmem:[%s1 + $0x10] sm:$0xff]
  %v27 = vld [vmem:[%s1 + $0x18] sm:$0xff]
  %v28 = vld [vmem:[%s1 + $0x20] sm:$0x1]
  %v29 = vld [vmem:[%s1 + $0x28] sm:$0x1]
  %v30 = vld [vmem:[%s1 + $0x30] sm:$0x1]
  %v31 = vld [vmem:[%s1 + $0x38] sm:$0x1]
  %v32 = vld [vmem:[%s2] sm:$0xff]
  %v33 = vld [vmem:[%s2 + $0x8] sm:$0xff]
  %v34 = vld [vmem:[%s2 + $0x10] sm:$0xff]
  %v35 = vld [vmem:[%s2 + $0x18] sm:$0xff]
  %v36 = vld [vmem:[%s2 + $0x20] sm:$0xff]
  %v37 = vld [vmem:[%s2 + $0x28] sm:$0xff]
  %v38 = vld [vmem:[%s2 + $0x30] sm:$0xff]
  %v39 = vld [vmem:[%s2 + $0x38] sm:$0xff]
  %v40 = vld [vmem:[%s2 + $0x40] sm:$0xff]
  %v41 = vld [vmem:[%s2 + $0x48] sm:$0xff]
  %v42 = vld [vmem:[%s2 + $0x50] sm:$0xff]
  %v43 = vld [vmem:[%s2 + $0x58] sm:$0xff]
  %v44 = vld [vmem:[%s2 + $0x60] sm:$0xff]
  %v45 = vld [vmem:[%s2 + $0x68] sm:$0xff]
  %v46 = vld [vmem:[%s2 + $0x70] sm:$0xff]
  %v47 = vld [vmem:[%s2 + $0x78] sm:$0xff]
  %v48 = vld [vmem:[%s2 + $0x80] sm:$0xff]
  %v49 = vld [vmem:[%s2 + $0x88] sm:$0xff]
  %v50 = vld [vmem:[%s2 + $0x90] sm:$0xff]
  %v51 = vld [vmem:[%s2 + $0x98] sm:$0xff]
  %v52 = vld [vmem:[%s2 + $0xa0] sm:$0xff]
  %v53 = vld [vmem:[%s2 + $0xa8] sm:$0xff]
  %v54 = vld [vmem:[%s2 + $0xb0] sm:$0xff]
  %v55 = vld [vmem:[%s2 + $0xb8] sm:$0xff]
  %v56 = vld [vmem:[%s2 + $0xc0] sm:$0xff]
  %v57 = vld [vmem:[%s2 + $0xc8] sm:$0xff]
  %v58 = vld [vmem:[%s2 + $0xd0] sm:$0xff]
  %v59 = vld [vmem:[%s2 + $0xd8] sm:$0xff]
  %v60 = vld [vmem:[%s2 + $0xe0] sm:$0xff]
  %v61 = vld [vmem:[%s2 + $0xe8] sm:$0xff]
  %v62 = vld [vmem:[%s2 + $0xf0] sm:$0xff]
  %v63 = vld [vmem:[%s2 + $0xf8] sm:$0xff]
  %v64 = vld [vmem:[%s2 + $0x100] sm:$0xff]
  %v65 = vld [vmem:[%s2 + $0x108] sm:$0xff]
  %v66 = vld [vmem:[%s2 + $0x110] sm:$0xff]
  %v67 = vld [vmem:[%s2 + $0x118] sm:$0xff]
  %v68 = vld [vmem:[%s2 + $0x120] sm:$0xff]
  %v69 = vld [vmem:[%s2 + $0x128] sm:$0xff]
  %v70 = vld [vmem:[%s2 + $0x130] sm:$0xff]
  %v71 = vld [vmem:[%s2 + $0x138] sm:$0xff]
  %v72 = vld [vmem:[%s2 + $0x140] sm:$0xff]
  %v73 = vld [vmem:[%s2 + $0x148] sm:$0xff]
  %v74 = vld [vmem:[%s2 + $0x150] sm:$0xff]
  %v75 = vld [vmem:[%s2 + $0x158] sm:$0xff]
  %v76 = vld [vmem:[%s2 + $0x160] sm:$0xff]
  %v77 = vld [vmem:[%s2 + $0x168] sm:$0xff]
  %v78 = vld [vmem:[%s2 + $0x170] sm:$0xff]
  %v79 = vld [vmem:[%s2 + $0x178] sm:$0xff]
  %v80 = vld [vmem:[%s2 + $0x180] sm:$0xff]
  %v81 = vld [vmem:[%s2 + $0x188] sm:$0xff]
  %v82 = vld [vmem:[%s2 + $0x190] sm:$0xff]
  %v83 = vld [vmem:[%s2 + $0x198] sm:$0xff]
  %v84 = vld [vmem:[%s2 + $0x1a0] sm:$0xff]
  %v85 = vld [vmem:[%s2 + $0x1a8] sm:$0xff]
  %v86 = vld [vmem:[%s2 + $0x1b0] sm:$0xff]
  %v87 = vld [vmem:[%s2 + $0x1b8] sm:$0xff]
  %v88 = vld [vmem:[%s2 + $0x1c0] sm:$0xff]
  %v89 = vld [vmem:[%s2 + $0x1c8] sm:$0xff]
  %v90 = vld [vmem:[%s2 + $0x1d0] sm:$0xff]
  %v91 = vld [vmem:[%s2 + $0x1d8] sm:$0xff]
  %v92 = vld [vmem:[%s2 + $0x1e0] sm:$0xff]
  %v93 = vld [vmem:[%s2 + $0x1e8] sm:$0xff]
  %v94 = vld [vmem:[%s2 + $0x1f0] sm:$0xff]
  %v95 = vld [vmem:[%s2 + $0x1f8] sm:$0xff]
  %v96 = vld [vmem:[%s3] sm:$0xff]
  %v97 = vld [vmem:[%s0] sm:$0xf]
  %v99 = vlaneseq
  %v100 = vshrl.u32 %v99, 7
  %v101 = vsub.s32 0, %v100
  %v102 = vrot.slane %v97, %v101
  %v103 = vlaneseq
  %v104 = vshrl.u32 %v103, 7
  %v105 = vsub.s32 1, %v104
  %v106 = vrot.slane %v97, %v105
  %v107 = vlaneseq
  %v108 = vshrl.u32 %v107, 7
  %v109 = vsub.s32 2, %v108
  %v110 = vrot.slane %v97, %v109
  %v111 = vlaneseq
  %v112 = vshrl.u32 %v111, 7
  %v113 = vsub.s32 3, %v112
  %v114 = vrot.slane %v97, %v113
  %119 = vrot.lane.b32.xlu0 %v102, 17
  %v120 = vpop.permute.xlu0 %119
  %121 = vrot.lane.b32.xlu0 %v106, 17
  %v122 = vpop.permute.xlu0 %121
  %123 = vrot.lane.b32.xlu0 %v110, 17
  %v124 = vpop.permute.xlu0 %123
  %125 = vrot.lane.b32.xlu0 %v114, 17
  %v126 = vpop.permute.xlu0 %125
  %v127 = vlaneseq
  %v128 = vand.u32 %v127, 127
  %vm129 = vcmp.lt.s32.totalorder %v128, 17
  %v130 = vsel %vm129, %v124, %v126
  %v131 = vsel %vm129, %v122, %v124
  %v132 = vsel %vm129, %v120, %v122
  %v133 = vsel %vm129, %v126, %v120
  %v134 = vmul.f32 %v133, %v24
  %v135 = vmul.f32 %v132, %v25
  %v136 = vmul.f32 %v131, %v26
  %v137 = vmul.f32 %v130, %v27
  %v142 = vcombine.low %v134, %v135
  %v143 = vcombine.low %v136, %v137
  %v145 = vunpack.c.l.s4 1966171168
  %v146 = vunpack.c.0.s8 %v145
  %v147 = vlaneseq
  %v148 = vshrl.u32 %v147, 7
  %v149 = vsub.s32 %v146, %v148
  %v150 = vrot.slane %v142, %v149
  %v152 = vunpack.c.l.s4 1966171168
  %v153 = vunpack.c.0.s8 %v152
  %v154 = vlaneseq
  %v155 = vshrl.u32 %v154, 7
  %v156 = vsub.s32 %v153, %v155
  %v157 = vrot.slane %v143, %v156
  %v158 = vcombine.low %v150, %v157
  %v160 = vunpack.c.l.s4 1966171168
  %v161 = vunpack.c.0.s8 %v160
  %v162 = vlaneseq
  %v163 = vshrl.u32 %v162, 7
  %v164 = vsub.s32 %v161, %v163
  %v165 = vrot.slane %v158, %v164
  %v167 = vlaneseq
  %vm168 = vcmp.ge.s32.totalorder %v167, 0
  %vm169 = vcmp.lt.s32.totalorder %v167, 512
  %vm170 = vmand %vm168, %vm169
  %171 = vst.msk [vmem:[#allocation2] ss:$8 sm:$0xf] %vm170, %v165
  %172 = vst.msk [vmem:[#allocation2] ss:$8 sm:$0x0] %vm170, %v165
  %173 = vrot.lane.b32.xlu0 %v102, 16
  %v174 = vpop.permute.xlu0 %173
  %175 = vrot.lane.b32.xlu0 %v106, 16
  %v176 = vpop.permute.xlu0 %175
  %177 = vrot.lane.b32.xlu0 %v110, 16
  %v178 = vpop.permute.xlu0 %177
  %179 = vrot.lane.b32.xlu0 %v114, 16
  %v180 = vpop.permute.xlu0 %179
  %vm181 = vcmp.lt.s32.totalorder %v128, 16
  %v182 = vsel %vm181, %v178, %v180
  %v183 = vsel %vm181, %v176, %v178
  %v184 = vsel %vm181, %v174, %v176
  %v185 = vsel %vm181, %v180, %v174
  %v190 = vrot.slane %v24, 1
  %v191 = vrot.slane %v25, 1
  %v192 = vrot.slane %v26, 1
  %v193 = vrot.slane %v27, 1
  %v198 = vmul.f32 %v185, %v190
  %v199 = vmul.f32 %v184, %v191
  %v200 = vmul.f32 %v183, %v192
  %v201 = vmul.f32 %v182, %v193
  %v206 = vcombine.low %v198, %v199
  %v207 = vcombine.low %v200, %v201
  %v209 = vunpack.c.l.s4 1966171168
  %v210 = vunpack.c.0.s8 %v209
  %v211 = vlaneseq
  %v212 = vshrl.u32 %v211, 7
  %v213 = vsub.s32 %v210, %v212
  %v214 = vrot.slane %v206, %v213
  %v216 = vunpack.c.l.s4 1966171168
  %v217 = vunpack.c.0.s8 %v216
  %v218 = vlaneseq
  %v219 = vshrl.u32 %v218, 7
  %v220 = vsub.s32 %v217, %v219
  %v221 = vrot.slane %v207, %v220
  %v222 = vcombine.low %v214, %v221
  %v224 = vunpack.c.l.s4 1966171168
  %v225 = vunpack.c.0.s8 %v224
  %v226 = vlaneseq
  %v227 = vshrl.u32 %v226, 7
  %v228 = vsub.s32 %v225, %v227
  %v229 = vrot.slane %v222, %v228
  %s231 = scalar_lea.vmem [#allocation2], 1
  %232 = vst.msk [vmem:[%s231] ss:$8 sm:$0xf] %vm170, %v229
  %233 = vst.msk [vmem:[%s231] ss:$8 sm:$0x0] %vm170, %v229
  %234 = vrot.lane.b32.xlu0 %v102, 15
  %v235 = vpop.permute.xlu0 %234
  %236 = vrot.lane.b32.xlu0 %v106, 15
  %v237 = vpop.permute.xlu0 %236
  %238 = vrot.lane.b32.xlu0 %v110, 15
  %v239 = vpop.permute.xlu0 %238
  %240 = vrot.lane.b32.xlu0 %v114, 15
  %v241 = vpop.permute.xlu0 %240
  %vm242 = vcmp.lt.s32.totalorder %v128, 15
  %v243 = vsel %vm242, %v239, %v241
  %v244 = vsel %vm242, %v237, %v239
  %v245 = vsel %vm242, %v235, %v237
  %v246 = vsel %vm242, %v241, %v235
  %v247 = vrot.slane %v24, 2
  %v248 = vrot.slane %v25, 2
  %v249 = vrot.slane %v26, 2
  %v250 = vrot.slane %v27, 2
  %v255 = vmul.f32 %v246, %v247
  %v256 = vmul.f32 %v245, %v248
  %v257 = vmul.f32 %v244, %v249
  %v258 = vmul.f32 %v243, %v250
  %v263 = vcombine.low %v255, %v256
  %v264 = vcombine.low %v257, %v258
  %v266 = vunpack.c.l.s4 1966171168
  %v267 = vunpack.c.0.s8 %v266
  %v268 = vlaneseq
  %v269 = vshrl.u32 %v268, 7
  %v270 = vsub.s32 %v267, %v269
  %v271 = vrot.slane %v263, %v270
  %v273 = vunpack.c.l.s4 1966171168
  %v274 = vunpack.c.0.s8 %v273
  %v275 = vlaneseq
  %v276 = vshrl.u32 %v275, 7
  %v277 = vsub.s32 %v274, %v276
  %v278 = vrot.slane %v264, %v277
  %v279 = vcombine.low %v271, %v278
  %v281 = vunpack.c.l.s4 1966171168
  %v282 = vunpack.c.0.s8 %v281
  %v283 = vlaneseq
  %v284 = vshrl.u32 %v283, 7
  %v285 = vsub.s32 %v282, %v284
  %v286 = vrot.slane %v279, %v285
  %s288 = scalar_lea.vmem [#allocation2], 2
  %289 = vst.msk [vmem:[%s288] ss:$8 sm:$0xf] %vm170, %v286
  %290 = vst.msk [vmem:[%s288] ss:$8 sm:$0x0] %vm170, %v286
  %291 = vrot.lane.b32.xlu0 %v102, 1
  %v292 = vpop.permute.xlu0 %291
  %293 = vrot.lane.b32.xlu0 %v106, 1
  %v294 = vpop.permute.xlu0 %293
  %295 = vrot.lane.b32.xlu0 %v110, 1
  %v296 = vpop.permute.xlu0 %295
  %297 = vrot.lane.b32.xlu0 %v114, 1
  %v298 = vpop.permute.xlu0 %297
  %vm299 = vcmp.lt.s32.totalorder %v128, 1
  %v300 = vsel %vm299, %v296, %v298
  %v301 = vsel %vm299, %v294, %v296
  %v302 = vsel %vm299, %v292, %v294
  %v303 = vsel %vm299, %v298, %v292
  %v304 = vrot.slane %v24, 3
  %v305 = vrot.slane %v25, 3
  %v306 = vrot.slane %v26, 3
  %v307 = vrot.slane %v27, 3
  %v312 = vmul.f32 %v303, %v304
  %v313 = vmul.f32 %v302, %v305
  %v314 = vmul.f32 %v301, %v306
  %v315 = vmul.f32 %v300, %v307
  %v320 = vcombine.low %v312, %v313
  %v321 = vcombine.low %v314, %v315
  %v323 = vunpack.c.l.s4 1966171168
  %v324 = vunpack.c.0.s8 %v323
  %v325 = vlaneseq
  %v326 = vshrl.u32 %v325, 7
  %v327 = vsub.s32 %v324, %v326
  %v328 = vrot.slane %v320, %v327
  %v330 = vunpack.c.l.s4 1966171168
  %v331 = vunpack.c.0.s8 %v330
  %v332 = vlaneseq
  %v333 = vshrl.u32 %v332, 7
  %v334 = vsub.s32 %v331, %v333
  %v335 = vrot.slane %v321, %v334
  %v336 = vcombine.low %v328, %v335
  %v338 = vunpack.c.l.s4 1966171168
  %v339 = vunpack.c.0.s8 %v338
  %v340 = vlaneseq
  %v341 = vshrl.u32 %v340, 7
  %v342 = vsub.s32 %v339, %v341
  %v343 = vrot.slane %v336, %v342
  %s345 = scalar_lea.vmem [#allocation2], 3
  %346 = vst.msk [vmem:[%s345] ss:$8 sm:$0xf] %vm170, %v343
  %347 = vst.msk [vmem:[%s345] ss:$8 sm:$0x0] %vm170, %v343
  %s348 = scalar_lea.vmem [#allocation2], 4
  %349 = vst.msk [vmem:[%s348] ss:$8 sm:$0xf] %vm170, %v97
  %350 = vst.msk [vmem:[%s348] ss:$8 sm:$0x0] %vm170, %v97
  %351 = vrot.lane.b32.xlu0 %v102, 127
  %v352 = vpop.permute.xlu0 %351
  %353 = vrot.lane.b32.xlu0 %v106, 127
  %v354 = vpop.permute.xlu0 %353
  %355 = vrot.lane.b32.xlu0 %v110, 127
  %v356 = vpop.permute.xlu0 %355
  %357 = vrot.lane.b32.xlu0 %v114, 127
  %v358 = vpop.permute.xlu0 %357
  %vm359 = vcmp.lt.s32.totalorder %v128, 127
  %v360 = vsel %vm359, %v356, %v358
  %v361 = vsel %vm359, %v354, %v356
  %v362 = vsel %vm359, %v352, %v354
  %v363 = vsel %vm359, %v358, %v352
  %v364 = vrot.slane %v24, 5
  %v365 = vrot.slane %v25, 5
  %v366 = vrot.slane %v26, 5
  %v367 = vrot.slane %v27, 5
  %v372 = vmul.f32 %v362, %v364
  %v373 = vmul.f32 %v361, %v365
  %v374 = vmul.f32 %v360, %v366
  %v375 = vmul.f32 %v363, %v367
  %v380 = vcombine.low %v372, %v373
  %v381 = vcombine.low %v374, %v375
  %v383 = vunpack.c.l.s4 1966171168
  %v384 = vunpack.c.0.s8 %v383
  %v385 = vlaneseq
  %v386 = vshrl.u32 %v385, 7
  %v387 = vsub.s32 %v384, %v386
  %v388 = vrot.slane %v380, %v387
  %v390 = vunpack.c.l.s4 1966171168
  %v391 = vunpack.c.0.s8 %v390
  %v392 = vlaneseq
  %v393 = vshrl.u32 %v392, 7
  %v394 = vsub.s32 %v391, %v393
  %v395 = vrot.slane %v381, %v394
  %v396 = vcombine.low %v388, %v395
  %v398 = vunpack.c.l.s4 1966171168
  %v399 = vunpack.c.0.s8 %v398
  %v400 = vlaneseq
  %v401 = vshrl.u32 %v400, 7
  %v402 = vsub.s32 %v399, %v401
  %v403 = vrot.slane %v396, %v402
  %s405 = scalar_lea.vmem [#allocation2], 5
  %406 = vst.msk [vmem:[%s405] ss:$8 sm:$0xf] %vm170, %v403
  %407 = vst.msk [vmem:[%s405] ss:$8 sm:$0x0] %vm170, %v403
  %408 = vrot.lane.b32.xlu0 %v102, 113
  %v409 = vpop.permute.xlu0 %408
  %410 = vrot.lane.b32.xlu0 %v106, 113
  %v411 = vpop.permute.xlu0 %410
  %412 = vrot.lane.b32.xlu0 %v110, 113
  %v413 = vpop.permute.xlu0 %412
  %414 = vrot.lane.b32.xlu0 %v114, 113
  %v415 = vpop.permute.xlu0 %414
  %vm416 = vcmp.lt.s32.totalorder %v128, 113
  %v417 = vsel %vm416, %v413, %v415
  %v418 = vsel %vm416, %v411, %v413
  %v419 = vsel %vm416, %v409, %v411
  %v420 = vsel %vm416, %v415, %v409
  %v421 = vrot.slane %v24, 6
  %v422 = vrot.slane %v25, 6
  %v423 = vrot.slane %v26, 6
  %v424 = vrot.slane %v27, 6
  %v429 = vmul.f32 %v419, %v421
  %v430 = vmul.f32 %v418, %v422
  %v431 = vmul.f32 %v417, %v423
  %v432 = vmul.f32 %v420, %v424
  %v437 = vcombine.low %v429, %v430
  %v438 = vcombine.low %v431, %v432
  %v440 = vunpack.c.l.s4 1966171168
  %v441 = vunpack.c.0.s8 %v440
  %v442 = vlaneseq
  %v443 = vshrl.u32 %v442, 7
  %v444 = vsub.s32 %v441, %v443
  %v445 = vrot.slane %v437, %v444
  %v447 = vunpack.c.l.s4 1966171168
  %v448 = vunpack.c.0.s8 %v447
  %v449 = vlaneseq
  %v450 = vshrl.u32 %v449, 7
  %v451 = vsub.s32 %v448, %v450
  %v452 = vrot.slane %v438, %v451
  %v453 = vcombine.low %v445, %v452
  %v455 = vunpack.c.l.s4 1966171168
  %v456 = vunpack.c.0.s8 %v455
  %v457 = vlaneseq
  %v458 = vshrl.u32 %v457, 7
  %v459 = vsub.s32 %v456, %v458
  %v460 = vrot.slane %v453, %v459
  %s462 = scalar_lea.vmem [#allocation2], 6
  %463 = vst.msk [vmem:[%s462] ss:$8 sm:$0xf] %vm170, %v460
  %464 = vst.msk [vmem:[%s462] ss:$8 sm:$0x0] %vm170, %v460
  %465 = vrot.lane.b32.xlu0 %v102, 112
  %v466 = vpop.permute.xlu0 %465
  %467 = vrot.lane.b32.xlu0 %v106, 112
  %v468 = vpop.permute.xlu0 %467
  %469 = vrot.lane.b32.xlu0 %v110, 112
  %v470 = vpop.permute.xlu0 %469
  %471 = vrot.lane.b32.xlu0 %v114, 112
  %v472 = vpop.permute.xlu0 %471
  %vm473 = vcmp.lt.s32.totalorder %v128, 112
  %v474 = vsel %vm473, %v470, %v472
  %v475 = vsel %vm473, %v468, %v470
  %v476 = vsel %vm473, %v466, %v468
  %v477 = vsel %vm473, %v472, %v466
  %v478 = vrot.slane %v24, 7
  %v479 = vrot.slane %v25, 7
  %v480 = vrot.slane %v26, 7
  %v481 = vrot.slane %v27, 7
  %v486 = vmul.f32 %v476, %v478
  %v487 = vmul.f32 %v475, %v479
  %v488 = vmul.f32 %v474, %v480
  %v489 = vmul.f32 %v477, %v481
  %v494 = vcombine.low %v486, %v487
  %v495 = vcombine.low %v488, %v489
  %v497 = vunpack.c.l.s4 1966171168
  %v498 = vunpack.c.0.s8 %v497
  %v499 = vlaneseq
  %v500 = vshrl.u32 %v499, 7
  %v501 = vsub.s32 %v498, %v500
  %v502 = vrot.slane %v494, %v501
  %v504 = vunpack.c.l.s4 1966171168
  %v505 = vunpack.c.0.s8 %v504
  %v506 = vlaneseq
  %v507 = vshrl.u32 %v506, 7
  %v508 = vsub.s32 %v505, %v507
  %v509 = vrot.slane %v495, %v508
  %v510 = vcombine.low %v502, %v509
  %v512 = vunpack.c.l.s4 1966171168
  %v513 = vunpack.c.0.s8 %v512
  %v514 = vlaneseq
  %v515 = vshrl.u32 %v514, 7
  %v516 = vsub.s32 %v513, %v515
  %v517 = vrot.slane %v510, %v516
  %s519 = scalar_lea.vmem [#allocation2], 7
  %520 = vst.msk [vmem:[%s519] ss:$8 sm:$0xf] %vm170, %v517
  %521 = vst.msk [vmem:[%s519] ss:$8 sm:$0x0] %vm170, %v517
  %522 = vrot.lane.b32.xlu0 %v102, 111
  %v523 = vpop.permute.xlu0 %522
  %524 = vrot.lane.b32.xlu0 %v106, 111
  %v525 = vpop.permute.xlu0 %524
  %526 = vrot.lane.b32.xlu0 %v110, 111
  %v527 = vpop.permute.xlu0 %526
  %528 = vrot.lane.b32.xlu0 %v114, 111
  %v529 = vpop.permute.xlu0 %528
  %vm530 = vcmp.lt.s32.totalorder %v128, 111
  %v531 = vsel %vm530, %v527, %v529
  %v532 = vsel %vm530, %v525, %v527
  %v533 = vsel %vm530, %v523, %v525
  %v534 = vsel %vm530, %v529, %v523
  %v535 = vmul.f32 %v533, %v28
  %v536 = vmul.f32 %v532, %v29
  %v537 = vmul.f32 %v531, %v30
  %v538 = vmul.f32 %v534, %v31
  %v543 = vcombine.low %v535, %v536
  %v544 = vcombine.low %v537, %v538
  %v546 = vunpack.c.l.s4 1966171168
  %v547 = vunpack.c.0.s8 %v546
  %v548 = vlaneseq
  %v549 = vshrl.u32 %v548, 7
  %v550 = vsub.s32 %v547, %v549
  %v551 = vrot.slane %v543, %v550
  %v553 = vunpack.c.l.s4 1966171168
  %v554 = vunpack.c.0.s8 %v553
  %v555 = vlaneseq
  %v556 = vshrl.u32 %v555, 7
  %v557 = vsub.s32 %v554, %v556
  %v558 = vrot.slane %v544, %v557
  %v559 = vcombine.low %v551, %v558
  %v561 = vunpack.c.l.s4 1966171168
  %v562 = vunpack.c.0.s8 %v561
  %v563 = vlaneseq
  %v564 = vshrl.u32 %v563, 7
  %v565 = vsub.s32 %v562, %v564
  %v566 = vrot.slane %v559, %v565
  %s568 = scalar_lea.vmem [#allocation2], 32
  %569 = vst.msk [vmem:[%s568] ss:$8 sm:$0xf] %vm170, %v566
  %570 = vst.msk [vmem:[%s568] ss:$8 sm:$0x0] %vm170, %v566
  %v571 = vld [vmem:[#allocation2] sm:$0xff]
  %v572 = vld [vmem:[#allocation2 + $0x8] sm:$0xff]
  %v573 = vld [vmem:[#allocation2 + $0x10] sm:$0xff]
  %v574 = vld [vmem:[#allocation2 + $0x18] sm:$0xff]
  %v575 = vld [vmem:[#allocation2 + $0x20] sm:$0x1]
  %v576 = vld [vmem:[#allocation2 + $0x28] sm:$0x1]
  %v577 = vld [vmem:[#allocation2 + $0x30] sm:$0x1]
  %v578 = vld [vmem:[#allocation2 + $0x38] sm:$0x1]
  %v579 = vpack.c.bf16 %v575, %v571
  %v580 = vpack.c.bf16 %v576, %v572
  %v581 = vpack.c.bf16 %v577, %v573
  %v582 = vpack.c.bf16 %v578, %v574
  %v583 = vld [vmem:[%s4] sm:$0xf]
  %v584 = vld [vmem:[%s5] sm:$0xff]
  %586 = vset.pattern.permute.xlu0 0
  %587 = vperm.xlu0 %586, %v584
  %v588 = vpop.permute.xlu0 %587
  %vm590 = vcmask 72704
  %v592 = vsel %vm590, %v583, 0
  %vm594 = vcmask 1043456
  %vm595 = vcmask 1044480
  %v596 = vsel %vm594, 4294967295, 65535
  %v597 = vsel %vm595, %v596, 0
  %v599 = vand.u32 %v579, %v597
  %v602 = vand.u32 %v580, %v597
  %v605 = vand.u32 %v581, %v597
  %v608 = vand.u32 %v582, %v597
  %610 = vmatprep.subr.bf16.mxu0 0
  %611 = vmatpush1.bf16.msra.mxu0 0
  %612 = vmatprep.subr.bf16.mxu0 0
  %613 = vmatpush1.bf16.msra.mxu0 0
  %614 = vmatprep.subr.bf16.mxu0 0
  %615 = vmatpush1.bf16.msra.mxu0 0
  %616 = vmatprep.subr.bf16.mxu0 0
  %617 = vmatpush1.bf16.msra.mxu0 0
  %618 = vmatprep.subr.bf16.mxu0 0
  %619 = vmatpush1.bf16.msra.mxu0 0
  %620 = vmatprep.subr.bf16.mxu0 0
  %621 = vmatpush1.bf16.msra.mxu0 0
  %622 = vmatprep.subr.bf16.mxu0 0
  %623 = vmatpush1.bf16.msra.mxu0 0
  %624 = vmatprep.subr.bf16.mxu0 %v602
  %625 = vmatpush1.bf16.msra.mxu0 %v599
  %626 = vmatprep.subr.bf16.mxu0 0
  %627 = vmatpush2.bf16.msra.mxu0 0
  %628 = vmatprep.subr.bf16.mxu0 0
  %629 = vmatpush2.bf16.msra.mxu0 0
  %630 = vmatprep.subr.bf16.mxu0 0
  %631 = vmatpush2.bf16.msra.mxu0 0
  %632 = vmatprep.subr.bf16.mxu0 0
  %633 = vmatpush2.bf16.msra.mxu0 0
  %634 = vmatprep.subr.bf16.mxu0 0
  %635 = vmatpush2.bf16.msra.mxu0 0
  %636 = vmatprep.subr.bf16.mxu0 0
  %637 = vmatpush2.bf16.msra.mxu0 0
  %638 = vmatprep.subr.bf16.mxu0 0
  %639 = vmatpush2.bf16.msra.mxu0 0
  %640 = vmatprep.subr.bf16.mxu0 0
  %641 = vmatpush2.bf16.msra.mxu0 0
  %642 = vmatprep.mubr.bf16.mxu0 0
  %643 = vmatmul.mubr.bf16.gmra.mxu0 %v592
  %v644 = vpop.f32.mrf.mxu0
  %v645 = vadd.f32 %v588, %v644
  %v646 = vpop.f32.mrf.mxu0
  %v647 = vadd.f32 %v588, %v646
  %v648 = vpop.f32.mrf.mxu0
  %v649 = vpop.f32.mrf.mxu0
  %650 = vdwg.mxu0
  %651 = vmatprep.subr.bf16.mxu0 0
  %652 = vmatpush1.bf16.msra.mxu0 0
  %653 = vmatprep.subr.bf16.mxu0 0
  %654 = vmatpush1.bf16.msra.mxu0 0
  %655 = vmatprep.subr.bf16.mxu0 0
  %656 = vmatpush1.bf16.msra.mxu0 0
  %657 = vmatprep.subr.bf16.mxu0 0
  %658 = vmatpush1.bf16.msra.mxu0 0
  %659 = vmatprep.subr.bf16.mxu0 0
  %660 = vmatpush1.bf16.msra.mxu0 0
  %661 = vmatprep.subr.bf16.mxu0 0
  %662 = vmatpush1.bf16.msra.mxu0 0
  %663 = vmatprep.subr.bf16.mxu0 0
  %664 = vmatpush1.bf16.msra.mxu0 0
  %665 = vmatprep.subr.bf16.mxu0 %v608
  %666 = vmatpush1.bf16.msra.mxu0 %v605
  %667 = vmatprep.subr.bf16.mxu0 0
  %668 = vmatpush2.bf16.msra.mxu0 0
  %669 = vmatprep.subr.bf16.mxu0 0
  %670 = vmatpush2.bf16.msra.mxu0 0
  %671 = vmatprep.subr.bf16.mxu0 0
  %672 = vmatpush2.bf16.msra.mxu0 0
  %673 = vmatprep.subr.bf16.mxu0 0
  %674 = vmatpush2.bf16.msra.mxu0 0
  %675 = vmatprep.subr.bf16.mxu0 0
  %676 = vmatpush2.bf16.msra.mxu0 0
  %677 = vmatprep.subr.bf16.mxu0 0
  %678 = vmatpush2.bf16.msra.mxu0 0
  %679 = vmatprep.subr.bf16.mxu0 0
  %680 = vmatpush2.bf16.msra.mxu0 0
  %681 = vmatprep.subr.bf16.mxu0 0
  %682 = vmatpush2.bf16.msra.mxu0 0
  %683 = vmatprep.mubr.bf16.mxu0 0
  %684 = vmatmul.mubr.bf16.gmra.mxu0 %v592
  %v685 = vpop.f32.mrf.mxu0
  %v686 = vadd.f32 %v588, %v685
  %v687 = vpop.f32.mrf.mxu0
  %v688 = vadd.f32 %v588, %v687
  %v689 = vpop.f32.mrf.mxu0
  %v690 = vpop.f32.mrf.mxu0
  %691 = vdwg.mxu0
  %v692 = vmax.f32 %v645, 0.0
  %v693 = vmax.f32 %v647, 0.0
  %v694 = vmax.f32 %v686, 0.0
  %v695 = vmax.f32 %v688, 0.0
  %696 = vrot.lane.b32.xlu0 %v692, 17
  %v697 = vpop.permute.xlu0 %696
  %698 = vrot.lane.b32.xlu0 %v693, 17
  %v699 = vpop.permute.xlu0 %698
  %700 = vrot.lane.b32.xlu0 %v694, 17
  %v701 = vpop.permute.xlu0 %700
  %702 = vrot.lane.b32.xlu0 %v695, 17
  %v703 = vpop.permute.xlu0 %702
  %v704 = vsel %vm129, %v701, %v703
  %v705 = vsel %vm129, %v699, %v701
  %v706 = vsel %vm129, %v697, %v699
  %v707 = vsel %vm129, %v703, %v697
  %v708 = vlaneseq
  %v709 = vshrl.u32 %v708, 7
  %v710 = vsub.s32 0, %v709
  %v711 = vrot.slane %v24, %v710
  %v712 = vlaneseq
  %v713 = vshrl.u32 %v712, 7
  %v714 = vsub.s32 0, %v713
  %v715 = vrot.slane %v25, %v714
  %v716 = vlaneseq
  %v717 = vshrl.u32 %v716, 7
  %v718 = vsub.s32 0, %v717
  %v719 = vrot.slane %v26, %v718
  %v720 = vlaneseq
  %v721 = vshrl.u32 %v720, 7
  %v722 = vsub.s32 0, %v721
  %v723 = vrot.slane %v27, %v722
  %v724 = vmul.f32 %v707, %v711
  %v725 = vmul.f32 %v706, %v715
  %v726 = vmul.f32 %v705, %v719
  %v727 = vmul.f32 %v704, %v723
  %728 = vst [vmem:[#allocation2] sm:$0xff] %v724
  %729 = vst [vmem:[#allocation2 + $0x8] sm:$0xff] %v725
  %730 = vst [vmem:[#allocation2 + $0x10] sm:$0xff] %v726
  %731 = vst [vmem:[#allocation2 + $0x18] sm:$0xff] %v727
  %732 = vrot.lane.b32.xlu0 %v692, 16
  %v733 = vpop.permute.xlu0 %732
  %734 = vrot.lane.b32.xlu0 %v693, 16
  %v735 = vpop.permute.xlu0 %734
  %736 = vrot.lane.b32.xlu0 %v694, 16
  %v737 = vpop.permute.xlu0 %736
  %738 = vrot.lane.b32.xlu0 %v695, 16
  %v739 = vpop.permute.xlu0 %738
  %v740 = vsel %vm181, %v737, %v739
  %v741 = vsel %vm181, %v735, %v737
  %v742 = vsel %vm181, %v733, %v735
  %v743 = vsel %vm181, %v739, %v733
  %v744 = vlaneseq
  %v745 = vshrl.u32 %v744, 7
  %v746 = vsub.s32 1, %v745
  %v747 = vrot.slane %v24, %v746
  %v748 = vlaneseq
  %v749 = vshrl.u32 %v748, 7
  %v750 = vsub.s32 1, %v749
  %v751 = vrot.slane %v25, %v750
  %v752 = vlaneseq
  %v753 = vshrl.u32 %v752, 7
  %v754 = vsub.s32 1, %v753
  %v755 = vrot.slane %v26, %v754
  %v756 = vlaneseq
  %v757 = vshrl.u32 %v756, 7
  %v758 = vsub.s32 1, %v757
  %v759 = vrot.slane %v27, %v758
  %v760 = vmul.f32 %v743, %v747
  %v761 = vmul.f32 %v742, %v751
  %v762 = vmul.f32 %v741, %v755
  %v763 = vmul.f32 %v740, %v759
  %764 = vst [vmem:[#allocation2 + $0x20] sm:$0xff] %v760
  %765 = vst [vmem:[#allocation2 + $0x28] sm:$0xff] %v761
  %766 = vst [vmem:[#allocation2 + $0x30] sm:$0xff] %v762
  %767 = vst [vmem:[#allocation2 + $0x38] sm:$0xff] %v763
  %768 = vrot.lane.b32.xlu0 %v692, 15
  %v769 = vpop.permute.xlu0 %768
  %770 = vrot.lane.b32.xlu0 %v693, 15
  %v771 = vpop.permute.xlu0 %770
  %772 = vrot.lane.b32.xlu0 %v694, 15
  %v773 = vpop.permute.xlu0 %772
  %774 = vrot.lane.b32.xlu0 %v695, 15
  %v775 = vpop.permute.xlu0 %774
  %v776 = vsel %vm242, %v773, %v775
  %v777 = vsel %vm242, %v771, %v773
  %v778 = vsel %vm242, %v769, %v771
  %v779 = vsel %vm242, %v775, %v769
  %v780 = vlaneseq
  %v781 = vshrl.u32 %v780, 7
  %v782 = vsub.s32 2, %v781
  %v783 = vrot.slane %v24, %v782
  %v784 = vlaneseq
  %v785 = vshrl.u32 %v784, 7
  %v786 = vsub.s32 2, %v785
  %v787 = vrot.slane %v25, %v786
  %v788 = vlaneseq
  %v789 = vshrl.u32 %v788, 7
  %v790 = vsub.s32 2, %v789
  %v791 = vrot.slane %v26, %v790
  %v792 = vlaneseq
  %v793 = vshrl.u32 %v792, 7
  %v794 = vsub.s32 2, %v793
  %v795 = vrot.slane %v27, %v794
  %v796 = vmul.f32 %v779, %v783
  %v797 = vmul.f32 %v778, %v787
  %v798 = vmul.f32 %v777, %v791
  %v799 = vmul.f32 %v776, %v795
  %800 = vst [vmem:[#allocation2 + $0x40] sm:$0xff] %v796
  %801 = vst [vmem:[#allocation2 + $0x48] sm:$0xff] %v797
  %802 = vst [vmem:[#allocation2 + $0x50] sm:$0xff] %v798
  %803 = vst [vmem:[#allocation2 + $0x58] sm:$0xff] %v799
  %804 = vrot.lane.b32.xlu0 %v692, 1
  %v805 = vpop.permute.xlu0 %804
  %806 = vrot.lane.b32.xlu0 %v693, 1
  %v807 = vpop.permute.xlu0 %806
  %808 = vrot.lane.b32.xlu0 %v694, 1
  %v809 = vpop.permute.xlu0 %808
  %810 = vrot.lane.b32.xlu0 %v695, 1
  %v811 = vpop.permute.xlu0 %810
  %v812 = vsel %vm299, %v809, %v811
  %v813 = vsel %vm299, %v807, %v809
  %v814 = vsel %vm299, %v805, %v807
  %v815 = vsel %vm299, %v811, %v805
  %v816 = vlaneseq
  %v817 = vshrl.u32 %v816, 7
  %v818 = vsub.s32 3, %v817
  %v819 = vrot.slane %v24, %v818
  %v820 = vlaneseq
  %v821 = vshrl.u32 %v820, 7
  %v822 = vsub.s32 3, %v821
  %v823 = vrot.slane %v25, %v822
  %v824 = vlaneseq
  %v825 = vshrl.u32 %v824, 7
  %v826 = vsub.s32 3, %v825
  %v827 = vrot.slane %v26, %v826
  %v828 = vlaneseq
  %v829 = vshrl.u32 %v828, 7
  %v830 = vsub.s32 3, %v829
  %v831 = vrot.slane %v27, %v830
  %v832 = vmul.f32 %v815, %v819
  %v833 = vmul.f32 %v814, %v823
  %v834 = vmul.f32 %v813, %v827
  %v835 = vmul.f32 %v812, %v831
  %836 = vst [vmem:[#allocation2 + $0x60] sm:$0xff] %v832
  %837 = vst [vmem:[#allocation2 + $0x68] sm:$0xff] %v833
  %838 = vst [vmem:[#allocation2 + $0x70] sm:$0xff] %v834
  %839 = vst [vmem:[#allocation2 + $0x78] sm:$0xff] %v835
  %840 = vst [vmem:[#allocation2 + $0x80] sm:$0xff] %v692
  %841 = vst [vmem:[#allocation2 + $0x88] sm:$0xff] %v693
  %842 = vst [vmem:[#allocation2 + $0x90] sm:$0xff] %v694
  %843 = vst [vmem:[#allocation2 + $0x98] sm:$0xff] %v695
  %844 = vrot.lane.b32.xlu0 %v692, 127
  %v845 = vpop.permute.xlu0 %844
  %846 = vrot.lane.b32.xlu0 %v693, 127
  %v847 = vpop.permute.xlu0 %846
  %848 = vrot.lane.b32.xlu0 %v694, 127
  %v849 = vpop.permute.xlu0 %848
  %850 = vrot.lane.b32.xlu0 %v695, 127
  %v851 = vpop.permute.xlu0 %850
  %v852 = vsel %vm359, %v849, %v851
  %v853 = vsel %vm359, %v847, %v849
  %v854 = vsel %vm359, %v845, %v847
  %v855 = vsel %vm359, %v851, %v845
  %v856 = vlaneseq
  %v857 = vshrl.u32 %v856, 7
  %v858 = vsub.s32 5, %v857
  %v859 = vrot.slane %v24, %v858
  %v860 = vlaneseq
  %v861 = vshrl.u32 %v860, 7
  %v862 = vsub.s32 5, %v861
  %v863 = vrot.slane %v25, %v862
  %v864 = vlaneseq
  %v865 = vshrl.u32 %v864, 7
  %v866 = vsub.s32 5, %v865
  %v867 = vrot.slane %v26, %v866
  %v868 = vlaneseq
  %v869 = vshrl.u32 %v868, 7
  %v870 = vsub.s32 5, %v869
  %v871 = vrot.slane %v27, %v870
  %v872 = vmul.f32 %v854, %v859
  %v873 = vmul.f32 %v853, %v863
  %v874 = vmul.f32 %v852, %v867
  %v875 = vmul.f32 %v855, %v871
  %876 = vst [vmem:[#allocation2 + $0xa0] sm:$0xff] %v872
  %877 = vst [vmem:[#allocation2 + $0xa8] sm:$0xff] %v873
  %878 = vst [vmem:[#allocation2 + $0xb0] sm:$0xff] %v874
  %879 = vst [vmem:[#allocation2 + $0xb8] sm:$0xff] %v875
  %880 = vrot.lane.b32.xlu0 %v692, 113
  %v881 = vpop.permute.xlu0 %880
  %882 = vrot.lane.b32.xlu0 %v693, 113
  %v883 = vpop.permute.xlu0 %882
  %884 = vrot.lane.b32.xlu0 %v694, 113
  %v885 = vpop.permute.xlu0 %884
  %886 = vrot.lane.b32.xlu0 %v695, 113
  %v887 = vpop.permute.xlu0 %886
  %v888 = vsel %vm416, %v885, %v887
  %v889 = vsel %vm416, %v883, %v885
  %v890 = vsel %vm416, %v881, %v883
  %v891 = vsel %vm416, %v887, %v881
  %v892 = vlaneseq
  %v893 = vshrl.u32 %v892, 7
  %v894 = vsub.s32 6, %v893
  %v895 = vrot.slane %v24, %v894
  %v896 = vlaneseq
  %v897 = vshrl.u32 %v896, 7
  %v898 = vsub.s32 6, %v897
  %v899 = vrot.slane %v25, %v898
  %v900 = vlaneseq
  %v901 = vshrl.u32 %v900, 7
  %v902 = vsub.s32 6, %v901
  %v903 = vrot.slane %v26, %v902
  %v904 = vlaneseq
  %v905 = vshrl.u32 %v904, 7
  %v906 = vsub.s32 6, %v905
  %v907 = vrot.slane %v27, %v906
  %v908 = vmul.f32 %v890, %v895
  %v909 = vmul.f32 %v889, %v899
  %v910 = vmul.f32 %v888, %v903
  %v911 = vmul.f32 %v891, %v907
  %912 = vst [vmem:[#allocation2 + $0xc0] sm:$0xff] %v908
  %913 = vst [vmem:[#allocation2 + $0xc8] sm:$0xff] %v909
  %914 = vst [vmem:[#allocation2 + $0xd0] sm:$0xff] %v910
  %915 = vst [vmem:[#allocation2 + $0xd8] sm:$0xff] %v911
  %916 = vrot.lane.b32.xlu0 %v692, 112
  %v917 = vpop.permute.xlu0 %916
  %918 = vrot.lane.b32.xlu0 %v693, 112
  %v919 = vpop.permute.xlu0 %918
  %920 = vrot.lane.b32.xlu0 %v694, 112
  %v921 = vpop.permute.xlu0 %920
  %922 = vrot.lane.b32.xlu0 %v695, 112
  %v923 = vpop.permute.xlu0 %922
  %v924 = vsel %vm473, %v921, %v923
  %v925 = vsel %vm473, %v919, %v921
  %v926 = vsel %vm473, %v917, %v919
  %v927 = vsel %vm473, %v923, %v917
  %v928 = vlaneseq
  %v929 = vshrl.u32 %v928, 7
  %v930 = vsub.s32 7, %v929
  %v931 = vrot.slane %v24, %v930
  %v932 = vlaneseq
  %v933 = vshrl.u32 %v932, 7
  %v934 = vsub.s32 7, %v933
  %v935 = vrot.slane %v25, %v934
  %v936 = vlaneseq
  %v937 = vshrl.u32 %v936, 7
  %v938 = vsub.s32 7, %v937
  %v939 = vrot.slane %v26, %v938
  %v940 = vlaneseq
  %v941 = vshrl.u32 %v940, 7
  %v942 = vsub.s32 7, %v941
  %v943 = vrot.slane %v27, %v942
  %v944 = vmul.f32 %v926, %v931
  %v945 = vmul.f32 %v925, %v935
  %v946 = vmul.f32 %v924, %v939
  %v947 = vmul.f32 %v927, %v943
  %948 = vst [vmem:[#allocation2 + $0xe0] sm:$0xff] %v944
  %949 = vst [vmem:[#allocation2 + $0xe8] sm:$0xff] %v945
  %950 = vst [vmem:[#allocation2 + $0xf0] sm:$0xff] %v946
  %951 = vst [vmem:[#allocation2 + $0xf8] sm:$0xff] %v947
  %952 = vrot.lane.b32.xlu0 %v692, 111
  %v953 = vpop.permute.xlu0 %952
  %954 = vrot.lane.b32.xlu0 %v693, 111
  %v955 = vpop.permute.xlu0 %954
  %956 = vrot.lane.b32.xlu0 %v694, 111
  %v957 = vpop.permute.xlu0 %956
  %958 = vrot.lane.b32.xlu0 %v695, 111
  %v959 = vpop.permute.xlu0 %958
  %v960 = vsel %vm530, %v957, %v959
  %v961 = vsel %vm530, %v955, %v957
  %v962 = vsel %vm530, %v953, %v955
  %v963 = vsel %vm530, %v959, %v953
  %v964 = vlaneseq
  %v965 = vshrl.u32 %v964, 7
  %v966 = vsub.s32 0, %v965
  %v967 = vrot.slane %v28, %v966
  %v968 = vlaneseq
  %v969 = vshrl.u32 %v968, 7
  %v970 = vsub.s32 0, %v969
  %v971 = vrot.slane %v29, %v970
  %v972 = vlaneseq
  %v973 = vshrl.u32 %v972, 7
  %v974 = vsub.s32 0, %v973
  %v975 = vrot.slane %v30, %v974
  %v976 = vlaneseq
  %v977 = vshrl.u32 %v976, 7
  %v978 = vsub.s32 0, %v977
  %v979 = vrot.slane %v31, %v978
  %v980 = vmul.f32 %v962, %v967
  %v981 = vmul.f32 %v961, %v971
  %v982 = vmul.f32 %v960, %v975
  %v983 = vmul.f32 %v963, %v979
  %984 = vst [vmem:[#allocation2 + $0x100] sm:$0xff] %v980
  %985 = vst [vmem:[#allocation2 + $0x108] sm:$0xff] %v981
  %986 = vst [vmem:[#allocation2 + $0x110] sm:$0xff] %v982
  %987 = vst [vmem:[#allocation2 + $0x118] sm:$0xff] %v983
  %v988 = vld [vmem:[#allocation2] sm:$0xff]
  %v989 = vld [vmem:[#allocation2 + $0x8] sm:$0xff]
  %v990 = vld [vmem:[#allocation2 + $0x10] sm:$0xff]
  %v991 = vld [vmem:[#allocation2 + $0x18] sm:$0xff]
  %v992 = vld [vmem:[#allocation2 + $0x20] sm:$0xff]
  %v993 = vld [vmem:[#allocation2 + $0x28] sm:$0xff]
  %v994 = vld [vmem:[#allocation2 + $0x30] sm:$0xff]
  %v995 = vld [vmem:[#allocation2 + $0x38] sm:$0xff]
  %v996 = vld [vmem:[#allocation2 + $0x40] sm:$0xff]
  %v997 = vld [vmem:[#allocation2 + $0x48] sm:$0xff]
  %v998 = vld [vmem:[#allocation2 + $0x50] sm:$0xff]
  %v999 = vld [vmem:[#allocation2 + $0x58] sm:$0xff]
  %v1000 = vld [vmem:[#allocation2 + $0x60] sm:$0xff]
  %v1001 = vld [vmem:[#allocation2 + $0x68] sm:$0xff]
  %v1002 = vld [vmem:[#allocation2 + $0x70] sm:$0xff]
  %v1003 = vld [vmem:[#allocation2 + $0x78] sm:$0xff]
  %v1004 = vld [vmem:[#allocation2 + $0x80] sm:$0xff]
  %v1005 = vld [vmem:[#allocation2 + $0x88] sm:$0xff]
  %v1006 = vld [vmem:[#allocation2 + $0x90] sm:$0xff]
  %v1007 = vld [vmem:[#allocation2 + $0x98] sm:$0xff]
  %v1008 = vld [vmem:[#allocation2 + $0xa0] sm:$0xff]
  %v1009 = vld [vmem:[#allocation2 + $0xa8] sm:$0xff]
  %v1010 = vld [vmem:[#allocation2 + $0xb0] sm:$0xff]
  %v1011 = vld [vmem:[#allocation2 + $0xb8] sm:$0xff]
  %v1012 = vld [vmem:[#allocation2 + $0xc0] sm:$0xff]
  %v1013 = vld [vmem:[#allocation2 + $0xc8] sm:$0xff]
  %v1014 = vld [vmem:[#allocation2 + $0xd0] sm:$0xff]
  %v1015 = vld [vmem:[#allocation2 + $0xd8] sm:$0xff]
  %v1016 = vld [vmem:[#allocation2 + $0xe0] sm:$0xff]
  %v1017 = vld [vmem:[#allocation2 + $0xe8] sm:$0xff]
  %v1018 = vld [vmem:[#allocation2 + $0xf0] sm:$0xff]
  %v1019 = vld [vmem:[#allocation2 + $0xf8] sm:$0xff]
  %v1020 = vld [vmem:[#allocation2 + $0x100] sm:$0xff]
  %v1021 = vld [vmem:[#allocation2 + $0x108] sm:$0xff]
  %v1022 = vld [vmem:[#allocation2 + $0x110] sm:$0xff]
  %v1023 = vld [vmem:[#allocation2 + $0x118] sm:$0xff]
  %v1024 = vpack.c.bf16 %v992, %v988
  %v1025 = vpack.c.bf16 %v993, %v989
  %v1026 = vpack.c.bf16 %v994, %v990
  %v1027 = vpack.c.bf16 %v995, %v991
  %v1028 = vpack.c.bf16 %v1000, %v996
  %v1029 = vpack.c.bf16 %v1001, %v997
  %v1030 = vpack.c.bf16 %v1002, %v998
  %v1031 = vpack.c.bf16 %v1003, %v999
  %v1032 = vpack.c.bf16 %v1008, %v1004
  %v1033 = vpack.c.bf16 %v1009, %v1005
  %v1034 = vpack.c.bf16 %v1010, %v1006
  %v1035 = vpack.c.bf16 %v1011, %v1007
  %v1036 = vpack.c.bf16 %v1016, %v1012
  %v1037 = vpack.c.bf16 %v1017, %v1013
  %v1038 = vpack.c.bf16 %v1018, %v1014
  %v1039 = vpack.c.bf16 %v1019, %v1015
  %v1040 = vpack.c.bf16 %v1020, %v1020
  %v1041 = vpack.c.bf16 %v1021, %v1021
  %v1042 = vpack.c.bf16 %v1022, %v1022
  %v1043 = vpack.c.bf16 %v1023, %v1023
  %v1044 = vld [vmem:[%s4 + $0x4] sm:$0xf]
  %v1045 = vld [vmem:[%s4 + $0x8] sm:$0xf]
  %v1046 = vld [vmem:[%s5 + $0x8] sm:$0xff]
  %v1047 = vld [vmem:[%s5 + $0x10] sm:$0xff]
  %1049 = vset.pattern.permute.xlu0 0
  %1050 = vperm.xlu0 %1049, %v1046
  %v1051 = vpop.permute.xlu0 %1050
  %1054 = vset.pattern.permute.xlu0 0
  %1055 = vperm.xlu0 %1054, %v1047
  %v1056 = vpop.permute.xlu0 %1055
  %v1060 = vunpack.c.l.b16 %v1044
  %v1061 = vunpack.c.l.b16 %v1045
  %v1062 = vpack.c.b16 %v1061, %v1060
  %vm1063 = vcmask 588800
  %v1065 = vsel %vm1063, %v1062, 0
  %v1068 = vsel %vm594, %v1040, 0
  %v1071 = vsel %vm594, %v1041, 0
  %v1074 = vsel %vm594, %v1042, 0
  %v1077 = vsel %vm594, %v1043, 0
  %1079 = vmatprep.subr.bf16.mxu0 0
  %1080 = vmatpush1.bf16.msra.mxu0 0
  %1081 = vmatprep.subr.bf16.mxu0 0
  %1082 = vmatpush1.bf16.msra.mxu0 0
  %1083 = vmatprep.subr.bf16.mxu0 0
  %1084 = vmatpush1.bf16.msra.mxu0 0
  %1085 = vmatprep.subr.bf16.mxu0 %v1071
  %1086 = vmatpush1.bf16.msra.mxu0 %v1068
  %1087 = vmatprep.subr.bf16.mxu0 %v1037
  %1088 = vmatpush1.bf16.msra.mxu0 %v1036
  %1089 = vmatprep.subr.bf16.mxu0 %v1033
  %1090 = vmatpush1.bf16.msra.mxu0 %v1032
  %1091 = vmatprep.subr.bf16.mxu0 %v1029
  %1092 = vmatpush1.bf16.msra.mxu0 %v1028
  %1093 = vmatprep.subr.bf16.mxu0 %v1025
  %1094 = vmatpush1.bf16.msra.mxu0 %v1024
  %1095 = vmatprep.subr.bf16.mxu0 0
  %1096 = vmatpush2.bf16.msra.mxu0 0
  %1097 = vmatprep.subr.bf16.mxu0 0
  %1098 = vmatpush2.bf16.msra.mxu0 0
  %1099 = vmatprep.subr.bf16.mxu0 0
  %1100 = vmatpush2.bf16.msra.mxu0 0
  %1101 = vmatprep.subr.bf16.mxu0 0
  %1102 = vmatpush2.bf16.msra.mxu0 0
  %1103 = vmatprep.subr.bf16.mxu0 0
  %1104 = vmatpush2.bf16.msra.mxu0 0
  %1105 = vmatprep.subr.bf16.mxu0 0
  %1106 = vmatpush2.bf16.msra.mxu0 0
  %1107 = vmatprep.subr.bf16.mxu0 0
  %1108 = vmatpush2.bf16.msra.mxu0 0
  %1109 = vmatprep.subr.bf16.mxu0 0
  %1110 = vmatpush2.bf16.msra.mxu0 0
  %1111 = vmatprep.mubr.bf16.mxu0 0
  %1112 = vmatmul.mubr.bf16.gmra.mxu0 %v1065
  %v1113 = vpop.f32.mrf.mxu0
  %v1114 = vadd.f32 %v1051, %v1113
  %v1115 = vpop.f32.mrf.mxu0
  %v1116 = vadd.f32 %v1051, %v1115
  %v1117 = vpop.f32.mrf.mxu0
  %v1118 = vadd.f32 %v1056, %v1117
  %v1119 = vpop.f32.mrf.mxu0
  %v1120 = vadd.f32 %v1056, %v1119
  %1121 = vdwg.mxu0
  %1122 = vmatprep.subr.bf16.mxu0 0
  %1123 = vmatpush1.bf16.msra.mxu0 0
  %1124 = vmatprep.subr.bf16.mxu0 0
  %1125 = vmatpush1.bf16.msra.mxu0 0
  %1126 = vmatprep.subr.bf16.mxu0 0
  %1127 = vmatpush1.bf16.msra.mxu0 0
  %1128 = vmatprep.subr.bf16.mxu0 %v1077
  %1129 = vmatpush1.bf16.msra.mxu0 %v1074
  %1130 = vmatprep.subr.bf16.mxu0 %v1039
  %1131 = vmatpush1.bf16.msra.mxu0 %v1038
  %1132 = vmatprep.subr.bf16.mxu0 %v1035
  %1133 = vmatpush1.bf16.msra.mxu0 %v1034
  %1134 = vmatprep.subr.bf16.mxu0 %v1031
  %1135 = vmatpush1.bf16.msra.mxu0 %v1030
  %1136 = vmatprep.subr.bf16.mxu0 %v1027
  %1137 = vmatpush1.bf16.msra.mxu0 %v1026
  %1138 = vmatprep.subr.bf16.mxu0 0
  %1139 = vmatpush2.bf16.msra.mxu0 0
  %1140 = vmatprep.subr.bf16.mxu0 0
  %1141 = vmatpush2.bf16.msra.mxu0 0
  %1142 = vmatprep.subr.bf16.mxu0 0
  %1143 = vmatpush2.bf16.msra.mxu0 0
  %1144 = vmatprep.subr.bf16.mxu0 0
  %1145 = vmatpush2.bf16.msra.mxu0 0
  %1146 = vmatprep.subr.bf16.mxu0 0
  %1147 = vmatpush2.bf16.msra.mxu0 0
  %1148 = vmatprep.subr.bf16.mxu0 0
  %1149 = vmatpush2.bf16.msra.mxu0 0
  %1150 = vmatprep.subr.bf16.mxu0 0
  %1151 = vmatpush2.bf16.msra.mxu0 0
  %1152 = vmatprep.subr.bf16.mxu0 0
  %1153 = vmatpush2.bf16.msra.mxu0 0
  %1154 = vmatprep.mubr.bf16.mxu0 0
  %1155 = vmatmul.mubr.bf16.gmra.mxu0 %v1065
  %v1156 = vpop.f32.mrf.mxu0
  %v1157 = vadd.f32 %v1051, %v1156
  %v1158 = vpop.f32.mrf.mxu0
  %v1159 = vadd.f32 %v1051, %v1158
  %v1160 = vpop.f32.mrf.mxu0
  %v1161 = vadd.f32 %v1056, %v1160
  %v1162 = vpop.f32.mrf.mxu0
  %v1163 = vadd.f32 %v1056, %v1162
  %1164 = vdwg.mxu0
  %v1165 = vmax.f32 %v1114, 0.0
  %v1166 = vmax.f32 %v1116, 0.0
  %v1167 = vmax.f32 %v1157, 0.0
  %v1168 = vmax.f32 %v1159, 0.0
  %v1169 = vmax.f32 %v1118, 0.0
  %v1170 = vmax.f32 %v1120, 0.0
  %v1171 = vmax.f32 %v1161, 0.0
  %v1172 = vmax.f32 %v1163, 0.0
  %1173 = vmatprep.subr.mxu0 0.0
  %1174 = vmatpush1.msra.mxu0 %v47
  %1175 = vmatprep.subr.mxu0 0.0
  %1176 = vmatpush1.msra.mxu0 %v46
  %1177 = vmatprep.subr.mxu0 0.0
  %1178 = vmatpush1.msra.mxu0 %v45
  %1179 = vmatprep.subr.mxu0 0.0
  %1180 = vmatpush1.msra.mxu0 %v44
  %1181 = vmatprep.subr.mxu0 0.0
  %1182 = vmatpush1.msra.mxu0 %v43
  %1183 = vmatprep.subr.mxu0 0.0
  %1184 = vmatpush1.msra.mxu0 %v42
  %1185 = vmatprep.subr.mxu0 0.0
  %1186 = vmatpush1.msra.mxu0 %v41
  %1187 = vmatprep.subr.mxu0 0.0
  %1188 = vmatpush1.msra.mxu0 %v40
  %1189 = vmatprep.subr.mxu0 0.0
  %1190 = vmatpush1.msra.mxu0 %v39
  %1191 = vmatprep.subr.mxu0 0.0
  %1192 = vmatpush1.msra.mxu0 %v38
  %1193 = vmatprep.subr.mxu0 0.0
  %1194 = vmatpush1.msra.mxu0 %v37
  %1195 = vmatprep.subr.mxu0 0.0
  %1196 = vmatpush1.msra.mxu0 %v36
  %1197 = vmatprep.subr.mxu0 0.0
  %1198 = vmatpush1.msra.mxu0 %v35
  %1199 = vmatprep.subr.mxu0 0.0
  %1200 = vmatpush1.msra.mxu0 %v34
  %1201 = vmatprep.subr.mxu0 0.0
  %1202 = vmatpush1.msra.mxu0 %v33
  %1203 = vmatprep.subr.mxu0 0.0
  %1204 = vmatpush1.msra.mxu0 %v32
  %1205 = vmatprep.subr.mxu0 0.0
  %1206 = vmatpush2.msra.mxu0 %v63
  %1207 = vmatprep.subr.mxu0 0.0
  %1208 = vmatpush2.msra.mxu0 %v62
  %1209 = vmatprep.subr.mxu0 0.0
  %1210 = vmatpush2.msra.mxu0 %v61
  %1211 = vmatprep.subr.mxu0 0.0
  %1212 = vmatpush2.msra.mxu0 %v60
  %1213 = vmatprep.subr.mxu0 0.0
  %1214 = vmatpush2.msra.mxu0 %v59
  %1215 = vmatprep.subr.mxu0 0.0
  %1216 = vmatpush2.msra.mxu0 %v58
  %1217 = vmatprep.subr.mxu0 0.0
  %1218 = vmatpush2.msra.mxu0 %v57
  %1219 = vmatprep.subr.mxu0 0.0
  %1220 = vmatpush2.msra.mxu0 %v56
  %1221 = vmatprep.subr.mxu0 0.0
  %1222 = vmatpush2.msra.mxu0 %v55
  %1223 = vmatprep.subr.mxu0 0.0
  %1224 = vmatpush2.msra.mxu0 %v54
  %1225 = vmatprep.subr.mxu0 0.0
  %1226 = vmatpush2.msra.mxu0 %v53
  %1227 = vmatprep.subr.mxu0 0.0
  %1228 = vmatpush2.msra.mxu0 %v52
  %1229 = vmatprep.subr.mxu0 0.0
  %1230 = vmatpush2.msra.mxu0 %v51
  %1231 = vmatprep.subr.mxu0 0.0
  %1232 = vmatpush2.msra.mxu0 %v50
  %1233 = vmatprep.subr.mxu0 0.0
  %1234 = vmatpush2.msra.mxu0 %v49
  %1235 = vmatprep.subr.mxu0 0.0
  %1236 = vmatpush2.msra.mxu0 %v48
  %1237 = vmatprep.mubr.f32.mxu0 %v1166
  %1238 = vmatmul.mubr.f32.gmra.mxu0 %v1165
  %v1239 = vpop.f32.mrf.mxu0
  %v1240 = vadd.f32 0.0, %v1239
  %v1241 = vpop.f32.mrf.mxu0
  %1242 = vmatprep.mubr.f32.mxu0 %v1170
  %1243 = vmatmul.mubr.f32.gmra.mxu0 %v1169
  %v1244 = vpop.f32.mrf.mxu0
  %v1245 = vadd.f32 0.0, %v1244
  %v1246 = vpop.f32.mrf.mxu0
  %1247 = vdwg.mxu0
  %1248 = vmatprep.subr.mxu0 0.0
  %1249 = vmatpush1.msra.mxu0 %v79
  %1250 = vmatprep.subr.mxu0 0.0
  %1251 = vmatpush1.msra.mxu0 %v78
  %1252 = vmatprep.subr.mxu0 0.0
  %1253 = vmatpush1.msra.mxu0 %v77
  %1254 = vmatprep.subr.mxu0 0.0
  %1255 = vmatpush1.msra.mxu0 %v76
  %1256 = vmatprep.subr.mxu0 0.0
  %1257 = vmatpush1.msra.mxu0 %v75
  %1258 = vmatprep.subr.mxu0 0.0
  %1259 = vmatpush1.msra.mxu0 %v74
  %1260 = vmatprep.subr.mxu0 0.0
  %1261 = vmatpush1.msra.mxu0 %v73
  %1262 = vmatprep.subr.mxu0 0.0
  %1263 = vmatpush1.msra.mxu0 %v72
  %1264 = vmatprep.subr.mxu0 0.0
  %1265 = vmatpush1.msra.mxu0 %v71
  %1266 = vmatprep.subr.mxu0 0.0
  %1267 = vmatpush1.msra.mxu0 %v70
  %1268 = vmatprep.subr.mxu0 0.0
  %1269 = vmatpush1.msra.mxu0 %v69
  %1270 = vmatprep.subr.mxu0 0.0
  %1271 = vmatpush1.msra.mxu0 %v68
  %1272 = vmatprep.subr.mxu0 0.0
  %1273 = vmatpush1.msra.mxu0 %v67
  %1274 = vmatprep.subr.mxu0 0.0
  %1275 = vmatpush1.msra.mxu0 %v66
  %1276 = vmatprep.subr.mxu0 0.0
  %1277 = vmatpush1.msra.mxu0 %v65
  %1278 = vmatprep.subr.mxu0 0.0
  %1279 = vmatpush1.msra.mxu0 %v64
  %1280 = vmatprep.subr.mxu0 0.0
  %1281 = vmatpush2.msra.mxu0 %v95
  %1282 = vmatprep.subr.mxu0 0.0
  %1283 = vmatpush2.msra.mxu0 %v94
  %1284 = vmatprep.subr.mxu0 0.0
  %1285 = vmatpush2.msra.mxu0 %v93
  %1286 = vmatprep.subr.mxu0 0.0
  %1287 = vmatpush2.msra.mxu0 %v92
  %1288 = vmatprep.subr.mxu0 0.0
  %1289 = vmatpush2.msra.mxu0 %v91
  %1290 = vmatprep.subr.mxu0 0.0
  %1291 = vmatpush2.msra.mxu0 %v90
  %1292 = vmatprep.subr.mxu0 0.0
  %1293 = vmatpush2.msra.mxu0 %v89
  %1294 = vmatprep.subr.mxu0 0.0
  %1295 = vmatpush2.msra.mxu0 %v88
  %1296 = vmatprep.subr.mxu0 0.0
  %1297 = vmatpush2.msra.mxu0 %v87
  %1298 = vmatprep.subr.mxu0 0.0
  %1299 = vmatpush2.msra.mxu0 %v86
  %1300 = vmatprep.subr.mxu0 0.0
  %1301 = vmatpush2.msra.mxu0 %v85
  %1302 = vmatprep.subr.mxu0 0.0
  %1303 = vmatpush2.msra.mxu0 %v84
  %1304 = vmatprep.subr.mxu0 0.0
  %1305 = vmatpush2.msra.mxu0 %v83
  %1306 = vmatprep.subr.mxu0 0.0
  %1307 = vmatpush2.msra.mxu0 %v82
  %1308 = vmatprep.subr.mxu0 0.0
  %1309 = vmatpush2.msra.mxu0 %v81
  %1310 = vmatprep.subr.mxu0 0.0
  %1311 = vmatpush2.msra.mxu0 %v80
  %1312 = vmatprep.mubr.f32.mxu0 %v1168
  %1313 = vmatmul.mubr.f32.gmra.mxu0 %v1167
  %v1314 = vpop.f32.mrf.mxu0
  %v1315 = vadd.f32 %v1240, %v1314
  %v1316 = vpop.f32.mrf.mxu0
  %1317 = vmatprep.mubr.f32.mxu0 %v1172
  %1318 = vmatmul.mubr.f32.gmra.mxu0 %v1171
  %v1319 = vpop.f32.mrf.mxu0
  %v1320 = vadd.f32 %v1245, %v1319
  %v1321 = vpop.f32.mrf.mxu0
  %1322 = vdwg.mxu0
  %v1323 = vld [vmem:[%s5 + $0x20] sm:$0xff]
  %v1324 = vld [vmem:[%s5 + $0x28] sm:$0xff]
  %1326 = vset.pattern.permute.xlu0 0
  %1327 = vperm.xlu0 %1326, %v1324
  %v1328 = vpop.permute.xlu0 %1327
  %vm1330 = vcmask 130048
  %v1332 = vsel %vm1330, %v1323, 0
  %1334 = vmatprep.subr.mxu0 0.0
  %1335 = vmatpush1.msra.mxu0 0.0
  %1336 = vmatprep.subr.mxu0 0.0
  %1337 = vmatpush1.msra.mxu0 0.0
  %1338 = vmatprep.subr.mxu0 0.0
  %1339 = vmatpush1.msra.mxu0 0.0
  %1340 = vmatprep.subr.mxu0 0.0
  %1341 = vmatpush1.msra.mxu0 0.0
  %1342 = vmatprep.subr.mxu0 0.0
  %1343 = vmatpush1.msra.mxu0 0.0
  %1344 = vmatprep.subr.mxu0 0.0
  %1345 = vmatpush1.msra.mxu0 0.0
  %1346 = vmatprep.subr.mxu0 0.0
  %1347 = vmatpush1.msra.mxu0 0.0
  %1348 = vmatprep.subr.mxu0 0.0
  %1349 = vmatpush1.msra.mxu0 0.0
  %1350 = vmatprep.subr.mxu0 0.0
  %1351 = vmatpush1.msra.mxu0 0.0
  %1352 = vmatprep.subr.mxu0 0.0
  %1353 = vmatpush1.msra.mxu0 0.0
  %1354 = vmatprep.subr.mxu0 0.0
  %1355 = vmatpush1.msra.mxu0 0.0
  %1356 = vmatprep.subr.mxu0 0.0
  %1357 = vmatpush1.msra.mxu0 0.0
  %1358 = vmatprep.subr.mxu0 0.0
  %1359 = vmatpush1.msra.mxu0 0.0
  %1360 = vmatprep.subr.mxu0 0.0
  %1361 = vmatpush1.msra.mxu0 0.0
  %1362 = vmatprep.subr.mxu0 0.0
  %1363 = vmatpush1.msra.mxu0 %v1320
  %1364 = vmatprep.subr.mxu0 0.0
  %1365 = vmatpush1.msra.mxu0 %v1315
  %1366 = vmatprep.subr.mxu0 0.0
  %1367 = vmatpush2.msra.mxu0 0.0
  %1368 = vmatprep.subr.mxu0 0.0
  %1369 = vmatpush2.msra.mxu0 0.0
  %1370 = vmatprep.subr.mxu0 0.0
  %1371 = vmatpush2.msra.mxu0 0.0
  %1372 = vmatprep.subr.mxu0 0.0
  %1373 = vmatpush2.msra.mxu0 0.0
  %1374 = vmatprep.subr.mxu0 0.0
  %1375 = vmatpush2.msra.mxu0 0.0
  %1376 = vmatprep.subr.mxu0 0.0
  %1377 = vmatpush2.msra.mxu0 0.0
  %1378 = vmatprep.subr.mxu0 0.0
  %1379 = vmatpush2.msra.mxu0 0.0
  %1380 = vmatprep.subr.mxu0 0.0
  %1381 = vmatpush2.msra.mxu0 0.0
  %1382 = vmatprep.subr.mxu0 0.0
  %1383 = vmatpush2.msra.mxu0 0.0
  %1384 = vmatprep.subr.mxu0 0.0
  %1385 = vmatpush2.msra.mxu0 0.0
  %1386 = vmatprep.subr.mxu0 0.0
  %1387 = vmatpush2.msra.mxu0 0.0
  %1388 = vmatprep.subr.mxu0 0.0
  %1389 = vmatpush2.msra.mxu0 0.0
  %1390 = vmatprep.subr.mxu0 0.0
  %1391 = vmatpush2.msra.mxu0 0.0
  %1392 = vmatprep.subr.mxu0 0.0
  %1393 = vmatpush2.msra.mxu0 0.0
  %1394 = vmatprep.subr.mxu0 0.0
  %1395 = vmatpush2.msra.mxu0 0.0
  %1396 = vmatprep.subr.mxu0 0.0
  %1397 = vmatpush2.msra.mxu0 0.0
  %1398 = vmatprep.mubr.f32.mxu0 0.0
  %1399 = vmatmul.mubr.f32.gmra.mxu0 %v1332
  %v1400 = vpop.f32.mrf.mxu0
  %v1401 = vadd.f32 %v1328, %v1400
  %v1402 = vpop.f32.mrf.mxu0
  %1403 = vdwg.mxu0
  %v1404 = vmax.f32 %v1401, 0.0
  %v1405 = vld [vmem:[%s5 + $0x30] sm:$0xff]
  %v1406 = vld [vmem:[%s5 + $0x38] sm:$0xff]
  %v1407 = vld [vmem:[%s5 + $0x40] sm:$0xff]
  %v1408 = vld [vmem:[%s5 + $0x48] sm:$0xff]
  %1410 = vset.pattern.permute.xlu0 0
  %1411 = vperm.xlu0 %1410, %v1407
  %v1412 = vpop.permute.xlu0 %1411
  %1415 = vset.pattern.permute.xlu0 0
  %1416 = vperm.xlu0 %1415, %v1408
  %v1417 = vpop.permute.xlu0 %1416
  %vm1419 = vcmask 64512
  %v1421 = vsel %vm1419, %v1405, 0
  %v1424 = vsel %vm1419, %v1406, 0
  %1426 = vmatprep.subr.mxu0 0.0
  %1427 = vmatpush1.msra.mxu0 0.0
  %1428 = vmatprep.subr.mxu0 0.0
  %1429 = vmatpush1.msra.mxu0 0.0
  %1430 = vmatprep.subr.mxu0 0.0
  %1431 = vmatpush1.msra.mxu0 0.0
  %1432 = vmatprep.subr.mxu0 0.0
  %1433 = vmatpush1.msra.mxu0 0.0
  %1434 = vmatprep.subr.mxu0 0.0
  %1435 = vmatpush1.msra.mxu0 0.0
  %1436 = vmatprep.subr.mxu0 0.0
  %1437 = vmatpush1.msra.mxu0 0.0
  %1438 = vmatprep.subr.mxu0 0.0
  %1439 = vmatpush1.msra.mxu0 0.0
  %1440 = vmatprep.subr.mxu0 0.0
  %1441 = vmatpush1.msra.mxu0 0.0
  %1442 = vmatprep.subr.mxu0 0.0
  %1443 = vmatpush1.msra.mxu0 0.0
  %1444 = vmatprep.subr.mxu0 0.0
  %1445 = vmatpush1.msra.mxu0 0.0
  %1446 = vmatprep.subr.mxu0 0.0
  %1447 = vmatpush1.msra.mxu0 0.0
  %1448 = vmatprep.subr.mxu0 0.0
  %1449 = vmatpush1.msra.mxu0 0.0
  %1450 = vmatprep.subr.mxu0 0.0
  %1451 = vmatpush1.msra.mxu0 0.0
  %1452 = vmatprep.subr.mxu0 0.0
  %1453 = vmatpush1.msra.mxu0 0.0
  %1454 = vmatprep.subr.mxu0 0.0
  %1455 = vmatpush1.msra.mxu0 0.0
  %1456 = vmatprep.subr.mxu0 0.0
  %1457 = vmatpush1.msra.mxu0 %v1404
  %1458 = vmatprep.subr.mxu0 0.0
  %1459 = vmatpush2.msra.mxu0 0.0
  %1460 = vmatprep.subr.mxu0 0.0
  %1461 = vmatpush2.msra.mxu0 0.0
  %1462 = vmatprep.subr.mxu0 0.0
  %1463 = vmatpush2.msra.mxu0 0.0
  %1464 = vmatprep.subr.mxu0 0.0
  %1465 = vmatpush2.msra.mxu0 0.0
  %1466 = vmatprep.subr.mxu0 0.0
  %1467 = vmatpush2.msra.mxu0 0.0
  %1468 = vmatprep.subr.mxu0 0.0
  %1469 = vmatpush2.msra.mxu0 0.0
  %1470 = vmatprep.subr.mxu0 0.0
  %1471 = vmatpush2.msra.mxu0 0.0
  %1472 = vmatprep.subr.mxu0 0.0
  %1473 = vmatpush2.msra.mxu0 0.0
  %1474 = vmatprep.subr.mxu0 0.0
  %1475 = vmatpush2.msra.mxu0 0.0
  %1476 = vmatprep.subr.mxu0 0.0
  %1477 = vmatpush2.msra.mxu0 0.0
  %1478 = vmatprep.subr.mxu0 0.0
  %1479 = vmatpush2.msra.mxu0 0.0
  %1480 = vmatprep.subr.mxu0 0.0
  %1481 = vmatpush2.msra.mxu0 0.0
  %1482 = vmatprep.subr.mxu0 0.0
  %1483 = vmatpush2.msra.mxu0 0.0
  %1484 = vmatprep.subr.mxu0 0.0
  %1485 = vmatpush2.msra.mxu0 0.0
  %1486 = vmatprep.subr.mxu0 0.0
  %1487 = vmatpush2.msra.mxu0 0.0
  %1488 = vmatprep.subr.mxu0 0.0
  %1489 = vmatpush2.msra.mxu0 0.0
  %1490 = vmatprep.mubr.f32.mxu0 0.0
  %1491 = vmatmul.mubr.f32.gmra.mxu0 %v1421
  %v1492 = vpop.f32.mrf.mxu0
  %v1493 = vadd.f32 %v1412, %v1492
  %v1494 = vpop.f32.mrf.mxu0
  %1495 = vmatprep.mubr.f32.mxu0 0.0
  %1496 = vmatmul.mubr.f32.gmra.mxu0 %v1424
  %v1497 = vpop.f32.mrf.mxu0
  %v1498 = vadd.f32 %v1417, %v1497
  %v1499 = vpop.f32.mrf.mxu0
  %1500 = vdwg.mxu0
  %v1501 = vsub.f32 0.0, %v1493
  %v1502 = vsub.f32 0.0, %v1498
  %v1503 = vmul.f32 %v1501, 1.442695
  %v1504 = vpow.pop %v1503
  %v1505 = vmul.f32 %v1502, 1.442695
  %v1506 = vpow.pop %v1505
  %v1507 = vadd.f32 %v1504, 1.0
  %v1508 = vadd.f32 %v1506, 1.0
  %v1509 = vrcp.pop %v1507
  %v1510 = vrcp.pop %v1508
  %v1511 = vld [vmem:[%s5 + $0x50] sm:$0xff]
  %v1512 = vld [vmem:[%s5 + $0x58] sm:$0xff]
  %1514 = vset.pattern.permute.xlu0 0
  %1515 = vperm.xlu0 %1514, %v1512
  %v1516 = vpop.permute.xlu0 %1515
  %v1519 = vsel %vm1330, %v1511, 0
  %1521 = vmatprep.subr.mxu0 0.0
  %1522 = vmatpush1.msra.mxu0 0.0
  %1523 = vmatprep.subr.mxu0 0.0
  %1524 = vmatpush1.msra.mxu0 0.0
  %1525 = vmatprep.subr.mxu0 0.0
  %1526 = vmatpush1.msra.mxu0 0.0
  %1527 = vmatprep.subr.mxu0 0.0
  %1528 = vmatpush1.msra.mxu0 0.0
  %1529 = vmatprep.subr.mxu0 0.0
  %1530 = vmatpush1.msra.mxu0 0.0
  %1531 = vmatprep.subr.mxu0 0.0
  %1532 = vmatpush1.msra.mxu0 0.0
  %1533 = vmatprep.subr.mxu0 0.0
  %1534 = vmatpush1.msra.mxu0 0.0
  %1535 = vmatprep.subr.mxu0 0.0
  %1536 = vmatpush1.msra.mxu0 0.0
  %1537 = vmatprep.subr.mxu0 0.0
  %1538 = vmatpush1.msra.mxu0 0.0
  %1539 = vmatprep.subr.mxu0 0.0
  %1540 = vmatpush1.msra.mxu0 0.0
  %1541 = vmatprep.subr.mxu0 0.0
  %1542 = vmatpush1.msra.mxu0 0.0
  %1543 = vmatprep.subr.mxu0 0.0
  %1544 = vmatpush1.msra.mxu0 0.0
  %1545 = vmatprep.subr.mxu0 0.0
  %1546 = vmatpush1.msra.mxu0 0.0
  %1547 = vmatprep.subr.mxu0 0.0
  %1548 = vmatpush1.msra.mxu0 0.0
  %1549 = vmatprep.subr.mxu0 0.0
  %1550 = vmatpush1.msra.mxu0 %v1320
  %1551 = vmatprep.subr.mxu0 0.0
  %1552 = vmatpush1.msra.mxu0 %v1315
  %1553 = vmatprep.subr.mxu0 0.0
  %1554 = vmatpush2.msra.mxu0 0.0
  %1555 = vmatprep.subr.mxu0 0.0
  %1556 = vmatpush2.msra.mxu0 0.0
  %1557 = vmatprep.subr.mxu0 0.0
  %1558 = vmatpush2.msra.mxu0 0.0
  %1559 = vmatprep.subr.mxu0 0.0
  %1560 = vmatpush2.msra.mxu0 0.0
  %1561 = vmatprep.subr.mxu0 0.0
  %1562 = vmatpush2.msra.mxu0 0.0
  %1563 = vmatprep.subr.mxu0 0.0
  %1564 = vmatpush2.msra.mxu0 0.0
  %1565 = vmatprep.subr.mxu0 0.0
  %1566 = vmatpush2.msra.mxu0 0.0
  %1567 = vmatprep.subr.mxu0 0.0
  %1568 = vmatpush2.msra.mxu0 0.0
  %1569 = vmatprep.subr.mxu0 0.0
  %1570 = vmatpush2.msra.mxu0 0.0
  %1571 = vmatprep.subr.mxu0 0.0
  %1572 = vmatpush2.msra.mxu0 0.0
  %1573 = vmatprep.subr.mxu0 0.0
  %1574 = vmatpush2.msra.mxu0 0.0
  %1575 = vmatprep.subr.mxu0 0.0
  %1576 = vmatpush2.msra.mxu0 0.0
  %1577 = vmatprep.subr.mxu0 0.0
  %1578 = vmatpush2.msra.mxu0 0.0
  %1579 = vmatprep.subr.mxu0 0.0
  %1580 = vmatpush2.msra.mxu0 0.0
  %1581 = vmatprep.subr.mxu0 0.0
  %1582 = vmatpush2.msra.mxu0 0.0
  %1583 = vmatprep.subr.mxu0 0.0
  %1584 = vmatpush2.msra.mxu0 0.0
  %1585 = vmatprep.mubr.f32.mxu0 0.0
  %1586 = vmatmul.mubr.f32.gmra.mxu0 %v1519
  %v1587 = vpop.f32.mrf.mxu0
  %v1588 = vadd.f32 %v1516, %v1587
  %v1589 = vpop.f32.mrf.mxu0
  %1590 = vdwg.mxu0
  %v1591 = vmax.f32 %v1588, 0.0
  %v1592 = vld [vmem:[%s5 + $0x60] sm:$0xff]
  %v1593 = vld [vmem:[%s5 + $0x68] sm:$0xff]
  %v1594 = vld [vmem:[%s5 + $0x70] sm:$0xff]
  %v1595 = vld [vmem:[%s5 + $0x78] sm:$0xff]
  %1597 = vset.pattern.permute.xlu0 0
  %1598 = vperm.xlu0 %1597, %v1594
  %v1599 = vpop.permute.xlu0 %1598
  %1602 = vset.pattern.permute.xlu0 0
  %1603 = vperm.xlu0 %1602, %v1595
  %v1604 = vpop.permute.xlu0 %1603
  %v1607 = vsel %vm1419, %v1592, 0
  %v1610 = vsel %vm1419, %v1593, 0
  %1612 = vmatprep.subr.mxu0 0.0
  %1613 = vmatpush1.msra.mxu0 0.0
  %1614 = vmatprep.subr.mxu0 0.0
  %1615 = vmatpush1.msra.mxu0 0.0
  %1616 = vmatprep.subr.mxu0 0.0
  %1617 = vmatpush1.msra.mxu0 0.0
  %1618 = vmatprep.subr.mxu0 0.0
  %1619 = vmatpush1.msra.mxu0 0.0
  %1620 = vmatprep.subr.mxu0 0.0
  %1621 = vmatpush1.msra.mxu0 0.0
  %1622 = vmatprep.subr.mxu0 0.0
  %1623 = vmatpush1.msra.mxu0 0.0
  %1624 = vmatprep.subr.mxu0 0.0
  %1625 = vmatpush1.msra.mxu0 0.0
  %1626 = vmatprep.subr.mxu0 0.0
  %1627 = vmatpush1.msra.mxu0 0.0
  %1628 = vmatprep.subr.mxu0 0.0
  %1629 = vmatpush1.msra.mxu0 0.0
  %1630 = vmatprep.subr.mxu0 0.0
  %1631 = vmatpush1.msra.mxu0 0.0
  %1632 = vmatprep.subr.mxu0 0.0
  %1633 = vmatpush1.msra.mxu0 0.0
  %1634 = vmatprep.subr.mxu0 0.0
  %1635 = vmatpush1.msra.mxu0 0.0
  %1636 = vmatprep.subr.mxu0 0.0
  %1637 = vmatpush1.msra.mxu0 0.0
  %1638 = vmatprep.subr.mxu0 0.0
  %1639 = vmatpush1.msra.mxu0 0.0
  %1640 = vmatprep.subr.mxu0 0.0
  %1641 = vmatpush1.msra.mxu0 0.0
  %1642 = vmatprep.subr.mxu0 0.0
  %1643 = vmatpush1.msra.mxu0 %v1591
  %1644 = vmatprep.subr.mxu0 0.0
  %1645 = vmatpush2.msra.mxu0 0.0
  %1646 = vmatprep.subr.mxu0 0.0
  %1647 = vmatpush2.msra.mxu0 0.0
  %1648 = vmatprep.subr.mxu0 0.0
  %1649 = vmatpush2.msra.mxu0 0.0
  %1650 = vmatprep.subr.mxu0 0.0
  %1651 = vmatpush2.msra.mxu0 0.0
  %1652 = vmatprep.subr.mxu0 0.0
  %1653 = vmatpush2.msra.mxu0 0.0
  %1654 = vmatprep.subr.mxu0 0.0
  %1655 = vmatpush2.msra.mxu0 0.0
  %1656 = vmatprep.subr.mxu0 0.0
  %1657 = vmatpush2.msra.mxu0 0.0
  %1658 = vmatprep.subr.mxu0 0.0
  %1659 = vmatpush2.msra.mxu0 0.0
  %1660 = vmatprep.subr.mxu0 0.0
  %1661 = vmatpush2.msra.mxu0 0.0
  %1662 = vmatprep.subr.mxu0 0.0
  %1663 = vmatpush2.msra.mxu0 0.0
  %1664 = vmatprep.subr.mxu0 0.0
  %1665 = vmatpush2.msra.mxu0 0.0
  %1666 = vmatprep.subr.mxu0 0.0
  %1667 = vmatpush2.msra.mxu0 0.0
  %1668 = vmatprep.subr.mxu0 0.0
  %1669 = vmatpush2.msra.mxu0 0.0
  %1670 = vmatprep.subr.mxu0 0.0
  %1671 = vmatpush2.msra.mxu0 0.0
  %1672 = vmatprep.subr.mxu0 0.0
  %1673 = vmatpush2.msra.mxu0 0.0
  %1674 = vmatprep.subr.mxu0 0.0
  %1675 = vmatpush2.msra.mxu0 0.0
  %1676 = vmatprep.mubr.f32.mxu0 0.0
  %1677 = vmatmul.mubr.f32.gmra.mxu0 %v1607
  %v1678 = vpop.f32.mrf.mxu0
  %v1679 = vadd.f32 %v1599, %v1678
  %v1680 = vpop.f32.mrf.mxu0
  %1681 = vmatprep.mubr.f32.mxu0 0.0
  %1682 = vmatmul.mubr.f32.gmra.mxu0 %v1610
  %v1683 = vpop.f32.mrf.mxu0
  %v1684 = vadd.f32 %v1604, %v1683
  %v1685 = vpop.f32.mrf.mxu0
  %1686 = vdwg.mxu0
  %v1687 = vsub.f32 0.0, %v1679
  %v1688 = vsub.f32 0.0, %v1684
  %v1689 = vmul.f32 %v1687, 1.442695
  %v1690 = vpow.pop %v1689
  %v1691 = vmul.f32 %v1688, 1.442695
  %v1692 = vpow.pop %v1691
  %v1693 = vadd.f32 %v1690, 1.0
  %v1694 = vadd.f32 %v1692, 1.0
  %v1695 = vrcp.pop %v1693
  %v1696 = vrcp.pop %v1694
  %v1697 = vmul.f32 %v1509, %v1695
  %v1698 = vmul.f32 %v1510, %v1696
  %v1700 = vcombine.high %v96, %v96
  %v1702 = vunpack.c.l.s4 1983009808
  %v1703 = vunpack.c.0.s8 %v1702
  %v1704 = vlaneseq
  %v1705 = vshrl.u32 %v1704, 7
  %v1706 = vsub.s32 %v1703, %v1705
  %v1707 = vrot.slane %v96, %v1706
  %v1709 = vunpack.c.l.s4 1983009808
  %v1710 = vunpack.c.0.s8 %v1709
  %v1711 = vlaneseq
  %v1712 = vshrl.u32 %v1711, 7
  %v1713 = vsub.s32 %v1710, %v1712
  %v1714 = vrot.slane %v1700, %v1713
  %v1715 = vcombine.high %v1707, %v1707
  %v1716 = vcombine.high %v1714, %v1714
  %vm1717 = vcmask 15360
  %v1719 = vsel %vm1717, %v1697, 0
  %v1722 = vsel %vm1717, %v1698, 0
  %vm1724 = vcmask 1041408
  %v1725 = vsel %vm1724, %v1707, 0
  %v1727 = vsel %vm1724, %v1715, 0
  %v1729 = vsel %vm1724, %v1714, 0
  %v1731 = vsel %vm1724, %v1716, 0
  %1733 = vmatprep.subr.mxu0 0.0
  %1734 = vmatpush1.msra.mxu0 0.0
  %1735 = vmatprep.subr.mxu0 0.0
  %1736 = vmatpush1.msra.mxu0 0.0
  %1737 = vmatprep.subr.mxu0 0.0
  %1738 = vmatpush1.msra.mxu0 0.0
  %1739 = vmatprep.subr.mxu0 0.0
  %1740 = vmatpush1.msra.mxu0 0.0
  %1741 = vmatprep.subr.mxu0 0.0
  %1742 = vmatpush1.msra.mxu0 0.0
  %1743 = vmatprep.subr.mxu0 0.0
  %1744 = vmatpush1.msra.mxu0 0.0
  %1745 = vmatprep.subr.mxu0 0.0
  %1746 = vmatpush1.msra.mxu0 0.0
  %1747 = vmatprep.subr.mxu0 0.0
  %1748 = vmatpush1.msra.mxu0 0.0
  %1749 = vmatprep.subr.mxu0 0.0
  %1750 = vmatpush1.msra.mxu0 0.0
  %1751 = vmatprep.subr.mxu0 0.0
  %1752 = vmatpush1.msra.mxu0 0.0
  %1753 = vmatprep.subr.mxu0 0.0
  %1754 = vmatpush1.msra.mxu0 0.0
  %1755 = vmatprep.subr.mxu0 0.0
  %1756 = vmatpush1.msra.mxu0 0.0
  %1757 = vmatprep.subr.mxu0 0.0
  %1758 = vmatpush1.msra.mxu0 0.0
  %1759 = vmatprep.subr.mxu0 0.0
  %1760 = vmatpush1.msra.mxu0 0.0
  %1761 = vmatprep.subr.mxu0 0.0
  %1762 = vmatpush1.msra.mxu0 0.0
  %1763 = vmatprep.subr.mxu0 %v1727
  %1764 = vmatpush1.msra.mxu0 %v1725
  %1765 = vmatprep.subr.mxu0 0.0
  %1766 = vmatpush2.msra.mxu0 0.0
  %1767 = vmatprep.subr.mxu0 0.0
  %1768 = vmatpush2.msra.mxu0 0.0
  %1769 = vmatprep.subr.mxu0 0.0
  %1770 = vmatpush2.msra.mxu0 0.0
  %1771 = vmatprep.subr.mxu0 0.0
  %1772 = vmatpush2.msra.mxu0 0.0
  %1773 = vmatprep.subr.mxu0 0.0
  %1774 = vmatpush2.msra.mxu0 0.0
  %1775 = vmatprep.subr.mxu0 0.0
  %1776 = vmatpush2.msra.mxu0 0.0
  %1777 = vmatprep.subr.mxu0 0.0
  %1778 = vmatpush2.msra.mxu0 0.0
  %1779 = vmatprep.subr.mxu0 0.0
  %1780 = vmatpush2.msra.mxu0 0.0
  %1781 = vmatprep.subr.mxu0 0.0
  %1782 = vmatpush2.msra.mxu0 0.0
  %1783 = vmatprep.subr.mxu0 0.0
  %1784 = vmatpush2.msra.mxu0 0.0
  %1785 = vmatprep.subr.mxu0 0.0
  %1786 = vmatpush2.msra.mxu0 0.0
  %1787 = vmatprep.subr.mxu0 0.0
  %1788 = vmatpush2.msra.mxu0 0.0
  %1789 = vmatprep.subr.mxu0 0.0
  %1790 = vmatpush2.msra.mxu0 0.0
  %1791 = vmatprep.subr.mxu0 0.0
  %1792 = vmatpush2.msra.mxu0 0.0
  %1793 = vmatprep.subr.mxu0 0.0
  %1794 = vmatpush2.msra.mxu0 0.0
  %1795 = vmatprep.subr.mxu0 0.0
  %1796 = vmatpush2.msra.mxu0 0.0
  %1797 = vmatprep.mubr.f32.mxu0 0.0
  %1798 = vmatmul.mubr.f32.gmra.mxu0 %v1719
  %v1799 = vpop.f32.mrf.mxu0
  %v1800 = vadd.f32 0.0, %v1799
  %v1801 = vpop.f32.mrf.mxu0
  %v1802 = vadd.f32 0.0, %v1801
  %1803 = vmatprep.mubr.f32.mxu0 0.0
  %1804 = vmatmul.mubr.f32.gmra.mxu0 %v1722
  %v1805 = vpop.f32.mrf.mxu0
  %v1806 = vadd.f32 0.0, %v1805
  %v1807 = vpop.f32.mrf.mxu0
  %v1808 = vadd.f32 0.0, %v1807
  %1809 = vdwg.mxu0
  %1810 = vmatprep.subr.mxu0 0.0
  %1811 = vmatpush1.msra.mxu0 0.0
  %1812 = vmatprep.subr.mxu0 0.0
  %1813 = vmatpush1.msra.mxu0 0.0
  %1814 = vmatprep.subr.mxu0 0.0
  %1815 = vmatpush1.msra.mxu0 0.0
  %1816 = vmatprep.subr.mxu0 0.0
  %1817 = vmatpush1.msra.mxu0 0.0
  %1818 = vmatprep.subr.mxu0 0.0
  %1819 = vmatpush1.msra.mxu0 0.0
  %1820 = vmatprep.subr.mxu0 0.0
  %1821 = vmatpush1.msra.mxu0 0.0
  %1822 = vmatprep.subr.mxu0 0.0
  %1823 = vmatpush1.msra.mxu0 0.0
  %1824 = vmatprep.subr.mxu0 0.0
  %1825 = vmatpush1.msra.mxu0 0.0
  %1826 = vmatprep.subr.mxu0 0.0
  %1827 = vmatpush1.msra.mxu0 0.0
  %1828 = vmatprep.subr.mxu0 0.0
  %1829 = vmatpush1.msra.mxu0 0.0
  %1830 = vmatprep.subr.mxu0 0.0
  %1831 = vmatpush1.msra.mxu0 0.0
  %1832 = vmatprep.subr.mxu0 0.0
  %1833 = vmatpush1.msra.mxu0 0.0
  %1834 = vmatprep.subr.mxu0 0.0
  %1835 = vmatpush1.msra.mxu0 0.0
  %1836 = vmatprep.subr.mxu0 0.0
  %1837 = vmatpush1.msra.mxu0 0.0
  %1838 = vmatprep.subr.mxu0 0.0
  %1839 = vmatpush1.msra.mxu0 0.0
  %1840 = vmatprep.subr.mxu0 %v1731
  %1841 = vmatpush1.msra.mxu0 %v1729
  %1842 = vmatprep.subr.mxu0 0.0
  %1843 = vmatpush2.msra.mxu0 0.0
  %1844 = vmatprep.subr.mxu0 0.0
  %1845 = vmatpush2.msra.mxu0 0.0
  %1846 = vmatprep.subr.mxu0 0.0
  %1847 = vmatpush2.msra.mxu0 0.0
  %1848 = vmatprep.subr.mxu0 0.0
  %1849 = vmatpush2.msra.mxu0 0.0
  %1850 = vmatprep.subr.mxu0 0.0
  %1851 = vmatpush2.msra.mxu0 0.0
  %1852 = vmatprep.subr.mxu0 0.0
  %1853 = vmatpush2.msra.mxu0 0.0
  %1854 = vmatprep.subr.mxu0 0.0
  %1855 = vmatpush2.msra.mxu0 0.0
  %1856 = vmatprep.subr.mxu0 0.0
  %1857 = vmatpush2.msra.mxu0 0.0
  %1858 = vmatprep.subr.mxu0 0.0
  %1859 = vmatpush2.msra.mxu0 0.0
  %1860 = vmatprep.subr.mxu0 0.0
  %1861 = vmatpush2.msra.mxu0 0.0
  %1862 = vmatprep.subr.mxu0 0.0
  %1863 = vmatpush2.msra.mxu0 0.0
  %1864 = vmatprep.subr.mxu0 0.0
  %1865 = vmatpush2.msra.mxu0 0.0
  %1866 = vmatprep.subr.mxu0 0.0
  %1867 = vmatpush2.msra.mxu0 0.0
  %1868 = vmatprep.subr.mxu0 0.0
  %1869 = vmatpush2.msra.mxu0 0.0
  %1870 = vmatprep.subr.mxu0 0.0
  %1871 = vmatpush2.msra.mxu0 0.0
  %1872 = vmatprep.subr.mxu0 0.0
  %1873 = vmatpush2.msra.mxu0 0.0
  %1874 = vmatprep.mubr.f32.mxu0 0.0
  %1875 = vmatmul.mubr.f32.gmra.mxu0 %v1719
  %v1876 = vpop.f32.mrf.mxu0
  %v1877 = vadd.f32 0.0, %v1876
  %v1878 = vpop.f32.mrf.mxu0
  %v1879 = vadd.f32 0.0, %v1878
  %1880 = vmatprep.mubr.f32.mxu0 0.0
  %1881 = vmatmul.mubr.f32.gmra.mxu0 %v1722
  %v1882 = vpop.f32.mrf.mxu0
  %v1883 = vadd.f32 0.0, %v1882
  %v1884 = vpop.f32.mrf.mxu0
  %v1885 = vadd.f32 0.0, %v1884
  %1886 = vdwg.mxu0
  %v1887 = vmul.f32 %v1165, %v1800
  %v1888 = vmul.f32 %v1166, %v1802
  %v1889 = vmul.f32 %v1167, %v1877
  %v1890 = vmul.f32 %v1168, %v1879
  %v1891 = vmul.f32 %v1169, %v1806
  %v1892 = vmul.f32 %v1170, %v1808
  %v1893 = vmul.f32 %v1171, %v1883
  %v1894 = vmul.f32 %v1172, %v1885
  %v1895 = vpack.c.bf16 %v1891, %v1887
  %v1896 = vpack.c.bf16 %v1892, %v1888
  %v1897 = vpack.c.bf16 %v1893, %v1889
  %v1898 = vpack.c.bf16 %v1894, %v1890
  %v1899 = vld [vmem:[%s4 + $0xc] sm:$0xf]
  %v1900 = vld [vmem:[%s5 + $0x18] sm:$0xff]
  %1902 = vset.pattern.permute.xlu0 0
  %1903 = vperm.xlu0 %1902, %v1900
  %v1904 = vpop.permute.xlu0 %1903
  %v1907 = vsel %vm1330, %v1899, 0
  %1909 = vmatprep.subr.bf16.mxu0 0
  %1910 = vmatpush1.bf16.msra.mxu0 0
  %1911 = vmatprep.subr.bf16.mxu0 0
  %1912 = vmatpush1.bf16.msra.mxu0 0
  %1913 = vmatprep.subr.bf16.mxu0 0
  %1914 = vmatpush1.bf16.msra.mxu0 0
  %1915 = vmatprep.subr.bf16.mxu0 0
  %1916 = vmatpush1.bf16.msra.mxu0 0
  %1917 = vmatprep.subr.bf16.mxu0 0
  %1918 = vmatpush1.bf16.msra.mxu0 0
  %1919 = vmatprep.subr.bf16.mxu0 0
  %1920 = vmatpush1.bf16.msra.mxu0 0
  %1921 = vmatprep.subr.bf16.mxu0 0
  %1922 = vmatpush1.bf16.msra.mxu0 0
  %1923 = vmatprep.subr.bf16.mxu0 %v1896
  %1924 = vmatpush1.bf16.msra.mxu0 %v1895
  %1925 = vmatprep.subr.bf16.mxu0 0
  %1926 = vmatpush2.bf16.msra.mxu0 0
  %1927 = vmatprep.subr.bf16.mxu0 0
  %1928 = vmatpush2.bf16.msra.mxu0 0
  %1929 = vmatprep.subr.bf16.mxu0 0
  %1930 = vmatpush2.bf16.msra.mxu0 0
  %1931 = vmatprep.subr.bf16.mxu0 0
  %1932 = vmatpush2.bf16.msra.mxu0 0
  %1933 = vmatprep.subr.bf16.mxu0 0
  %1934 = vmatpush2.bf16.msra.mxu0 0
  %1935 = vmatprep.subr.bf16.mxu0 0
  %1936 = vmatpush2.bf16.msra.mxu0 0
  %1937 = vmatprep.subr.bf16.mxu0 0
  %1938 = vmatpush2.bf16.msra.mxu0 0
  %1939 = vmatprep.subr.bf16.mxu0 0
  %1940 = vmatpush2.bf16.msra.mxu0 0
  %1941 = vmatprep.mubr.bf16.mxu0 0
  %1942 = vmatmul.mubr.bf16.gmra.mxu0 %v1907
  %v1943 = vpop.f32.mrf.mxu0
  %v1944 = vadd.f32 %v1904, %v1943
  %v1945 = vpop.f32.mrf.mxu0
  %v1946 = vadd.f32 %v1904, %v1945
  %v1947 = vpop.f32.mrf.mxu0
  %v1948 = vpop.f32.mrf.mxu0
  %1949 = vdwg.mxu0
  %1950 = vmatprep.subr.bf16.mxu0 0
  %1951 = vmatpush1.bf16.msra.mxu0 0
  %1952 = vmatprep.subr.bf16.mxu0 0
  %1953 = vmatpush1.bf16.msra.mxu0 0
  %1954 = vmatprep.subr.bf16.mxu0 0
  %1955 = vmatpush1.bf16.msra.mxu0 0
  %1956 = vmatprep.subr.bf16.mxu0 0
  %1957 = vmatpush1.bf16.msra.mxu0 0
  %1958 = vmatprep.subr.bf16.mxu0 0
  %1959 = vmatpush1.bf16.msra.mxu0 0
  %1960 = vmatprep.subr.bf16.mxu0 0
  %1961 = vmatpush1.bf16.msra.mxu0 0
  %1962 = vmatprep.subr.bf16.mxu0 0
  %1963 = vmatpush1.bf16.msra.mxu0 0
  %1964 = vmatprep.subr.bf16.mxu0 %v1898
  %1965 = vmatpush1.bf16.msra.mxu0 %v1897
  %1966 = vmatprep.subr.bf16.mxu0 0
  %1967 = vmatpush2.bf16.msra.mxu0 0
  %1968 = vmatprep.subr.bf16.mxu0 0
  %1969 = vmatpush2.bf16.msra.mxu0 0
  %1970 = vmatprep.subr.bf16.mxu0 0
  %1971 = vmatpush2.bf16.msra.mxu0 0
  %1972 = vmatprep.subr.bf16.mxu0 0
  %1973 = vmatpush2.bf16.msra.mxu0 0
  %1974 = vmatprep.subr.bf16.mxu0 0
  %1975 = vmatpush2.bf16.msra.mxu0 0
  %1976 = vmatprep.subr.bf16.mxu0 0
  %1977 = vmatpush2.bf16.msra.mxu0 0
  %1978 = vmatprep.subr.bf16.mxu0 0
  %1979 = vmatpush2.bf16.msra.mxu0 0
  %1980 = vmatprep.subr.bf16.mxu0 0
  %1981 = vmatpush2.bf16.msra.mxu0 0
  %1982 = vmatprep.mubr.bf16.mxu0 0
  %1983 = vmatmul.mubr.bf16.gmra.mxu0 %v1907
  %v1984 = vpop.f32.mrf.mxu0
  %v1985 = vadd.f32 %v1904, %v1984
  %v1986 = vpop.f32.mrf.mxu0
  %v1987 = vadd.f32 %v1904, %v1986
  %v1988 = vpop.f32.mrf.mxu0
  %v1989 = vpop.f32.mrf.mxu0
  %1990 = vdwg.mxu0
  %v1991 = vadd.f32 %v1944, %v692
  %v1992 = vadd.f32 %v1946, %v693
  %v1993 = vadd.f32 %v1985, %v694
  %v1994 = vadd.f32 %v1987, %v695
  %v1995 = vmax.f32 %v1991, 0.0
  %v1996 = vmax.f32 %v1992, 0.0
  %v1997 = vmax.f32 %v1993, 0.0
  %v1998 = vmax.f32 %v1994, 0.0
  %1999 = vrot.lane.b32.xlu0 %v1995, 17
  %v2000 = vpop.permute.xlu0 %1999
  %2001 = vrot.lane.b32.xlu0 %v1996, 17
  %v2002 = vpop.permute.xlu0 %2001
  %2003 = vrot.lane.b32.xlu0 %v1997, 17
  %v2004 = vpop.permute.xlu0 %2003
  %2005 = vrot.lane.b32.xlu0 %v1998, 17
  %v2006 = vpop.permute.xlu0 %2005
  %v2007 = vsel %vm129, %v2004, %v2006
  %v2008 = vsel %vm129, %v2002, %v2004
  %v2009 = vsel %vm129, %v2000, %v2002
  %v2010 = vsel %vm129, %v2006, %v2000
  %v2011 = vmul.f32 %v2010, %v711
  %v2012 = vmul.f32 %v2009, %v715
  %v2013 = vmul.f32 %v2008, %v719
  %v2014 = vmul.f32 %v2007, %v723
  %2015 = vst [vmem:[#allocation2] sm:$0xff] %v2011
  %2016 = vst [vmem:[#allocation2 + $0x8] sm:$0xff] %v2012
  %2017 = vst [vmem:[#allocation2 + $0x10] sm:$0xff] %v2013
  %2018 = vst [vmem:[#allocation2 + $0x18] sm:$0xff] %v2014
  %2019 = vrot.lane.b32.xlu0 %v1995, 16
  %v2020 = vpop.permute.xlu0 %2019
  %2021 = vrot.lane.b32.xlu0 %v1996, 16
  %v2022 = vpop.permute.xlu0 %2021
  %2023 = vrot.lane.b32.xlu0 %v1997, 16
  %v2024 = vpop.permute.xlu0 %2023
  %2025 = vrot.lane.b32.xlu0 %v1998, 16
  %v2026 = vpop.permute.xlu0 %2025
  %v2027 = vsel %vm181, %v2024, %v2026
  %v2028 = vsel %vm181, %v2022, %v2024
  %v2029 = vsel %vm181, %v2020, %v2022
  %v2030 = vsel %vm181, %v2026, %v2020
  %v2031 = vmul.f32 %v2030, %v747
  %v2032 = vmul.f32 %v2029, %v751
  %v2033 = vmul.f32 %v2028, %v755
  %v2034 = vmul.f32 %v2027, %v759
  %2035 = vst [vmem:[#allocation2 + $0x20] sm:$0xff] %v2031
  %2036 = vst [vmem:[#allocation2 + $0x28] sm:$0xff] %v2032
  %2037 = vst [vmem:[#allocation2 + $0x30] sm:$0xff] %v2033
  %2038 = vst [vmem:[#allocation2 + $0x38] sm:$0xff] %v2034
  %2039 = vrot.lane.b32.xlu0 %v1995, 15
  %v2040 = vpop.permute.xlu0 %2039
  %2041 = vrot.lane.b32.xlu0 %v1996, 15
  %v2042 = vpop.permute.xlu0 %2041
  %2043 = vrot.lane.b32.xlu0 %v1997, 15
  %v2044 = vpop.permute.xlu0 %2043
  %2045 = vrot.lane.b32.xlu0 %v1998, 15
  %v2046 = vpop.permute.xlu0 %2045
  %v2047 = vsel %vm242, %v2044, %v2046
  %v2048 = vsel %vm242, %v2042, %v2044
  %v2049 = vsel %vm242, %v2040, %v2042
  %v2050 = vsel %vm242, %v2046, %v2040
  %v2051 = vmul.f32 %v2050, %v783
  %v2052 = vmul.f32 %v2049, %v787
  %v2053 = vmul.f32 %v2048, %v791
  %v2054 = vmul.f32 %v2047, %v795
  %2055 = vst [vmem:[#allocation2 + $0x40] sm:$0xff] %v2051
  %2056 = vst [vmem:[#allocation2 + $0x48] sm:$0xff] %v2052
  %2057 = vst [vmem:[#allocation2 + $0x50] sm:$0xff] %v2053
  %2058 = vst [vmem:[#allocation2 + $0x58] sm:$0xff] %v2054
  %2059 = vrot.lane.b32.xlu0 %v1995, 1
  %v2060 = vpop.permute.xlu0 %2059
  %2061 = vrot.lane.b32.xlu0 %v1996, 1
  %v2062 = vpop.permute.xlu0 %2061
  %2063 = vrot.lane.b32.xlu0 %v1997, 1
  %v2064 = vpop.permute.xlu0 %2063
  %2065 = vrot.lane.b32.xlu0 %v1998, 1
  %v2066 = vpop.permute.xlu0 %2065
  %v2067 = vsel %vm299, %v2064, %v2066
  %v2068 = vsel %vm299, %v2062, %v2064
  %v2069 = vsel %vm299, %v2060, %v2062
  %v2070 = vsel %vm299, %v2066, %v2060
  %v2071 = vmul.f32 %v2070, %v819
  %v2072 = vmul.f32 %v2069, %v823
  %v2073 = vmul.f32 %v2068, %v827
  %v2074 = vmul.f32 %v2067, %v831
  %2075 = vst [vmem:[#allocation2 + $0x60] sm:$0xff] %v2071
  %2076 = vst [vmem:[#allocation2 + $0x68] sm:$0xff] %v2072
  %2077 = vst [vmem:[#allocation2 + $0x70] sm:$0xff] %v2073
  %2078 = vst [vmem:[#allocation2 + $0x78] sm:$0xff] %v2074
  %2079 = vst [vmem:[#allocation2 + $0x80] sm:$0xff] %v1995
  %2080 = vst [vmem:[#allocation2 + $0x88] sm:$0xff] %v1996
  %2081 = vst [vmem:[#allocation2 + $0x90] sm:$0xff] %v1997
  %2082 = vst [vmem:[#allocation2 + $0x98] sm:$0xff] %v1998
  %2083 = vrot.lane.b32.xlu0 %v1995, 127
  %v2084 = vpop.permute.xlu0 %2083
  %2085 = vrot.lane.b32.xlu0 %v1996, 127
  %v2086 = vpop.permute.xlu0 %2085
  %2087 = vrot.lane.b32.xlu0 %v1997, 127
  %v2088 = vpop.permute.xlu0 %2087
  %2089 = vrot.lane.b32.xlu0 %v1998, 127
  %v2090 = vpop.permute.xlu0 %2089
  %v2091 = vsel %vm359, %v2088, %v2090
  %v2092 = vsel %vm359, %v2086, %v2088
  %v2093 = vsel %vm359, %v2084, %v2086
  %v2094 = vsel %vm359, %v2090, %v2084
  %v2095 = vmul.f32 %v2093, %v859
  %v2096 = vmul.f32 %v2092, %v863
  %v2097 = vmul.f32 %v2091, %v867
  %v2098 = vmul.f32 %v2094, %v871
  %2099 = vst [vmem:[#allocation2 + $0xa0] sm:$0xff] %v2095
  %2100 = vst [vmem:[#allocation2 + $0xa8] sm:$0xff] %v2096
  %2101 = vst [vmem:[#allocation2 + $0xb0] sm:$0xff] %v2097
  %2102 = vst [vmem:[#allocation2 + $0xb8] sm:$0xff] %v2098
  %2103 = vrot.lane.b32.xlu0 %v1995, 113
  %v2104 = vpop.permute.xlu0 %2103
  %2105 = vrot.lane.b32.xlu0 %v1996, 113
  %v2106 = vpop.permute.xlu0 %2105
  %2107 = vrot.lane.b32.xlu0 %v1997, 113
  %v2108 = vpop.permute.xlu0 %2107
  %2109 = vrot.lane.b32.xlu0 %v1998, 113
  %v2110 = vpop.permute.xlu0 %2109
  %v2111 = vsel %vm416, %v2108, %v2110
  %v2112 = vsel %vm416, %v2106, %v2108
  %v2113 = vsel %vm416, %v2104, %v2106
  %v2114 = vsel %vm416, %v2110, %v2104
  %v2115 = vmul.f32 %v2113, %v895
  %v2116 = vmul.f32 %v2112, %v899
  %v2117 = vmul.f32 %v2111, %v903
  %v2118 = vmul.f32 %v2114, %v907
  %2119 = vst [vmem:[#allocation2 + $0xc0] sm:$0xff] %v2115
  %2120 = vst [vmem:[#allocation2 + $0xc8] sm:$0xff] %v2116
  %2121 = vst [vmem:[#allocation2 + $0xd0] sm:$0xff] %v2117
  %2122 = vst [vmem:[#allocation2 + $0xd8] sm:$0xff] %v2118
  %2123 = vrot.lane.b32.xlu0 %v1995, 112
  %v2124 = vpop.permute.xlu0 %2123
  %2125 = vrot.lane.b32.xlu0 %v1996, 112
  %v2126 = vpop.permute.xlu0 %2125
  %2127 = vrot.lane.b32.xlu0 %v1997, 112
  %v2128 = vpop.permute.xlu0 %2127
  %2129 = vrot.lane.b32.xlu0 %v1998, 112
  %v2130 = vpop.permute.xlu0 %2129
  %v2131 = vsel %vm473, %v2128, %v2130
  %v2132 = vsel %vm473, %v2126, %v2128
  %v2133 = vsel %vm473, %v2124, %v2126
  %v2134 = vsel %vm473, %v2130, %v2124
  %v2135 = vmul.f32 %v2133, %v931
  %v2136 = vmul.f32 %v2132, %v935
  %v2137 = vmul.f32 %v2131, %v939
  %v2138 = vmul.f32 %v2134, %v943
  %2139 = vst [vmem:[#allocation2 + $0xe0] sm:$0xff] %v2135
  %2140 = vst [vmem:[#allocation2 + $0xe8] sm:$0xff] %v2136
  %2141 = vst [vmem:[#allocation2 + $0xf0] sm:$0xff] %v2137
  %2142 = vst [vmem:[#allocation2 + $0xf8] sm:$0xff] %v2138
  %2143 = vrot.lane.b32.xlu0 %v1995, 111
  %v2144 = vpop.permute.xlu0 %2143
  %2145 = vrot.lane.b32.xlu0 %v1996, 111
  %v2146 = vpop.permute.xlu0 %2145
  %2147 = vrot.lane.b32.xlu0 %v1997, 111
  %v2148 = vpop.permute.xlu0 %2147
  %2149 = vrot.lane.b32.xlu0 %v1998, 111
  %v2150 = vpop.permute.xlu0 %2149
  %v2151 = vsel %vm530, %v2148, %v2150
  %v2152 = vsel %vm530, %v2146, %v2148
  %v2153 = vsel %vm530, %v2144, %v2146
  %v2154 = vsel %vm530, %v2150, %v2144
  %v2155 = vmul.f32 %v2153, %v967
  %v2156 = vmul.f32 %v2152, %v971
  %v2157 = vmul.f32 %v2151, %v975
  %v2158 = vmul.f32 %v2154, %v979
  %2159 = vst [vmem:[#allocation2 + $0x100] sm:$0xff] %v2155
  %2160 = vst [vmem:[#allocation2 + $0x108] sm:$0xff] %v2156
  %2161 = vst [vmem:[#allocation2 + $0x110] sm:$0xff] %v2157
  %2162 = vst [vmem:[#allocation2 + $0x118] sm:$0xff] %v2158
  %v2163 = vld [vmem:[#allocation2] sm:$0xff]
  %v2164 = vld [vmem:[#allocation2 + $0x8] sm:$0xff]
  %v2165 = vld [vmem:[#allocation2 + $0x10] sm:$0xff]
  %v2166 = vld [vmem:[#allocation2 + $0x18] sm:$0xff]
  %v2167 = vld [vmem:[#allocation2 + $0x20] sm:$0xff]
  %v2168 = vld [vmem:[#allocation2 + $0x28] sm:$0xff]
  %v2169 = vld [vmem:[#allocation2 + $0x30] sm:$0xff]
  %v2170 = vld [vmem:[#allocation2 + $0x38] sm:$0xff]
  %v2171 = vld [vmem:[#allocation2 + $0x40] sm:$0xff]
  %v2172 = vld [vmem:[#allocation2 + $0x48] sm:$0xff]
  %v2173 = vld [vmem:[#allocation2 + $0x50] sm:$0xff]
  %v2174 = vld [vmem:[#allocation2 + $0x58] sm:$0xff]
  %v2175 = vld [vmem:[#allocation2 + $0x60] sm:$0xff]
  %v2176 = vld [vmem:[#allocation2 + $0x68] sm:$0xff]
  %v2177 = vld [vmem:[#allocation2 + $0x70] sm:$0xff]
  %v2178 = vld [vmem:[#allocation2 + $0x78] sm:$0xff]
  %v2179 = vld [vmem:[#allocation2 + $0x80] sm:$0xff]
  %v2180 = vld [vmem:[#allocation2 + $0x88] sm:$0xff]
  %v2181 = vld [vmem:[#allocation2 + $0x90] sm:$0xff]
  %v2182 = vld [vmem:[#allocation2 + $0x98] sm:$0xff]
  %v2183 = vld [vmem:[#allocation2 + $0xa0] sm:$0xff]
  %v2184 = vld [vmem:[#allocation2 + $0xa8] sm:$0xff]
  %v2185 = vld [vmem:[#allocation2 + $0xb0] sm:$0xff]
  %v2186 = vld [vmem:[#allocation2 + $0xb8] sm:$0xff]
  %v2187 = vld [vmem:[#allocation2 + $0xc0] sm:$0xff]
  %v2188 = vld [vmem:[#allocation2 + $0xc8] sm:$0xff]
  %v2189 = vld [vmem:[#allocation2 + $0xd0] sm:$0xff]
  %v2190 = vld [vmem:[#allocation2 + $0xd8] sm:$0xff]
  %v2191 = vld [vmem:[#allocation2 + $0xe0] sm:$0xff]
  %v2192 = vld [vmem:[#allocation2 + $0xe8] sm:$0xff]
  %v2193 = vld [vmem:[#allocation2 + $0xf0] sm:$0xff]
  %v2194 = vld [vmem:[#allocation2 + $0xf8] sm:$0xff]
  %v2195 = vld [vmem:[#allocation2 + $0x100] sm:$0xff]
  %v2196 = vld [vmem:[#allocation2 + $0x108] sm:$0xff]
  %v2197 = vld [vmem:[#allocation2 + $0x110] sm:$0xff]
  %v2198 = vld [vmem:[#allocation2 + $0x118] sm:$0xff]
  %v2199 = vpack.c.bf16 %v2167, %v2163
  %v2200 = vpack.c.bf16 %v2168, %v2164
  %v2201 = vpack.c.bf16 %v2169, %v2165
  %v2202 = vpack.c.bf16 %v2170, %v2166
  %v2203 = vpack.c.bf16 %v2175, %v2171
  %v2204 = vpack.c.bf16 %v2176, %v2172
  %v2205 = vpack.c.bf16 %v2177, %v2173
  %v2206 = vpack.c.bf16 %v2178, %v2174
  %v2207 = vpack.c.bf16 %v2183, %v2179
  %v2208 = vpack.c.bf16 %v2184, %v2180
  %v2209 = vpack.c.bf16 %v2185, %v2181
  %v2210 = vpack.c.bf16 %v2186, %v2182
  %v2211 = vpack.c.bf16 %v2191, %v2187
  %v2212 = vpack.c.bf16 %v2192, %v2188
  %v2213 = vpack.c.bf16 %v2193, %v2189
  %v2214 = vpack.c.bf16 %v2194, %v2190
  %v2215 = vpack.c.bf16 %v2195, %v2195
  %v2216 = vpack.c.bf16 %v2196, %v2196
  %v2217 = vpack.c.bf16 %v2197, %v2197
  %v2218 = vpack.c.bf16 %v2198, %v2198
  %v2219 = vld [vmem:[%s4 + $0x10] sm:$0xf]
  %v2220 = vld [vmem:[%s4 + $0x14] sm:$0xf]
  %v2221 = vld [vmem:[%s5 + $0x80] sm:$0xff]
  %v2222 = vld [vmem:[%s5 + $0x88] sm:$0xff]
  %2224 = vset.pattern.permute.xlu0 0
  %2225 = vperm.xlu0 %2224, %v2221
  %v2226 = vpop.permute.xlu0 %2225
  %2229 = vset.pattern.permute.xlu0 0
  %2230 = vperm.xlu0 %2229, %v2222
  %v2231 = vpop.permute.xlu0 %2230
  %v2235 = vunpack.c.l.b16 %v2219
  %v2236 = vunpack.c.l.b16 %v2220
  %v2237 = vpack.c.b16 %v2236, %v2235
  %v2239 = vsel %vm1063, %v2237, 0
  %v2242 = vsel %vm594, %v2215, 0
  %v2245 = vsel %vm594, %v2216, 0
  %v2248 = vsel %vm594, %v2217, 0
  %v2251 = vsel %vm594, %v2218, 0
  %2253 = vmatprep.subr.bf16.mxu0 0
  %2254 = vmatpush1.bf16.msra.mxu0 0
  %2255 = vmatprep.subr.bf16.mxu0 0
  %2256 = vmatpush1.bf16.msra.mxu0 0
  %2257 = vmatprep.subr.bf16.mxu0 0
  %2258 = vmatpush1.bf16.msra.mxu0 0
  %2259 = vmatprep.subr.bf16.mxu0 %v2245
  %2260 = vmatpush1.bf16.msra.mxu0 %v2242
  %2261 = vmatprep.subr.bf16.mxu0 %v2212
  %2262 = vmatpush1.bf16.msra.mxu0 %v2211
  %2263 = vmatprep.subr.bf16.mxu0 %v2208
  %2264 = vmatpush1.bf16.msra.mxu0 %v2207
  %2265 = vmatprep.subr.bf16.mxu0 %v2204
  %2266 = vmatpush1.bf16.msra.mxu0 %v2203
  %2267 = vmatprep.subr.bf16.mxu0 %v2200
  %2268 = vmatpush1.bf16.msra.mxu0 %v2199
  %2269 = vmatprep.subr.bf16.mxu0 0
  %2270 = vmatpush2.bf16.msra.mxu0 0
  %2271 = vmatprep.subr.bf16.mxu0 0
  %2272 = vmatpush2.bf16.msra.mxu0 0
  %2273 = vmatprep.subr.bf16.mxu0 0
  %2274 = vmatpush2.bf16.msra.mxu0 0
  %2275 = vmatprep.subr.bf16.mxu0 0
  %2276 = vmatpush2.bf16.msra.mxu0 0
  %2277 = vmatprep.subr.bf16.mxu0 0
  %2278 = vmatpush2.bf16.msra.mxu0 0
  %2279 = vmatprep.subr.bf16.mxu0 0
  %2280 = vmatpush2.bf16.msra.mxu0 0
  %2281 = vmatprep.subr.bf16.mxu0 0
  %2282 = vmatpush2.bf16.msra.mxu0 0
  %2283 = vmatprep.subr.bf16.mxu0 0
  %2284 = vmatpush2.bf16.msra.mxu0 0
  %2285 = vmatprep.mubr.bf16.mxu0 0
  %2286 = vmatmul.mubr.bf16.gmra.mxu0 %v2239
  %v2287 = vpop.f32.mrf.mxu0
  %v2288 = vadd.f32 %v2226, %v2287
  %v2289 = vpop.f32.mrf.mxu0
  %v2290 = vadd.f32 %v2226, %v2289
  %v2291 = vpop.f32.mrf.mxu0
  %v2292 = vadd.f32 %v2231, %v2291
  %v2293 = vpop.f32.mrf.mxu0
  %v2294 = vadd.f32 %v2231, %v2293
  %2295 = vdwg.mxu0
  %2296 = vmatprep.subr.bf16.mxu0 0
  %2297 = vmatpush1.bf16.msra.mxu0 0
  %2298 = vmatprep.subr.bf16.mxu0 0
  %2299 = vmatpush1.bf16.msra.mxu0 0
  %2300 = vmatprep.subr.bf16.mxu0 0
  %2301 = vmatpush1.bf16.msra.mxu0 0
  %2302 = vmatprep.subr.bf16.mxu0 %v2251
  %2303 = vmatpush1.bf16.msra.mxu0 %v2248
  %2304 = vmatprep.subr.bf16.mxu0 %v2214
  %2305 = vmatpush1.bf16.msra.mxu0 %v2213
  %2306 = vmatprep.subr.bf16.mxu0 %v2210
  %2307 = vmatpush1.bf16.msra.mxu0 %v2209
  %2308 = vmatprep.subr.bf16.mxu0 %v2206
  %2309 = vmatpush1.bf16.msra.mxu0 %v2205
  %2310 = vmatprep.subr.bf16.mxu0 %v2202
  %2311 = vmatpush1.bf16.msra.mxu0 %v2201
  %2312 = vmatprep.subr.bf16.mxu0 0
  %2313 = vmatpush2.bf16.msra.mxu0 0
  %2314 = vmatprep.subr.bf16.mxu0 0
  %2315 = vmatpush2.bf16.msra.mxu0 0
  %2316 = vmatprep.subr.bf16.mxu0 0
  %2317 = vmatpush2.bf16.msra.mxu0 0
  %2318 = vmatprep.subr.bf16.mxu0 0
  %2319 = vmatpush2.bf16.msra.mxu0 0
  %2320 = vmatprep.subr.bf16.mxu0 0
  %2321 = vmatpush2.bf16.msra.mxu0 0
  %2322 = vmatprep.subr.bf16.mxu0 0
  %2323 = vmatpush2.bf16.msra.mxu0 0
  %2324 = vmatprep.subr.bf16.mxu0 0
  %2325 = vmatpush2.bf16.msra.mxu0 0
  %2326 = vmatprep.subr.bf16.mxu0 0
  %2327 = vmatpush2.bf16.msra.mxu0 0
  %2328 = vmatprep.mubr.bf16.mxu0 0
  %2329 = vmatmul.mubr.bf16.gmra.mxu0 %v2239
  %v2330 = vpop.f32.mrf.mxu0
  %v2331 = vadd.f32 %v2226, %v2330
  %v2332 = vpop.f32.mrf.mxu0
  %v2333 = vadd.f32 %v2226, %v2332
  %v2334 = vpop.f32.mrf.mxu0
  %v2335 = vadd.f32 %v2231, %v2334
  %v2336 = vpop.f32.mrf.mxu0
  %v2337 = vadd.f32 %v2231, %v2336
  %2338 = vdwg.mxu0
  %v2339 = vmax.f32 %v2288, 0.0
  %v2340 = vmax.f32 %v2290, 0.0
  %v2341 = vmax.f32 %v2331, 0.0
  %v2342 = vmax.f32 %v2333, 0.0
  %v2343 = vmax.f32 %v2292, 0.0
  %v2344 = vmax.f32 %v2294, 0.0
  %v2345 = vmax.f32 %v2335, 0.0
  %v2346 = vmax.f32 %v2337, 0.0
  %2347 = vmatprep.subr.mxu0 0.0
  %2348 = vmatpush1.msra.mxu0 %v47
  %2349 = vmatprep.subr.mxu0 0.0
  %2350 = vmatpush1.msra.mxu0 %v46
  %2351 = vmatprep.subr.mxu0 0.0
  %2352 = vmatpush1.msra.mxu0 %v45
  %2353 = vmatprep.subr.mxu0 0.0
  %2354 = vmatpush1.msra.mxu0 %v44
  %2355 = vmatprep.subr.mxu0 0.0
  %2356 = vmatpush1.msra.mxu0 %v43
  %2357 = vmatprep.subr.mxu0 0.0
  %2358 = vmatpush1.msra.mxu0 %v42
  %2359 = vmatprep.subr.mxu0 0.0
  %2360 = vmatpush1.msra.mxu0 %v41
  %2361 = vmatprep.subr.mxu0 0.0
  %2362 = vmatpush1.msra.mxu0 %v40
  %2363 = vmatprep.subr.mxu0 0.0
  %2364 = vmatpush1.msra.mxu0 %v39
  %2365 = vmatprep.subr.mxu0 0.0
  %2366 = vmatpush1.msra.mxu0 %v38
  %2367 = vmatprep.subr.mxu0 0.0
  %2368 = vmatpush1.msra.mxu0 %v37
  %2369 = vmatprep.subr.mxu0 0.0
  %2370 = vmatpush1.msra.mxu0 %v36
  %2371 = vmatprep.subr.mxu0 0.0
  %2372 = vmatpush1.msra.mxu0 %v35
  %2373 = vmatprep.subr.mxu0 0.0
  %2374 = vmatpush1.msra.mxu0 %v34
  %2375 = vmatprep.subr.mxu0 0.0
  %2376 = vmatpush1.msra.mxu0 %v33
  %2377 = vmatprep.subr.mxu0 0.0
  %2378 = vmatpush1.msra.mxu0 %v32
  %2379 = vmatprep.subr.mxu0 0.0
  %2380 = vmatpush2.msra.mxu0 %v63
  %2381 = vmatprep.subr.mxu0 0.0
  %2382 = vmatpush2.msra.mxu0 %v62
  %2383 = vmatprep.subr.mxu0 0.0
  %2384 = vmatpush2.msra.mxu0 %v61
  %2385 = vmatprep.subr.mxu0 0.0
  %2386 = vmatpush2.msra.mxu0 %v60
  %2387 = vmatprep.subr.mxu0 0.0
  %2388 = vmatpush2.msra.mxu0 %v59
  %2389 = vmatprep.subr.mxu0 0.0
  %2390 = vmatpush2.msra.mxu0 %v58
  %2391 = vmatprep.subr.mxu0 0.0
  %2392 = vmatpush2.msra.mxu0 %v57
  %2393 = vmatprep.subr.mxu0 0.0
  %2394 = vmatpush2.msra.mxu0 %v56
  %2395 = vmatprep.subr.mxu0 0.0
  %2396 = vmatpush2.msra.mxu0 %v55
  %2397 = vmatprep.subr.mxu0 0.0
  %2398 = vmatpush2.msra.mxu0 %v54
  %2399 = vmatprep.subr.mxu0 0.0
  %2400 = vmatpush2.msra.mxu0 %v53
  %2401 = vmatprep.subr.mxu0 0.0
  %2402 = vmatpush2.msra.mxu0 %v52
  %2403 = vmatprep.subr.mxu0 0.0
  %2404 = vmatpush2.msra.mxu0 %v51
  %2405 = vmatprep.subr.mxu0 0.0
  %2406 = vmatpush2.msra.mxu0 %v50
  %2407 = vmatprep.subr.mxu0 0.0
  %2408 = vmatpush2.msra.mxu0 %v49
  %2409 = vmatprep.subr.mxu0 0.0
  %2410 = vmatpush2.msra.mxu0 %v48
  %2411 = vmatprep.mubr.f32.mxu0 %v2340
  %2412 = vmatmul.mubr.f32.gmra.mxu0 %v2339
  %v2413 = vpop.f32.mrf.mxu0
  %v2414 = vadd.f32 0.0, %v2413
  %v2415 = vpop.f32.mrf.mxu0
  %2416 = vmatprep.mubr.f32.mxu0 %v2344
  %2417 = vmatmul.mubr.f32.gmra.mxu0 %v2343
  %v2418 = vpop.f32.mrf.mxu0
  %v2419 = vadd.f32 0.0, %v2418
  %v2420 = vpop.f32.mrf.mxu0
  %2421 = vdwg.mxu0
  %2422 = vmatprep.subr.mxu0 0.0
  %2423 = vmatpush1.msra.mxu0 %v79
  %2424 = vmatprep.subr.mxu0 0.0
  %2425 = vmatpush1.msra.mxu0 %v78
  %2426 = vmatprep.subr.mxu0 0.0
  %2427 = vmatpush1.msra.mxu0 %v77
  %2428 = vmatprep.subr.mxu0 0.0
  %2429 = vmatpush1.msra.mxu0 %v76
  %2430 = vmatprep.subr.mxu0 0.0
  %2431 = vmatpush1.msra.mxu0 %v75
  %2432 = vmatprep.subr.mxu0 0.0
  %2433 = vmatpush1.msra.mxu0 %v74
  %2434 = vmatprep.subr.mxu0 0.0
  %2435 = vmatpush1.msra.mxu0 %v73
  %2436 = vmatprep.subr.mxu0 0.0
  %2437 = vmatpush1.msra.mxu0 %v72
  %2438 = vmatprep.subr.mxu0 0.0
  %2439 = vmatpush1.msra.mxu0 %v71
  %2440 = vmatprep.subr.mxu0 0.0
  %2441 = vmatpush1.msra.mxu0 %v70
  %2442 = vmatprep.subr.mxu0 0.0
  %2443 = vmatpush1.msra.mxu0 %v69
  %2444 = vmatprep.subr.mxu0 0.0
  %2445 = vmatpush1.msra.mxu0 %v68
  %2446 = vmatprep.subr.mxu0 0.0
  %2447 = vmatpush1.msra.mxu0 %v67
  %2448 = vmatprep.subr.mxu0 0.0
  %2449 = vmatpush1.msra.mxu0 %v66
  %2450 = vmatprep.subr.mxu0 0.0
  %2451 = vmatpush1.msra.mxu0 %v65
  %2452 = vmatprep.subr.mxu0 0.0
  %2453 = vmatpush1.msra.mxu0 %v64
  %2454 = vmatprep.subr.mxu0 0.0
  %2455 = vmatpush2.msra.mxu0 %v95
  %2456 = vmatprep.subr.mxu0 0.0
  %2457 = vmatpush2.msra.mxu0 %v94
  %2458 = vmatprep.subr.mxu0 0.0
  %2459 = vmatpush2.msra.mxu0 %v93
  %2460 = vmatprep.subr.mxu0 0.0
  %2461 = vmatpush2.msra.mxu0 %v92
  %2462 = vmatprep.subr.mxu0 0.0
  %2463 = vmatpush2.msra.mxu0 %v91
  %2464 = vmatprep.subr.mxu0 0.0
  %2465 = vmatpush2.msra.mxu0 %v90
  %2466 = vmatprep.subr.mxu0 0.0
  %2467 = vmatpush2.msra.mxu0 %v89
  %2468 = vmatprep.subr.mxu0 0.0
  %2469 = vmatpush2.msra.mxu0 %v88
  %2470 = vmatprep.subr.mxu0 0.0
  %2471 = vmatpush2.msra.mxu0 %v87
  %2472 = vmatprep.subr.mxu0 0.0
  %2473 = vmatpush2.msra.mxu0 %v86
  %2474 = vmatprep.subr.mxu0 0.0
  %2475 = vmatpush2.msra.mxu0 %v85
  %2476 = vmatprep.subr.mxu0 0.0
  %2477 = vmatpush2.msra.mxu0 %v84
  %2478 = vmatprep.subr.mxu0 0.0
  %2479 = vmatpush2.msra.mxu0 %v83
  %2480 = vmatprep.subr.mxu0 0.0
  %2481 = vmatpush2.msra.mxu0 %v82
  %2482 = vmatprep.subr.mxu0 0.0
  %2483 = vmatpush2.msra.mxu0 %v81
  %2484 = vmatprep.subr.mxu0 0.0
  %2485 = vmatpush2.msra.mxu0 %v80
  %2486 = vmatprep.mubr.f32.mxu0 %v2342
  %2487 = vmatmul.mubr.f32.gmra.mxu0 %v2341
  %v2488 = vpop.f32.mrf.mxu0
  %v2489 = vadd.f32 %v2414, %v2488
  %v2490 = vpop.f32.mrf.mxu0
  %2491 = vmatprep.mubr.f32.mxu0 %v2346
  %2492 = vmatmul.mubr.f32.gmra.mxu0 %v2345
  %v2493 = vpop.f32.mrf.mxu0
  %v2494 = vadd.f32 %v2419, %v2493
  %v2495 = vpop.f32.mrf.mxu0
  %2496 = vdwg.mxu0
  %v2497 = vld [vmem:[%s5 + $0x98] sm:$0xff]
  %v2498 = vld [vmem:[%s5 + $0xa0] sm:$0xff]
  %2500 = vset.pattern.permute.xlu0 0
  %2501 = vperm.xlu0 %2500, %v2498
  %v2502 = vpop.permute.xlu0 %2501
  %v2505 = vsel %vm1330, %v2497, 0
  %2507 = vmatprep.subr.mxu0 0.0
  %2508 = vmatpush1.msra.mxu0 0.0
  %2509 = vmatprep.subr.mxu0 0.0
  %2510 = vmatpush1.msra.mxu0 0.0
  %2511 = vmatprep.subr.mxu0 0.0
  %2512 = vmatpush1.msra.mxu0 0.0
  %2513 = vmatprep.subr.mxu0 0.0
  %2514 = vmatpush1.msra.mxu0 0.0
  %2515 = vmatprep.subr.mxu0 0.0
  %2516 = vmatpush1.msra.mxu0 0.0
  %2517 = vmatprep.subr.mxu0 0.0
  %2518 = vmatpush1.msra.mxu0 0.0
  %2519 = vmatprep.subr.mxu0 0.0
  %2520 = vmatpush1.msra.mxu0 0.0
  %2521 = vmatprep.subr.mxu0 0.0
  %2522 = vmatpush1.msra.mxu0 0.0
  %2523 = vmatprep.subr.mxu0 0.0
  %2524 = vmatpush1.msra.mxu0 0.0
  %2525 = vmatprep.subr.mxu0 0.0
  %2526 = vmatpush1.msra.mxu0 0.0
  %2527 = vmatprep.subr.mxu0 0.0
  %2528 = vmatpush1.msra.mxu0 0.0
  %2529 = vmatprep.subr.mxu0 0.0
  %2530 = vmatpush1.msra.mxu0 0.0
  %2531 = vmatprep.subr.mxu0 0.0
  %2532 = vmatpush1.msra.mxu0 0.0
  %2533 = vmatprep.subr.mxu0 0.0
  %2534 = vmatpush1.msra.mxu0 0.0
  %2535 = vmatprep.subr.mxu0 0.0
  %2536 = vmatpush1.msra.mxu0 %v2494
  %2537 = vmatprep.subr.mxu0 0.0
  %2538 = vmatpush1.msra.mxu0 %v2489
  %2539 = vmatprep.subr.mxu0 0.0
  %2540 = vmatpush2.msra.mxu0 0.0
  %2541 = vmatprep.subr.mxu0 0.0
  %2542 = vmatpush2.msra.mxu0 0.0
  %2543 = vmatprep.subr.mxu0 0.0
  %2544 = vmatpush2.msra.mxu0 0.0
  %2545 = vmatprep.subr.mxu0 0.0
  %2546 = vmatpush2.msra.mxu0 0.0
  %2547 = vmatprep.subr.mxu0 0.0
  %2548 = vmatpush2.msra.mxu0 0.0
  %2549 = vmatprep.subr.mxu0 0.0
  %2550 = vmatpush2.msra.mxu0 0.0
  %2551 = vmatprep.subr.mxu0 0.0
  %2552 = vmatpush2.msra.mxu0 0.0
  %2553 = vmatprep.subr.mxu0 0.0
  %2554 = vmatpush2.msra.mxu0 0.0
  %2555 = vmatprep.subr.mxu0 0.0
  %2556 = vmatpush2.msra.mxu0 0.0
  %2557 = vmatprep.subr.mxu0 0.0
  %2558 = vmatpush2.msra.mxu0 0.0
  %2559 = vmatprep.subr.mxu0 0.0
  %2560 = vmatpush2.msra.mxu0 0.0
  %2561 = vmatprep.subr.mxu0 0.0
  %2562 = vmatpush2.msra.mxu0 0.0
  %2563 = vmatprep.subr.mxu0 0.0
  %2564 = vmatpush2.msra.mxu0 0.0
  %2565 = vmatprep.subr.mxu0 0.0
  %2566 = vmatpush2.msra.mxu0 0.0
  %2567 = vmatprep.subr.mxu0 0.0
  %2568 = vmatpush2.msra.mxu0 0.0
  %2569 = vmatprep.subr.mxu0 0.0
  %2570 = vmatpush2.msra.mxu0 0.0
  %2571 = vmatprep.mubr.f32.mxu0 0.0
  %2572 = vmatmul.mubr.f32.gmra.mxu0 %v2505
  %v2573 = vpop.f32.mrf.mxu0
  %v2574 = vadd.f32 %v2502, %v2573
  %v2575 = vpop.f32.mrf.mxu0
  %2576 = vdwg.mxu0
  %v2577 = vmax.f32 %v2574, 0.0
  %v2578 = vld [vmem:[%s5 + $0xa8] sm:$0xff]
  %v2579 = vld [vmem:[%s5 + $0xb0] sm:$0xff]
  %v2580 = vld [vmem:[%s5 + $0xb8] sm:$0xff]
  %v2581 = vld [vmem:[%s5 + $0xc0] sm:$0xff]
  %2583 = vset.pattern.permute.xlu0 0
  %2584 = vperm.xlu0 %2583, %v2580
  %v2585 = vpop.permute.xlu0 %2584
  %2588 = vset.pattern.permute.xlu0 0
  %2589 = vperm.xlu0 %2588, %v2581
  %v2590 = vpop.permute.xlu0 %2589
  %v2593 = vsel %vm1419, %v2578, 0
  %v2596 = vsel %vm1419, %v2579, 0
  %2598 = vmatprep.subr.mxu0 0.0
  %2599 = vmatpush1.msra.mxu0 0.0
  %2600 = vmatprep.subr.mxu0 0.0
  %2601 = vmatpush1.msra.mxu0 0.0
  %2602 = vmatprep.subr.mxu0 0.0
  %2603 = vmatpush1.msra.mxu0 0.0
  %2604 = vmatprep.subr.mxu0 0.0
  %2605 = vmatpush1.msra.mxu0 0.0
  %2606 = vmatprep.subr.mxu0 0.0
  %2607 = vmatpush1.msra.mxu0 0.0
  %2608 = vmatprep.subr.mxu0 0.0
  %2609 = vmatpush1.msra.mxu0 0.0
  %2610 = vmatprep.subr.mxu0 0.0
  %2611 = vmatpush1.msra.mxu0 0.0
  %2612 = vmatprep.subr.mxu0 0.0
  %2613 = vmatpush1.msra.mxu0 0.0
  %2614 = vmatprep.subr.mxu0 0.0
  %2615 = vmatpush1.msra.mxu0 0.0
  %2616 = vmatprep.subr.mxu0 0.0
  %2617 = vmatpush1.msra.mxu0 0.0
  %2618 = vmatprep.subr.mxu0 0.0
  %2619 = vmatpush1.msra.mxu0 0.0
  %2620 = vmatprep.subr.mxu0 0.0
  %2621 = vmatpush1.msra.mxu0 0.0
  %2622 = vmatprep.subr.mxu0 0.0
  %2623 = vmatpush1.msra.mxu0 0.0
  %2624 = vmatprep.subr.mxu0 0.0
  %2625 = vmatpush1.msra.mxu0 0.0
  %2626 = vmatprep.subr.mxu0 0.0
  %2627 = vmatpush1.msra.mxu0 0.0
  %2628 = vmatprep.subr.mxu0 0.0
  %2629 = vmatpush1.msra.mxu0 %v2577
  %2630 = vmatprep.subr.mxu0 0.0
  %2631 = vmatpush2.msra.mxu0 0.0
  %2632 = vmatprep.subr.mxu0 0.0
  %2633 = vmatpush2.msra.mxu0 0.0
  %2634 = vmatprep.subr.mxu0 0.0
  %2635 = vmatpush2.msra.mxu0 0.0
  %2636 = vmatprep.subr.mxu0 0.0
  %2637 = vmatpush2.msra.mxu0 0.0
  %2638 = vmatprep.subr.mxu0 0.0
  %2639 = vmatpush2.msra.mxu0 0.0
  %2640 = vmatprep.subr.mxu0 0.0
  %2641 = vmatpush2.msra.mxu0 0.0
  %2642 = vmatprep.subr.mxu0 0.0
  %2643 = vmatpush2.msra.mxu0 0.0
  %2644 = vmatprep.subr.mxu0 0.0
  %2645 = vmatpush2.msra.mxu0 0.0
  %2646 = vmatprep.subr.mxu0 0.0
  %2647 = vmatpush2.msra.mxu0 0.0
  %2648 = vmatprep.subr.mxu0 0.0
  %2649 = vmatpush2.msra.mxu0 0.0
  %2650 = vmatprep.subr.mxu0 0.0
  %2651 = vmatpush2.msra.mxu0 0.0
  %2652 = vmatprep.subr.mxu0 0.0
  %2653 = vmatpush2.msra.mxu0 0.0
  %2654 = vmatprep.subr.mxu0 0.0
  %2655 = vmatpush2.msra.mxu0 0.0
  %2656 = vmatprep.subr.mxu0 0.0
  %2657 = vmatpush2.msra.mxu0 0.0
  %2658 = vmatprep.subr.mxu0 0.0
  %2659 = vmatpush2.msra.mxu0 0.0
  %2660 = vmatprep.subr.mxu0 0.0
  %2661 = vmatpush2.msra.mxu0 0.0
  %2662 = vmatprep.mubr.f32.mxu0 0.0
  %2663 = vmatmul.mubr.f32.gmra.mxu0 %v2593
  %v2664 = vpop.f32.mrf.mxu0
  %v2665 = vadd.f32 %v2585, %v2664
  %v2666 = vpop.f32.mrf.mxu0
  %2667 = vmatprep.mubr.f32.mxu0 0.0
  %2668 = vmatmul.mubr.f32.gmra.mxu0 %v2596
  %v2669 = vpop.f32.mrf.mxu0
  %v2670 = vadd.f32 %v2590, %v2669
  %v2671 = vpop.f32.mrf.mxu0
  %2672 = vdwg.mxu0
  %v2673 = vsub.f32 0.0, %v2665
  %v2674 = vsub.f32 0.0, %v2670
  %v2675 = vmul.f32 %v2673, 1.442695
  %v2676 = vpow.pop %v2675
  %v2677 = vmul.f32 %v2674, 1.442695
  %v2678 = vpow.pop %v2677
  %v2679 = vadd.f32 %v2676, 1.0
  %v2680 = vadd.f32 %v2678, 1.0
  %v2681 = vrcp.pop %v2679
  %v2682 = vrcp.pop %v2680
  %v2683 = vld [vmem:[%s5 + $0xc8] sm:$0xff]
  %v2684 = vld [vmem:[%s5 + $0xd0] sm:$0xff]
  %2686 = vset.pattern.permute.xlu0 0
  %2687 = vperm.xlu0 %2686, %v2684
  %v2688 = vpop.permute.xlu0 %2687
  %v2691 = vsel %vm1330, %v2683, 0
  %2693 = vmatprep.subr.mxu0 0.0
  %2694 = vmatpush1.msra.mxu0 0.0
  %2695 = vmatprep.subr.mxu0 0.0
  %2696 = vmatpush1.msra.mxu0 0.0
  %2697 = vmatprep.subr.mxu0 0.0
  %2698 = vmatpush1.msra.mxu0 0.0
  %2699 = vmatprep.subr.mxu0 0.0
  %2700 = vmatpush1.msra.mxu0 0.0
  %2701 = vmatprep.subr.mxu0 0.0
  %2702 = vmatpush1.msra.mxu0 0.0
  %2703 = vmatprep.subr.mxu0 0.0
  %2704 = vmatpush1.msra.mxu0 0.0
  %2705 = vmatprep.subr.mxu0 0.0
  %2706 = vmatpush1.msra.mxu0 0.0
  %2707 = vmatprep.subr.mxu0 0.0
  %2708 = vmatpush1.msra.mxu0 0.0
  %2709 = vmatprep.subr.mxu0 0.0
  %2710 = vmatpush1.msra.mxu0 0.0
  %2711 = vmatprep.subr.mxu0 0.0
  %2712 = vmatpush1.msra.mxu0 0.0
  %2713 = vmatprep.subr.mxu0 0.0
  %2714 = vmatpush1.msra.mxu0 0.0
  %2715 = vmatprep.subr.mxu0 0.0
  %2716 = vmatpush1.msra.mxu0 0.0
  %2717 = vmatprep.subr.mxu0 0.0
  %2718 = vmatpush1.msra.mxu0 0.0
  %2719 = vmatprep.subr.mxu0 0.0
  %2720 = vmatpush1.msra.mxu0 0.0
  %2721 = vmatprep.subr.mxu0 0.0
  %2722 = vmatpush1.msra.mxu0 %v2494
  %2723 = vmatprep.subr.mxu0 0.0
  %2724 = vmatpush1.msra.mxu0 %v2489
  %2725 = vmatprep.subr.mxu0 0.0
  %2726 = vmatpush2.msra.mxu0 0.0
  %2727 = vmatprep.subr.mxu0 0.0
  %2728 = vmatpush2.msra.mxu0 0.0
  %2729 = vmatprep.subr.mxu0 0.0
  %2730 = vmatpush2.msra.mxu0 0.0
  %2731 = vmatprep.subr.mxu0 0.0
  %2732 = vmatpush2.msra.mxu0 0.0
  %2733 = vmatprep.subr.mxu0 0.0
  %2734 = vmatpush2.msra.mxu0 0.0
  %2735 = vmatprep.subr.mxu0 0.0
  %2736 = vmatpush2.msra.mxu0 0.0
  %2737 = vmatprep.subr.mxu0 0.0
  %2738 = vmatpush2.msra.mxu0 0.0
  %2739 = vmatprep.subr.mxu0 0.0
  %2740 = vmatpush2.msra.mxu0 0.0
  %2741 = vmatprep.subr.mxu0 0.0
  %2742 = vmatpush2.msra.mxu0 0.0
  %2743 = vmatprep.subr.mxu0 0.0
  %2744 = vmatpush2.msra.mxu0 0.0
  %2745 = vmatprep.subr.mxu0 0.0
  %2746 = vmatpush2.msra.mxu0 0.0
  %2747 = vmatprep.subr.mxu0 0.0
  %2748 = vmatpush2.msra.mxu0 0.0
  %2749 = vmatprep.subr.mxu0 0.0
  %2750 = vmatpush2.msra.mxu0 0.0
  %2751 = vmatprep.subr.mxu0 0.0
  %2752 = vmatpush2.msra.mxu0 0.0
  %2753 = vmatprep.subr.mxu0 0.0
  %2754 = vmatpush2.msra.mxu0 0.0
  %2755 = vmatprep.subr.mxu0 0.0
  %2756 = vmatpush2.msra.mxu0 0.0
  %2757 = vmatprep.mubr.f32.mxu0 0.0
  %2758 = vmatmul.mubr.f32.gmra.mxu0 %v2691
  %v2759 = vpop.f32.mrf.mxu0
  %v2760 = vadd.f32 %v2688, %v2759
  %v2761 = vpop.f32.mrf.mxu0
  %2762 = vdwg.mxu0
  %v2763 = vmax.f32 %v2760, 0.0
  %v2764 = vld [vmem:[%s5 + $0xd8] sm:$0xff]
  %v2765 = vld [vmem:[%s5 + $0xe0] sm:$0xff]
  %v2766 = vld [vmem:[%s5 + $0xe8] sm:$0xff]
  %v2767 = vld [vmem:[%s5 + $0xf0] sm:$0xff]
  %2769 = vset.pattern.permute.xlu0 0
  %2770 = vperm.xlu0 %2769, %v2766
  %v2771 = vpop.permute.xlu0 %2770
  %2774 = vset.pattern.permute.xlu0 0
  %2775 = vperm.xlu0 %2774, %v2767
  %v2776 = vpop.permute.xlu0 %2775
  %v2779 = vsel %vm1419, %v2764, 0
  %v2782 = vsel %vm1419, %v2765, 0
  %2784 = vmatprep.subr.mxu0 0.0
  %2785 = vmatpush1.msra.mxu0 0.0
  %2786 = vmatprep.subr.mxu0 0.0
  %2787 = vmatpush1.msra.mxu0 0.0
  %2788 = vmatprep.subr.mxu0 0.0
  %2789 = vmatpush1.msra.mxu0 0.0
  %2790 = vmatprep.subr.mxu0 0.0
  %2791 = vmatpush1.msra.mxu0 0.0
  %2792 = vmatprep.subr.mxu0 0.0
  %2793 = vmatpush1.msra.mxu0 0.0
  %2794 = vmatprep.subr.mxu0 0.0
  %2795 = vmatpush1.msra.mxu0 0.0
  %2796 = vmatprep.subr.mxu0 0.0
  %2797 = vmatpush1.msra.mxu0 0.0
  %2798 = vmatprep.subr.mxu0 0.0
  %2799 = vmatpush1.msra.mxu0 0.0
  %2800 = vmatprep.subr.mxu0 0.0
  %2801 = vmatpush1.msra.mxu0 0.0
  %2802 = vmatprep.subr.mxu0 0.0
  %2803 = vmatpush1.msra.mxu0 0.0
  %2804 = vmatprep.subr.mxu0 0.0
  %2805 = vmatpush1.msra.mxu0 0.0
  %2806 = vmatprep.subr.mxu0 0.0
  %2807 = vmatpush1.msra.mxu0 0.0
  %2808 = vmatprep.subr.mxu0 0.0
  %2809 = vmatpush1.msra.mxu0 0.0
  %2810 = vmatprep.subr.mxu0 0.0
  %2811 = vmatpush1.msra.mxu0 0.0
  %2812 = vmatprep.subr.mxu0 0.0
  %2813 = vmatpush1.msra.mxu0 0.0
  %2814 = vmatprep.subr.mxu0 0.0
  %2815 = vmatpush1.msra.mxu0 %v2763
  %2816 = vmatprep.subr.mxu0 0.0
  %2817 = vmatpush2.msra.mxu0 0.0
  %2818 = vmatprep.subr.mxu0 0.0
  %2819 = vmatpush2.msra.mxu0 0.0
  %2820 = vmatprep.subr.mxu0 0.0
  %2821 = vmatpush2.msra.mxu0 0.0
  %2822 = vmatprep.subr.mxu0 0.0
  %2823 = vmatpush2.msra.mxu0 0.0
  %2824 = vmatprep.subr.mxu0 0.0
  %2825 = vmatpush2.msra.mxu0 0.0
  %2826 = vmatprep.subr.mxu0 0.0
  %2827 = vmatpush2.msra.mxu0 0.0
  %2828 = vmatprep.subr.mxu0 0.0
  %2829 = vmatpush2.msra.mxu0 0.0
  %2830 = vmatprep.subr.mxu0 0.0
  %2831 = vmatpush2.msra.mxu0 0.0
  %2832 = vmatprep.subr.mxu0 0.0
  %2833 = vmatpush2.msra.mxu0 0.0
  %2834 = vmatprep.subr.mxu0 0.0
  %2835 = vmatpush2.msra.mxu0 0.0
  %2836 = vmatprep.subr.mxu0 0.0
  %2837 = vmatpush2.msra.mxu0 0.0
  %2838 = vmatprep.subr.mxu0 0.0
  %2839 = vmatpush2.msra.mxu0 0.0
  %2840 = vmatprep.subr.mxu0 0.0
  %2841 = vmatpush2.msra.mxu0 0.0
  %2842 = vmatprep.subr.mxu0 0.0
  %2843 = vmatpush2.msra.mxu0 0.0
  %2844 = vmatprep.subr.mxu0 0.0
  %2845 = vmatpush2.msra.mxu0 0.0
  %2846 = vmatprep.subr.mxu0 0.0
  %2847 = vmatpush2.msra.mxu0 0.0
  %2848 = vmatprep.mubr.f32.mxu0 0.0
  %2849 = vmatmul.mubr.f32.gmra.mxu0 %v2779
  %v2850 = vpop.f32.mrf.mxu0
  %v2851 = vadd.f32 %v2771, %v2850
  %v2852 = vpop.f32.mrf.mxu0
  %2853 = vmatprep.mubr.f32.mxu0 0.0
  %2854 = vmatmul.mubr.f32.gmra.mxu0 %v2782
  %v2855 = vpop.f32.mrf.mxu0
  %v2856 = vadd.f32 %v2776, %v2855
  %v2857 = vpop.f32.mrf.mxu0
  %2858 = vdwg.mxu0
  %v2859 = vsub.f32 0.0, %v2851
  %v2860 = vsub.f32 0.0, %v2856
  %v2861 = vmul.f32 %v2859, 1.442695
  %v2862 = vpow.pop %v2861
  %v2863 = vmul.f32 %v2860, 1.442695
  %v2864 = vpow.pop %v2863
  %v2865 = vadd.f32 %v2862, 1.0
  %v2866 = vadd.f32 %v2864, 1.0
  %v2867 = vrcp.pop %v2865
  %v2868 = vrcp.pop %v2866
  %v2869 = vmul.f32 %v2681, %v2867
  %v2870 = vmul.f32 %v2682, %v2868
  %v2872 = vsel %vm1717, %v2869, 0
  %v2875 = vsel %vm1717, %v2870, 0
  %2877 = vmatprep.subr.mxu0 0.0
  %2878 = vmatpush1.msra.mxu0 0.0
  %2879 = vmatprep.subr.mxu0 0.0
  %2880 = vmatpush1.msra.mxu0 0.0
  %2881 = vmatprep.subr.mxu0 0.0
  %2882 = vmatpush1.msra.mxu0 0.0
  %2883 = vmatprep.subr.mxu0 0.0
  %2884 = vmatpush1.msra.mxu0 0.0
  %2885 = vmatprep.subr.mxu0 0.0
  %2886 = vmatpush1.msra.mxu0 0.0
  %2887 = vmatprep.subr.mxu0 0.0
  %2888 = vmatpush1.msra.mxu0 0.0
  %2889 = vmatprep.subr.mxu0 0.0
  %2890 = vmatpush1.msra.mxu0 0.0
  %2891 = vmatprep.subr.mxu0 0.0
  %2892 = vmatpush1.msra.mxu0 0.0
  %2893 = vmatprep.subr.mxu0 0.0
  %2894 = vmatpush1.msra.mxu0 0.0
  %2895 = vmatprep.subr.mxu0 0.0
  %2896 = vmatpush1.msra.mxu0 0.0
  %2897 = vmatprep.subr.mxu0 0.0
  %2898 = vmatpush1.msra.mxu0 0.0
  %2899 = vmatprep.subr.mxu0 0.0
  %2900 = vmatpush1.msra.mxu0 0.0
  %2901 = vmatprep.subr.mxu0 0.0
  %2902 = vmatpush1.msra.mxu0 0.0
  %2903 = vmatprep.subr.mxu0 0.0
  %2904 = vmatpush1.msra.mxu0 0.0
  %2905 = vmatprep.subr.mxu0 0.0
  %2906 = vmatpush1.msra.mxu0 0.0
  %2907 = vmatprep.subr.mxu0 %v1727
  %2908 = vmatpush1.msra.mxu0 %v1725
  %2909 = vmatprep.subr.mxu0 0.0
  %2910 = vmatpush2.msra.mxu0 0.0
  %2911 = vmatprep.subr.mxu0 0.0
  %2912 = vmatpush2.msra.mxu0 0.0
  %2913 = vmatprep.subr.mxu0 0.0
  %2914 = vmatpush2.msra.mxu0 0.0
  %2915 = vmatprep.subr.mxu0 0.0
  %2916 = vmatpush2.msra.mxu0 0.0
  %2917 = vmatprep.subr.mxu0 0.0
  %2918 = vmatpush2.msra.mxu0 0.0
  %2919 = vmatprep.subr.mxu0 0.0
  %2920 = vmatpush2.msra.mxu0 0.0
  %2921 = vmatprep.subr.mxu0 0.0
  %2922 = vmatpush2.msra.mxu0 0.0
  %2923 = vmatprep.subr.mxu0 0.0
  %2924 = vmatpush2.msra.mxu0 0.0
  %2925 = vmatprep.subr.mxu0 0.0
  %2926 = vmatpush2.msra.mxu0 0.0
  %2927 = vmatprep.subr.mxu0 0.0
  %2928 = vmatpush2.msra.mxu0 0.0
  %2929 = vmatprep.subr.mxu0 0.0
  %2930 = vmatpush2.msra.mxu0 0.0
  %2931 = vmatprep.subr.mxu0 0.0
  %2932 = vmatpush2.msra.mxu0 0.0
  %2933 = vmatprep.subr.mxu0 0.0
  %2934 = vmatpush2.msra.mxu0 0.0
  %2935 = vmatprep.subr.mxu0 0.0
  %2936 = vmatpush2.msra.mxu0 0.0
  %2937 = vmatprep.subr.mxu0 0.0
  %2938 = vmatpush2.msra.mxu0 0.0
  %2939 = vmatprep.subr.mxu0 0.0
  %2940 = vmatpush2.msra.mxu0 0.0
  %2941 = vmatprep.mubr.f32.mxu0 0.0
  %2942 = vmatmul.mubr.f32.gmra.mxu0 %v2872
  %v2943 = vpop.f32.mrf.mxu0
  %v2944 = vadd.f32 0.0, %v2943
  %v2945 = vpop.f32.mrf.mxu0
  %v2946 = vadd.f32 0.0, %v2945
  %2947 = vmatprep.mubr.f32.mxu0 0.0
  %2948 = vmatmul.mubr.f32.gmra.mxu0 %v2875
  %v2949 = vpop.f32.mrf.mxu0
  %v2950 = vadd.f32 0.0, %v2949
  %v2951 = vpop.f32.mrf.mxu0
  %v2952 = vadd.f32 0.0, %v2951
  %2953 = vdwg.mxu0
  %2954 = vmatprep.subr.mxu0 0.0
  %2955 = vmatpush1.msra.mxu0 0.0
  %2956 = vmatprep.subr.mxu0 0.0
  %2957 = vmatpush1.msra.mxu0 0.0
  %2958 = vmatprep.subr.mxu0 0.0
  %2959 = vmatpush1.msra.mxu0 0.0
  %2960 = vmatprep.subr.mxu0 0.0
  %2961 = vmatpush1.msra.mxu0 0.0
  %2962 = vmatprep.subr.mxu0 0.0
  %2963 = vmatpush1.msra.mxu0 0.0
  %2964 = vmatprep.subr.mxu0 0.0
  %2965 = vmatpush1.msra.mxu0 0.0
  %2966 = vmatprep.subr.mxu0 0.0
  %2967 = vmatpush1.msra.mxu0 0.0
  %2968 = vmatprep.subr.mxu0 0.0
  %2969 = vmatpush1.msra.mxu0 0.0
  %2970 = vmatprep.subr.mxu0 0.0
  %2971 = vmatpush1.msra.mxu0 0.0
  %2972 = vmatprep.subr.mxu0 0.0
  %2973 = vmatpush1.msra.mxu0 0.0
  %2974 = vmatprep.subr.mxu0 0.0
  %2975 = vmatpush1.msra.mxu0 0.0
  %2976 = vmatprep.subr.mxu0 0.0
  %2977 = vmatpush1.msra.mxu0 0.0
  %2978 = vmatprep.subr.mxu0 0.0
  %2979 = vmatpush1.msra.mxu0 0.0
  %2980 = vmatprep.subr.mxu0 0.0
  %2981 = vmatpush1.msra.mxu0 0.0
  %2982 = vmatprep.subr.mxu0 0.0
  %2983 = vmatpush1.msra.mxu0 0.0
  %2984 = vmatprep.subr.mxu0 %v1731
  %2985 = vmatpush1.msra.mxu0 %v1729
  %2986 = vmatprep.subr.mxu0 0.0
  %2987 = vmatpush2.msra.mxu0 0.0
  %2988 = vmatprep.subr.mxu0 0.0
  %2989 = vmatpush2.msra.mxu0 0.0
  %2990 = vmatprep.subr.mxu0 0.0
  %2991 = vmatpush2.msra.mxu0 0.0
  %2992 = vmatprep.subr.mxu0 0.0
  %2993 = vmatpush2.msra.mxu0 0.0
  %2994 = vmatprep.subr.mxu0 0.0
  %2995 = vmatpush2.msra.mxu0 0.0
  %2996 = vmatprep.subr.mxu0 0.0
  %2997 = vmatpush2.msra.mxu0 0.0
  %2998 = vmatprep.subr.mxu0 0.0
  %2999 = vmatpush2.msra.mxu0 0.0
  %3000 = vmatprep.subr.mxu0 0.0
  %3001 = vmatpush2.msra.mxu0 0.0
  %3002 = vmatprep.subr.mxu0 0.0
  %3003 = vmatpush2.msra.mxu0 0.0
  %3004 = vmatprep.subr.mxu0 0.0
  %3005 = vmatpush2.msra.mxu0 0.0
  %3006 = vmatprep.subr.mxu0 0.0
  %3007 = vmatpush2.msra.mxu0 0.0
  %3008 = vmatprep.subr.mxu0 0.0
  %3009 = vmatpush2.msra.mxu0 0.0
  %3010 = vmatprep.subr.mxu0 0.0
  %3011 = vmatpush2.msra.mxu0 0.0
  %3012 = vmatprep.subr.mxu0 0.0
  %3013 = vmatpush2.msra.mxu0 0.0
  %3014 = vmatprep.subr.mxu0 0.0
  %3015 = vmatpush2.msra.mxu0 0.0
  %3016 = vmatprep.subr.mxu0 0.0
  %3017 = vmatpush2.msra.mxu0 0.0
  %3018 = vmatprep.mubr.f32.mxu0 0.0
  %3019 = vmatmul.mubr.f32.gmra.mxu0 %v2872
  %v3020 = vpop.f32.mrf.mxu0
  %v3021 = vadd.f32 0.0, %v3020
  %v3022 = vpop.f32.mrf.mxu0
  %v3023 = vadd.f32 0.0, %v3022
  %3024 = vmatprep.mubr.f32.mxu0 0.0
  %3025 = vmatmul.mubr.f32.gmra.mxu0 %v2875
  %v3026 = vpop.f32.mrf.mxu0
  %v3027 = vadd.f32 0.0, %v3026
  %v3028 = vpop.f32.mrf.mxu0
  %v3029 = vadd.f32 0.0, %v3028
  %3030 = vdwg.mxu0
  %v3031 = vmul.f32 %v2339, %v2944
  %v3032 = vmul.f32 %v2340, %v2946
  %v3033 = vmul.f32 %v2341, %v3021
  %v3034 = vmul.f32 %v2342, %v3023
  %v3035 = vmul.f32 %v2343, %v2950
  %v3036 = vmul.f32 %v2344, %v2952
  %v3037 = vmul.f32 %v2345, %v3027
  %v3038 = vmul.f32 %v2346, %v3029
  %v3039 = vpack.c.bf16 %v3035, %v3031
  %v3040 = vpack.c.bf16 %v3036, %v3032
  %v3041 = vpack.c.bf16 %v3037, %v3033
  %v3042 = vpack.c.bf16 %v3038, %v3034
  %v3043 = vld [vmem:[%s4 + $0x18] sm:$0xf]
  %v3044 = vld [vmem:[%s5 + $0x90] sm:$0xff]
  %3046 = vset.pattern.permute.xlu0 0
  %3047 = vperm.xlu0 %3046, %v3044
  %v3048 = vpop.permute.xlu0 %3047
  %v3051 = vsel %vm1330, %v3043, 0
  %3053 = vmatprep.subr.bf16.mxu0 0
  %3054 = vmatpush1.bf16.msra.mxu0 0
  %3055 = vmatprep.subr.bf16.mxu0 0
  %3056 = vmatpush1.bf16.msra.mxu0 0
  %3057 = vmatprep.subr.bf16.mxu0 0
  %3058 = vmatpush1.bf16.msra.mxu0 0
  %3059 = vmatprep.subr.bf16.mxu0 0
  %3060 = vmatpush1.bf16.msra.mxu0 0
  %3061 = vmatprep.subr.bf16.mxu0 0
  %3062 = vmatpush1.bf16.msra.mxu0 0
  %3063 = vmatprep.subr.bf16.mxu0 0
  %3064 = vmatpush1.bf16.msra.mxu0 0
  %3065 = vmatprep.subr.bf16.mxu0 0
  %3066 = vmatpush1.bf16.msra.mxu0 0
  %3067 = vmatprep.subr.bf16.mxu0 %v3040
  %3068 = vmatpush1.bf16.msra.mxu0 %v3039
  %3069 = vmatprep.subr.bf16.mxu0 0
  %3070 = vmatpush2.bf16.msra.mxu0 0
  %3071 = vmatprep.subr.bf16.mxu0 0
  %3072 = vmatpush2.bf16.msra.mxu0 0
  %3073 = vmatprep.subr.bf16.mxu0 0
  %3074 = vmatpush2.bf16.msra.mxu0 0
  %3075 = vmatprep.subr.bf16.mxu0 0
  %3076 = vmatpush2.bf16.msra.mxu0 0
  %3077 = vmatprep.subr.bf16.mxu0 0
  %3078 = vmatpush2.bf16.msra.mxu0 0
  %3079 = vmatprep.subr.bf16.mxu0 0
  %3080 = vmatpush2.bf16.msra.mxu0 0
  %3081 = vmatprep.subr.bf16.mxu0 0
  %3082 = vmatpush2.bf16.msra.mxu0 0
  %3083 = vmatprep.subr.bf16.mxu0 0
  %3084 = vmatpush2.bf16.msra.mxu0 0
  %3085 = vmatprep.mubr.bf16.mxu0 0
  %3086 = vmatmul.mubr.bf16.gmra.mxu0 %v3051
  %v3087 = vpop.f32.mrf.mxu0
  %v3088 = vadd.f32 %v3048, %v3087
  %v3089 = vpop.f32.mrf.mxu0
  %v3090 = vadd.f32 %v3048, %v3089
  %v3091 = vpop.f32.mrf.mxu0
  %v3092 = vpop.f32.mrf.mxu0
  %3093 = vdwg.mxu0
  %3094 = vmatprep.subr.bf16.mxu0 0
  %3095 = vmatpush1.bf16.msra.mxu0 0
  %3096 = vmatprep.subr.bf16.mxu0 0
  %3097 = vmatpush1.bf16.msra.mxu0 0
  %3098 = vmatprep.subr.bf16.mxu0 0
  %3099 = vmatpush1.bf16.msra.mxu0 0
  %3100 = vmatprep.subr.bf16.mxu0 0
  %3101 = vmatpush1.bf16.msra.mxu0 0
  %3102 = vmatprep.subr.bf16.mxu0 0
  %3103 = vmatpush1.bf16.msra.mxu0 0
  %3104 = vmatprep.subr.bf16.mxu0 0
  %3105 = vmatpush1.bf16.msra.mxu0 0
  %3106 = vmatprep.subr.bf16.mxu0 0
  %3107 = vmatpush1.bf16.msra.mxu0 0
  %3108 = vmatprep.subr.bf16.mxu0 %v3042
  %3109 = vmatpush1.bf16.msra.mxu0 %v3041
  %3110 = vmatprep.subr.bf16.mxu0 0
  %3111 = vmatpush2.bf16.msra.mxu0 0
  %3112 = vmatprep.subr.bf16.mxu0 0
  %3113 = vmatpush2.bf16.msra.mxu0 0
  %3114 = vmatprep.subr.bf16.mxu0 0
  %3115 = vmatpush2.bf16.msra.mxu0 0
  %3116 = vmatprep.subr.bf16.mxu0 0
  %3117 = vmatpush2.bf16.msra.mxu0 0
  %3118 = vmatprep.subr.bf16.mxu0 0
  %3119 = vmatpush2.bf16.msra.mxu0 0
  %3120 = vmatprep.subr.bf16.mxu0 0
  %3121 = vmatpush2.bf16.msra.mxu0 0
  %3122 = vmatprep.subr.bf16.mxu0 0
  %3123 = vmatpush2.bf16.msra.mxu0 0
  %3124 = vmatprep.subr.bf16.mxu0 0
  %3125 = vmatpush2.bf16.msra.mxu0 0
  %3126 = vmatprep.mubr.bf16.mxu0 0
  %3127 = vmatmul.mubr.bf16.gmra.mxu0 %v3051
  %v3128 = vpop.f32.mrf.mxu0
  %v3129 = vadd.f32 %v3048, %v3128
  %v3130 = vpop.f32.mrf.mxu0
  %v3131 = vadd.f32 %v3048, %v3130
  %v3132 = vpop.f32.mrf.mxu0
  %v3133 = vpop.f32.mrf.mxu0
  %3134 = vdwg.mxu0
  %v3135 = vadd.f32 %v3088, %v1995
  %v3136 = vadd.f32 %v3090, %v1996
  %v3137 = vadd.f32 %v3129, %v1997
  %v3138 = vadd.f32 %v3131, %v1998
  %v3139 = vmax.f32 %v3135, 0.0
  %v3140 = vmax.f32 %v3136, 0.0
  %v3141 = vmax.f32 %v3137, 0.0
  %v3142 = vmax.f32 %v3138, 0.0
  %3143 = vrot.lane.b32.xlu0 %v3139, 17
  %v3144 = vpop.permute.xlu0 %3143
  %3145 = vrot.lane.b32.xlu0 %v3140, 17
  %v3146 = vpop.permute.xlu0 %3145
  %3147 = vrot.lane.b32.xlu0 %v3141, 17
  %v3148 = vpop.permute.xlu0 %3147
  %3149 = vrot.lane.b32.xlu0 %v3142, 17
  %v3150 = vpop.permute.xlu0 %3149
  %v3151 = vsel %vm129, %v3148, %v3150
  %v3152 = vsel %vm129, %v3146, %v3148
  %v3153 = vsel %vm129, %v3144, %v3146
  %v3154 = vsel %vm129, %v3150, %v3144
  %v3155 = vmul.f32 %v3154, %v711
  %v3156 = vmul.f32 %v3153, %v715
  %v3157 = vmul.f32 %v3152, %v719
  %v3158 = vmul.f32 %v3151, %v723
  %3159 = vst [vmem:[#allocation2] sm:$0xff] %v3155
  %3160 = vst [vmem:[#allocation2 + $0x8] sm:$0xff] %v3156
  %3161 = vst [vmem:[#allocation2 + $0x10] sm:$0xff] %v3157
  %3162 = vst [vmem:[#allocation2 + $0x18] sm:$0xff] %v3158
  %3163 = vrot.lane.b32.xlu0 %v3139, 16
  %v3164 = vpop.permute.xlu0 %3163
  %3165 = vrot.lane.b32.xlu0 %v3140, 16
  %v3166 = vpop.permute.xlu0 %3165
  %3167 = vrot.lane.b32.xlu0 %v3141, 16
  %v3168 = vpop.permute.xlu0 %3167
  %3169 = vrot.lane.b32.xlu0 %v3142, 16
  %v3170 = vpop.permute.xlu0 %3169
  %v3171 = vsel %vm181, %v3168, %v3170
  %v3172 = vsel %vm181, %v3166, %v3168
  %v3173 = vsel %vm181, %v3164, %v3166
  %v3174 = vsel %vm181, %v3170, %v3164
  %v3175 = vmul.f32 %v3174, %v747
  %v3176 = vmul.f32 %v3173, %v751
  %v3177 = vmul.f32 %v3172, %v755
  %v3178 = vmul.f32 %v3171, %v759
  %3179 = vst [vmem:[#allocation2 + $0x20] sm:$0xff] %v3175
  %3180 = vst [vmem:[#allocation2 + $0x28] sm:$0xff] %v3176
  %3181 = vst [vmem:[#allocation2 + $0x30] sm:$0xff] %v3177
  %3182 = vst [vmem:[#allocation2 + $0x38] sm:$0xff] %v3178
  %3183 = vrot.lane.b32.xlu0 %v3139, 15
  %v3184 = vpop.permute.xlu0 %3183
  %3185 = vrot.lane.b32.xlu0 %v3140, 15
  %v3186 = vpop.permute.xlu0 %3185
  %3187 = vrot.lane.b32.xlu0 %v3141, 15
  %v3188 = vpop.permute.xlu0 %3187
  %3189 = vrot.lane.b32.xlu0 %v3142, 15
  %v3190 = vpop.permute.xlu0 %3189
  %v3191 = vsel %vm242, %v3188, %v3190
  %v3192 = vsel %vm242, %v3186, %v3188
  %v3193 = vsel %vm242, %v3184, %v3186
  %v3194 = vsel %vm242, %v3190, %v3184
  %v3195 = vmul.f32 %v3194, %v783
  %v3196 = vmul.f32 %v3193, %v787
  %v3197 = vmul.f32 %v3192, %v791
  %v3198 = vmul.f32 %v3191, %v795
  %3199 = vst [vmem:[#allocation2 + $0x40] sm:$0xff] %v3195
  %3200 = vst [vmem:[#allocation2 + $0x48] sm:$0xff] %v3196
  %3201 = vst [vmem:[#allocation2 + $0x50] sm:$0xff] %v3197
  %3202 = vst [vmem:[#allocation2 + $0x58] sm:$0xff] %v3198
  %3203 = vrot.lane.b32.xlu0 %v3139, 1
  %v3204 = vpop.permute.xlu0 %3203
  %3205 = vrot.lane.b32.xlu0 %v3140, 1
  %v3206 = vpop.permute.xlu0 %3205
  %3207 = vrot.lane.b32.xlu0 %v3141, 1
  %v3208 = vpop.permute.xlu0 %3207
  %3209 = vrot.lane.b32.xlu0 %v3142, 1
  %v3210 = vpop.permute.xlu0 %3209
  %v3211 = vsel %vm299, %v3208, %v3210
  %v3212 = vsel %vm299, %v3206, %v3208
  %v3213 = vsel %vm299, %v3204, %v3206
  %v3214 = vsel %vm299, %v3210, %v3204
  %v3215 = vmul.f32 %v3214, %v819
  %v3216 = vmul.f32 %v3213, %v823
  %v3217 = vmul.f32 %v3212, %v827
  %v3218 = vmul.f32 %v3211, %v831
  %3219 = vst [vmem:[#allocation2 + $0x60] sm:$0xff] %v3215
  %3220 = vst [vmem:[#allocation2 + $0x68] sm:$0xff] %v3216
  %3221 = vst [vmem:[#allocation2 + $0x70] sm:$0xff] %v3217
  %3222 = vst [vmem:[#allocation2 + $0x78] sm:$0xff] %v3218
  %3223 = vst [vmem:[#allocation2 + $0x80] sm:$0xff] %v3139
  %3224 = vst [vmem:[#allocation2 + $0x88] sm:$0xff] %v3140
  %3225 = vst [vmem:[#allocation2 + $0x90] sm:$0xff] %v3141
  %3226 = vst [vmem:[#allocation2 + $0x98] sm:$0xff] %v3142
  %3227 = vrot.lane.b32.xlu0 %v3139, 127
  %v3228 = vpop.permute.xlu0 %3227
  %3229 = vrot.lane.b32.xlu0 %v3140, 127
  %v3230 = vpop.permute.xlu0 %3229
  %3231 = vrot.lane.b32.xlu0 %v3141, 127
  %v3232 = vpop.permute.xlu0 %3231
  %3233 = vrot.lane.b32.xlu0 %v3142, 127
  %v3234 = vpop.permute.xlu0 %3233
  %v3235 = vsel %vm359, %v3232, %v3234
  %v3236 = vsel %vm359, %v3230, %v3232
  %v3237 = vsel %vm359, %v3228, %v3230
  %v3238 = vsel %vm359, %v3234, %v3228
  %v3239 = vmul.f32 %v3237, %v859
  %v3240 = vmul.f32 %v3236, %v863
  %v3241 = vmul.f32 %v3235, %v867
  %v3242 = vmul.f32 %v3238, %v871
  %3243 = vst [vmem:[#allocation2 + $0xa0] sm:$0xff] %v3239
  %3244 = vst [vmem:[#allocation2 + $0xa8] sm:$0xff] %v3240
  %3245 = vst [vmem:[#allocation2 + $0xb0] sm:$0xff] %v3241
  %3246 = vst [vmem:[#allocation2 + $0xb8] sm:$0xff] %v3242
  %3247 = vrot.lane.b32.xlu0 %v3139, 113
  %v3248 = vpop.permute.xlu0 %3247
  %3249 = vrot.lane.b32.xlu0 %v3140, 113
  %v3250 = vpop.permute.xlu0 %3249
  %3251 = vrot.lane.b32.xlu0 %v3141, 113
  %v3252 = vpop.permute.xlu0 %3251
  %3253 = vrot.lane.b32.xlu0 %v3142, 113
  %v3254 = vpop.permute.xlu0 %3253
  %v3255 = vsel %vm416, %v3252, %v3254
  %v3256 = vsel %vm416, %v3250, %v3252
  %v3257 = vsel %vm416, %v3248, %v3250
  %v3258 = vsel %vm416, %v3254, %v3248
  %v3259 = vmul.f32 %v3257, %v895
  %v3260 = vmul.f32 %v3256, %v899
  %v3261 = vmul.f32 %v3255, %v903
  %v3262 = vmul.f32 %v3258, %v907
  %3263 = vst [vmem:[#allocation2 + $0xc0] sm:$0xff] %v3259
  %3264 = vst [vmem:[#allocation2 + $0xc8] sm:$0xff] %v3260
  %3265 = vst [vmem:[#allocation2 + $0xd0] sm:$0xff] %v3261
  %3266 = vst [vmem:[#allocation2 + $0xd8] sm:$0xff] %v3262
  %3267 = vrot.lane.b32.xlu0 %v3139, 112
  %v3268 = vpop.permute.xlu0 %3267
  %3269 = vrot.lane.b32.xlu0 %v3140, 112
  %v3270 = vpop.permute.xlu0 %3269
  %3271 = vrot.lane.b32.xlu0 %v3141, 112
  %v3272 = vpop.permute.xlu0 %3271
  %3273 = vrot.lane.b32.xlu0 %v3142, 112
  %v3274 = vpop.permute.xlu0 %3273
  %v3275 = vsel %vm473, %v3272, %v3274
  %v3276 = vsel %vm473, %v3270, %v3272
  %v3277 = vsel %vm473, %v3268, %v3270
  %v3278 = vsel %vm473, %v3274, %v3268
  %v3279 = vmul.f32 %v3277, %v931
  %v3280 = vmul.f32 %v3276, %v935
  %v3281 = vmul.f32 %v3275, %v939
  %v3282 = vmul.f32 %v3278, %v943
  %3283 = vst [vmem:[#allocation2 + $0xe0] sm:$0xff] %v3279
  %3284 = vst [vmem:[#allocation2 + $0xe8] sm:$0xff] %v3280
  %3285 = vst [vmem:[#allocation2 + $0xf0] sm:$0xff] %v3281
  %3286 = vst [vmem:[#allocation2 + $0xf8] sm:$0xff] %v3282
  %3287 = vrot.lane.b32.xlu0 %v3139, 111
  %v3288 = vpop.permute.xlu0 %3287
  %3289 = vrot.lane.b32.xlu0 %v3140, 111
  %v3290 = vpop.permute.xlu0 %3289
  %3291 = vrot.lane.b32.xlu0 %v3141, 111
  %v3292 = vpop.permute.xlu0 %3291
  %3293 = vrot.lane.b32.xlu0 %v3142, 111
  %v3294 = vpop.permute.xlu0 %3293
  %v3295 = vsel %vm530, %v3292, %v3294
  %v3296 = vsel %vm530, %v3290, %v3292
  %v3297 = vsel %vm530, %v3288, %v3290
  %v3298 = vsel %vm530, %v3294, %v3288
  %v3299 = vmul.f32 %v3297, %v967
  %v3300 = vmul.f32 %v3296, %v971
  %v3301 = vmul.f32 %v3295, %v975
  %v3302 = vmul.f32 %v3298, %v979
  %3303 = vst [vmem:[#allocation2 + $0x100] sm:$0xff] %v3299
  %3304 = vst [vmem:[#allocation2 + $0x108] sm:$0xff] %v3300
  %3305 = vst [vmem:[#allocation2 + $0x110] sm:$0xff] %v3301
  %3306 = vst [vmem:[#allocation2 + $0x118] sm:$0xff] %v3302
  %v3307 = vld [vmem:[#allocation2] sm:$0xff]
  %v3308 = vld [vmem:[#allocation2 + $0x8] sm:$0xff]
  %v3309 = vld [vmem:[#allocation2 + $0x10] sm:$0xff]
  %v3310 = vld [vmem:[#allocation2 + $0x18] sm:$0xff]
  %v3311 = vld [vmem:[#allocation2 + $0x20] sm:$0xff]
  %v3312 = vld [vmem:[#allocation2 + $0x28] sm:$0xff]
  %v3313 = vld [vmem:[#allocation2 + $0x30] sm:$0xff]
  %v3314 = vld [vmem:[#allocation2 + $0x38] sm:$0xff]
  %v3315 = vld [vmem:[#allocation2 + $0x40] sm:$0xff]
  %v3316 = vld [vmem:[#allocation2 + $0x48] sm:$0xff]
  %v3317 = vld [vmem:[#allocation2 + $0x50] sm:$0xff]
  %v3318 = vld [vmem:[#allocation2 + $0x58] sm:$0xff]
  %v3319 = vld [vmem:[#allocation2 + $0x60] sm:$0xff]
  %v3320 = vld [vmem:[#allocation2 + $0x68] sm:$0xff]
  %v3321 = vld [vmem:[#allocation2 + $0x70] sm:$0xff]
  %v3322 = vld [vmem:[#allocation2 + $0x78] sm:$0xff]
  %v3323 = vld [vmem:[#allocation2 + $0x80] sm:$0xff]
  %v3324 = vld [vmem:[#allocation2 + $0x88] sm:$0xff]
  %v3325 = vld [vmem:[#allocation2 + $0x90] sm:$0xff]
  %v3326 = vld [vmem:[#allocation2 + $0x98] sm:$0xff]
  %v3327 = vld [vmem:[#allocation2 + $0xa0] sm:$0xff]
  %v3328 = vld [vmem:[#allocation2 + $0xa8] sm:$0xff]
  %v3329 = vld [vmem:[#allocation2 + $0xb0] sm:$0xff]
  %v3330 = vld [vmem:[#allocation2 + $0xb8] sm:$0xff]
  %v3331 = vld [vmem:[#allocation2 + $0xc0] sm:$0xff]
  %v3332 = vld [vmem:[#allocation2 + $0xc8] sm:$0xff]
  %v3333 = vld [vmem:[#allocation2 + $0xd0] sm:$0xff]
  %v3334 = vld [vmem:[#allocation2 + $0xd8] sm:$0xff]
  %v3335 = vld [vmem:[#allocation2 + $0xe0] sm:$0xff]
  %v3336 = vld [vmem:[#allocation2 + $0xe8] sm:$0xff]
  %v3337 = vld [vmem:[#allocation2 + $0xf0] sm:$0xff]
  %v3338 = vld [vmem:[#allocation2 + $0xf8] sm:$0xff]
  %v3339 = vld [vmem:[#allocation2 + $0x100] sm:$0xff]
  %v3340 = vld [vmem:[#allocation2 + $0x108] sm:$0xff]
  %v3341 = vld [vmem:[#allocation2 + $0x110] sm:$0xff]
  %v3342 = vld [vmem:[#allocation2 + $0x118] sm:$0xff]
  %v3343 = vpack.c.bf16 %v3311, %v3307
  %v3344 = vpack.c.bf16 %v3312, %v3308
  %v3345 = vpack.c.bf16 %v3313, %v3309
  %v3346 = vpack.c.bf16 %v3314, %v3310
  %v3347 = vpack.c.bf16 %v3319, %v3315
  %v3348 = vpack.c.bf16 %v3320, %v3316
  %v3349 = vpack.c.bf16 %v3321, %v3317
  %v3350 = vpack.c.bf16 %v3322, %v3318
  %v3351 = vpack.c.bf16 %v3327, %v3323
  %v3352 = vpack.c.bf16 %v3328, %v3324
  %v3353 = vpack.c.bf16 %v3329, %v3325
  %v3354 = vpack.c.bf16 %v3330, %v3326
  %v3355 = vpack.c.bf16 %v3335, %v3331
  %v3356 = vpack.c.bf16 %v3336, %v3332
  %v3357 = vpack.c.bf16 %v3337, %v3333
  %v3358 = vpack.c.bf16 %v3338, %v3334
  %v3359 = vpack.c.bf16 %v3339, %v3339
  %v3360 = vpack.c.bf16 %v3340, %v3340
  %v3361 = vpack.c.bf16 %v3341, %v3341
  %v3362 = vpack.c.bf16 %v3342, %v3342
  %v3363 = vld [vmem:[%s4 + $0x1c] sm:$0xf]
  %v3364 = vld [vmem:[%s4 + $0x20] sm:$0xf]
  %v3365 = vld [vmem:[%s5 + $0xf8] sm:$0xff]
  %v3366 = vld [vmem:[%s5 + $0x100] sm:$0xff]
  %3368 = vset.pattern.permute.xlu0 0
  %3369 = vperm.xlu0 %3368, %v3365
  %v3370 = vpop.permute.xlu0 %3369
  %3373 = vset.pattern.permute.xlu0 0
  %3374 = vperm.xlu0 %3373, %v3366
  %v3375 = vpop.permute.xlu0 %3374
  %v3379 = vunpack.c.l.b16 %v3363
  %v3380 = vunpack.c.l.b16 %v3364
  %v3381 = vpack.c.b16 %v3380, %v3379
  %v3383 = vsel %vm1063, %v3381, 0
  %v3386 = vsel %vm594, %v3359, 0
  %v3389 = vsel %vm594, %v3360, 0
  %v3392 = vsel %vm594, %v3361, 0
  %v3395 = vsel %vm594, %v3362, 0
  %3397 = vmatprep.subr.bf16.mxu0 0
  %3398 = vmatpush1.bf16.msra.mxu0 0
  %3399 = vmatprep.subr.bf16.mxu0 0
  %3400 = vmatpush1.bf16.msra.mxu0 0
  %3401 = vmatprep.subr.bf16.mxu0 0
  %3402 = vmatpush1.bf16.msra.mxu0 0
  %3403 = vmatprep.subr.bf16.mxu0 %v3389
  %3404 = vmatpush1.bf16.msra.mxu0 %v3386
  %3405 = vmatprep.subr.bf16.mxu0 %v3356
  %3406 = vmatpush1.bf16.msra.mxu0 %v3355
  %3407 = vmatprep.subr.bf16.mxu0 %v3352
  %3408 = vmatpush1.bf16.msra.mxu0 %v3351
  %3409 = vmatprep.subr.bf16.mxu0 %v3348
  %3410 = vmatpush1.bf16.msra.mxu0 %v3347
  %3411 = vmatprep.subr.bf16.mxu0 %v3344
  %3412 = vmatpush1.bf16.msra.mxu0 %v3343
  %3413 = vmatprep.subr.bf16.mxu0 0
  %3414 = vmatpush2.bf16.msra.mxu0 0
  %3415 = vmatprep.subr.bf16.mxu0 0
  %3416 = vmatpush2.bf16.msra.mxu0 0
  %3417 = vmatprep.subr.bf16.mxu0 0
  %3418 = vmatpush2.bf16.msra.mxu0 0
  %3419 = vmatprep.subr.bf16.mxu0 0
  %3420 = vmatpush2.bf16.msra.mxu0 0
  %3421 = vmatprep.subr.bf16.mxu0 0
  %3422 = vmatpush2.bf16.msra.mxu0 0
  %3423 = vmatprep.subr.bf16.mxu0 0
  %3424 = vmatpush2.bf16.msra.mxu0 0
  %3425 = vmatprep.subr.bf16.mxu0 0
  %3426 = vmatpush2.bf16.msra.mxu0 0
  %3427 = vmatprep.subr.bf16.mxu0 0
  %3428 = vmatpush2.bf16.msra.mxu0 0
  %3429 = vmatprep.mubr.bf16.mxu0 0
  %3430 = vmatmul.mubr.bf16.gmra.mxu0 %v3383
  %v3431 = vpop.f32.mrf.mxu0
  %v3432 = vadd.f32 %v3370, %v3431
  %v3433 = vpop.f32.mrf.mxu0
  %v3434 = vadd.f32 %v3370, %v3433
  %v3435 = vpop.f32.mrf.mxu0
  %v3436 = vadd.f32 %v3375, %v3435
  %v3437 = vpop.f32.mrf.mxu0
  %v3438 = vadd.f32 %v3375, %v3437
  %3439 = vdwg.mxu0
  %3440 = vmatprep.subr.bf16.mxu0 0
  %3441 = vmatpush1.bf16.msra.mxu0 0
  %3442 = vmatprep.subr.bf16.mxu0 0
  %3443 = vmatpush1.bf16.msra.mxu0 0
  %3444 = vmatprep.subr.bf16.mxu0 0
  %3445 = vmatpush1.bf16.msra.mxu0 0
  %3446 = vmatprep.subr.bf16.mxu0 %v3395
  %3447 = vmatpush1.bf16.msra.mxu0 %v3392
  %3448 = vmatprep.subr.bf16.mxu0 %v3358
  %3449 = vmatpush1.bf16.msra.mxu0 %v3357
  %3450 = vmatprep.subr.bf16.mxu0 %v3354
  %3451 = vmatpush1.bf16.msra.mxu0 %v3353
  %3452 = vmatprep.subr.bf16.mxu0 %v3350
  %3453 = vmatpush1.bf16.msra.mxu0 %v3349
  %3454 = vmatprep.subr.bf16.mxu0 %v3346
  %3455 = vmatpush1.bf16.msra.mxu0 %v3345
  %3456 = vmatprep.subr.bf16.mxu0 0
  %3457 = vmatpush2.bf16.msra.mxu0 0
  %3458 = vmatprep.subr.bf16.mxu0 0
  %3459 = vmatpush2.bf16.msra.mxu0 0
  %3460 = vmatprep.subr.bf16.mxu0 0
  %3461 = vmatpush2.bf16.msra.mxu0 0
  %3462 = vmatprep.subr.bf16.mxu0 0
  %3463 = vmatpush2.bf16.msra.mxu0 0
  %3464 = vmatprep.subr.bf16.mxu0 0
  %3465 = vmatpush2.bf16.msra.mxu0 0
  %3466 = vmatprep.subr.bf16.mxu0 0
  %3467 = vmatpush2.bf16.msra.mxu0 0
  %3468 = vmatprep.subr.bf16.mxu0 0
  %3469 = vmatpush2.bf16.msra.mxu0 0
  %3470 = vmatprep.subr.bf16.mxu0 0
  %3471 = vmatpush2.bf16.msra.mxu0 0
  %3472 = vmatprep.mubr.bf16.mxu0 0
  %3473 = vmatmul.mubr.bf16.gmra.mxu0 %v3383
  %v3474 = vpop.f32.mrf.mxu0
  %v3475 = vadd.f32 %v3370, %v3474
  %v3476 = vpop.f32.mrf.mxu0
  %v3477 = vadd.f32 %v3370, %v3476
  %v3478 = vpop.f32.mrf.mxu0
  %v3479 = vadd.f32 %v3375, %v3478
  %v3480 = vpop.f32.mrf.mxu0
  %v3481 = vadd.f32 %v3375, %v3480
  %3482 = vdwg.mxu0
  %v3483 = vmax.f32 %v3432, 0.0
  %v3484 = vmax.f32 %v3434, 0.0
  %v3485 = vmax.f32 %v3475, 0.0
  %v3486 = vmax.f32 %v3477, 0.0
  %v3487 = vmax.f32 %v3436, 0.0
  %v3488 = vmax.f32 %v3438, 0.0
  %v3489 = vmax.f32 %v3479, 0.0
  %v3490 = vmax.f32 %v3481, 0.0
  %3491 = vmatprep.subr.mxu0 0.0
  %3492 = vmatpush1.msra.mxu0 %v47
  %3493 = vmatprep.subr.mxu0 0.0
  %3494 = vmatpush1.msra.mxu0 %v46
  %3495 = vmatprep.subr.mxu0 0.0
  %3496 = vmatpush1.msra.mxu0 %v45
  %3497 = vmatprep.subr.mxu0 0.0
  %3498 = vmatpush1.msra.mxu0 %v44
  %3499 = vmatprep.subr.mxu0 0.0
  %3500 = vmatpush1.msra.mxu0 %v43
  %3501 = vmatprep.subr.mxu0 0.0
  %3502 = vmatpush1.msra.mxu0 %v42
  %3503 = vmatprep.subr.mxu0 0.0
  %3504 = vmatpush1.msra.mxu0 %v41
  %3505 = vmatprep.subr.mxu0 0.0
  %3506 = vmatpush1.msra.mxu0 %v40
  %3507 = vmatprep.subr.mxu0 0.0
  %3508 = vmatpush1.msra.mxu0 %v39
  %3509 = vmatprep.subr.mxu0 0.0
  %3510 = vmatpush1.msra.mxu0 %v38
  %3511 = vmatprep.subr.mxu0 0.0
  %3512 = vmatpush1.msra.mxu0 %v37
  %3513 = vmatprep.subr.mxu0 0.0
  %3514 = vmatpush1.msra.mxu0 %v36
  %3515 = vmatprep.subr.mxu0 0.0
  %3516 = vmatpush1.msra.mxu0 %v35
  %3517 = vmatprep.subr.mxu0 0.0
  %3518 = vmatpush1.msra.mxu0 %v34
  %3519 = vmatprep.subr.mxu0 0.0
  %3520 = vmatpush1.msra.mxu0 %v33
  %3521 = vmatprep.subr.mxu0 0.0
  %3522 = vmatpush1.msra.mxu0 %v32
  %3523 = vmatprep.subr.mxu0 0.0
  %3524 = vmatpush2.msra.mxu0 %v63
  %3525 = vmatprep.subr.mxu0 0.0
  %3526 = vmatpush2.msra.mxu0 %v62
  %3527 = vmatprep.subr.mxu0 0.0
  %3528 = vmatpush2.msra.mxu0 %v61
  %3529 = vmatprep.subr.mxu0 0.0
  %3530 = vmatpush2.msra.mxu0 %v60
  %3531 = vmatprep.subr.mxu0 0.0
  %3532 = vmatpush2.msra.mxu0 %v59
  %3533 = vmatprep.subr.mxu0 0.0
  %3534 = vmatpush2.msra.mxu0 %v58
  %3535 = vmatprep.subr.mxu0 0.0
  %3536 = vmatpush2.msra.mxu0 %v57
  %3537 = vmatprep.subr.mxu0 0.0
  %3538 = vmatpush2.msra.mxu0 %v56
  %3539 = vmatprep.subr.mxu0 0.0
  %3540 = vmatpush2.msra.mxu0 %v55
  %3541 = vmatprep.subr.mxu0 0.0
  %3542 = vmatpush2.msra.mxu0 %v54
  %3543 = vmatprep.subr.mxu0 0.0
  %3544 = vmatpush2.msra.mxu0 %v53
  %3545 = vmatprep.subr.mxu0 0.0
  %3546 = vmatpush2.msra.mxu0 %v52
  %3547 = vmatprep.subr.mxu0 0.0
  %3548 = vmatpush2.msra.mxu0 %v51
  %3549 = vmatprep.subr.mxu0 0.0
  %3550 = vmatpush2.msra.mxu0 %v50
  %3551 = vmatprep.subr.mxu0 0.0
  %3552 = vmatpush2.msra.mxu0 %v49
  %3553 = vmatprep.subr.mxu0 0.0
  %3554 = vmatpush2.msra.mxu0 %v48
  %3555 = vmatprep.mubr.f32.mxu0 %v3484
  %3556 = vmatmul.mubr.f32.gmra.mxu0 %v3483
  %v3557 = vpop.f32.mrf.mxu0
  %v3558 = vadd.f32 0.0, %v3557
  %v3559 = vpop.f32.mrf.mxu0
  %3560 = vmatprep.mubr.f32.mxu0 %v3488
  %3561 = vmatmul.mubr.f32.gmra.mxu0 %v3487
  %v3562 = vpop.f32.mrf.mxu0
  %v3563 = vadd.f32 0.0, %v3562
  %v3564 = vpop.f32.mrf.mxu0
  %3565 = vdwg.mxu0
  %3566 = vmatprep.subr.mxu0 0.0
  %3567 = vmatpush1.msra.mxu0 %v79
  %3568 = vmatprep.subr.mxu0 0.0
  %3569 = vmatpush1.msra.mxu0 %v78
  %3570 = vmatprep.subr.mxu0 0.0
  %3571 = vmatpush1.msra.mxu0 %v77
  %3572 = vmatprep.subr.mxu0 0.0
  %3573 = vmatpush1.msra.mxu0 %v76
  %3574 = vmatprep.subr.mxu0 0.0
  %3575 = vmatpush1.msra.mxu0 %v75
  %3576 = vmatprep.subr.mxu0 0.0
  %3577 = vmatpush1.msra.mxu0 %v74
  %3578 = vmatprep.subr.mxu0 0.0
  %3579 = vmatpush1.msra.mxu0 %v73
  %3580 = vmatprep.subr.mxu0 0.0
  %3581 = vmatpush1.msra.mxu0 %v72
  %3582 = vmatprep.subr.mxu0 0.0
  %3583 = vmatpush1.msra.mxu0 %v71
  %3584 = vmatprep.subr.mxu0 0.0
  %3585 = vmatpush1.msra.mxu0 %v70
  %3586 = vmatprep.subr.mxu0 0.0
  %3587 = vmatpush1.msra.mxu0 %v69
  %3588 = vmatprep.subr.mxu0 0.0
  %3589 = vmatpush1.msra.mxu0 %v68
  %3590 = vmatprep.subr.mxu0 0.0
  %3591 = vmatpush1.msra.mxu0 %v67
  %3592 = vmatprep.subr.mxu0 0.0
  %3593 = vmatpush1.msra.mxu0 %v66
  %3594 = vmatprep.subr.mxu0 0.0
  %3595 = vmatpush1.msra.mxu0 %v65
  %3596 = vmatprep.subr.mxu0 0.0
  %3597 = vmatpush1.msra.mxu0 %v64
  %3598 = vmatprep.subr.mxu0 0.0
  %3599 = vmatpush2.msra.mxu0 %v95
  %3600 = vmatprep.subr.mxu0 0.0
  %3601 = vmatpush2.msra.mxu0 %v94
  %3602 = vmatprep.subr.mxu0 0.0
  %3603 = vmatpush2.msra.mxu0 %v93
  %3604 = vmatprep.subr.mxu0 0.0
  %3605 = vmatpush2.msra.mxu0 %v92
  %3606 = vmatprep.subr.mxu0 0.0
  %3607 = vmatpush2.msra.mxu0 %v91
  %3608 = vmatprep.subr.mxu0 0.0
  %3609 = vmatpush2.msra.mxu0 %v90
  %3610 = vmatprep.subr.mxu0 0.0
  %3611 = vmatpush2.msra.mxu0 %v89
  %3612 = vmatprep.subr.mxu0 0.0
  %3613 = vmatpush2.msra.mxu0 %v88
  %3614 = vmatprep.subr.mxu0 0.0
  %3615 = vmatpush2.msra.mxu0 %v87
  %3616 = vmatprep.subr.mxu0 0.0
  %3617 = vmatpush2.msra.mxu0 %v86
  %3618 = vmatprep.subr.mxu0 0.0
  %3619 = vmatpush2.msra.mxu0 %v85
  %3620 = vmatprep.subr.mxu0 0.0
  %3621 = vmatpush2.msra.mxu0 %v84
  %3622 = vmatprep.subr.mxu0 0.0
  %3623 = vmatpush2.msra.mxu0 %v83
  %3624 = vmatprep.subr.mxu0 0.0
  %3625 = vmatpush2.msra.mxu0 %v82
  %3626 = vmatprep.subr.mxu0 0.0
  %3627 = vmatpush2.msra.mxu0 %v81
  %3628 = vmatprep.subr.mxu0 0.0
  %3629 = vmatpush2.msra.mxu0 %v80
  %3630 = vmatprep.mubr.f32.mxu0 %v3486
  %3631 = vmatmul.mubr.f32.gmra.mxu0 %v3485
  %v3632 = vpop.f32.mrf.mxu0
  %v3633 = vadd.f32 %v3558, %v3632
  %v3634 = vpop.f32.mrf.mxu0
  %3635 = vmatprep.mubr.f32.mxu0 %v3490
  %3636 = vmatmul.mubr.f32.gmra.mxu0 %v3489
  %v3637 = vpop.f32.mrf.mxu0
  %v3638 = vadd.f32 %v3563, %v3637
  %v3639 = vpop.f32.mrf.mxu0
  %3640 = vdwg.mxu0
  %v3641 = vld [vmem:[%s5 + $0x110] sm:$0xff]
  %v3642 = vld [vmem:[%s5 + $0x118] sm:$0xff]
  %3644 = vset.pattern.permute.xlu0 0
  %3645 = vperm.xlu0 %3644, %v3642
  %v3646 = vpop.permute.xlu0 %3645
  %v3649 = vsel %vm1330, %v3641, 0
  %3651 = vmatprep.subr.mxu0 0.0
  %3652 = vmatpush1.msra.mxu0 0.0
  %3653 = vmatprep.subr.mxu0 0.0
  %3654 = vmatpush1.msra.mxu0 0.0
  %3655 = vmatprep.subr.mxu0 0.0
  %3656 = vmatpush1.msra.mxu0 0.0
  %3657 = vmatprep.subr.mxu0 0.0
  %3658 = vmatpush1.msra.mxu0 0.0
  %3659 = vmatprep.subr.mxu0 0.0
  %3660 = vmatpush1.msra.mxu0 0.0
  %3661 = vmatprep.subr.mxu0 0.0
  %3662 = vmatpush1.msra.mxu0 0.0
  %3663 = vmatprep.subr.mxu0 0.0
  %3664 = vmatpush1.msra.mxu0 0.0
  %3665 = vmatprep.subr.mxu0 0.0
  %3666 = vmatpush1.msra.mxu0 0.0
  %3667 = vmatprep.subr.mxu0 0.0
  %3668 = vmatpush1.msra.mxu0 0.0
  %3669 = vmatprep.subr.mxu0 0.0
  %3670 = vmatpush1.msra.mxu0 0.0
  %3671 = vmatprep.subr.mxu0 0.0
  %3672 = vmatpush1.msra.mxu0 0.0
  %3673 = vmatprep.subr.mxu0 0.0
  %3674 = vmatpush1.msra.mxu0 0.0
  %3675 = vmatprep.subr.mxu0 0.0
  %3676 = vmatpush1.msra.mxu0 0.0
  %3677 = vmatprep.subr.mxu0 0.0
  %3678 = vmatpush1.msra.mxu0 0.0
  %3679 = vmatprep.subr.mxu0 0.0
  %3680 = vmatpush1.msra.mxu0 %v3638
  %3681 = vmatprep.subr.mxu0 0.0
  %3682 = vmatpush1.msra.mxu0 %v3633
  %3683 = vmatprep.subr.mxu0 0.0
  %3684 = vmatpush2.msra.mxu0 0.0
  %3685 = vmatprep.subr.mxu0 0.0
  %3686 = vmatpush2.msra.mxu0 0.0
  %3687 = vmatprep.subr.mxu0 0.0
  %3688 = vmatpush2.msra.mxu0 0.0
  %3689 = vmatprep.subr.mxu0 0.0
  %3690 = vmatpush2.msra.mxu0 0.0
  %3691 = vmatprep.subr.mxu0 0.0
  %3692 = vmatpush2.msra.mxu0 0.0
  %3693 = vmatprep.subr.mxu0 0.0
  %3694 = vmatpush2.msra.mxu0 0.0
  %3695 = vmatprep.subr.mxu0 0.0
  %3696 = vmatpush2.msra.mxu0 0.0
  %3697 = vmatprep.subr.mxu0 0.0
  %3698 = vmatpush2.msra.mxu0 0.0
  %3699 = vmatprep.subr.mxu0 0.0
  %3700 = vmatpush2.msra.mxu0 0.0
  %3701 = vmatprep.subr.mxu0 0.0
  %3702 = vmatpush2.msra.mxu0 0.0
  %3703 = vmatprep.subr.mxu0 0.0
  %3704 = vmatpush2.msra.mxu0 0.0
  %3705 = vmatprep.subr.mxu0 0.0
  %3706 = vmatpush2.msra.mxu0 0.0
  %3707 = vmatprep.subr.mxu0 0.0
  %3708 = vmatpush2.msra.mxu0 0.0
  %3709 = vmatprep.subr.mxu0 0.0
  %3710 = vmatpush2.msra.mxu0 0.0
  %3711 = vmatprep.subr.mxu0 0.0
  %3712 = vmatpush2.msra.mxu0 0.0
  %3713 = vmatprep.subr.mxu0 0.0
  %3714 = vmatpush2.msra.mxu0 0.0
  %3715 = vmatprep.mubr.f32.mxu0 0.0
  %3716 = vmatmul.mubr.f32.gmra.mxu0 %v3649
  %v3717 = vpop.f32.mrf.mxu0
  %v3718 = vadd.f32 %v3646, %v3717
  %v3719 = vpop.f32.mrf.mxu0
  %3720 = vdwg.mxu0
  %v3721 = vmax.f32 %v3718, 0.0
  %v3722 = vld [vmem:[%s5 + $0x120] sm:$0xff]
  %v3723 = vld [vmem:[%s5 + $0x128] sm:$0xff]
  %v3724 = vld [vmem:[%s5 + $0x130] sm:$0xff]
  %v3725 = vld [vmem:[%s5 + $0x138] sm:$0xff]
  %3727 = vset.pattern.permute.xlu0 0
  %3728 = vperm.xlu0 %3727, %v3724
  %v3729 = vpop.permute.xlu0 %3728
  %3732 = vset.pattern.permute.xlu0 0
  %3733 = vperm.xlu0 %3732, %v3725
  %v3734 = vpop.permute.xlu0 %3733
  %v3737 = vsel %vm1419, %v3722, 0
  %v3740 = vsel %vm1419, %v3723, 0
  %3742 = vmatprep.subr.mxu0 0.0
  %3743 = vmatpush1.msra.mxu0 0.0
  %3744 = vmatprep.subr.mxu0 0.0
  %3745 = vmatpush1.msra.mxu0 0.0
  %3746 = vmatprep.subr.mxu0 0.0
  %3747 = vmatpush1.msra.mxu0 0.0
  %3748 = vmatprep.subr.mxu0 0.0
  %3749 = vmatpush1.msra.mxu0 0.0
  %3750 = vmatprep.subr.mxu0 0.0
  %3751 = vmatpush1.msra.mxu0 0.0
  %3752 = vmatprep.subr.mxu0 0.0
  %3753 = vmatpush1.msra.mxu0 0.0
  %3754 = vmatprep.subr.mxu0 0.0
  %3755 = vmatpush1.msra.mxu0 0.0
  %3756 = vmatprep.subr.mxu0 0.0
  %3757 = vmatpush1.msra.mxu0 0.0
  %3758 = vmatprep.subr.mxu0 0.0
  %3759 = vmatpush1.msra.mxu0 0.0
  %3760 = vmatprep.subr.mxu0 0.0
  %3761 = vmatpush1.msra.mxu0 0.0
  %3762 = vmatprep.subr.mxu0 0.0
  %3763 = vmatpush1.msra.mxu0 0.0
  %3764 = vmatprep.subr.mxu0 0.0
  %3765 = vmatpush1.msra.mxu0 0.0
  %3766 = vmatprep.subr.mxu0 0.0
  %3767 = vmatpush1.msra.mxu0 0.0
  %3768 = vmatprep.subr.mxu0 0.0
  %3769 = vmatpush1.msra.mxu0 0.0
  %3770 = vmatprep.subr.mxu0 0.0
  %3771 = vmatpush1.msra.mxu0 0.0
  %3772 = vmatprep.subr.mxu0 0.0
  %3773 = vmatpush1.msra.mxu0 %v3721
  %3774 = vmatprep.subr.mxu0 0.0
  %3775 = vmatpush2.msra.mxu0 0.0
  %3776 = vmatprep.subr.mxu0 0.0
  %3777 = vmatpush2.msra.mxu0 0.0
  %3778 = vmatprep.subr.mxu0 0.0
  %3779 = vmatpush2.msra.mxu0 0.0
  %3780 = vmatprep.subr.mxu0 0.0
  %3781 = vmatpush2.msra.mxu0 0.0
  %3782 = vmatprep.subr.mxu0 0.0
  %3783 = vmatpush2.msra.mxu0 0.0
  %3784 = vmatprep.subr.mxu0 0.0
  %3785 = vmatpush2.msra.mxu0 0.0
  %3786 = vmatprep.subr.mxu0 0.0
  %3787 = vmatpush2.msra.mxu0 0.0
  %3788 = vmatprep.subr.mxu0 0.0
  %3789 = vmatpush2.msra.mxu0 0.0
  %3790 = vmatprep.subr.mxu0 0.0
  %3791 = vmatpush2.msra.mxu0 0.0
  %3792 = vmatprep.subr.mxu0 0.0
  %3793 = vmatpush2.msra.mxu0 0.0
  %3794 = vmatprep.subr.mxu0 0.0
  %3795 = vmatpush2.msra.mxu0 0.0
  %3796 = vmatprep.subr.mxu0 0.0
  %3797 = vmatpush2.msra.mxu0 0.0
  %3798 = vmatprep.subr.mxu0 0.0
  %3799 = vmatpush2.msra.mxu0 0.0
  %3800 = vmatprep.subr.mxu0 0.0
  %3801 = vmatpush2.msra.mxu0 0.0
  %3802 = vmatprep.subr.mxu0 0.0
  %3803 = vmatpush2.msra.mxu0 0.0
  %3804 = vmatprep.subr.mxu0 0.0
  %3805 = vmatpush2.msra.mxu0 0.0
  %3806 = vmatprep.mubr.f32.mxu0 0.0
  %3807 = vmatmul.mubr.f32.gmra.mxu0 %v3737
  %v3808 = vpop.f32.mrf.mxu0
  %v3809 = vadd.f32 %v3729, %v3808
  %v3810 = vpop.f32.mrf.mxu0
  %3811 = vmatprep.mubr.f32.mxu0 0.0
  %3812 = vmatmul.mubr.f32.gmra.mxu0 %v3740
  %v3813 = vpop.f32.mrf.mxu0
  %v3814 = vadd.f32 %v3734, %v3813
  %v3815 = vpop.f32.mrf.mxu0
  %3816 = vdwg.mxu0
  %v3817 = vsub.f32 0.0, %v3809
  %v3818 = vsub.f32 0.0, %v3814
  %v3819 = vmul.f32 %v3817, 1.442695
  %v3820 = vpow.pop %v3819
  %v3821 = vmul.f32 %v3818, 1.442695
  %v3822 = vpow.pop %v3821
  %v3823 = vadd.f32 %v3820, 1.0
  %v3824 = vadd.f32 %v3822, 1.0
  %v3825 = vrcp.pop %v3823
  %v3826 = vrcp.pop %v3824
  %v3827 = vld [vmem:[%s5 + $0x140] sm:$0xff]
  %v3828 = vld [vmem:[%s5 + $0x148] sm:$0xff]
  %3830 = vset.pattern.permute.xlu0 0
  %3831 = vperm.xlu0 %3830, %v3828
  %v3832 = vpop.permute.xlu0 %3831
  %v3835 = vsel %vm1330, %v3827, 0
  %3837 = vmatprep.subr.mxu0 0.0
  %3838 = vmatpush1.msra.mxu0 0.0
  %3839 = vmatprep.subr.mxu0 0.0
  %3840 = vmatpush1.msra.mxu0 0.0
  %3841 = vmatprep.subr.mxu0 0.0
  %3842 = vmatpush1.msra.mxu0 0.0
  %3843 = vmatprep.subr.mxu0 0.0
  %3844 = vmatpush1.msra.mxu0 0.0
  %3845 = vmatprep.subr.mxu0 0.0
  %3846 = vmatpush1.msra.mxu0 0.0
  %3847 = vmatprep.subr.mxu0 0.0
  %3848 = vmatpush1.msra.mxu0 0.0
  %3849 = vmatprep.subr.mxu0 0.0
  %3850 = vmatpush1.msra.mxu0 0.0
  %3851 = vmatprep.subr.mxu0 0.0
  %3852 = vmatpush1.msra.mxu0 0.0
  %3853 = vmatprep.subr.mxu0 0.0
  %3854 = vmatpush1.msra.mxu0 0.0
  %3855 = vmatprep.subr.mxu0 0.0
  %3856 = vmatpush1.msra.mxu0 0.0
  %3857 = vmatprep.subr.mxu0 0.0
  %3858 = vmatpush1.msra.mxu0 0.0
  %3859 = vmatprep.subr.mxu0 0.0
  %3860 = vmatpush1.msra.mxu0 0.0
  %3861 = vmatprep.subr.mxu0 0.0
  %3862 = vmatpush1.msra.mxu0 0.0
  %3863 = vmatprep.subr.mxu0 0.0
  %3864 = vmatpush1.msra.mxu0 0.0
  %3865 = vmatprep.subr.mxu0 0.0
  %3866 = vmatpush1.msra.mxu0 %v3638
  %3867 = vmatprep.subr.mxu0 0.0
  %3868 = vmatpush1.msra.mxu0 %v3633
  %3869 = vmatprep.subr.mxu0 0.0
  %3870 = vmatpush2.msra.mxu0 0.0
  %3871 = vmatprep.subr.mxu0 0.0
  %3872 = vmatpush2.msra.mxu0 0.0
  %3873 = vmatprep.subr.mxu0 0.0
  %3874 = vmatpush2.msra.mxu0 0.0
  %3875 = vmatprep.subr.mxu0 0.0
  %3876 = vmatpush2.msra.mxu0 0.0
  %3877 = vmatprep.subr.mxu0 0.0
  %3878 = vmatpush2.msra.mxu0 0.0
  %3879 = vmatprep.subr.mxu0 0.0
  %3880 = vmatpush2.msra.mxu0 0.0
  %3881 = vmatprep.subr.mxu0 0.0
  %3882 = vmatpush2.msra.mxu0 0.0
  %3883 = vmatprep.subr.mxu0 0.0
  %3884 = vmatpush2.msra.mxu0 0.0
  %3885 = vmatprep.subr.mxu0 0.0
  %3886 = vmatpush2.msra.mxu0 0.0
  %3887 = vmatprep.subr.mxu0 0.0
  %3888 = vmatpush2.msra.mxu0 0.0
  %3889 = vmatprep.subr.mxu0 0.0
  %3890 = vmatpush2.msra.mxu0 0.0
  %3891 = vmatprep.subr.mxu0 0.0
  %3892 = vmatpush2.msra.mxu0 0.0
  %3893 = vmatprep.subr.mxu0 0.0
  %3894 = vmatpush2.msra.mxu0 0.0
  %3895 = vmatprep.subr.mxu0 0.0
  %3896 = vmatpush2.msra.mxu0 0.0
  %3897 = vmatprep.subr.mxu0 0.0
  %3898 = vmatpush2.msra.mxu0 0.0
  %3899 = vmatprep.subr.mxu0 0.0
  %3900 = vmatpush2.msra.mxu0 0.0
  %3901 = vmatprep.mubr.f32.mxu0 0.0
  %3902 = vmatmul.mubr.f32.gmra.mxu0 %v3835
  %v3903 = vpop.f32.mrf.mxu0
  %v3904 = vadd.f32 %v3832, %v3903
  %v3905 = vpop.f32.mrf.mxu0
  %3906 = vdwg.mxu0
  %v3907 = vmax.f32 %v3904, 0.0
  %v3908 = vld [vmem:[%s5 + $0x150] sm:$0xff]
  %v3909 = vld [vmem:[%s5 + $0x158] sm:$0xff]
  %v3910 = vld [vmem:[%s5 + $0x160] sm:$0xff]
  %v3911 = vld [vmem:[%s5 + $0x168] sm:$0xff]
  %3913 = vset.pattern.permute.xlu0 0
  %3914 = vperm.xlu0 %3913, %v3910
  %v3915 = vpop.permute.xlu0 %3914
  %3918 = vset.pattern.permute.xlu0 0
  %3919 = vperm.xlu0 %3918, %v3911
  %v3920 = vpop.permute.xlu0 %3919
  %v3923 = vsel %vm1419, %v3908, 0
  %v3926 = vsel %vm1419, %v3909, 0
  %3928 = vmatprep.subr.mxu0 0.0
  %3929 = vmatpush1.msra.mxu0 0.0
  %3930 = vmatprep.subr.mxu0 0.0
  %3931 = vmatpush1.msra.mxu0 0.0
  %3932 = vmatprep.subr.mxu0 0.0
  %3933 = vmatpush1.msra.mxu0 0.0
  %3934 = vmatprep.subr.mxu0 0.0
  %3935 = vmatpush1.msra.mxu0 0.0
  %3936 = vmatprep.subr.mxu0 0.0
  %3937 = vmatpush1.msra.mxu0 0.0
  %3938 = vmatprep.subr.mxu0 0.0
  %3939 = vmatpush1.msra.mxu0 0.0
  %3940 = vmatprep.subr.mxu0 0.0
  %3941 = vmatpush1.msra.mxu0 0.0
  %3942 = vmatprep.subr.mxu0 0.0
  %3943 = vmatpush1.msra.mxu0 0.0
  %3944 = vmatprep.subr.mxu0 0.0
  %3945 = vmatpush1.msra.mxu0 0.0
  %3946 = vmatprep.subr.mxu0 0.0
  %3947 = vmatpush1.msra.mxu0 0.0
  %3948 = vmatprep.subr.mxu0 0.0
  %3949 = vmatpush1.msra.mxu0 0.0
  %3950 = vmatprep.subr.mxu0 0.0
  %3951 = vmatpush1.msra.mxu0 0.0
  %3952 = vmatprep.subr.mxu0 0.0
  %3953 = vmatpush1.msra.mxu0 0.0
  %3954 = vmatprep.subr.mxu0 0.0
  %3955 = vmatpush1.msra.mxu0 0.0
  %3956 = vmatprep.subr.mxu0 0.0
  %3957 = vmatpush1.msra.mxu0 0.0
  %3958 = vmatprep.subr.mxu0 0.0
  %3959 = vmatpush1.msra.mxu0 %v3907
  %3960 = vmatprep.subr.mxu0 0.0
  %3961 = vmatpush2.msra.mxu0 0.0
  %3962 = vmatprep.subr.mxu0 0.0
  %3963 = vmatpush2.msra.mxu0 0.0
  %3964 = vmatprep.subr.mxu0 0.0
  %3965 = vmatpush2.msra.mxu0 0.0
  %3966 = vmatprep.subr.mxu0 0.0
  %3967 = vmatpush2.msra.mxu0 0.0
  %3968 = vmatprep.subr.mxu0 0.0
  %3969 = vmatpush2.msra.mxu0 0.0
  %3970 = vmatprep.subr.mxu0 0.0
  %3971 = vmatpush2.msra.mxu0 0.0
  %3972 = vmatprep.subr.mxu0 0.0
  %3973 = vmatpush2.msra.mxu0 0.0
  %3974 = vmatprep.subr.mxu0 0.0
  %3975 = vmatpush2.msra.mxu0 0.0
  %3976 = vmatprep.subr.mxu0 0.0
  %3977 = vmatpush2.msra.mxu0 0.0
  %3978 = vmatprep.subr.mxu0 0.0
  %3979 = vmatpush2.msra.mxu0 0.0
  %3980 = vmatprep.subr.mxu0 0.0
  %3981 = vmatpush2.msra.mxu0 0.0
  %3982 = vmatprep.subr.mxu0 0.0
  %3983 = vmatpush2.msra.mxu0 0.0
  %3984 = vmatprep.subr.mxu0 0.0
  %3985 = vmatpush2.msra.mxu0 0.0
  %3986 = vmatprep.subr.mxu0 0.0
  %3987 = vmatpush2.msra.mxu0 0.0
  %3988 = vmatprep.subr.mxu0 0.0
  %3989 = vmatpush2.msra.mxu0 0.0
  %3990 = vmatprep.subr.mxu0 0.0
  %3991 = vmatpush2.msra.mxu0 0.0
  %3992 = vmatprep.mubr.f32.mxu0 0.0
  %3993 = vmatmul.mubr.f32.gmra.mxu0 %v3923
  %v3994 = vpop.f32.mrf.mxu0
  %v3995 = vadd.f32 %v3915, %v3994
  %v3996 = vpop.f32.mrf.mxu0
  %3997 = vmatprep.mubr.f32.mxu0 0.0
  %3998 = vmatmul.mubr.f32.gmra.mxu0 %v3926
  %v3999 = vpop.f32.mrf.mxu0
  %v4000 = vadd.f32 %v3920, %v3999
  %v4001 = vpop.f32.mrf.mxu0
  %4002 = vdwg.mxu0
  %v4003 = vsub.f32 0.0, %v3995
  %v4004 = vsub.f32 0.0, %v4000
  %v4005 = vmul.f32 %v4003, 1.442695
  %v4006 = vpow.pop %v4005
  %v4007 = vmul.f32 %v4004, 1.442695
  %v4008 = vpow.pop %v4007
  %v4009 = vadd.f32 %v4006, 1.0
  %v4010 = vadd.f32 %v4008, 1.0
  %v4011 = vrcp.pop %v4009
  %v4012 = vrcp.pop %v4010
  %v4013 = vmul.f32 %v3825, %v4011
  %v4014 = vmul.f32 %v3826, %v4012
  %v4016 = vsel %vm1717, %v4013, 0
  %v4019 = vsel %vm1717, %v4014, 0
  %4021 = vmatprep.subr.mxu0 0.0
  %4022 = vmatpush1.msra.mxu0 0.0
  %4023 = vmatprep.subr.mxu0 0.0
  %4024 = vmatpush1.msra.mxu0 0.0
  %4025 = vmatprep.subr.mxu0 0.0
  %4026 = vmatpush1.msra.mxu0 0.0
  %4027 = vmatprep.subr.mxu0 0.0
  %4028 = vmatpush1.msra.mxu0 0.0
  %4029 = vmatprep.subr.mxu0 0.0
  %4030 = vmatpush1.msra.mxu0 0.0
  %4031 = vmatprep.subr.mxu0 0.0
  %4032 = vmatpush1.msra.mxu0 0.0
  %4033 = vmatprep.subr.mxu0 0.0
  %4034 = vmatpush1.msra.mxu0 0.0
  %4035 = vmatprep.subr.mxu0 0.0
  %4036 = vmatpush1.msra.mxu0 0.0
  %4037 = vmatprep.subr.mxu0 0.0
  %4038 = vmatpush1.msra.mxu0 0.0
  %4039 = vmatprep.subr.mxu0 0.0
  %4040 = vmatpush1.msra.mxu0 0.0
  %4041 = vmatprep.subr.mxu0 0.0
  %4042 = vmatpush1.msra.mxu0 0.0
  %4043 = vmatprep.subr.mxu0 0.0
  %4044 = vmatpush1.msra.mxu0 0.0
  %4045 = vmatprep.subr.mxu0 0.0
  %4046 = vmatpush1.msra.mxu0 0.0
  %4047 = vmatprep.subr.mxu0 0.0
  %4048 = vmatpush1.msra.mxu0 0.0
  %4049 = vmatprep.subr.mxu0 0.0
  %4050 = vmatpush1.msra.mxu0 0.0
  %4051 = vmatprep.subr.mxu0 %v1727
  %4052 = vmatpush1.msra.mxu0 %v1725
  %4053 = vmatprep.subr.mxu0 0.0
  %4054 = vmatpush2.msra.mxu0 0.0
  %4055 = vmatprep.subr.mxu0 0.0
  %4056 = vmatpush2.msra.mxu0 0.0
  %4057 = vmatprep.subr.mxu0 0.0
  %4058 = vmatpush2.msra.mxu0 0.0
  %4059 = vmatprep.subr.mxu0 0.0
  %4060 = vmatpush2.msra.mxu0 0.0
  %4061 = vmatprep.subr.mxu0 0.0
  %4062 = vmatpush2.msra.mxu0 0.0
  %4063 = vmatprep.subr.mxu0 0.0
  %4064 = vmatpush2.msra.mxu0 0.0
  %4065 = vmatprep.subr.mxu0 0.0
  %4066 = vmatpush2.msra.mxu0 0.0
  %4067 = vmatprep.subr.mxu0 0.0
  %4068 = vmatpush2.msra.mxu0 0.0
  %4069 = vmatprep.subr.mxu0 0.0
  %4070 = vmatpush2.msra.mxu0 0.0
  %4071 = vmatprep.subr.mxu0 0.0
  %4072 = vmatpush2.msra.mxu0 0.0
  %4073 = vmatprep.subr.mxu0 0.0
  %4074 = vmatpush2.msra.mxu0 0.0
  %4075 = vmatprep.subr.mxu0 0.0
  %4076 = vmatpush2.msra.mxu0 0.0
  %4077 = vmatprep.subr.mxu0 0.0
  %4078 = vmatpush2.msra.mxu0 0.0
  %4079 = vmatprep.subr.mxu0 0.0
  %4080 = vmatpush2.msra.mxu0 0.0
  %4081 = vmatprep.subr.mxu0 0.0
  %4082 = vmatpush2.msra.mxu0 0.0
  %4083 = vmatprep.subr.mxu0 0.0
  %4084 = vmatpush2.msra.mxu0 0.0
  %4085 = vmatprep.mubr.f32.mxu0 0.0
  %4086 = vmatmul.mubr.f32.gmra.mxu0 %v4016
  %v4087 = vpop.f32.mrf.mxu0
  %v4088 = vadd.f32 0.0, %v4087
  %v4089 = vpop.f32.mrf.mxu0
  %v4090 = vadd.f32 0.0, %v4089
  %4091 = vmatprep.mubr.f32.mxu0 0.0
  %4092 = vmatmul.mubr.f32.gmra.mxu0 %v4019
  %v4093 = vpop.f32.mrf.mxu0
  %v4094 = vadd.f32 0.0, %v4093
  %v4095 = vpop.f32.mrf.mxu0
  %v4096 = vadd.f32 0.0, %v4095
  %4097 = vdwg.mxu0
  %4098 = vmatprep.subr.mxu0 0.0
  %4099 = vmatpush1.msra.mxu0 0.0
  %4100 = vmatprep.subr.mxu0 0.0
  %4101 = vmatpush1.msra.mxu0 0.0
  %4102 = vmatprep.subr.mxu0 0.0
  %4103 = vmatpush1.msra.mxu0 0.0
  %4104 = vmatprep.subr.mxu0 0.0
  %4105 = vmatpush1.msra.mxu0 0.0
  %4106 = vmatprep.subr.mxu0 0.0
  %4107 = vmatpush1.msra.mxu0 0.0
  %4108 = vmatprep.subr.mxu0 0.0
  %4109 = vmatpush1.msra.mxu0 0.0
  %4110 = vmatprep.subr.mxu0 0.0
  %4111 = vmatpush1.msra.mxu0 0.0
  %4112 = vmatprep.subr.mxu0 0.0
  %4113 = vmatpush1.msra.mxu0 0.0
  %4114 = vmatprep.subr.mxu0 0.0
  %4115 = vmatpush1.msra.mxu0 0.0
  %4116 = vmatprep.subr.mxu0 0.0
  %4117 = vmatpush1.msra.mxu0 0.0
  %4118 = vmatprep.subr.mxu0 0.0
  %4119 = vmatpush1.msra.mxu0 0.0
  %4120 = vmatprep.subr.mxu0 0.0
  %4121 = vmatpush1.msra.mxu0 0.0
  %4122 = vmatprep.subr.mxu0 0.0
  %4123 = vmatpush1.msra.mxu0 0.0
  %4124 = vmatprep.subr.mxu0 0.0
  %4125 = vmatpush1.msra.mxu0 0.0
  %4126 = vmatprep.subr.mxu0 0.0
  %4127 = vmatpush1.msra.mxu0 0.0
  %4128 = vmatprep.subr.mxu0 %v1731
  %4129 = vmatpush1.msra.mxu0 %v1729
  %4130 = vmatprep.subr.mxu0 0.0
  %4131 = vmatpush2.msra.mxu0 0.0
  %4132 = vmatprep.subr.mxu0 0.0
  %4133 = vmatpush2.msra.mxu0 0.0
  %4134 = vmatprep.subr.mxu0 0.0
  %4135 = vmatpush2.msra.mxu0 0.0
  %4136 = vmatprep.subr.mxu0 0.0
  %4137 = vmatpush2.msra.mxu0 0.0
  %4138 = vmatprep.subr.mxu0 0.0
  %4139 = vmatpush2.msra.mxu0 0.0
  %4140 = vmatprep.subr.mxu0 0.0
  %4141 = vmatpush2.msra.mxu0 0.0
  %4142 = vmatprep.subr.mxu0 0.0
  %4143 = vmatpush2.msra.mxu0 0.0
  %4144 = vmatprep.subr.mxu0 0.0
  %4145 = vmatpush2.msra.mxu0 0.0
  %4146 = vmatprep.subr.mxu0 0.0
  %4147 = vmatpush2.msra.mxu0 0.0
  %4148 = vmatprep.subr.mxu0 0.0
  %4149 = vmatpush2.msra.mxu0 0.0
  %4150 = vmatprep.subr.mxu0 0.0
  %4151 = vmatpush2.msra.mxu0 0.0
  %4152 = vmatprep.subr.mxu0 0.0
  %4153 = vmatpush2.msra.mxu0 0.0
  %4154 = vmatprep.subr.mxu0 0.0
  %4155 = vmatpush2.msra.mxu0 0.0
  %4156 = vmatprep.subr.mxu0 0.0
  %4157 = vmatpush2.msra.mxu0 0.0
  %4158 = vmatprep.subr.mxu0 0.0
  %4159 = vmatpush2.msra.mxu0 0.0
  %4160 = vmatprep.subr.mxu0 0.0
  %4161 = vmatpush2.msra.mxu0 0.0
  %4162 = vmatprep.mubr.f32.mxu0 0.0
  %4163 = vmatmul.mubr.f32.gmra.mxu0 %v4016
  %v4164 = vpop.f32.mrf.mxu0
  %v4165 = vadd.f32 0.0, %v4164
  %v4166 = vpop.f32.mrf.mxu0
  %v4167 = vadd.f32 0.0, %v4166
  %4168 = vmatprep.mubr.f32.mxu0 0.0
  %4169 = vmatmul.mubr.f32.gmra.mxu0 %v4019
  %v4170 = vpop.f32.mrf.mxu0
  %v4171 = vadd.f32 0.0, %v4170
  %v4172 = vpop.f32.mrf.mxu0
  %v4173 = vadd.f32 0.0, %v4172
  %4174 = vdwg.mxu0
  %v4175 = vmul.f32 %v3483, %v4088
  %v4176 = vmul.f32 %v3484, %v4090
  %v4177 = vmul.f32 %v3485, %v4165
  %v4178 = vmul.f32 %v3486, %v4167
  %v4179 = vmul.f32 %v3487, %v4094
  %v4180 = vmul.f32 %v3488, %v4096
  %v4181 = vmul.f32 %v3489, %v4171
  %v4182 = vmul.f32 %v3490, %v4173
  %v4183 = vpack.c.bf16 %v4179, %v4175
  %v4184 = vpack.c.bf16 %v4180, %v4176
  %v4185 = vpack.c.bf16 %v4181, %v4177
  %v4186 = vpack.c.bf16 %v4182, %v4178
  %v4187 = vld [vmem:[%s4 + $0x24] sm:$0xf]
  %v4188 = vld [vmem:[%s5 + $0x108] sm:$0xff]
  %4190 = vset.pattern.permute.xlu0 0
  %4191 = vperm.xlu0 %4190, %v4188
  %v4192 = vpop.permute.xlu0 %4191
  %v4195 = vsel %vm1330, %v4187, 0
  %4197 = vmatprep.subr.bf16.mxu0 0
  %4198 = vmatpush1.bf16.msra.mxu0 0
  %4199 = vmatprep.subr.bf16.mxu0 0
  %4200 = vmatpush1.bf16.msra.mxu0 0
  %4201 = vmatprep.subr.bf16.mxu0 0
  %4202 = vmatpush1.bf16.msra.mxu0 0
  %4203 = vmatprep.subr.bf16.mxu0 0
  %4204 = vmatpush1.bf16.msra.mxu0 0
  %4205 = vmatprep.subr.bf16.mxu0 0
  %4206 = vmatpush1.bf16.msra.mxu0 0
  %4207 = vmatprep.subr.bf16.mxu0 0
  %4208 = vmatpush1.bf16.msra.mxu0 0
  %4209 = vmatprep.subr.bf16.mxu0 0
  %4210 = vmatpush1.bf16.msra.mxu0 0
  %4211 = vmatprep.subr.bf16.mxu0 %v4184
  %4212 = vmatpush1.bf16.msra.mxu0 %v4183
  %4213 = vmatprep.subr.bf16.mxu0 0
  %4214 = vmatpush2.bf16.msra.mxu0 0
  %4215 = vmatprep.subr.bf16.mxu0 0
  %4216 = vmatpush2.bf16.msra.mxu0 0
  %4217 = vmatprep.subr.bf16.mxu0 0
  %4218 = vmatpush2.bf16.msra.mxu0 0
  %4219 = vmatprep.subr.bf16.mxu0 0
  %4220 = vmatpush2.bf16.msra.mxu0 0
  %4221 = vmatprep.subr.bf16.mxu0 0
  %4222 = vmatpush2.bf16.msra.mxu0 0
  %4223 = vmatprep.subr.bf16.mxu0 0
  %4224 = vmatpush2.bf16.msra.mxu0 0
  %4225 = vmatprep.subr.bf16.mxu0 0
  %4226 = vmatpush2.bf16.msra.mxu0 0
  %4227 = vmatprep.subr.bf16.mxu0 0
  %4228 = vmatpush2.bf16.msra.mxu0 0
  %4229 = vmatprep.mubr.bf16.mxu0 0
  %4230 = vmatmul.mubr.bf16.gmra.mxu0 %v4195
  %v4231 = vpop.f32.mrf.mxu0
  %v4232 = vadd.f32 %v4192, %v4231
  %v4233 = vpop.f32.mrf.mxu0
  %v4234 = vadd.f32 %v4192, %v4233
  %v4235 = vpop.f32.mrf.mxu0
  %v4236 = vpop.f32.mrf.mxu0
  %4237 = vdwg.mxu0
  %4238 = vmatprep.subr.bf16.mxu0 0
  %4239 = vmatpush1.bf16.msra.mxu0 0
  %4240 = vmatprep.subr.bf16.mxu0 0
  %4241 = vmatpush1.bf16.msra.mxu0 0
  %4242 = vmatprep.subr.bf16.mxu0 0
  %4243 = vmatpush1.bf16.msra.mxu0 0
  %4244 = vmatprep.subr.bf16.mxu0 0
  %4245 = vmatpush1.bf16.msra.mxu0 0
  %4246 = vmatprep.subr.bf16.mxu0 0
  %4247 = vmatpush1.bf16.msra.mxu0 0
  %4248 = vmatprep.subr.bf16.mxu0 0
  %4249 = vmatpush1.bf16.msra.mxu0 0
  %4250 = vmatprep.subr.bf16.mxu0 0
  %4251 = vmatpush1.bf16.msra.mxu0 0
  %4252 = vmatprep.subr.bf16.mxu0 %v4186
  %4253 = vmatpush1.bf16.msra.mxu0 %v4185
  %4254 = vmatprep.subr.bf16.mxu0 0
  %4255 = vmatpush2.bf16.msra.mxu0 0
  %4256 = vmatprep.subr.bf16.mxu0 0
  %4257 = vmatpush2.bf16.msra.mxu0 0
  %4258 = vmatprep.subr.bf16.mxu0 0
  %4259 = vmatpush2.bf16.msra.mxu0 0
  %4260 = vmatprep.subr.bf16.mxu0 0
  %4261 = vmatpush2.bf16.msra.mxu0 0
  %4262 = vmatprep.subr.bf16.mxu0 0
  %4263 = vmatpush2.bf16.msra.mxu0 0
  %4264 = vmatprep.subr.bf16.mxu0 0
  %4265 = vmatpush2.bf16.msra.mxu0 0
  %4266 = vmatprep.subr.bf16.mxu0 0
  %4267 = vmatpush2.bf16.msra.mxu0 0
  %4268 = vmatprep.subr.bf16.mxu0 0
  %4269 = vmatpush2.bf16.msra.mxu0 0
  %4270 = vmatprep.mubr.bf16.mxu0 0
  %4271 = vmatmul.mubr.bf16.gmra.mxu0 %v4195
  %v4272 = vpop.f32.mrf.mxu0
  %v4273 = vadd.f32 %v4192, %v4272
  %v4274 = vpop.f32.mrf.mxu0
  %v4275 = vadd.f32 %v4192, %v4274
  %v4276 = vpop.f32.mrf.mxu0
  %v4277 = vpop.f32.mrf.mxu0
  %4278 = vdwg.mxu0
  %v4279 = vadd.f32 %v4232, %v3139
  %v4280 = vadd.f32 %v4234, %v3140
  %v4281 = vadd.f32 %v4273, %v3141
  %v4282 = vadd.f32 %v4275, %v3142
  %v4283 = vmax.f32 %v4279, 0.0
  %v4284 = vmax.f32 %v4280, 0.0
  %v4285 = vmax.f32 %v4281, 0.0
  %v4286 = vmax.f32 %v4282, 0.0
  %4287 = vrot.lane.b32.xlu0 %v4283, 17
  %v4288 = vpop.permute.xlu0 %4287
  %4289 = vrot.lane.b32.xlu0 %v4284, 17
  %v4290 = vpop.permute.xlu0 %4289
  %4291 = vrot.lane.b32.xlu0 %v4285, 17
  %v4292 = vpop.permute.xlu0 %4291
  %4293 = vrot.lane.b32.xlu0 %v4286, 17
  %v4294 = vpop.permute.xlu0 %4293
  %v4295 = vsel %vm129, %v4292, %v4294
  %v4296 = vsel %vm129, %v4290, %v4292
  %v4297 = vsel %vm129, %v4288, %v4290
  %v4298 = vsel %vm129, %v4294, %v4288
  %v4299 = vmul.f32 %v4298, %v711
  %v4300 = vmul.f32 %v4297, %v715
  %v4301 = vmul.f32 %v4296, %v719
  %v4302 = vmul.f32 %v4295, %v723
  %4303 = vst [vmem:[#allocation2] sm:$0xff] %v4299
  %4304 = vst [vmem:[#allocation2 + $0x8] sm:$0xff] %v4300
  %4305 = vst [vmem:[#allocation2 + $0x10] sm:$0xff] %v4301
  %4306 = vst [vmem:[#allocation2 + $0x18] sm:$0xff] %v4302
  %4307 = vrot.lane.b32.xlu0 %v4283, 16
  %v4308 = vpop.permute.xlu0 %4307
  %4309 = vrot.lane.b32.xlu0 %v4284, 16
  %v4310 = vpop.permute.xlu0 %4309
  %4311 = vrot.lane.b32.xlu0 %v4285, 16
  %v4312 = vpop.permute.xlu0 %4311
  %4313 = vrot.lane.b32.xlu0 %v4286, 16
  %v4314 = vpop.permute.xlu0 %4313
  %v4315 = vsel %vm181, %v4312, %v4314
  %v4316 = vsel %vm181, %v4310, %v4312
  %v4317 = vsel %vm181, %v4308, %v4310
  %v4318 = vsel %vm181, %v4314, %v4308
  %v4319 = vmul.f32 %v4318, %v747
  %v4320 = vmul.f32 %v4317, %v751
  %v4321 = vmul.f32 %v4316, %v755
  %v4322 = vmul.f32 %v4315, %v759
  %4323 = vst [vmem:[#allocation2 + $0x20] sm:$0xff] %v4319
  %4324 = vst [vmem:[#allocation2 + $0x28] sm:$0xff] %v4320
  %4325 = vst [vmem:[#allocation2 + $0x30] sm:$0xff] %v4321
  %4326 = vst [vmem:[#allocation2 + $0x38] sm:$0xff] %v4322
  %4327 = vrot.lane.b32.xlu0 %v4283, 15
  %v4328 = vpop.permute.xlu0 %4327
  %4329 = vrot.lane.b32.xlu0 %v4284, 15
  %v4330 = vpop.permute.xlu0 %4329
  %4331 = vrot.lane.b32.xlu0 %v4285, 15
  %v4332 = vpop.permute.xlu0 %4331
  %4333 = vrot.lane.b32.xlu0 %v4286, 15
  %v4334 = vpop.permute.xlu0 %4333
  %v4335 = vsel %vm242, %v4332, %v4334
  %v4336 = vsel %vm242, %v4330, %v4332
  %v4337 = vsel %vm242, %v4328, %v4330
  %v4338 = vsel %vm242, %v4334, %v4328
  %v4339 = vmul.f32 %v4338, %v783
  %v4340 = vmul.f32 %v4337, %v787
  %v4341 = vmul.f32 %v4336, %v791
  %v4342 = vmul.f32 %v4335, %v795
  %4343 = vst [vmem:[#allocation2 + $0x40] sm:$0xff] %v4339
  %4344 = vst [vmem:[#allocation2 + $0x48] sm:$0xff] %v4340
  %4345 = vst [vmem:[#allocation2 + $0x50] sm:$0xff] %v4341
  %4346 = vst [vmem:[#allocation2 + $0x58] sm:$0xff] %v4342
  %4347 = vrot.lane.b32.xlu0 %v4283, 1
  %v4348 = vpop.permute.xlu0 %4347
  %4349 = vrot.lane.b32.xlu0 %v4284, 1
  %v4350 = vpop.permute.xlu0 %4349
  %4351 = vrot.lane.b32.xlu0 %v4285, 1
  %v4352 = vpop.permute.xlu0 %4351
  %4353 = vrot.lane.b32.xlu0 %v4286, 1
  %v4354 = vpop.permute.xlu0 %4353
  %v4355 = vsel %vm299, %v4352, %v4354
  %v4356 = vsel %vm299, %v4350, %v4352
  %v4357 = vsel %vm299, %v4348, %v4350
  %v4358 = vsel %vm299, %v4354, %v4348
  %v4359 = vmul.f32 %v4358, %v819
  %v4360 = vmul.f32 %v4357, %v823
  %v4361 = vmul.f32 %v4356, %v827
  %v4362 = vmul.f32 %v4355, %v831
  %4363 = vst [vmem:[#allocation2 + $0x60] sm:$0xff] %v4359
  %4364 = vst [vmem:[#allocation2 + $0x68] sm:$0xff] %v4360
  %4365 = vst [vmem:[#allocation2 + $0x70] sm:$0xff] %v4361
  %4366 = vst [vmem:[#allocation2 + $0x78] sm:$0xff] %v4362
  %4367 = vst [vmem:[#allocation2 + $0x80] sm:$0xff] %v4283
  %4368 = vst [vmem:[#allocation2 + $0x88] sm:$0xff] %v4284
  %4369 = vst [vmem:[#allocation2 + $0x90] sm:$0xff] %v4285
  %4370 = vst [vmem:[#allocation2 + $0x98] sm:$0xff] %v4286
  %4371 = vrot.lane.b32.xlu0 %v4283, 127
  %v4372 = vpop.permute.xlu0 %4371
  %4373 = vrot.lane.b32.xlu0 %v4284, 127
  %v4374 = vpop.permute.xlu0 %4373
  %4375 = vrot.lane.b32.xlu0 %v4285, 127
  %v4376 = vpop.permute.xlu0 %4375
  %4377 = vrot.lane.b32.xlu0 %v4286, 127
  %v4378 = vpop.permute.xlu0 %4377
  %v4379 = vsel %vm359, %v4376, %v4378
  %v4380 = vsel %vm359, %v4374, %v4376
  %v4381 = vsel %vm359, %v4372, %v4374
  %v4382 = vsel %vm359, %v4378, %v4372
  %v4383 = vmul.f32 %v4381, %v859
  %v4384 = vmul.f32 %v4380, %v863
  %v4385 = vmul.f32 %v4379, %v867
  %v4386 = vmul.f32 %v4382, %v871
  %4387 = vst [vmem:[#allocation2 + $0xa0] sm:$0xff] %v4383
  %4388 = vst [vmem:[#allocation2 + $0xa8] sm:$0xff] %v4384
  %4389 = vst [vmem:[#allocation2 + $0xb0] sm:$0xff] %v4385
  %4390 = vst [vmem:[#allocation2 + $0xb8] sm:$0xff] %v4386
  %4391 = vrot.lane.b32.xlu0 %v4283, 113
  %v4392 = vpop.permute.xlu0 %4391
  %4393 = vrot.lane.b32.xlu0 %v4284, 113
  %v4394 = vpop.permute.xlu0 %4393
  %4395 = vrot.lane.b32.xlu0 %v4285, 113
  %v4396 = vpop.permute.xlu0 %4395
  %4397 = vrot.lane.b32.xlu0 %v4286, 113
  %v4398 = vpop.permute.xlu0 %4397
  %v4399 = vsel %vm416, %v4396, %v4398
  %v4400 = vsel %vm416, %v4394, %v4396
  %v4401 = vsel %vm416, %v4392, %v4394
  %v4402 = vsel %vm416, %v4398, %v4392
  %v4403 = vmul.f32 %v4401, %v895
  %v4404 = vmul.f32 %v4400, %v899
  %v4405 = vmul.f32 %v4399, %v903
  %v4406 = vmul.f32 %v4402, %v907
  %4407 = vst [vmem:[#allocation2 + $0xc0] sm:$0xff] %v4403
  %4408 = vst [vmem:[#allocation2 + $0xc8] sm:$0xff] %v4404
  %4409 = vst [vmem:[#allocation2 + $0xd0] sm:$0xff] %v4405
  %4410 = vst [vmem:[#allocation2 + $0xd8] sm:$0xff] %v4406
  %4411 = vrot.lane.b32.xlu0 %v4283, 112
  %v4412 = vpop.permute.xlu0 %4411
  %4413 = vrot.lane.b32.xlu0 %v4284, 112
  %v4414 = vpop.permute.xlu0 %4413
  %4415 = vrot.lane.b32.xlu0 %v4285, 112
  %v4416 = vpop.permute.xlu0 %4415
  %4417 = vrot.lane.b32.xlu0 %v4286, 112
  %v4418 = vpop.permute.xlu0 %4417
  %v4419 = vsel %vm473, %v4416, %v4418
  %v4420 = vsel %vm473, %v4414, %v4416
  %v4421 = vsel %vm473, %v4412, %v4414
  %v4422 = vsel %vm473, %v4418, %v4412
  %v4423 = vmul.f32 %v4421, %v931
  %v4424 = vmul.f32 %v4420, %v935
  %v4425 = vmul.f32 %v4419, %v939
  %v4426 = vmul.f32 %v4422, %v943
  %4427 = vst [vmem:[#allocation2 + $0xe0] sm:$0xff] %v4423
  %4428 = vst [vmem:[#allocation2 + $0xe8] sm:$0xff] %v4424
  %4429 = vst [vmem:[#allocation2 + $0xf0] sm:$0xff] %v4425
  %4430 = vst [vmem:[#allocation2 + $0xf8] sm:$0xff] %v4426
  %4431 = vrot.lane.b32.xlu0 %v4283, 111
  %v4432 = vpop.permute.xlu0 %4431
  %4433 = vrot.lane.b32.xlu0 %v4284, 111
  %v4434 = vpop.permute.xlu0 %4433
  %4435 = vrot.lane.b32.xlu0 %v4285, 111
  %v4436 = vpop.permute.xlu0 %4435
  %4437 = vrot.lane.b32.xlu0 %v4286, 111
  %v4438 = vpop.permute.xlu0 %4437
  %v4439 = vsel %vm530, %v4436, %v4438
  %v4440 = vsel %vm530, %v4434, %v4436
  %v4441 = vsel %vm530, %v4432, %v4434
  %v4442 = vsel %vm530, %v4438, %v4432
  %v4443 = vmul.f32 %v4441, %v967
  %v4444 = vmul.f32 %v4440, %v971
  %v4445 = vmul.f32 %v4439, %v975
  %v4446 = vmul.f32 %v4442, %v979
  %4447 = vst [vmem:[#allocation2 + $0x100] sm:$0xff] %v4443
  %4448 = vst [vmem:[#allocation2 + $0x108] sm:$0xff] %v4444
  %4449 = vst [vmem:[#allocation2 + $0x110] sm:$0xff] %v4445
  %4450 = vst [vmem:[#allocation2 + $0x118] sm:$0xff] %v4446
  %v4451 = vld [vmem:[#allocation2] sm:$0xff]
  %v4452 = vld [vmem:[#allocation2 + $0x8] sm:$0xff]
  %v4453 = vld [vmem:[#allocation2 + $0x10] sm:$0xff]
  %v4454 = vld [vmem:[#allocation2 + $0x18] sm:$0xff]
  %v4455 = vld [vmem:[#allocation2 + $0x20] sm:$0xff]
  %v4456 = vld [vmem:[#allocation2 + $0x28] sm:$0xff]
  %v4457 = vld [vmem:[#allocation2 + $0x30] sm:$0xff]
  %v4458 = vld [vmem:[#allocation2 + $0x38] sm:$0xff]
  %v4459 = vld [vmem:[#allocation2 + $0x40] sm:$0xff]
  %v4460 = vld [vmem:[#allocation2 + $0x48] sm:$0xff]
  %v4461 = vld [vmem:[#allocation2 + $0x50] sm:$0xff]
  %v4462 = vld [vmem:[#allocation2 + $0x58] sm:$0xff]
  %v4463 = vld [vmem:[#allocation2 + $0x60] sm:$0xff]
  %v4464 = vld [vmem:[#allocation2 + $0x68] sm:$0xff]
  %v4465 = vld [vmem:[#allocation2 + $0x70] sm:$0xff]
  %v4466 = vld [vmem:[#allocation2 + $0x78] sm:$0xff]
  %v4467 = vld [vmem:[#allocation2 + $0x80] sm:$0xff]
  %v4468 = vld [vmem:[#allocation2 + $0x88] sm:$0xff]
  %v4469 = vld [vmem:[#allocation2 + $0x90] sm:$0xff]
  %v4470 = vld [vmem:[#allocation2 + $0x98] sm:$0xff]
  %v4471 = vld [vmem:[#allocation2 + $0xa0] sm:$0xff]
  %v4472 = vld [vmem:[#allocation2 + $0xa8] sm:$0xff]
  %v4473 = vld [vmem:[#allocation2 + $0xb0] sm:$0xff]
  %v4474 = vld [vmem:[#allocation2 + $0xb8] sm:$0xff]
  %v4475 = vld [vmem:[#allocation2 + $0xc0] sm:$0xff]
  %v4476 = vld [vmem:[#allocation2 + $0xc8] sm:$0xff]
  %v4477 = vld [vmem:[#allocation2 + $0xd0] sm:$0xff]
  %v4478 = vld [vmem:[#allocation2 + $0xd8] sm:$0xff]
  %v4479 = vld [vmem:[#allocation2 + $0xe0] sm:$0xff]
  %v4480 = vld [vmem:[#allocation2 + $0xe8] sm:$0xff]
  %v4481 = vld [vmem:[#allocation2 + $0xf0] sm:$0xff]
  %v4482 = vld [vmem:[#allocation2 + $0xf8] sm:$0xff]
  %v4483 = vld [vmem:[#allocation2 + $0x100] sm:$0xff]
  %v4484 = vld [vmem:[#allocation2 + $0x108] sm:$0xff]
  %v4485 = vld [vmem:[#allocation2 + $0x110] sm:$0xff]
  %v4486 = vld [vmem:[#allocation2 + $0x118] sm:$0xff]
  %v4487 = vpack.c.bf16 %v4455, %v4451
  %v4488 = vpack.c.bf16 %v4456, %v4452
  %v4489 = vpack.c.bf16 %v4457, %v4453
  %v4490 = vpack.c.bf16 %v4458, %v4454
  %v4491 = vpack.c.bf16 %v4463, %v4459
  %v4492 = vpack.c.bf16 %v4464, %v4460
  %v4493 = vpack.c.bf16 %v4465, %v4461
  %v4494 = vpack.c.bf16 %v4466, %v4462
  %v4495 = vpack.c.bf16 %v4471, %v4467
  %v4496 = vpack.c.bf16 %v4472, %v4468
  %v4497 = vpack.c.bf16 %v4473, %v4469
  %v4498 = vpack.c.bf16 %v4474, %v4470
  %v4499 = vpack.c.bf16 %v4479, %v4475
  %v4500 = vpack.c.bf16 %v4480, %v4476
  %v4501 = vpack.c.bf16 %v4481, %v4477
  %v4502 = vpack.c.bf16 %v4482, %v4478
  %v4503 = vpack.c.bf16 %v4483, %v4483
  %v4504 = vpack.c.bf16 %v4484, %v4484
  %v4505 = vpack.c.bf16 %v4485, %v4485
  %v4506 = vpack.c.bf16 %v4486, %v4486
  %v4507 = vld [vmem:[%s4 + $0x28] sm:$0xf]
  %v4508 = vld [vmem:[%s4 + $0x2c] sm:$0xf]
  %v4509 = vld [vmem:[%s5 + $0x170] sm:$0xff]
  %v4510 = vld [vmem:[%s5 + $0x178] sm:$0xff]
  %4512 = vset.pattern.permute.xlu0 0
  %4513 = vperm.xlu0 %4512, %v4509
  %v4514 = vpop.permute.xlu0 %4513
  %4517 = vset.pattern.permute.xlu0 0
  %4518 = vperm.xlu0 %4517, %v4510
  %v4519 = vpop.permute.xlu0 %4518
  %v4523 = vunpack.c.l.b16 %v4507
  %v4524 = vunpack.c.l.b16 %v4508
  %v4525 = vpack.c.b16 %v4524, %v4523
  %v4527 = vsel %vm1063, %v4525, 0
  %v4530 = vsel %vm594, %v4503, 0
  %v4533 = vsel %vm594, %v4504, 0
  %v4536 = vsel %vm594, %v4505, 0
  %v4539 = vsel %vm594, %v4506, 0
  %4541 = vmatprep.subr.bf16.mxu0 0
  %4542 = vmatpush1.bf16.msra.mxu0 0
  %4543 = vmatprep.subr.bf16.mxu0 0
  %4544 = vmatpush1.bf16.msra.mxu0 0
  %4545 = vmatprep.subr.bf16.mxu0 0
  %4546 = vmatpush1.bf16.msra.mxu0 0
  %4547 = vmatprep.subr.bf16.mxu0 %v4533
  %4548 = vmatpush1.bf16.msra.mxu0 %v4530
  %4549 = vmatprep.subr.bf16.mxu0 %v4500
  %4550 = vmatpush1.bf16.msra.mxu0 %v4499
  %4551 = vmatprep.subr.bf16.mxu0 %v4496
  %4552 = vmatpush1.bf16.msra.mxu0 %v4495
  %4553 = vmatprep.subr.bf16.mxu0 %v4492
  %4554 = vmatpush1.bf16.msra.mxu0 %v4491
  %4555 = vmatprep.subr.bf16.mxu0 %v4488
  %4556 = vmatpush1.bf16.msra.mxu0 %v4487
  %4557 = vmatprep.subr.bf16.mxu0 0
  %4558 = vmatpush2.bf16.msra.mxu0 0
  %4559 = vmatprep.subr.bf16.mxu0 0
  %4560 = vmatpush2.bf16.msra.mxu0 0
  %4561 = vmatprep.subr.bf16.mxu0 0
  %4562 = vmatpush2.bf16.msra.mxu0 0
  %4563 = vmatprep.subr.bf16.mxu0 0
  %4564 = vmatpush2.bf16.msra.mxu0 0
  %4565 = vmatprep.subr.bf16.mxu0 0
  %4566 = vmatpush2.bf16.msra.mxu0 0
  %4567 = vmatprep.subr.bf16.mxu0 0
  %4568 = vmatpush2.bf16.msra.mxu0 0
  %4569 = vmatprep.subr.bf16.mxu0 0
  %4570 = vmatpush2.bf16.msra.mxu0 0
  %4571 = vmatprep.subr.bf16.mxu0 0
  %4572 = vmatpush2.bf16.msra.mxu0 0
  %4573 = vmatprep.mubr.bf16.mxu0 0
  %4574 = vmatmul.mubr.bf16.gmra.mxu0 %v4527
  %v4575 = vpop.f32.mrf.mxu0
  %v4576 = vadd.f32 %v4514, %v4575
  %v4577 = vpop.f32.mrf.mxu0
  %v4578 = vadd.f32 %v4514, %v4577
  %v4579 = vpop.f32.mrf.mxu0
  %v4580 = vadd.f32 %v4519, %v4579
  %v4581 = vpop.f32.mrf.mxu0
  %v4582 = vadd.f32 %v4519, %v4581
  %4583 = vdwg.mxu0
  %4584 = vmatprep.subr.bf16.mxu0 0
  %4585 = vmatpush1.bf16.msra.mxu0 0
  %4586 = vmatprep.subr.bf16.mxu0 0
  %4587 = vmatpush1.bf16.msra.mxu0 0
  %4588 = vmatprep.subr.bf16.mxu0 0
  %4589 = vmatpush1.bf16.msra.mxu0 0
  %4590 = vmatprep.subr.bf16.mxu0 %v4539
  %4591 = vmatpush1.bf16.msra.mxu0 %v4536
  %4592 = vmatprep.subr.bf16.mxu0 %v4502
  %4593 = vmatpush1.bf16.msra.mxu0 %v4501
  %4594 = vmatprep.subr.bf16.mxu0 %v4498
  %4595 = vmatpush1.bf16.msra.mxu0 %v4497
  %4596 = vmatprep.subr.bf16.mxu0 %v4494
  %4597 = vmatpush1.bf16.msra.mxu0 %v4493
  %4598 = vmatprep.subr.bf16.mxu0 %v4490
  %4599 = vmatpush1.bf16.msra.mxu0 %v4489
  %4600 = vmatprep.subr.bf16.mxu0 0
  %4601 = vmatpush2.bf16.msra.mxu0 0
  %4602 = vmatprep.subr.bf16.mxu0 0
  %4603 = vmatpush2.bf16.msra.mxu0 0
  %4604 = vmatprep.subr.bf16.mxu0 0
  %4605 = vmatpush2.bf16.msra.mxu0 0
  %4606 = vmatprep.subr.bf16.mxu0 0
  %4607 = vmatpush2.bf16.msra.mxu0 0
  %4608 = vmatprep.subr.bf16.mxu0 0
  %4609 = vmatpush2.bf16.msra.mxu0 0
  %4610 = vmatprep.subr.bf16.mxu0 0
  %4611 = vmatpush2.bf16.msra.mxu0 0
  %4612 = vmatprep.subr.bf16.mxu0 0
  %4613 = vmatpush2.bf16.msra.mxu0 0
  %4614 = vmatprep.subr.bf16.mxu0 0
  %4615 = vmatpush2.bf16.msra.mxu0 0
  %4616 = vmatprep.mubr.bf16.mxu0 0
  %4617 = vmatmul.mubr.bf16.gmra.mxu0 %v4527
  %v4618 = vpop.f32.mrf.mxu0
  %v4619 = vadd.f32 %v4514, %v4618
  %v4620 = vpop.f32.mrf.mxu0
  %v4621 = vadd.f32 %v4514, %v4620
  %v4622 = vpop.f32.mrf.mxu0
  %v4623 = vadd.f32 %v4519, %v4622
  %v4624 = vpop.f32.mrf.mxu0
  %v4625 = vadd.f32 %v4519, %v4624
  %4626 = vdwg.mxu0
  %v4627 = vmax.f32 %v4576, 0.0
  %v4628 = vmax.f32 %v4578, 0.0
  %v4629 = vmax.f32 %v4619, 0.0
  %v4630 = vmax.f32 %v4621, 0.0
  %v4631 = vmax.f32 %v4580, 0.0
  %v4632 = vmax.f32 %v4582, 0.0
  %v4633 = vmax.f32 %v4623, 0.0
  %v4634 = vmax.f32 %v4625, 0.0
  %4635 = vmatprep.subr.mxu0 0.0
  %4636 = vmatpush1.msra.mxu0 %v47
  %4637 = vmatprep.subr.mxu0 0.0
  %4638 = vmatpush1.msra.mxu0 %v46
  %4639 = vmatprep.subr.mxu0 0.0
  %4640 = vmatpush1.msra.mxu0 %v45
  %4641 = vmatprep.subr.mxu0 0.0
  %4642 = vmatpush1.msra.mxu0 %v44
  %4643 = vmatprep.subr.mxu0 0.0
  %4644 = vmatpush1.msra.mxu0 %v43
  %4645 = vmatprep.subr.mxu0 0.0
  %4646 = vmatpush1.msra.mxu0 %v42
  %4647 = vmatprep.subr.mxu0 0.0
  %4648 = vmatpush1.msra.mxu0 %v41
  %4649 = vmatprep.subr.mxu0 0.0
  %4650 = vmatpush1.msra.mxu0 %v40
  %4651 = vmatprep.subr.mxu0 0.0
  %4652 = vmatpush1.msra.mxu0 %v39
  %4653 = vmatprep.subr.mxu0 0.0
  %4654 = vmatpush1.msra.mxu0 %v38
  %4655 = vmatprep.subr.mxu0 0.0
  %4656 = vmatpush1.msra.mxu0 %v37
  %4657 = vmatprep.subr.mxu0 0.0
  %4658 = vmatpush1.msra.mxu0 %v36
  %4659 = vmatprep.subr.mxu0 0.0
  %4660 = vmatpush1.msra.mxu0 %v35
  %4661 = vmatprep.subr.mxu0 0.0
  %4662 = vmatpush1.msra.mxu0 %v34
  %4663 = vmatprep.subr.mxu0 0.0
  %4664 = vmatpush1.msra.mxu0 %v33
  %4665 = vmatprep.subr.mxu0 0.0
  %4666 = vmatpush1.msra.mxu0 %v32
  %4667 = vmatprep.subr.mxu0 0.0
  %4668 = vmatpush2.msra.mxu0 %v63
  %4669 = vmatprep.subr.mxu0 0.0
  %4670 = vmatpush2.msra.mxu0 %v62
  %4671 = vmatprep.subr.mxu0 0.0
  %4672 = vmatpush2.msra.mxu0 %v61
  %4673 = vmatprep.subr.mxu0 0.0
  %4674 = vmatpush2.msra.mxu0 %v60
  %4675 = vmatprep.subr.mxu0 0.0
  %4676 = vmatpush2.msra.mxu0 %v59
  %4677 = vmatprep.subr.mxu0 0.0
  %4678 = vmatpush2.msra.mxu0 %v58
  %4679 = vmatprep.subr.mxu0 0.0
  %4680 = vmatpush2.msra.mxu0 %v57
  %4681 = vmatprep.subr.mxu0 0.0
  %4682 = vmatpush2.msra.mxu0 %v56
  %4683 = vmatprep.subr.mxu0 0.0
  %4684 = vmatpush2.msra.mxu0 %v55
  %4685 = vmatprep.subr.mxu0 0.0
  %4686 = vmatpush2.msra.mxu0 %v54
  %4687 = vmatprep.subr.mxu0 0.0
  %4688 = vmatpush2.msra.mxu0 %v53
  %4689 = vmatprep.subr.mxu0 0.0
  %4690 = vmatpush2.msra.mxu0 %v52
  %4691 = vmatprep.subr.mxu0 0.0
  %4692 = vmatpush2.msra.mxu0 %v51
  %4693 = vmatprep.subr.mxu0 0.0
  %4694 = vmatpush2.msra.mxu0 %v50
  %4695 = vmatprep.subr.mxu0 0.0
  %4696 = vmatpush2.msra.mxu0 %v49
  %4697 = vmatprep.subr.mxu0 0.0
  %4698 = vmatpush2.msra.mxu0 %v48
  %4699 = vmatprep.mubr.f32.mxu0 %v4628
  %4700 = vmatmul.mubr.f32.gmra.mxu0 %v4627
  %v4701 = vpop.f32.mrf.mxu0
  %v4702 = vadd.f32 0.0, %v4701
  %v4703 = vpop.f32.mrf.mxu0
  %4704 = vmatprep.mubr.f32.mxu0 %v4632
  %4705 = vmatmul.mubr.f32.gmra.mxu0 %v4631
  %v4706 = vpop.f32.mrf.mxu0
  %v4707 = vadd.f32 0.0, %v4706
  %v4708 = vpop.f32.mrf.mxu0
  %4709 = vdwg.mxu0
  %4710 = vmatprep.subr.mxu0 0.0
  %4711 = vmatpush1.msra.mxu0 %v79
  %4712 = vmatprep.subr.mxu0 0.0
  %4713 = vmatpush1.msra.mxu0 %v78
  %4714 = vmatprep.subr.mxu0 0.0
  %4715 = vmatpush1.msra.mxu0 %v77
  %4716 = vmatprep.subr.mxu0 0.0
  %4717 = vmatpush1.msra.mxu0 %v76
  %4718 = vmatprep.subr.mxu0 0.0
  %4719 = vmatpush1.msra.mxu0 %v75
  %4720 = vmatprep.subr.mxu0 0.0
  %4721 = vmatpush1.msra.mxu0 %v74
  %4722 = vmatprep.subr.mxu0 0.0
  %4723 = vmatpush1.msra.mxu0 %v73
  %4724 = vmatprep.subr.mxu0 0.0
  %4725 = vmatpush1.msra.mxu0 %v72
  %4726 = vmatprep.subr.mxu0 0.0
  %4727 = vmatpush1.msra.mxu0 %v71
  %4728 = vmatprep.subr.mxu0 0.0
  %4729 = vmatpush1.msra.mxu0 %v70
  %4730 = vmatprep.subr.mxu0 0.0
  %4731 = vmatpush1.msra.mxu0 %v69
  %4732 = vmatprep.subr.mxu0 0.0
  %4733 = vmatpush1.msra.mxu0 %v68
  %4734 = vmatprep.subr.mxu0 0.0
  %4735 = vmatpush1.msra.mxu0 %v67
  %4736 = vmatprep.subr.mxu0 0.0
  %4737 = vmatpush1.msra.mxu0 %v66
  %4738 = vmatprep.subr.mxu0 0.0
  %4739 = vmatpush1.msra.mxu0 %v65
  %4740 = vmatprep.subr.mxu0 0.0
  %4741 = vmatpush1.msra.mxu0 %v64
  %4742 = vmatprep.subr.mxu0 0.0
  %4743 = vmatpush2.msra.mxu0 %v95
  %4744 = vmatprep.subr.mxu0 0.0
  %4745 = vmatpush2.msra.mxu0 %v94
  %4746 = vmatprep.subr.mxu0 0.0
  %4747 = vmatpush2.msra.mxu0 %v93
  %4748 = vmatprep.subr.mxu0 0.0
  %4749 = vmatpush2.msra.mxu0 %v92
  %4750 = vmatprep.subr.mxu0 0.0
  %4751 = vmatpush2.msra.mxu0 %v91
  %4752 = vmatprep.subr.mxu0 0.0
  %4753 = vmatpush2.msra.mxu0 %v90
  %4754 = vmatprep.subr.mxu0 0.0
  %4755 = vmatpush2.msra.mxu0 %v89
  %4756 = vmatprep.subr.mxu0 0.0
  %4757 = vmatpush2.msra.mxu0 %v88
  %4758 = vmatprep.subr.mxu0 0.0
  %4759 = vmatpush2.msra.mxu0 %v87
  %4760 = vmatprep.subr.mxu0 0.0
  %4761 = vmatpush2.msra.mxu0 %v86
  %4762 = vmatprep.subr.mxu0 0.0
  %4763 = vmatpush2.msra.mxu0 %v85
  %4764 = vmatprep.subr.mxu0 0.0
  %4765 = vmatpush2.msra.mxu0 %v84
  %4766 = vmatprep.subr.mxu0 0.0
  %4767 = vmatpush2.msra.mxu0 %v83
  %4768 = vmatprep.subr.mxu0 0.0
  %4769 = vmatpush2.msra.mxu0 %v82
  %4770 = vmatprep.subr.mxu0 0.0
  %4771 = vmatpush2.msra.mxu0 %v81
  %4772 = vmatprep.subr.mxu0 0.0
  %4773 = vmatpush2.msra.mxu0 %v80
  %4774 = vmatprep.mubr.f32.mxu0 %v4630
  %4775 = vmatmul.mubr.f32.gmra.mxu0 %v4629
  %v4776 = vpop.f32.mrf.mxu0
  %v4777 = vadd.f32 %v4702, %v4776
  %v4778 = vpop.f32.mrf.mxu0
  %4779 = vmatprep.mubr.f32.mxu0 %v4634
  %4780 = vmatmul.mubr.f32.gmra.mxu0 %v4633
  %v4781 = vpop.f32.mrf.mxu0
  %v4782 = vadd.f32 %v4707, %v4781
  %v4783 = vpop.f32.mrf.mxu0
  %4784 = vdwg.mxu0
  %v4785 = vld [vmem:[%s5 + $0x188] sm:$0xff]
  %v4786 = vld [vmem:[%s5 + $0x190] sm:$0xff]
  %v4787 = vld [vmem:[%s5 + $0x198] sm:$0xff]
  %v4788 = vld [vmem:[%s5 + $0x1a0] sm:$0xff]
  %4790 = vset.pattern.permute.xlu0 0
  %4791 = vperm.xlu0 %4790, %v4787
  %v4792 = vpop.permute.xlu0 %4791
  %4795 = vset.pattern.permute.xlu0 0
  %4796 = vperm.xlu0 %4795, %v4788
  %v4797 = vpop.permute.xlu0 %4796
  %v4800 = vsel %vm1330, %v4785, 0
  %v4803 = vsel %vm1330, %v4786, 0
  %4805 = vmatprep.subr.mxu0 0.0
  %4806 = vmatpush1.msra.mxu0 0.0
  %4807 = vmatprep.subr.mxu0 0.0
  %4808 = vmatpush1.msra.mxu0 0.0
  %4809 = vmatprep.subr.mxu0 0.0
  %4810 = vmatpush1.msra.mxu0 0.0
  %4811 = vmatprep.subr.mxu0 0.0
  %4812 = vmatpush1.msra.mxu0 0.0
  %4813 = vmatprep.subr.mxu0 0.0
  %4814 = vmatpush1.msra.mxu0 0.0
  %4815 = vmatprep.subr.mxu0 0.0
  %4816 = vmatpush1.msra.mxu0 0.0
  %4817 = vmatprep.subr.mxu0 0.0
  %4818 = vmatpush1.msra.mxu0 0.0
  %4819 = vmatprep.subr.mxu0 0.0
  %4820 = vmatpush1.msra.mxu0 0.0
  %4821 = vmatprep.subr.mxu0 0.0
  %4822 = vmatpush1.msra.mxu0 0.0
  %4823 = vmatprep.subr.mxu0 0.0
  %4824 = vmatpush1.msra.mxu0 0.0
  %4825 = vmatprep.subr.mxu0 0.0
  %4826 = vmatpush1.msra.mxu0 0.0
  %4827 = vmatprep.subr.mxu0 0.0
  %4828 = vmatpush1.msra.mxu0 0.0
  %4829 = vmatprep.subr.mxu0 0.0
  %4830 = vmatpush1.msra.mxu0 0.0
  %4831 = vmatprep.subr.mxu0 0.0
  %4832 = vmatpush1.msra.mxu0 0.0
  %4833 = vmatprep.subr.mxu0 0.0
  %4834 = vmatpush1.msra.mxu0 %v4782
  %4835 = vmatprep.subr.mxu0 0.0
  %4836 = vmatpush1.msra.mxu0 %v4777
  %4837 = vmatprep.subr.mxu0 0.0
  %4838 = vmatpush2.msra.mxu0 0.0
  %4839 = vmatprep.subr.mxu0 0.0
  %4840 = vmatpush2.msra.mxu0 0.0
  %4841 = vmatprep.subr.mxu0 0.0
  %4842 = vmatpush2.msra.mxu0 0.0
  %4843 = vmatprep.subr.mxu0 0.0
  %4844 = vmatpush2.msra.mxu0 0.0
  %4845 = vmatprep.subr.mxu0 0.0
  %4846 = vmatpush2.msra.mxu0 0.0
  %4847 = vmatprep.subr.mxu0 0.0
  %4848 = vmatpush2.msra.mxu0 0.0
  %4849 = vmatprep.subr.mxu0 0.0
  %4850 = vmatpush2.msra.mxu0 0.0
  %4851 = vmatprep.subr.mxu0 0.0
  %4852 = vmatpush2.msra.mxu0 0.0
  %4853 = vmatprep.subr.mxu0 0.0
  %4854 = vmatpush2.msra.mxu0 0.0
  %4855 = vmatprep.subr.mxu0 0.0
  %4856 = vmatpush2.msra.mxu0 0.0
  %4857 = vmatprep.subr.mxu0 0.0
  %4858 = vmatpush2.msra.mxu0 0.0
  %4859 = vmatprep.subr.mxu0 0.0
  %4860 = vmatpush2.msra.mxu0 0.0
  %4861 = vmatprep.subr.mxu0 0.0
  %4862 = vmatpush2.msra.mxu0 0.0
  %4863 = vmatprep.subr.mxu0 0.0
  %4864 = vmatpush2.msra.mxu0 0.0
  %4865 = vmatprep.subr.mxu0 0.0
  %4866 = vmatpush2.msra.mxu0 0.0
  %4867 = vmatprep.subr.mxu0 0.0
  %4868 = vmatpush2.msra.mxu0 0.0
  %4869 = vmatprep.mubr.f32.mxu0 0.0
  %4870 = vmatmul.mubr.f32.gmra.mxu0 %v4800
  %v4871 = vpop.f32.mrf.mxu0
  %v4872 = vadd.f32 %v4792, %v4871
  %v4873 = vpop.f32.mrf.mxu0
  %4874 = vmatprep.mubr.f32.mxu0 0.0
  %4875 = vmatmul.mubr.f32.gmra.mxu0 %v4803
  %v4876 = vpop.f32.mrf.mxu0
  %v4877 = vadd.f32 %v4797, %v4876
  %v4878 = vpop.f32.mrf.mxu0
  %4879 = vdwg.mxu0
  %v4880 = vmax.f32 %v4872, 0.0
  %v4881 = vmax.f32 %v4877, 0.0
  %v4882 = vld [vmem:[%s5 + $0x1a8] sm:$0xff]
  %v4883 = vld [vmem:[%s5 + $0x1b0] sm:$0xff]
  %v4884 = vld [vmem:[%s5 + $0x1b8] sm:$0xff]
  %v4885 = vld [vmem:[%s5 + $0x1c0] sm:$0xff]
  %4887 = vset.pattern.permute.xlu0 0
  %4888 = vperm.xlu0 %4887, %v4884
  %v4889 = vpop.permute.xlu0 %4888
  %4892 = vset.pattern.permute.xlu0 0
  %4893 = vperm.xlu0 %4892, %v4885
  %v4894 = vpop.permute.xlu0 %4893
  %v4897 = vsel %vm1330, %v4882, 0
  %v4900 = vsel %vm1330, %v4883, 0
  %4902 = vmatprep.subr.mxu0 0.0
  %4903 = vmatpush1.msra.mxu0 0.0
  %4904 = vmatprep.subr.mxu0 0.0
  %4905 = vmatpush1.msra.mxu0 0.0
  %4906 = vmatprep.subr.mxu0 0.0
  %4907 = vmatpush1.msra.mxu0 0.0
  %4908 = vmatprep.subr.mxu0 0.0
  %4909 = vmatpush1.msra.mxu0 0.0
  %4910 = vmatprep.subr.mxu0 0.0
  %4911 = vmatpush1.msra.mxu0 0.0
  %4912 = vmatprep.subr.mxu0 0.0
  %4913 = vmatpush1.msra.mxu0 0.0
  %4914 = vmatprep.subr.mxu0 0.0
  %4915 = vmatpush1.msra.mxu0 0.0
  %4916 = vmatprep.subr.mxu0 0.0
  %4917 = vmatpush1.msra.mxu0 0.0
  %4918 = vmatprep.subr.mxu0 0.0
  %4919 = vmatpush1.msra.mxu0 0.0
  %4920 = vmatprep.subr.mxu0 0.0
  %4921 = vmatpush1.msra.mxu0 0.0
  %4922 = vmatprep.subr.mxu0 0.0
  %4923 = vmatpush1.msra.mxu0 0.0
  %4924 = vmatprep.subr.mxu0 0.0
  %4925 = vmatpush1.msra.mxu0 0.0
  %4926 = vmatprep.subr.mxu0 0.0
  %4927 = vmatpush1.msra.mxu0 0.0
  %4928 = vmatprep.subr.mxu0 0.0
  %4929 = vmatpush1.msra.mxu0 0.0
  %4930 = vmatprep.subr.mxu0 0.0
  %4931 = vmatpush1.msra.mxu0 %v4881
  %4932 = vmatprep.subr.mxu0 0.0
  %4933 = vmatpush1.msra.mxu0 %v4880
  %4934 = vmatprep.subr.mxu0 0.0
  %4935 = vmatpush2.msra.mxu0 0.0
  %4936 = vmatprep.subr.mxu0 0.0
  %4937 = vmatpush2.msra.mxu0 0.0
  %4938 = vmatprep.subr.mxu0 0.0
  %4939 = vmatpush2.msra.mxu0 0.0
  %4940 = vmatprep.subr.mxu0 0.0
  %4941 = vmatpush2.msra.mxu0 0.0
  %4942 = vmatprep.subr.mxu0 0.0
  %4943 = vmatpush2.msra.mxu0 0.0
  %4944 = vmatprep.subr.mxu0 0.0
  %4945 = vmatpush2.msra.mxu0 0.0
  %4946 = vmatprep.subr.mxu0 0.0
  %4947 = vmatpush2.msra.mxu0 0.0
  %4948 = vmatprep.subr.mxu0 0.0
  %4949 = vmatpush2.msra.mxu0 0.0
  %4950 = vmatprep.subr.mxu0 0.0
  %4951 = vmatpush2.msra.mxu0 0.0
  %4952 = vmatprep.subr.mxu0 0.0
  %4953 = vmatpush2.msra.mxu0 0.0
  %4954 = vmatprep.subr.mxu0 0.0
  %4955 = vmatpush2.msra.mxu0 0.0
  %4956 = vmatprep.subr.mxu0 0.0
  %4957 = vmatpush2.msra.mxu0 0.0
  %4958 = vmatprep.subr.mxu0 0.0
  %4959 = vmatpush2.msra.mxu0 0.0
  %4960 = vmatprep.subr.mxu0 0.0
  %4961 = vmatpush2.msra.mxu0 0.0
  %4962 = vmatprep.subr.mxu0 0.0
  %4963 = vmatpush2.msra.mxu0 0.0
  %4964 = vmatprep.subr.mxu0 0.0
  %4965 = vmatpush2.msra.mxu0 0.0
  %4966 = vmatprep.mubr.f32.mxu0 0.0
  %4967 = vmatmul.mubr.f32.gmra.mxu0 %v4897
  %v4968 = vpop.f32.mrf.mxu0
  %v4969 = vadd.f32 %v4889, %v4968
  %v4970 = vpop.f32.mrf.mxu0
  %4971 = vmatprep.mubr.f32.mxu0 0.0
  %4972 = vmatmul.mubr.f32.gmra.mxu0 %v4900
  %v4973 = vpop.f32.mrf.mxu0
  %v4974 = vadd.f32 %v4894, %v4973
  %v4975 = vpop.f32.mrf.mxu0
  %4976 = vdwg.mxu0
  %v4977 = vsub.f32 0.0, %v4969
  %v4978 = vsub.f32 0.0, %v4974
  %v4979 = vmul.f32 %v4977, 1.442695
  %v4980 = vpow.pop %v4979
  %v4981 = vmul.f32 %v4978, 1.442695
  %v4982 = vpow.pop %v4981
  %v4983 = vadd.f32 %v4980, 1.0
  %v4984 = vadd.f32 %v4982, 1.0
  %v4985 = vrcp.pop %v4983
  %v4986 = vrcp.pop %v4984
  %v4987 = vld [vmem:[%s5 + $0x1c8] sm:$0xff]
  %v4988 = vld [vmem:[%s5 + $0x1d0] sm:$0xff]
  %v4989 = vld [vmem:[%s5 + $0x1d8] sm:$0xff]
  %v4990 = vld [vmem:[%s5 + $0x1e0] sm:$0xff]
  %v4991 = vld [vmem:[%s5 + $0x1e8] sm:$0xff]
  %v4992 = vld [vmem:[%s5 + $0x1f0] sm:$0xff]
  %4994 = vset.pattern.permute.xlu0 0
  %4995 = vperm.xlu0 %4994, %v4990
  %v4996 = vpop.permute.xlu0 %4995
  %4999 = vset.pattern.permute.xlu0 0
  %5000 = vperm.xlu0 %4999, %v4991
  %v5001 = vpop.permute.xlu0 %5000
  %5004 = vset.pattern.permute.xlu0 0
  %5005 = vperm.xlu0 %5004, %v4992
  %v5006 = vpop.permute.xlu0 %5005
  %v5009 = vsel %vm1330, %v4987, 0
  %v5012 = vsel %vm1330, %v4988, 0
  %v5015 = vsel %vm1330, %v4989, 0
  %5017 = vmatprep.subr.mxu0 0.0
  %5018 = vmatpush1.msra.mxu0 0.0
  %5019 = vmatprep.subr.mxu0 0.0
  %5020 = vmatpush1.msra.mxu0 0.0
  %5021 = vmatprep.subr.mxu0 0.0
  %5022 = vmatpush1.msra.mxu0 0.0
  %5023 = vmatprep.subr.mxu0 0.0
  %5024 = vmatpush1.msra.mxu0 0.0
  %5025 = vmatprep.subr.mxu0 0.0
  %5026 = vmatpush1.msra.mxu0 0.0
  %5027 = vmatprep.subr.mxu0 0.0
  %5028 = vmatpush1.msra.mxu0 0.0
  %5029 = vmatprep.subr.mxu0 0.0
  %5030 = vmatpush1.msra.mxu0 0.0
  %5031 = vmatprep.subr.mxu0 0.0
  %5032 = vmatpush1.msra.mxu0 0.0
  %5033 = vmatprep.subr.mxu0 0.0
  %5034 = vmatpush1.msra.mxu0 0.0
  %5035 = vmatprep.subr.mxu0 0.0
  %5036 = vmatpush1.msra.mxu0 0.0
  %5037 = vmatprep.subr.mxu0 0.0
  %5038 = vmatpush1.msra.mxu0 0.0
  %5039 = vmatprep.subr.mxu0 0.0
  %5040 = vmatpush1.msra.mxu0 0.0
  %5041 = vmatprep.subr.mxu0 0.0
  %5042 = vmatpush1.msra.mxu0 0.0
  %5043 = vmatprep.subr.mxu0 0.0
  %5044 = vmatpush1.msra.mxu0 0.0
  %5045 = vmatprep.subr.mxu0 0.0
  %5046 = vmatpush1.msra.mxu0 %v4782
  %5047 = vmatprep.subr.mxu0 0.0
  %5048 = vmatpush1.msra.mxu0 %v4777
  %5049 = vmatprep.subr.mxu0 0.0
  %5050 = vmatpush2.msra.mxu0 0.0
  %5051 = vmatprep.subr.mxu0 0.0
  %5052 = vmatpush2.msra.mxu0 0.0
  %5053 = vmatprep.subr.mxu0 0.0
  %5054 = vmatpush2.msra.mxu0 0.0
  %5055 = vmatprep.subr.mxu0 0.0
  %5056 = vmatpush2.msra.mxu0 0.0
  %5057 = vmatprep.subr.mxu0 0.0
  %5058 = vmatpush2.msra.mxu0 0.0
  %5059 = vmatprep.subr.mxu0 0.0
  %5060 = vmatpush2.msra.mxu0 0.0
  %5061 = vmatprep.subr.mxu0 0.0
  %5062 = vmatpush2.msra.mxu0 0.0
  %5063 = vmatprep.subr.mxu0 0.0
  %5064 = vmatpush2.msra.mxu0 0.0
  %5065 = vmatprep.subr.mxu0 0.0
  %5066 = vmatpush2.msra.mxu0 0.0
  %5067 = vmatprep.subr.mxu0 0.0
  %5068 = vmatpush2.msra.mxu0 0.0
  %5069 = vmatprep.subr.mxu0 0.0
  %5070 = vmatpush2.msra.mxu0 0.0
  %5071 = vmatprep.subr.mxu0 0.0
  %5072 = vmatpush2.msra.mxu0 0.0
  %5073 = vmatprep.subr.mxu0 0.0
  %5074 = vmatpush2.msra.mxu0 0.0
  %5075 = vmatprep.subr.mxu0 0.0
  %5076 = vmatpush2.msra.mxu0 0.0
  %5077 = vmatprep.subr.mxu0 0.0
  %5078 = vmatpush2.msra.mxu0 0.0
  %5079 = vmatprep.subr.mxu0 0.0
  %5080 = vmatpush2.msra.mxu0 0.0
  %5081 = vmatprep.mubr.f32.mxu0 0.0
  %5082 = vmatmul.mubr.f32.gmra.mxu0 %v5009
  %v5083 = vpop.f32.mrf.mxu0
  %v5084 = vadd.f32 %v4996, %v5083
  %v5085 = vpop.f32.mrf.mxu0
  %5086 = vmatprep.mubr.f32.mxu0 0.0
  %5087 = vmatmul.mubr.f32.gmra.mxu0 %v5012
  %v5088 = vpop.f32.mrf.mxu0
  %v5089 = vadd.f32 %v5001, %v5088
  %v5090 = vpop.f32.mrf.mxu0
  %5091 = vmatprep.mubr.f32.mxu0 0.0
  %5092 = vmatmul.mubr.f32.gmra.mxu0 %v5015
  %v5093 = vpop.f32.mrf.mxu0
  %v5094 = vadd.f32 %v5006, %v5093
  %v5095 = vpop.f32.mrf.mxu0
  %5096 = vdwg.mxu0
  %v5097 = vmax.f32 %v5084, 0.0
  %v5098 = vmax.f32 %v5089, 0.0
  %v5099 = vmax.f32 %v5094, 0.0
  %v5100 = vld [vmem:[%s5 + $0x1f8] sm:$0xff]
  %v5101 = vld [vmem:[%s5 + $0x200] sm:$0xff]
  %v5102 = vld [vmem:[%s5 + $0x208] sm:$0xff]
  %v5103 = vld [vmem:[%s5 + $0x210] sm:$0xff]
  %5105 = vset.pattern.permute.xlu0 0
  %5106 = vperm.xlu0 %5105, %v5102
  %v5107 = vpop.permute.xlu0 %5106
  %5110 = vset.pattern.permute.xlu0 0
  %5111 = vperm.xlu0 %5110, %v5103
  %v5112 = vpop.permute.xlu0 %5111
  %vm5114 = vcmask 195584
  %v5116 = vsel %vm5114, %v5100, 0
  %v5119 = vsel %vm5114, %v5101, 0
  %5121 = vmatprep.subr.mxu0 0.0
  %5122 = vmatpush1.msra.mxu0 0.0
  %5123 = vmatprep.subr.mxu0 0.0
  %5124 = vmatpush1.msra.mxu0 0.0
  %5125 = vmatprep.subr.mxu0 0.0
  %5126 = vmatpush1.msra.mxu0 0.0
  %5127 = vmatprep.subr.mxu0 0.0
  %5128 = vmatpush1.msra.mxu0 0.0
  %5129 = vmatprep.subr.mxu0 0.0
  %5130 = vmatpush1.msra.mxu0 0.0
  %5131 = vmatprep.subr.mxu0 0.0
  %5132 = vmatpush1.msra.mxu0 0.0
  %5133 = vmatprep.subr.mxu0 0.0
  %5134 = vmatpush1.msra.mxu0 0.0
  %5135 = vmatprep.subr.mxu0 0.0
  %5136 = vmatpush1.msra.mxu0 0.0
  %5137 = vmatprep.subr.mxu0 0.0
  %5138 = vmatpush1.msra.mxu0 0.0
  %5139 = vmatprep.subr.mxu0 0.0
  %5140 = vmatpush1.msra.mxu0 0.0
  %5141 = vmatprep.subr.mxu0 0.0
  %5142 = vmatpush1.msra.mxu0 0.0
  %5143 = vmatprep.subr.mxu0 0.0
  %5144 = vmatpush1.msra.mxu0 0.0
  %5145 = vmatprep.subr.mxu0 0.0
  %5146 = vmatpush1.msra.mxu0 0.0
  %5147 = vmatprep.subr.mxu0 0.0
  %5148 = vmatpush1.msra.mxu0 %v5099
  %5149 = vmatprep.subr.mxu0 0.0
  %5150 = vmatpush1.msra.mxu0 %v5098
  %5151 = vmatprep.subr.mxu0 0.0
  %5152 = vmatpush1.msra.mxu0 %v5097
  %5153 = vmatprep.subr.mxu0 0.0
  %5154 = vmatpush2.msra.mxu0 0.0
  %5155 = vmatprep.subr.mxu0 0.0
  %5156 = vmatpush2.msra.mxu0 0.0
  %5157 = vmatprep.subr.mxu0 0.0
  %5158 = vmatpush2.msra.mxu0 0.0
  %5159 = vmatprep.subr.mxu0 0.0
  %5160 = vmatpush2.msra.mxu0 0.0
  %5161 = vmatprep.subr.mxu0 0.0
  %5162 = vmatpush2.msra.mxu0 0.0
  %5163 = vmatprep.subr.mxu0 0.0
  %5164 = vmatpush2.msra.mxu0 0.0
  %5165 = vmatprep.subr.mxu0 0.0
  %5166 = vmatpush2.msra.mxu0 0.0
  %5167 = vmatprep.subr.mxu0 0.0
  %5168 = vmatpush2.msra.mxu0 0.0
  %5169 = vmatprep.subr.mxu0 0.0
  %5170 = vmatpush2.msra.mxu0 0.0
  %5171 = vmatprep.subr.mxu0 0.0
  %5172 = vmatpush2.msra.mxu0 0.0
  %5173 = vmatprep.subr.mxu0 0.0
  %5174 = vmatpush2.msra.mxu0 0.0
  %5175 = vmatprep.subr.mxu0 0.0
  %5176 = vmatpush2.msra.mxu0 0.0
  %5177 = vmatprep.subr.mxu0 0.0
  %5178 = vmatpush2.msra.mxu0 0.0
  %5179 = vmatprep.subr.mxu0 0.0
  %5180 = vmatpush2.msra.mxu0 0.0
  %5181 = vmatprep.subr.mxu0 0.0
  %5182 = vmatpush2.msra.mxu0 0.0
  %5183 = vmatprep.subr.mxu0 0.0
  %5184 = vmatpush2.msra.mxu0 0.0
  %5185 = vmatprep.mubr.f32.mxu0 0.0
  %5186 = vmatmul.mubr.f32.gmra.mxu0 %v5116
  %v5187 = vpop.f32.mrf.mxu0
  %v5188 = vadd.f32 %v5107, %v5187
  %v5189 = vpop.f32.mrf.mxu0
  %5190 = vmatprep.mubr.f32.mxu0 0.0
  %5191 = vmatmul.mubr.f32.gmra.mxu0 %v5119
  %v5192 = vpop.f32.mrf.mxu0
  %v5193 = vadd.f32 %v5112, %v5192
  %v5194 = vpop.f32.mrf.mxu0
  %5195 = vdwg.mxu0
  %v5196 = vsub.f32 0.0, %v5188
  %v5197 = vsub.f32 0.0, %v5193
  %v5198 = vmul.f32 %v5196, 1.442695
  %v5199 = vpow.pop %v5198
  %v5200 = vmul.f32 %v5197, 1.442695
  %v5201 = vpow.pop %v5200
  %v5202 = vadd.f32 %v5199, 1.0
  %v5203 = vadd.f32 %v5201, 1.0
  %v5204 = vrcp.pop %v5202
  %v5205 = vrcp.pop %v5203
  %v5206 = vmul.f32 %v4985, %v5204
  %v5207 = vmul.f32 %v4986, %v5205
  %v5209 = vsel %vm1717, %v5206, 0
  %v5212 = vsel %vm1717, %v5207, 0
  %5214 = vmatprep.subr.mxu0 0.0
  %5215 = vmatpush1.msra.mxu0 0.0
  %5216 = vmatprep.subr.mxu0 0.0
  %5217 = vmatpush1.msra.mxu0 0.0
  %5218 = vmatprep.subr.mxu0 0.0
  %5219 = vmatpush1.msra.mxu0 0.0
  %5220 = vmatprep.subr.mxu0 0.0
  %5221 = vmatpush1.msra.mxu0 0.0
  %5222 = vmatprep.subr.mxu0 0.0
  %5223 = vmatpush1.msra.mxu0 0.0
  %5224 = vmatprep.subr.mxu0 0.0
  %5225 = vmatpush1.msra.mxu0 0.0
  %5226 = vmatprep.subr.mxu0 0.0
  %5227 = vmatpush1.msra.mxu0 0.0
  %5228 = vmatprep.subr.mxu0 0.0
  %5229 = vmatpush1.msra.mxu0 0.0
  %5230 = vmatprep.subr.mxu0 0.0
  %5231 = vmatpush1.msra.mxu0 0.0
  %5232 = vmatprep.subr.mxu0 0.0
  %5233 = vmatpush1.msra.mxu0 0.0
  %5234 = vmatprep.subr.mxu0 0.0
  %5235 = vmatpush1.msra.mxu0 0.0
  %5236 = vmatprep.subr.mxu0 0.0
  %5237 = vmatpush1.msra.mxu0 0.0
  %5238 = vmatprep.subr.mxu0 0.0
  %5239 = vmatpush1.msra.mxu0 0.0
  %5240 = vmatprep.subr.mxu0 0.0
  %5241 = vmatpush1.msra.mxu0 0.0
  %5242 = vmatprep.subr.mxu0 0.0
  %5243 = vmatpush1.msra.mxu0 0.0
  %5244 = vmatprep.subr.mxu0 %v1727
  %5245 = vmatpush1.msra.mxu0 %v1725
  %5246 = vmatprep.subr.mxu0 0.0
  %5247 = vmatpush2.msra.mxu0 0.0
  %5248 = vmatprep.subr.mxu0 0.0
  %5249 = vmatpush2.msra.mxu0 0.0
  %5250 = vmatprep.subr.mxu0 0.0
  %5251 = vmatpush2.msra.mxu0 0.0
  %5252 = vmatprep.subr.mxu0 0.0
  %5253 = vmatpush2.msra.mxu0 0.0
  %5254 = vmatprep.subr.mxu0 0.0
  %5255 = vmatpush2.msra.mxu0 0.0
  %5256 = vmatprep.subr.mxu0 0.0
  %5257 = vmatpush2.msra.mxu0 0.0
  %5258 = vmatprep.subr.mxu0 0.0
  %5259 = vmatpush2.msra.mxu0 0.0
  %5260 = vmatprep.subr.mxu0 0.0
  %5261 = vmatpush2.msra.mxu0 0.0
  %5262 = vmatprep.subr.mxu0 0.0
  %5263 = vmatpush2.msra.mxu0 0.0
  %5264 = vmatprep.subr.mxu0 0.0
  %5265 = vmatpush2.msra.mxu0 0.0
  %5266 = vmatprep.subr.mxu0 0.0
  %5267 = vmatpush2.msra.mxu0 0.0
  %5268 = vmatprep.subr.mxu0 0.0
  %5269 = vmatpush2.msra.mxu0 0.0
  %5270 = vmatprep.subr.mxu0 0.0
  %5271 = vmatpush2.msra.mxu0 0.0
  %5272 = vmatprep.subr.mxu0 0.0
  %5273 = vmatpush2.msra.mxu0 0.0
  %5274 = vmatprep.subr.mxu0 0.0
  %5275 = vmatpush2.msra.mxu0 0.0
  %5276 = vmatprep.subr.mxu0 0.0
  %5277 = vmatpush2.msra.mxu0 0.0
  %5278 = vmatprep.mubr.f32.mxu0 0.0
  %5279 = vmatmul.mubr.f32.gmra.mxu0 %v5209
  %v5280 = vpop.f32.mrf.mxu0
  %v5281 = vadd.f32 0.0, %v5280
  %v5282 = vpop.f32.mrf.mxu0
  %v5283 = vadd.f32 0.0, %v5282
  %5284 = vmatprep.mubr.f32.mxu0 0.0
  %5285 = vmatmul.mubr.f32.gmra.mxu0 %v5212
  %v5286 = vpop.f32.mrf.mxu0
  %v5287 = vadd.f32 0.0, %v5286
  %v5288 = vpop.f32.mrf.mxu0
  %v5289 = vadd.f32 0.0, %v5288
  %5290 = vdwg.mxu0
  %5291 = vmatprep.subr.mxu0 0.0
  %5292 = vmatpush1.msra.mxu0 0.0
  %5293 = vmatprep.subr.mxu0 0.0
  %5294 = vmatpush1.msra.mxu0 0.0
  %5295 = vmatprep.subr.mxu0 0.0
  %5296 = vmatpush1.msra.mxu0 0.0
  %5297 = vmatprep.subr.mxu0 0.0
  %5298 = vmatpush1.msra.mxu0 0.0
  %5299 = vmatprep.subr.mxu0 0.0
  %5300 = vmatpush1.msra.mxu0 0.0
  %5301 = vmatprep.subr.mxu0 0.0
  %5302 = vmatpush1.msra.mxu0 0.0
  %5303 = vmatprep.subr.mxu0 0.0
  %5304 = vmatpush1.msra.mxu0 0.0
  %5305 = vmatprep.subr.mxu0 0.0
  %5306 = vmatpush1.msra.mxu0 0.0
  %5307 = vmatprep.subr.mxu0 0.0
  %5308 = vmatpush1.msra.mxu0 0.0
  %5309 = vmatprep.subr.mxu0 0.0
  %5310 = vmatpush1.msra.mxu0 0.0
  %5311 = vmatprep.subr.mxu0 0.0
  %5312 = vmatpush1.msra.mxu0 0.0
  %5313 = vmatprep.subr.mxu0 0.0
  %5314 = vmatpush1.msra.mxu0 0.0
  %5315 = vmatprep.subr.mxu0 0.0
  %5316 = vmatpush1.msra.mxu0 0.0
  %5317 = vmatprep.subr.mxu0 0.0
  %5318 = vmatpush1.msra.mxu0 0.0
  %5319 = vmatprep.subr.mxu0 0.0
  %5320 = vmatpush1.msra.mxu0 0.0
  %5321 = vmatprep.subr.mxu0 %v1731
  %5322 = vmatpush1.msra.mxu0 %v1729
  %5323 = vmatprep.subr.mxu0 0.0
  %5324 = vmatpush2.msra.mxu0 0.0
  %5325 = vmatprep.subr.mxu0 0.0
  %5326 = vmatpush2.msra.mxu0 0.0
  %5327 = vmatprep.subr.mxu0 0.0
  %5328 = vmatpush2.msra.mxu0 0.0
  %5329 = vmatprep.subr.mxu0 0.0
  %5330 = vmatpush2.msra.mxu0 0.0
  %5331 = vmatprep.subr.mxu0 0.0
  %5332 = vmatpush2.msra.mxu0 0.0
  %5333 = vmatprep.subr.mxu0 0.0
  %5334 = vmatpush2.msra.mxu0 0.0
  %5335 = vmatprep.subr.mxu0 0.0
  %5336 = vmatpush2.msra.mxu0 0.0
  %5337 = vmatprep.subr.mxu0 0.0
  %5338 = vmatpush2.msra.mxu0 0.0
  %5339 = vmatprep.subr.mxu0 0.0
  %5340 = vmatpush2.msra.mxu0 0.0
  %5341 = vmatprep.subr.mxu0 0.0
  %5342 = vmatpush2.msra.mxu0 0.0
  %5343 = vmatprep.subr.mxu0 0.0
  %5344 = vmatpush2.msra.mxu0 0.0
  %5345 = vmatprep.subr.mxu0 0.0
  %5346 = vmatpush2.msra.mxu0 0.0
  %5347 = vmatprep.subr.mxu0 0.0
  %5348 = vmatpush2.msra.mxu0 0.0
  %5349 = vmatprep.subr.mxu0 0.0
  %5350 = vmatpush2.msra.mxu0 0.0
  %5351 = vmatprep.subr.mxu0 0.0
  %5352 = vmatpush2.msra.mxu0 0.0
  %5353 = vmatprep.subr.mxu0 0.0
  %5354 = vmatpush2.msra.mxu0 0.0
  %5355 = vmatprep.mubr.f32.mxu0 0.0
  %5356 = vmatmul.mubr.f32.gmra.mxu0 %v5209
  %v5357 = vpop.f32.mrf.mxu0
  %v5358 = vadd.f32 0.0, %v5357
  %v5359 = vpop.f32.mrf.mxu0
  %v5360 = vadd.f32 0.0, %v5359
  %5361 = vmatprep.mubr.f32.mxu0 0.0
  %5362 = vmatmul.mubr.f32.gmra.mxu0 %v5212
  %v5363 = vpop.f32.mrf.mxu0
  %v5364 = vadd.f32 0.0, %v5363
  %v5365 = vpop.f32.mrf.mxu0
  %v5366 = vadd.f32 0.0, %v5365
  %5367 = vdwg.mxu0
  %v5368 = vmul.f32 %v4627, %v5281
  %v5369 = vmul.f32 %v4628, %v5283
  %v5370 = vmul.f32 %v4629, %v5358
  %v5371 = vmul.f32 %v4630, %v5360
  %v5372 = vmul.f32 %v4631, %v5287
  %v5373 = vmul.f32 %v4632, %v5289
  %v5374 = vmul.f32 %v4633, %v5364
  %v5375 = vmul.f32 %v4634, %v5366
  %v5376 = vpack.c.bf16 %v5372, %v5368
  %v5377 = vpack.c.bf16 %v5373, %v5369
  %v5378 = vpack.c.bf16 %v5374, %v5370
  %v5379 = vpack.c.bf16 %v5375, %v5371
  %v5380 = vld [vmem:[%s4 + $0x30] sm:$0xf]
  %v5381 = vld [vmem:[%s5 + $0x180] sm:$0xff]
  %5383 = vset.pattern.permute.xlu0 0
  %5384 = vperm.xlu0 %5383, %v5381
  %v5385 = vpop.permute.xlu0 %5384
  %v5388 = vsel %vm1330, %v5380, 0
  %5390 = vmatprep.subr.bf16.mxu0 0
  %5391 = vmatpush1.bf16.msra.mxu0 0
  %5392 = vmatprep.subr.bf16.mxu0 0
  %5393 = vmatpush1.bf16.msra.mxu0 0
  %5394 = vmatprep.subr.bf16.mxu0 0
  %5395 = vmatpush1.bf16.msra.mxu0 0
  %5396 = vmatprep.subr.bf16.mxu0 0
  %5397 = vmatpush1.bf16.msra.mxu0 0
  %5398 = vmatprep.subr.bf16.mxu0 0
  %5399 = vmatpush1.bf16.msra.mxu0 0
  %5400 = vmatprep.subr.bf16.mxu0 0
  %5401 = vmatpush1.bf16.msra.mxu0 0
  %5402 = vmatprep.subr.bf16.mxu0 0
  %5403 = vmatpush1.bf16.msra.mxu0 0
  %5404 = vmatprep.subr.bf16.mxu0 %v5377
  %5405 = vmatpush1.bf16.msra.mxu0 %v5376
  %5406 = vmatprep.subr.bf16.mxu0 0
  %5407 = vmatpush2.bf16.msra.mxu0 0
  %5408 = vmatprep.subr.bf16.mxu0 0
  %5409 = vmatpush2.bf16.msra.mxu0 0
  %5410 = vmatprep.subr.bf16.mxu0 0
  %5411 = vmatpush2.bf16.msra.mxu0 0
  %5412 = vmatprep.subr.bf16.mxu0 0
  %5413 = vmatpush2.bf16.msra.mxu0 0
  %5414 = vmatprep.subr.bf16.mxu0 0
  %5415 = vmatpush2.bf16.msra.mxu0 0
  %5416 = vmatprep.subr.bf16.mxu0 0
  %5417 = vmatpush2.bf16.msra.mxu0 0
  %5418 = vmatprep.subr.bf16.mxu0 0
  %5419 = vmatpush2.bf16.msra.mxu0 0
  %5420 = vmatprep.subr.bf16.mxu0 0
  %5421 = vmatpush2.bf16.msra.mxu0 0
  %5422 = vmatprep.mubr.bf16.mxu0 0
  %5423 = vmatmul.mubr.bf16.gmra.mxu0 %v5388
  %v5424 = vpop.f32.mrf.mxu0
  %v5425 = vadd.f32 %v5385, %v5424
  %v5426 = vpop.f32.mrf.mxu0
  %v5427 = vadd.f32 %v5385, %v5426
  %v5428 = vpop.f32.mrf.mxu0
  %v5429 = vpop.f32.mrf.mxu0
  %5430 = vdwg.mxu0
  %5431 = vmatprep.subr.bf16.mxu0 0
  %5432 = vmatpush1.bf16.msra.mxu0 0
  %5433 = vmatprep.subr.bf16.mxu0 0
  %5434 = vmatpush1.bf16.msra.mxu0 0
  %5435 = vmatprep.subr.bf16.mxu0 0
  %5436 = vmatpush1.bf16.msra.mxu0 0
  %5437 = vmatprep.subr.bf16.mxu0 0
  %5438 = vmatpush1.bf16.msra.mxu0 0
  %5439 = vmatprep.subr.bf16.mxu0 0
  %5440 = vmatpush1.bf16.msra.mxu0 0
  %5441 = vmatprep.subr.bf16.mxu0 0
  %5442 = vmatpush1.bf16.msra.mxu0 0
  %5443 = vmatprep.subr.bf16.mxu0 0
  %5444 = vmatpush1.bf16.msra.mxu0 0
  %5445 = vmatprep.subr.bf16.mxu0 %v5379
  %5446 = vmatpush1.bf16.msra.mxu0 %v5378
  %5447 = vmatprep.subr.bf16.mxu0 0
  %5448 = vmatpush2.bf16.msra.mxu0 0
  %5449 = vmatprep.subr.bf16.mxu0 0
  %5450 = vmatpush2.bf16.msra.mxu0 0
  %5451 = vmatprep.subr.bf16.mxu0 0
  %5452 = vmatpush2.bf16.msra.mxu0 0
  %5453 = vmatprep.subr.bf16.mxu0 0
  %5454 = vmatpush2.bf16.msra.mxu0 0
  %5455 = vmatprep.subr.bf16.mxu0 0
  %5456 = vmatpush2.bf16.msra.mxu0 0
  %5457 = vmatprep.subr.bf16.mxu0 0
  %5458 = vmatpush2.bf16.msra.mxu0 0
  %5459 = vmatprep.subr.bf16.mxu0 0
  %5460 = vmatpush2.bf16.msra.mxu0 0
  %5461 = vmatprep.subr.bf16.mxu0 0
  %5462 = vmatpush2.bf16.msra.mxu0 0
  %5463 = vmatprep.mubr.bf16.mxu0 0
  %5464 = vmatmul.mubr.bf16.gmra.mxu0 %v5388
  %v5465 = vpop.f32.mrf.mxu0
  %v5466 = vadd.f32 %v5385, %v5465
  %v5467 = vpop.f32.mrf.mxu0
  %v5468 = vadd.f32 %v5385, %v5467
  %v5469 = vpop.f32.mrf.mxu0
  %v5470 = vpop.f32.mrf.mxu0
  %5471 = vdwg.mxu0
  %v5472 = vadd.f32 %v5425, %v4283
  %v5473 = vadd.f32 %v5427, %v4284
  %v5474 = vadd.f32 %v5466, %v4285
  %v5475 = vadd.f32 %v5468, %v4286
  %v5476 = vmax.f32 %v5472, 0.0
  %v5477 = vmax.f32 %v5473, 0.0
  %v5478 = vmax.f32 %v5474, 0.0
  %v5479 = vmax.f32 %v5475, 0.0
  %5480 = vrot.lane.b32.xlu0 %v5476, 17
  %v5481 = vpop.permute.xlu0 %5480
  %5482 = vrot.lane.b32.xlu0 %v5477, 17
  %v5483 = vpop.permute.xlu0 %5482
  %5484 = vrot.lane.b32.xlu0 %v5478, 17
  %v5485 = vpop.permute.xlu0 %5484
  %5486 = vrot.lane.b32.xlu0 %v5479, 17
  %v5487 = vpop.permute.xlu0 %5486
  %v5488 = vsel %vm129, %v5485, %v5487
  %v5489 = vsel %vm129, %v5483, %v5485
  %v5490 = vsel %vm129, %v5481, %v5483
  %v5491 = vsel %vm129, %v5487, %v5481
  %v5492 = vmul.f32 %v5491, %v711
  %v5493 = vmul.f32 %v5490, %v715
  %v5494 = vmul.f32 %v5489, %v719
  %v5495 = vmul.f32 %v5488, %v723
  %5496 = vst [vmem:[#allocation2] sm:$0xff] %v5492
  %5497 = vst [vmem:[#allocation2 + $0x8] sm:$0xff] %v5493
  %5498 = vst [vmem:[#allocation2 + $0x10] sm:$0xff] %v5494
  %5499 = vst [vmem:[#allocation2 + $0x18] sm:$0xff] %v5495
  %5500 = vrot.lane.b32.xlu0 %v5476, 16
  %v5501 = vpop.permute.xlu0 %5500
  %5502 = vrot.lane.b32.xlu0 %v5477, 16
  %v5503 = vpop.permute.xlu0 %5502
  %5504 = vrot.lane.b32.xlu0 %v5478, 16
  %v5505 = vpop.permute.xlu0 %5504
  %5506 = vrot.lane.b32.xlu0 %v5479, 16
  %v5507 = vpop.permute.xlu0 %5506
  %v5508 = vsel %vm181, %v5505, %v5507
  %v5509 = vsel %vm181, %v5503, %v5505
  %v5510 = vsel %vm181, %v5501, %v5503
  %v5511 = vsel %vm181, %v5507, %v5501
  %v5512 = vmul.f32 %v5511, %v747
  %v5513 = vmul.f32 %v5510, %v751
  %v5514 = vmul.f32 %v5509, %v755
  %v5515 = vmul.f32 %v5508, %v759
  %5516 = vst [vmem:[#allocation2 + $0x20] sm:$0xff] %v5512
  %5517 = vst [vmem:[#allocation2 + $0x28] sm:$0xff] %v5513
  %5518 = vst [vmem:[#allocation2 + $0x30] sm:$0xff] %v5514
  %5519 = vst [vmem:[#allocation2 + $0x38] sm:$0xff] %v5515
  %5520 = vrot.lane.b32.xlu0 %v5476, 15
  %v5521 = vpop.permute.xlu0 %5520
  %5522 = vrot.lane.b32.xlu0 %v5477, 15
  %v5523 = vpop.permute.xlu0 %5522
  %5524 = vrot.lane.b32.xlu0 %v5478, 15
  %v5525 = vpop.permute.xlu0 %5524
  %5526 = vrot.lane.b32.xlu0 %v5479, 15
  %v5527 = vpop.permute.xlu0 %5526
  %v5528 = vsel %vm242, %v5525, %v5527
  %v5529 = vsel %vm242, %v5523, %v5525
  %v5530 = vsel %vm242, %v5521, %v5523
  %v5531 = vsel %vm242, %v5527, %v5521
  %v5532 = vmul.f32 %v5531, %v783
  %v5533 = vmul.f32 %v5530, %v787
  %v5534 = vmul.f32 %v5529, %v791
  %v5535 = vmul.f32 %v5528, %v795
  %5536 = vst [vmem:[#allocation2 + $0x40] sm:$0xff] %v5532
  %5537 = vst [vmem:[#allocation2 + $0x48] sm:$0xff] %v5533
  %5538 = vst [vmem:[#allocation2 + $0x50] sm:$0xff] %v5534
  %5539 = vst [vmem:[#allocation2 + $0x58] sm:$0xff] %v5535
  %5540 = vrot.lane.b32.xlu0 %v5476, 1
  %v5541 = vpop.permute.xlu0 %5540
  %5542 = vrot.lane.b32.xlu0 %v5477, 1
  %v5543 = vpop.permute.xlu0 %5542
  %5544 = vrot.lane.b32.xlu0 %v5478, 1
  %v5545 = vpop.permute.xlu0 %5544
  %5546 = vrot.lane.b32.xlu0 %v5479, 1
  %v5547 = vpop.permute.xlu0 %5546
  %v5548 = vsel %vm299, %v5545, %v5547
  %v5549 = vsel %vm299, %v5543, %v5545
  %v5550 = vsel %vm299, %v5541, %v5543
  %v5551 = vsel %vm299, %v5547, %v5541
  %v5552 = vmul.f32 %v5551, %v819
  %v5553 = vmul.f32 %v5550, %v823
  %v5554 = vmul.f32 %v5549, %v827
  %v5555 = vmul.f32 %v5548, %v831
  %5556 = vst [vmem:[#allocation2 + $0x60] sm:$0xff] %v5552
  %5557 = vst [vmem:[#allocation2 + $0x68] sm:$0xff] %v5553
  %5558 = vst [vmem:[#allocation2 + $0x70] sm:$0xff] %v5554
  %5559 = vst [vmem:[#allocation2 + $0x78] sm:$0xff] %v5555
  %5560 = vst [vmem:[#allocation2 + $0x80] sm:$0xff] %v5476
  %5561 = vst [vmem:[#allocation2 + $0x88] sm:$0xff] %v5477
  %5562 = vst [vmem:[#allocation2 + $0x90] sm:$0xff] %v5478
  %5563 = vst [vmem:[#allocation2 + $0x98] sm:$0xff] %v5479
  %5564 = vrot.lane.b32.xlu0 %v5476, 127
  %v5565 = vpop.permute.xlu0 %5564
  %5566 = vrot.lane.b32.xlu0 %v5477, 127
  %v5567 = vpop.permute.xlu0 %5566
  %5568 = vrot.lane.b32.xlu0 %v5478, 127
  %v5569 = vpop.permute.xlu0 %5568
  %5570 = vrot.lane.b32.xlu0 %v5479, 127
  %v5571 = vpop.permute.xlu0 %5570
  %v5572 = vsel %vm359, %v5569, %v5571
  %v5573 = vsel %vm359, %v5567, %v5569
  %v5574 = vsel %vm359, %v5565, %v5567
  %v5575 = vsel %vm359, %v5571, %v5565
  %v5576 = vmul.f32 %v5574, %v859
  %v5577 = vmul.f32 %v5573, %v863
  %v5578 = vmul.f32 %v5572, %v867
  %v5579 = vmul.f32 %v5575, %v871
  %5580 = vst [vmem:[#allocation2 + $0xa0] sm:$0xff] %v5576
  %5581 = vst [vmem:[#allocation2 + $0xa8] sm:$0xff] %v5577
  %5582 = vst [vmem:[#allocation2 + $0xb0] sm:$0xff] %v5578
  %5583 = vst [vmem:[#allocation2 + $0xb8] sm:$0xff] %v5579
  %5584 = vrot.lane.b32.xlu0 %v5476, 113
  %v5585 = vpop.permute.xlu0 %5584
  %5586 = vrot.lane.b32.xlu0 %v5477, 113
  %v5587 = vpop.permute.xlu0 %5586
  %5588 = vrot.lane.b32.xlu0 %v5478, 113
  %v5589 = vpop.permute.xlu0 %5588
  %5590 = vrot.lane.b32.xlu0 %v5479, 113
  %v5591 = vpop.permute.xlu0 %5590
  %v5592 = vsel %vm416, %v5589, %v5591
  %v5593 = vsel %vm416, %v5587, %v5589
  %v5594 = vsel %vm416, %v5585, %v5587
  %v5595 = vsel %vm416, %v5591, %v5585
  %v5596 = vmul.f32 %v5594, %v895
  %v5597 = vmul.f32 %v5593, %v899
  %v5598 = vmul.f32 %v5592, %v903
  %v5599 = vmul.f32 %v5595, %v907
  %5600 = vst [vmem:[#allocation2 + $0xc0] sm:$0xff] %v5596
  %5601 = vst [vmem:[#allocation2 + $0xc8] sm:$0xff] %v5597
  %5602 = vst [vmem:[#allocation2 + $0xd0] sm:$0xff] %v5598
  %5603 = vst [vmem:[#allocation2 + $0xd8] sm:$0xff] %v5599
  %5604 = vrot.lane.b32.xlu0 %v5476, 112
  %v5605 = vpop.permute.xlu0 %5604
  %5606 = vrot.lane.b32.xlu0 %v5477, 112
  %v5607 = vpop.permute.xlu0 %5606
  %5608 = vrot.lane.b32.xlu0 %v5478, 112
  %v5609 = vpop.permute.xlu0 %5608
  %5610 = vrot.lane.b32.xlu0 %v5479, 112
  %v5611 = vpop.permute.xlu0 %5610
  %v5612 = vsel %vm473, %v5609, %v5611
  %v5613 = vsel %vm473, %v5607, %v5609
  %v5614 = vsel %vm473, %v5605, %v5607
  %v5615 = vsel %vm473, %v5611, %v5605
  %v5616 = vmul.f32 %v5614, %v931
  %v5617 = vmul.f32 %v5613, %v935
  %v5618 = vmul.f32 %v5612, %v939
  %v5619 = vmul.f32 %v5615, %v943
  %5620 = vst [vmem:[#allocation2 + $0xe0] sm:$0xff] %v5616
  %5621 = vst [vmem:[#allocation2 + $0xe8] sm:$0xff] %v5617
  %5622 = vst [vmem:[#allocation2 + $0xf0] sm:$0xff] %v5618
  %5623 = vst [vmem:[#allocation2 + $0xf8] sm:$0xff] %v5619
  %5624 = vrot.lane.b32.xlu0 %v5476, 111
  %v5625 = vpop.permute.xlu0 %5624
  %5626 = vrot.lane.b32.xlu0 %v5477, 111
  %v5627 = vpop.permute.xlu0 %5626
  %5628 = vrot.lane.b32.xlu0 %v5478, 111
  %v5629 = vpop.permute.xlu0 %5628
  %5630 = vrot.lane.b32.xlu0 %v5479, 111
  %v5631 = vpop.permute.xlu0 %5630
  %v5632 = vsel %vm530, %v5629, %v5631
  %v5633 = vsel %vm530, %v5627, %v5629
  %v5634 = vsel %vm530, %v5625, %v5627
  %v5635 = vsel %vm530, %v5631, %v5625
  %v5636 = vmul.f32 %v5634, %v967
  %v5637 = vmul.f32 %v5633, %v971
  %v5638 = vmul.f32 %v5632, %v975
  %v5639 = vmul.f32 %v5635, %v979
  %5640 = vst [vmem:[#allocation2 + $0x100] sm:$0xff] %v5636
  %5641 = vst [vmem:[#allocation2 + $0x108] sm:$0xff] %v5637
  %5642 = vst [vmem:[#allocation2 + $0x110] sm:$0xff] %v5638
  %5643 = vst [vmem:[#allocation2 + $0x118] sm:$0xff] %v5639
  %v5644 = vld [vmem:[#allocation2] sm:$0xff]
  %v5645 = vld [vmem:[#allocation2 + $0x8] sm:$0xff]
  %v5646 = vld [vmem:[#allocation2 + $0x10] sm:$0xff]
  %v5647 = vld [vmem:[#allocation2 + $0x18] sm:$0xff]
  %v5648 = vld [vmem:[#allocation2 + $0x20] sm:$0xff]
  %v5649 = vld [vmem:[#allocation2 + $0x28] sm:$0xff]
  %v5650 = vld [vmem:[#allocation2 + $0x30] sm:$0xff]
  %v5651 = vld [vmem:[#allocation2 + $0x38] sm:$0xff]
  %v5652 = vld [vmem:[#allocation2 + $0x40] sm:$0xff]
  %v5653 = vld [vmem:[#allocation2 + $0x48] sm:$0xff]
  %v5654 = vld [vmem:[#allocation2 + $0x50] sm:$0xff]
  %v5655 = vld [vmem:[#allocation2 + $0x58] sm:$0xff]
  %v5656 = vld [vmem:[#allocation2 + $0x60] sm:$0xff]
  %v5657 = vld [vmem:[#allocation2 + $0x68] sm:$0xff]
  %v5658 = vld [vmem:[#allocation2 + $0x70] sm:$0xff]
  %v5659 = vld [vmem:[#allocation2 + $0x78] sm:$0xff]
  %v5660 = vld [vmem:[#allocation2 + $0x80] sm:$0xff]
  %v5661 = vld [vmem:[#allocation2 + $0x88] sm:$0xff]
  %v5662 = vld [vmem:[#allocation2 + $0x90] sm:$0xff]
  %v5663 = vld [vmem:[#allocation2 + $0x98] sm:$0xff]
  %v5664 = vld [vmem:[#allocation2 + $0xa0] sm:$0xff]
  %v5665 = vld [vmem:[#allocation2 + $0xa8] sm:$0xff]
  %v5666 = vld [vmem:[#allocation2 + $0xb0] sm:$0xff]
  %v5667 = vld [vmem:[#allocation2 + $0xb8] sm:$0xff]
  %v5668 = vld [vmem:[#allocation2 + $0xc0] sm:$0xff]
  %v5669 = vld [vmem:[#allocation2 + $0xc8] sm:$0xff]
  %v5670 = vld [vmem:[#allocation2 + $0xd0] sm:$0xff]
  %v5671 = vld [vmem:[#allocation2 + $0xd8] sm:$0xff]
  %v5672 = vld [vmem:[#allocation2 + $0xe0] sm:$0xff]
  %v5673 = vld [vmem:[#allocation2 + $0xe8] sm:$0xff]
  %v5674 = vld [vmem:[#allocation2 + $0xf0] sm:$0xff]
  %v5675 = vld [vmem:[#allocation2 + $0xf8] sm:$0xff]
  %v5676 = vld [vmem:[#allocation2 + $0x100] sm:$0xff]
  %v5677 = vld [vmem:[#allocation2 + $0x108] sm:$0xff]
  %v5678 = vld [vmem:[#allocation2 + $0x110] sm:$0xff]
  %v5679 = vld [vmem:[#allocation2 + $0x118] sm:$0xff]
  %v5680 = vpack.c.bf16 %v5648, %v5644
  %v5681 = vpack.c.bf16 %v5649, %v5645
  %v5682 = vpack.c.bf16 %v5650, %v5646
  %v5683 = vpack.c.bf16 %v5651, %v5647
  %v5684 = vpack.c.bf16 %v5656, %v5652
  %v5685 = vpack.c.bf16 %v5657, %v5653
  %v5686 = vpack.c.bf16 %v5658, %v5654
  %v5687 = vpack.c.bf16 %v5659, %v5655
  %v5688 = vpack.c.bf16 %v5664, %v5660
  %v5689 = vpack.c.bf16 %v5665, %v5661
  %v5690 = vpack.c.bf16 %v5666, %v5662
  %v5691 = vpack.c.bf16 %v5667, %v5663
  %v5692 = vpack.c.bf16 %v5672, %v5668
  %v5693 = vpack.c.bf16 %v5673, %v5669
  %v5694 = vpack.c.bf16 %v5674, %v5670
  %v5695 = vpack.c.bf16 %v5675, %v5671
  %v5696 = vpack.c.bf16 %v5676, %v5676
  %v5697 = vpack.c.bf16 %v5677, %v5677
  %v5698 = vpack.c.bf16 %v5678, %v5678
  %v5699 = vpack.c.bf16 %v5679, %v5679
  %v5700 = vld [vmem:[%s4 + $0x34] sm:$0xf]
  %v5701 = vld [vmem:[%s4 + $0x38] sm:$0xf]
  %v5702 = vld [vmem:[%s4 + $0x3c] sm:$0xf]
  %v5703 = vld [vmem:[%s5 + $0x218] sm:$0xff]
  %v5704 = vld [vmem:[%s5 + $0x220] sm:$0xff]
  %v5705 = vld [vmem:[%s5 + $0x228] sm:$0xff]
  %5707 = vset.pattern.permute.xlu0 0
  %5708 = vperm.xlu0 %5707, %v5703
  %v5709 = vpop.permute.xlu0 %5708
  %5712 = vset.pattern.permute.xlu0 0
  %5713 = vperm.xlu0 %5712, %v5704
  %v5714 = vpop.permute.xlu0 %5713
  %5717 = vset.pattern.permute.xlu0 0
  %5718 = vperm.xlu0 %5717, %v5705
  %v5719 = vpop.permute.xlu0 %5718
  %v5724 = vunpack.c.l.b16 %v5700
  %v5725 = vunpack.c.l.b16 %v5701
  %v5726 = vunpack.c.l.b16 %v5702
  %v5727 = vpack.c.b16 %v5725, %v5724
  %v5728 = vpack.c.b16 %v5726, %v5726
  %v5730 = vsel %vm1063, %v5727, 0
  %v5733 = vsel %vm1063, %v5728, 0
  %v5736 = vsel %vm594, %v5696, 0
  %v5739 = vsel %vm594, %v5697, 0
  %v5742 = vsel %vm594, %v5698, 0
  %v5745 = vsel %vm594, %v5699, 0
  %5747 = vmatprep.subr.bf16.mxu0 0
  %5748 = vmatpush1.bf16.msra.mxu0 0
  %5749 = vmatprep.subr.bf16.mxu0 0
  %5750 = vmatpush1.bf16.msra.mxu0 0
  %5751 = vmatprep.subr.bf16.mxu0 0
  %5752 = vmatpush1.bf16.msra.mxu0 0
  %5753 = vmatprep.subr.bf16.mxu0 %v5739
  %5754 = vmatpush1.bf16.msra.mxu0 %v5736
  %5755 = vmatprep.subr.bf16.mxu0 %v5693
  %5756 = vmatpush1.bf16.msra.mxu0 %v5692
  %5757 = vmatprep.subr.bf16.mxu0 %v5689
  %5758 = vmatpush1.bf16.msra.mxu0 %v5688
  %5759 = vmatprep.subr.bf16.mxu0 %v5685
  %5760 = vmatpush1.bf16.msra.mxu0 %v5684
  %5761 = vmatprep.subr.bf16.mxu0 %v5681
  %5762 = vmatpush1.bf16.msra.mxu0 %v5680
  %5763 = vmatprep.subr.bf16.mxu0 0
  %5764 = vmatpush2.bf16.msra.mxu0 0
  %5765 = vmatprep.subr.bf16.mxu0 0
  %5766 = vmatpush2.bf16.msra.mxu0 0
  %5767 = vmatprep.subr.bf16.mxu0 0
  %5768 = vmatpush2.bf16.msra.mxu0 0
  %5769 = vmatprep.subr.bf16.mxu0 0
  %5770 = vmatpush2.bf16.msra.mxu0 0
  %5771 = vmatprep.subr.bf16.mxu0 0
  %5772 = vmatpush2.bf16.msra.mxu0 0
  %5773 = vmatprep.subr.bf16.mxu0 0
  %5774 = vmatpush2.bf16.msra.mxu0 0
  %5775 = vmatprep.subr.bf16.mxu0 0
  %5776 = vmatpush2.bf16.msra.mxu0 0
  %5777 = vmatprep.subr.bf16.mxu0 0
  %5778 = vmatpush2.bf16.msra.mxu0 0
  %5779 = vmatprep.mubr.bf16.mxu0 0
  %5780 = vmatmul.mubr.bf16.gmra.mxu0 %v5730
  %v5781 = vpop.f32.mrf.mxu0
  %v5782 = vadd.f32 %v5709, %v5781
  %v5783 = vpop.f32.mrf.mxu0
  %v5784 = vadd.f32 %v5709, %v5783
  %v5785 = vpop.f32.mrf.mxu0
  %v5786 = vadd.f32 %v5714, %v5785
  %v5787 = vpop.f32.mrf.mxu0
  %v5788 = vadd.f32 %v5714, %v5787
  %5789 = vmatprep.mubr.bf16.mxu0 0
  %5790 = vmatmul.mubr.bf16.gmra.mxu0 %v5733
  %v5791 = vpop.f32.mrf.mxu0
  %v5792 = vadd.f32 %v5719, %v5791
  %v5793 = vpop.f32.mrf.mxu0
  %v5794 = vadd.f32 %v5719, %v5793
  %v5795 = vpop.f32.mrf.mxu0
  %v5796 = vpop.f32.mrf.mxu0
  %5797 = vdwg.mxu0
  %5798 = vmatprep.subr.bf16.mxu0 0
  %5799 = vmatpush1.bf16.msra.mxu0 0
  %5800 = vmatprep.subr.bf16.mxu0 0
  %5801 = vmatpush1.bf16.msra.mxu0 0
  %5802 = vmatprep.subr.bf16.mxu0 0
  %5803 = vmatpush1.bf16.msra.mxu0 0
  %5804 = vmatprep.subr.bf16.mxu0 %v5745
  %5805 = vmatpush1.bf16.msra.mxu0 %v5742
  %5806 = vmatprep.subr.bf16.mxu0 %v5695
  %5807 = vmatpush1.bf16.msra.mxu0 %v5694
  %5808 = vmatprep.subr.bf16.mxu0 %v5691
  %5809 = vmatpush1.bf16.msra.mxu0 %v5690
  %5810 = vmatprep.subr.bf16.mxu0 %v5687
  %5811 = vmatpush1.bf16.msra.mxu0 %v5686
  %5812 = vmatprep.subr.bf16.mxu0 %v5683
  %5813 = vmatpush1.bf16.msra.mxu0 %v5682
  %5814 = vmatprep.subr.bf16.mxu0 0
  %5815 = vmatpush2.bf16.msra.mxu0 0
  %5816 = vmatprep.subr.bf16.mxu0 0
  %5817 = vmatpush2.bf16.msra.mxu0 0
  %5818 = vmatprep.subr.bf16.mxu0 0
  %5819 = vmatpush2.bf16.msra.mxu0 0
  %5820 = vmatprep.subr.bf16.mxu0 0
  %5821 = vmatpush2.bf16.msra.mxu0 0
  %5822 = vmatprep.subr.bf16.mxu0 0
  %5823 = vmatpush2.bf16.msra.mxu0 0
  %5824 = vmatprep.subr.bf16.mxu0 0
  %5825 = vmatpush2.bf16.msra.mxu0 0
  %5826 = vmatprep.subr.bf16.mxu0 0
  %5827 = vmatpush2.bf16.msra.mxu0 0
  %5828 = vmatprep.subr.bf16.mxu0 0
  %5829 = vmatpush2.bf16.msra.mxu0 0
  %5830 = vmatprep.mubr.bf16.mxu0 0
  %5831 = vmatmul.mubr.bf16.gmra.mxu0 %v5730
  %v5832 = vpop.f32.mrf.mxu0
  %v5833 = vadd.f32 %v5709, %v5832
  %v5834 = vpop.f32.mrf.mxu0
  %v5835 = vadd.f32 %v5709, %v5834
  %v5836 = vpop.f32.mrf.mxu0
  %v5837 = vadd.f32 %v5714, %v5836
  %v5838 = vpop.f32.mrf.mxu0
  %v5839 = vadd.f32 %v5714, %v5838
  %5840 = vmatprep.mubr.bf16.mxu0 0
  %5841 = vmatmul.mubr.bf16.gmra.mxu0 %v5733
  %v5842 = vpop.f32.mrf.mxu0
  %v5843 = vadd.f32 %v5719, %v5842
  %v5844 = vpop.f32.mrf.mxu0
  %v5845 = vadd.f32 %v5719, %v5844
  %v5846 = vpop.f32.mrf.mxu0
  %v5847 = vpop.f32.mrf.mxu0
  %5848 = vdwg.mxu0
  %v5849 = vmax.f32 %v5782, 0.0
  %v5850 = vmax.f32 %v5784, 0.0
  %v5851 = vmax.f32 %v5833, 0.0
  %v5852 = vmax.f32 %v5835, 0.0
  %v5853 = vmax.f32 %v5786, 0.0
  %v5854 = vmax.f32 %v5788, 0.0
  %v5855 = vmax.f32 %v5837, 0.0
  %v5856 = vmax.f32 %v5839, 0.0
  %v5857 = vmax.f32 %v5792, 0.0
  %v5858 = vmax.f32 %v5794, 0.0
  %v5859 = vmax.f32 %v5843, 0.0
  %v5860 = vmax.f32 %v5845, 0.0
  %5861 = vmatprep.subr.mxu0 0.0
  %5862 = vmatpush1.msra.mxu0 %v47
  %5863 = vmatprep.subr.mxu0 0.0
  %5864 = vmatpush1.msra.mxu0 %v46
  %5865 = vmatprep.subr.mxu0 0.0
  %5866 = vmatpush1.msra.mxu0 %v45
  %5867 = vmatprep.subr.mxu0 0.0
  %5868 = vmatpush1.msra.mxu0 %v44
  %5869 = vmatprep.subr.mxu0 0.0
  %5870 = vmatpush1.msra.mxu0 %v43
  %5871 = vmatprep.subr.mxu0 0.0
  %5872 = vmatpush1.msra.mxu0 %v42
  %5873 = vmatprep.subr.mxu0 0.0
  %5874 = vmatpush1.msra.mxu0 %v41
  %5875 = vmatprep.subr.mxu0 0.0
  %5876 = vmatpush1.msra.mxu0 %v40
  %5877 = vmatprep.subr.mxu0 0.0
  %5878 = vmatpush1.msra.mxu0 %v39
  %5879 = vmatprep.subr.mxu0 0.0
  %5880 = vmatpush1.msra.mxu0 %v38
  %5881 = vmatprep.subr.mxu0 0.0
  %5882 = vmatpush1.msra.mxu0 %v37
  %5883 = vmatprep.subr.mxu0 0.0
  %5884 = vmatpush1.msra.mxu0 %v36
  %5885 = vmatprep.subr.mxu0 0.0
  %5886 = vmatpush1.msra.mxu0 %v35
  %5887 = vmatprep.subr.mxu0 0.0
  %5888 = vmatpush1.msra.mxu0 %v34
  %5889 = vmatprep.subr.mxu0 0.0
  %5890 = vmatpush1.msra.mxu0 %v33
  %5891 = vmatprep.subr.mxu0 0.0
  %5892 = vmatpush1.msra.mxu0 %v32
  %5893 = vmatprep.subr.mxu0 0.0
  %5894 = vmatpush2.msra.mxu0 %v63
  %5895 = vmatprep.subr.mxu0 0.0
  %5896 = vmatpush2.msra.mxu0 %v62
  %5897 = vmatprep.subr.mxu0 0.0
  %5898 = vmatpush2.msra.mxu0 %v61
  %5899 = vmatprep.subr.mxu0 0.0
  %5900 = vmatpush2.msra.mxu0 %v60
  %5901 = vmatprep.subr.mxu0 0.0
  %5902 = vmatpush2.msra.mxu0 %v59
  %5903 = vmatprep.subr.mxu0 0.0
  %5904 = vmatpush2.msra.mxu0 %v58
  %5905 = vmatprep.subr.mxu0 0.0
  %5906 = vmatpush2.msra.mxu0 %v57
  %5907 = vmatprep.subr.mxu0 0.0
  %5908 = vmatpush2.msra.mxu0 %v56
  %5909 = vmatprep.subr.mxu0 0.0
  %5910 = vmatpush2.msra.mxu0 %v55
  %5911 = vmatprep.subr.mxu0 0.0
  %5912 = vmatpush2.msra.mxu0 %v54
  %5913 = vmatprep.subr.mxu0 0.0
  %5914 = vmatpush2.msra.mxu0 %v53
  %5915 = vmatprep.subr.mxu0 0.0
  %5916 = vmatpush2.msra.mxu0 %v52
  %5917 = vmatprep.subr.mxu0 0.0
  %5918 = vmatpush2.msra.mxu0 %v51
  %5919 = vmatprep.subr.mxu0 0.0
  %5920 = vmatpush2.msra.mxu0 %v50
  %5921 = vmatprep.subr.mxu0 0.0
  %5922 = vmatpush2.msra.mxu0 %v49
  %5923 = vmatprep.subr.mxu0 0.0
  %5924 = vmatpush2.msra.mxu0 %v48
  %5925 = vmatprep.mubr.f32.mxu0 %v5850
  %5926 = vmatmul.mubr.f32.gmra.mxu0 %v5849
  %v5927 = vpop.f32.mrf.mxu0
  %v5928 = vadd.f32 0.0, %v5927
  %v5929 = vpop.f32.mrf.mxu0
  %5930 = vmatprep.mubr.f32.mxu0 %v5854
  %5931 = vmatmul.mubr.f32.gmra.mxu0 %v5853
  %v5932 = vpop.f32.mrf.mxu0
  %v5933 = vadd.f32 0.0, %v5932
  %v5934 = vpop.f32.mrf.mxu0
  %5935 = vmatprep.mubr.f32.mxu0 %v5858
  %5936 = vmatmul.mubr.f32.gmra.mxu0 %v5857
  %v5937 = vpop.f32.mrf.mxu0
  %v5938 = vadd.f32 0.0, %v5937
  %v5939 = vpop.f32.mrf.mxu0
  %5940 = vdwg.mxu0
  %5941 = vmatprep.subr.mxu0 0.0
  %5942 = vmatpush1.msra.mxu0 %v79
  %5943 = vmatprep.subr.mxu0 0.0
  %5944 = vmatpush1.msra.mxu0 %v78
  %5945 = vmatprep.subr.mxu0 0.0
  %5946 = vmatpush1.msra.mxu0 %v77
  %5947 = vmatprep.subr.mxu0 0.0
  %5948 = vmatpush1.msra.mxu0 %v76
  %5949 = vmatprep.subr.mxu0 0.0
  %5950 = vmatpush1.msra.mxu0 %v75
  %5951 = vmatprep.subr.mxu0 0.0
  %5952 = vmatpush1.msra.mxu0 %v74
  %5953 = vmatprep.subr.mxu0 0.0
  %5954 = vmatpush1.msra.mxu0 %v73
  %5955 = vmatprep.subr.mxu0 0.0
  %5956 = vmatpush1.msra.mxu0 %v72
  %5957 = vmatprep.subr.mxu0 0.0
  %5958 = vmatpush1.msra.mxu0 %v71
  %5959 = vmatprep.subr.mxu0 0.0
  %5960 = vmatpush1.msra.mxu0 %v70
  %5961 = vmatprep.subr.mxu0 0.0
  %5962 = vmatpush1.msra.mxu0 %v69
  %5963 = vmatprep.subr.mxu0 0.0
  %5964 = vmatpush1.msra.mxu0 %v68
  %5965 = vmatprep.subr.mxu0 0.0
  %5966 = vmatpush1.msra.mxu0 %v67
  %5967 = vmatprep.subr.mxu0 0.0
  %5968 = vmatpush1.msra.mxu0 %v66
  %5969 = vmatprep.subr.mxu0 0.0
  %5970 = vmatpush1.msra.mxu0 %v65
  %5971 = vmatprep.subr.mxu0 0.0
  %5972 = vmatpush1.msra.mxu0 %v64
  %5973 = vmatprep.subr.mxu0 0.0
  %5974 = vmatpush2.msra.mxu0 %v95
  %5975 = vmatprep.subr.mxu0 0.0
  %5976 = vmatpush2.msra.mxu0 %v94
  %5977 = vmatprep.subr.mxu0 0.0
  %5978 = vmatpush2.msra.mxu0 %v93
  %5979 = vmatprep.subr.mxu0 0.0
  %5980 = vmatpush2.msra.mxu0 %v92
  %5981 = vmatprep.subr.mxu0 0.0
  %5982 = vmatpush2.msra.mxu0 %v91
  %5983 = vmatprep.subr.mxu0 0.0
  %5984 = vmatpush2.msra.mxu0 %v90
  %5985 = vmatprep.subr.mxu0 0.0
  %5986 = vmatpush2.msra.mxu0 %v89
  %5987 = vmatprep.subr.mxu0 0.0
  %5988 = vmatpush2.msra.mxu0 %v88
  %5989 = vmatprep.subr.mxu0 0.0
  %5990 = vmatpush2.msra.mxu0 %v87
  %5991 = vmatprep.subr.mxu0 0.0
  %5992 = vmatpush2.msra.mxu0 %v86
  %5993 = vmatprep.subr.mxu0 0.0
  %5994 = vmatpush2.msra.mxu0 %v85
  %5995 = vmatprep.subr.mxu0 0.0
  %5996 = vmatpush2.msra.mxu0 %v84
  %5997 = vmatprep.subr.mxu0 0.0
  %5998 = vmatpush2.msra.mxu0 %v83
  %5999 = vmatprep.subr.mxu0 0.0
  %6000 = vmatpush2.msra.mxu0 %v82
  %6001 = vmatprep.subr.mxu0 0.0
  %6002 = vmatpush2.msra.mxu0 %v81
  %6003 = vmatprep.subr.mxu0 0.0
  %6004 = vmatpush2.msra.mxu0 %v80
  %6005 = vmatprep.mubr.f32.mxu0 %v5852
  %6006 = vmatmul.mubr.f32.gmra.mxu0 %v5851
  %v6007 = vpop.f32.mrf.mxu0
  %v6008 = vadd.f32 %v5928, %v6007
  %v6009 = vpop.f32.mrf.mxu0
  %6010 = vmatprep.mubr.f32.mxu0 %v5856
  %6011 = vmatmul.mubr.f32.gmra.mxu0 %v5855
  %v6012 = vpop.f32.mrf.mxu0
  %v6013 = vadd.f32 %v5933, %v6012
  %v6014 = vpop.f32.mrf.mxu0
  %6015 = vmatprep.mubr.f32.mxu0 %v5860
  %6016 = vmatmul.mubr.f32.gmra.mxu0 %v5859
  %v6017 = vpop.f32.mrf.mxu0
  %v6018 = vadd.f32 %v5938, %v6017
  %v6019 = vpop.f32.mrf.mxu0
  %6020 = vdwg.mxu0
  %v6021 = vld [vmem:[%s5 + $0x230] sm:$0xff]
  %v6022 = vld [vmem:[%s5 + $0x238] sm:$0xff]
  %v6023 = vld [vmem:[%s5 + $0x240] sm:$0xff]
  %v6024 = vld [vmem:[%s5 + $0x248] sm:$0xff]
  %6026 = vset.pattern.permute.xlu0 0
  %6027 = vperm.xlu0 %6026, %v6023
  %v6028 = vpop.permute.xlu0 %6027
  %6031 = vset.pattern.permute.xlu0 0
  %6032 = vperm.xlu0 %6031, %v6024
  %v6033 = vpop.permute.xlu0 %6032
  %v6036 = vsel %vm5114, %v6021, 0
  %v6039 = vsel %vm5114, %v6022, 0
  %6041 = vmatprep.subr.mxu0 0.0
  %6042 = vmatpush1.msra.mxu0 0.0
  %6043 = vmatprep.subr.mxu0 0.0
  %6044 = vmatpush1.msra.mxu0 0.0
  %6045 = vmatprep.subr.mxu0 0.0
  %6046 = vmatpush1.msra.mxu0 0.0
  %6047 = vmatprep.subr.mxu0 0.0
  %6048 = vmatpush1.msra.mxu0 0.0
  %6049 = vmatprep.subr.mxu0 0.0
  %6050 = vmatpush1.msra.mxu0 0.0
  %6051 = vmatprep.subr.mxu0 0.0
  %6052 = vmatpush1.msra.mxu0 0.0
  %6053 = vmatprep.subr.mxu0 0.0
  %6054 = vmatpush1.msra.mxu0 0.0
  %6055 = vmatprep.subr.mxu0 0.0
  %6056 = vmatpush1.msra.mxu0 0.0
  %6057 = vmatprep.subr.mxu0 0.0
  %6058 = vmatpush1.msra.mxu0 0.0
  %6059 = vmatprep.subr.mxu0 0.0
  %6060 = vmatpush1.msra.mxu0 0.0
  %6061 = vmatprep.subr.mxu0 0.0
  %6062 = vmatpush1.msra.mxu0 0.0
  %6063 = vmatprep.subr.mxu0 0.0
  %6064 = vmatpush1.msra.mxu0 0.0
  %6065 = vmatprep.subr.mxu0 0.0
  %6066 = vmatpush1.msra.mxu0 0.0
  %6067 = vmatprep.subr.mxu0 0.0
  %6068 = vmatpush1.msra.mxu0 %v6018
  %6069 = vmatprep.subr.mxu0 0.0
  %6070 = vmatpush1.msra.mxu0 %v6013
  %6071 = vmatprep.subr.mxu0 0.0
  %6072 = vmatpush1.msra.mxu0 %v6008
  %6073 = vmatprep.subr.mxu0 0.0
  %6074 = vmatpush2.msra.mxu0 0.0
  %6075 = vmatprep.subr.mxu0 0.0
  %6076 = vmatpush2.msra.mxu0 0.0
  %6077 = vmatprep.subr.mxu0 0.0
  %6078 = vmatpush2.msra.mxu0 0.0
  %6079 = vmatprep.subr.mxu0 0.0
  %6080 = vmatpush2.msra.mxu0 0.0
  %6081 = vmatprep.subr.mxu0 0.0
  %6082 = vmatpush2.msra.mxu0 0.0
  %6083 = vmatprep.subr.mxu0 0.0
  %6084 = vmatpush2.msra.mxu0 0.0
  %6085 = vmatprep.subr.mxu0 0.0
  %6086 = vmatpush2.msra.mxu0 0.0
  %6087 = vmatprep.subr.mxu0 0.0
  %6088 = vmatpush2.msra.mxu0 0.0
  %6089 = vmatprep.subr.mxu0 0.0
  %6090 = vmatpush2.msra.mxu0 0.0
  %6091 = vmatprep.subr.mxu0 0.0
  %6092 = vmatpush2.msra.mxu0 0.0
  %6093 = vmatprep.subr.mxu0 0.0
  %6094 = vmatpush2.msra.mxu0 0.0
  %6095 = vmatprep.subr.mxu0 0.0
  %6096 = vmatpush2.msra.mxu0 0.0
  %6097 = vmatprep.subr.mxu0 0.0
  %6098 = vmatpush2.msra.mxu0 0.0
  %6099 = vmatprep.subr.mxu0 0.0
  %6100 = vmatpush2.msra.mxu0 0.0
  %6101 = vmatprep.subr.mxu0 0.0
  %6102 = vmatpush2.msra.mxu0 0.0
  %6103 = vmatprep.subr.mxu0 0.0
  %6104 = vmatpush2.msra.mxu0 0.0
  %6105 = vmatprep.mubr.f32.mxu0 0.0
  %6106 = vmatmul.mubr.f32.gmra.mxu0 %v6036
  %v6107 = vpop.f32.mrf.mxu0
  %v6108 = vadd.f32 %v6028, %v6107
  %v6109 = vpop.f32.mrf.mxu0
  %6110 = vmatprep.mubr.f32.mxu0 0.0
  %6111 = vmatmul.mubr.f32.gmra.mxu0 %v6039
  %v6112 = vpop.f32.mrf.mxu0
  %v6113 = vadd.f32 %v6033, %v6112
  %v6114 = vpop.f32.mrf.mxu0
  %6115 = vdwg.mxu0
  %6116 = vst.msk [vmem:[%s6] sm:$0xff] %vm1717, %v6108
  %6117 = vst.msk [vmem:[%s6 + $0x8] sm:$0xff] %vm1717, %v6113
  // Predicated region
  $region26: #{bitgatenet_forward.1} parent=0 // pred_check
    _
  $region27: #{bitgatenet_forward.1} parent=0 // pred_check_branch
    %6119 = sbr.rel (0) target = $region29
  $region28: #{bitgatenet_forward.1} parent=0 // pred_region
    _
  $region29: #{bitgatenet_forward.1} parent=0 // pred_fallthru
    _
  // Predicated region
  $region30: #{bitgatenet_forward.1} parent=0 // pred_check
    _
  $region31: #{bitgatenet_forward.1} parent=0 // pred_check_branch
    %6121 = sbr.rel (0) target = $region33
  $region32: #{bitgatenet_forward.1} parent=0 // pred_region
    _
  $region33: #{bitgatenet_forward.1} parent=0 // pred_fallthru
    _

</llo_original>
